<compile_context>
chip_gen: v5e
topology: v5e:2x2
jax: 0.10.0
libtpu: 0.0.40
codegen_flags: <defaults>
</compile_context>

<pallas_src>
import math

import jax
import jax.numpy as jnp
from jax import lax
from jax.experimental import pallas as pl
from jax.experimental.pallas import tpu as pltpu

# ----------------------------- model constants ------------------------------
N_NODES   = 111   # brain regions
F_IN      = 111   # input node feature dim (GCNConv(111, 64))
H1_DIM    = 64
H2_DIM    = 20
K_POOL    = 100   # ceil(0.9 * 111)  -> SAGPooling ratio k1 = 0.9
N_CLUST   = 56    # int(0.5 * 112)   -> ChebConv out dim, k2 = 0.5
EMB_DIM   = K_POOL * H2_DIM          # 2000, HPG input dim
NEG_SLOPE = 0.01                     # F.leaky_relu default
BN_EPS    = 1e-5
N_GRAPHS  = 4                        # small population for the demo

LEFT = jnp.array([6, 5, 55, 1, 98, 71, 73, 77, 63, 96, 79, 15, 104, 4, 25, 23, 41, 43, 45,
                  17, 61, 65, 59, 57, 86, 21, 35, 37, 39, 94, 110, 3, 69, 81, 84, 100, 102,
                  106, 47, 27, 75, 2, 67, 19, 49, 31, 33, 108, 51, 53, 88, 90, 92, 29, 0],
                 dtype=jnp.int32)
RIGHT = jnp.array([13, 12, 54, 8, 97, 70, 72, 76, 62, 95, 78, 14, 103, 11, 24, 22, 40, 42,
                   44, 16, 60, 64, 58, 56, 85, 20, 34, 36, 38, 93, 109, 10, 68, 80, 83, 99,
                   101, 105, 46, 26, 74, 9, 66, 18, 48, 30, 32, 107, 50, 52, 87, 89, 91, 28, 7],
                  dtype=jnp.int32)


# ------------------------------ kernel helpers -------------------------------
def _leaky(x):
    return jnp.where(x > 0, x, NEG_SLOPE * x)


def _dot(a, b):
    return jnp.dot(a, b, preferred_element_type=jnp.float32)


def _dot_t(a, b):
    # a @ b.T without materializing a transpose (MXU transposed-rhs path).
    return lax.dot_general(a, b, (((1,), (1,)), ((), ())),
                           preferred_element_type=jnp.float32)


def _bcast_cols(col, m):
    # col: (n, 1)  ->  (m, n) matrix with [i, j] = col[j]   (outer product, K=1 matmul)
    return _dot_t(jnp.ones((m, 1), jnp.float32), col)


def _softmax_last(x):
    m = jnp.max(x, axis=-1, keepdims=True)
    e = jnp.exp(x - m)
    s = jnp.sum(e, axis=-1, keepdims=True)
    return e * pl.reciprocal(s, approx=True)


# ------------------- fused per-graph brain-connectome kernel ------------------
def brain_kernel(adj_ref, x_ref, masks_ref, bias_ref,
                 w1_ref, w2_ref, wg_ref, wsc_ref, wcheb_ref,
                 out_ref):
    f32 = jnp.float32
    adj = adj_ref[0]                     # (111, 111) weighted adjacency
    x = x_ref[0]                         # (111, 111) node features
    masks = masks_ref[...]               # (111, 3): [left_mask | right_mask | ones]
    lm = masks[:, 0:1]
    rm = masks[:, 1:2]

    b = bias_ref[...]                    # (8, 64) packed biases
    bl1, br1 = b[0:1, :H1_DIM], b[1:2, :H1_DIM]
    bl2, br2 = b[2:3, :H2_DIM], b[3:4, :H2_DIM]
    bg1 = b[4:5, :H2_DIM]
    brel = b[5:6, 0:1]
    bc = b[6:7, :N_CLUST]

    # ---- GCNConv normalization, dinv-folded (no eye, no masked-adjacency copies) ----
    # degrees of [left-subgraph, right-subgraph, full graph] in ONE matvec; +1 for self loops.
    degs = _dot(adj, masks)                                   # (111, 3)
    dinv_l = lax.rsqrt(lm * degs[:, 0:1] + 1.0)
    dinv_r = lax.rsqrt(rm * degs[:, 1:2] + 1.0)
    dinv_g = lax.rsqrt(degs[:, 2:3] + 1.0)

    def prop_masked(h, dinv, m):
        # D^-1/2 (M A M + I) D^-1/2 @ h  ==  dinv*(m*(adj @ (m*dinv*h)) + dinv*h)
        hd = dinv * h
        return dinv * (m * _dot(adj, m * hd) + hd)

    def prop_full(h, dinv):
        hd = dinv * h
        return dinv * (_dot(adj, hd) + hd)

    # GCNConv(111,64) per hemisphere, merged via 0/1 mask columns (no scatter)
    w1 = w1_ref[...]                                          # (111, 128) = [Wl1 | Wr1]
    nf1 = (lm * _leaky(_dot(prop_masked(x, dinv_l, lm), w1[:, :H1_DIM]) + bl1)
           + rm * _leaky(_dot(prop_masked(x, dinv_r, rm), w1[:, H1_DIM:]) + br1))   # (111, 64)

    # GCNConv(64,20) per hemisphere
    w2 = w2_ref[...]                                          # (64, 40) = [Wl2 | Wr2]
    nf2 = (lm * _leaky(_dot(prop_masked(nf1, dinv_l, lm), w2[:, :H2_DIM]) + bl2)
           + rm * _leaky(_dot(prop_masked(nf1, dinv_r, rm), w2[:, H2_DIM:]) + br2))  # (111, 20)

    # global GCNConv(20,20)
    nf2 = _leaky(_dot(prop_full(nf2, dinv_g), wg_ref[...]) + bg1)                    # (111, 20)

    # ---- SAGPooling(20, 0.9): score = GraphConv(20,1); top-k=100; gate = tanh(score) ----
    wsc = wsc_ref[...]                                        # (20, 2) = [Wrel | Wroot]
    score = _dot(_dot(adj, nf2), wsc[:, 0:1]) + _dot(nf2, wsc[:, 1:2]) + brel        # (111, 1)

    # top-k via pairwise ranking (rank == position in descending sort, ties -> lower index)
    i_idx = lax.broadcasted_iota(jnp.int32, (N_NODES, N_NODES), 0)
    j_idx = lax.broadcasted_iota(jnp.int32, (N_NODES, N_NODES), 1)
    s_i = jnp.broadcast_to(score, (N_NODES, N_NODES))         # [i, j] = s[i]  (pure broadcast)
    s_j = _bcast_cols(score, N_NODES)                         # [i, j] = s[j]
    beats = (s_j > s_i) | ((s_j == s_i) & (j_idx < i_idx))
    rank = jnp.sum(beats.astype(f32), axis=1, keepdims=True)  # (111, 1), exact ints

    rank_b = _bcast_cols(rank, N_NODES)                       # [i, j] = rank[j]
    p_pad = ((rank_b == i_idx.astype(f32)) & (i_idx < K_POOL)).astype(f32)   # (111, 111)
    p100 = p_pad[:K_POOL, :]                                  # (100, 111) view of the top rows

    pooled_x = _dot(p100, nf2) * jnp.tanh(_dot(p100, score))  # (100, 20) = x[perm]*tanh(score)

    # ---- ChebConv(20, 56, K=3, sym, lambda_max=2) on pooled+relabelled unweighted edges ----
    # (faithfully reproduces the reference's pooled-index-space edges applied to the full
    #  111-node feature matrix)
    a_bin = (adj > 0).astype(f32)
    a_pad = _dot_t(_dot(p_pad, a_bin), p_pad)                 # top-left 100x100 = adj[perm][:,perm]>0
    deg_c = jnp.sum(a_pad, axis=1, keepdims=True)
    dinv_c = jnp.where(deg_c > 0, lax.rsqrt(jnp.maximum(deg_c, 1e-12)), 0.0)

    def cheb_prop(y):                                         # L_hat @ y = -(D^-1/2 A D^-1/2) y
        return -(dinv_c * _dot(a_pad, dinv_c * y))

    t1 = cheb_prop(nf2)
    t2 = 2.0 * cheb_prop(t1) - nf2
    cheb_out = (_dot(nf2, wcheb_ref[0]) + _dot(t1, wcheb_ref[1])
                + _dot(t2, wcheb_ref[2]) + bc)                # (111, 56), 3 accumulated matmuls
    ass = _softmax_last(cheb_out)
    s2 = _softmax_last(ass)                                   # dense_diff_pool re-applies softmax

    # ---- inter_channel_adj: rows of `ass` at node ids < 110 that are in perm (ascending id) ----
    idx_col = lax.broadcasted_iota(jnp.int32, (N_NODES, 1), 0)
    keep = ((rank < float(K_POOL)) & (idx_col < 110)).astype(f32)            # (111, 1)
    # TODO(synk): inclusive prefix-sum via a triangular matvec; replace with cumsum/roll scan
    # if/when that lowers cleanly in Mosaic.
    tri = (j_idx <= i_idx).astype(f32)
    dest = _dot(tri, keep) - 1.0                              # compacted row index
    dest = jnp.where(keep > 0, dest, -1.0)
    r100 = lax.broadcasted_iota(jnp.int32, (K_POOL, N_NODES), 0).astype(f32)
    q_sel = (r100 == _bcast_cols(dest, K_POOL)).astype(f32)   # (100, 111)
    ica = _dot(q_sel, ass)                                    # (100, 56)

    # H1 = ica @ (s2^T @ nf2), computed as (ica @ s2^T) @ nf2 to avoid a transposed-LHS matmul
    h1 = _dot(_dot_t(ica, s2), nf2)                           # (100, 20)
    out_ref[0] = pooled_x + h1                                # flattened to 2000 outside


def brain_forward_batched(p, adjs, feats):
    """All brain graphs in ONE pallas_call; returns (G, 100, 20) per-graph H2."""
    g = adjs.shape[0]
    left = jnp.zeros((N_NODES,), jnp.float32).at[LEFT].set(1.0)
    right = jnp.zeros((N_NODES,), jnp.float32).at[RIGHT].set(1.0)
    masks = jnp.stack([left, right, jnp.ones((N_NODES,), jnp.float32)], axis=1)  # (111, 3)

    shared_args = (masks, p["biases"], p["w1_lr"], p["w2_lr"],
                   p["wg1"], p["wsc"], p["wcheb"])

    per_graph = pl.BlockSpec((1, N_NODES, N_NODES), lambda i: (i, 0, 0))

    def shared(arr):
        zeros = (0,) * arr.ndim
        return pl.BlockSpec(arr.shape, lambda i: zeros)

    return pl.pallas_call(
        brain_kernel,
        out_shape=jax.ShapeDtypeStruct((g, K_POOL, H2_DIM), jnp.float32),
        grid=(g,),
        in_specs=[per_graph, per_graph] + [shared(a) for a in shared_args],
        out_specs=pl.BlockSpec((1, K_POOL, H2_DIM), lambda i: (i, 0, 0)),
        compiler_params=pltpu.CompilerParams(dimension_semantics=("parallel",)),
    )(adjs, feats, *shared_args)


# ----------------------------- fused HPG head kernel --------------------------
def hpg_kernel(x_ref, ms_ref, md_ref,
               w0_ref, b0_ref, wr_ref, br_ref, wo_ref, bo_ref, out_ref):
    inv_sqrt_d = 1.0 / math.sqrt(float(H2_DIM))
    bn_scale = 1.0 / math.sqrt(1.0 + BN_EPS)       # eval-mode BatchNorm1d (running stats 0/1)
    w_same = 0.8 / (0.8 + 0.2)
    w_diff = 0.2 / (0.8 + 0.2)

    ms = ms_ref[...]
    md = md_ref[...]

    def attn_head(qkvs, mask):
        # PyG TransformerConv (heads=1) given a packed Q|K|V|skip projection (G, 80).
        q = qkvs[:, 0 * H2_DIM:1 * H2_DIM]
        k = qkvs[:, 1 * H2_DIM:2 * H2_DIM]
        v = qkvs[:, 2 * H2_DIM:3 * H2_DIM]
        skip = qkvs[:, 3 * H2_DIM:4 * H2_DIM]
        scores = _dot_t(q, k) * inv_sqrt_d                    # (G, G)
        masked = jnp.where(mask > 0, scores, jnp.float32(-1e30))
        m = jnp.max(masked, axis=-1, keepdims=True)
        p = jnp.exp(masked - m) * mask
        denom = jnp.maximum(jnp.sum(p, axis=-1, keepdims=True), 1e-16)
        attn = p * pl.reciprocal(denom, approx=True)
        return skip + _dot(attn, v)

    x = x_ref[...]                                            # (G, 2000)
    acc = jnp.zeros((x.shape[0], 2), jnp.float32) + bo_ref[...]     # out_fc bias
    for layer in range(4):
        # both convs of this layer share one packed projection (single K=fin MXU pass)
        if layer == 0:
            qkvs = _dot(x, w0_ref[...]) + b0_ref[...]         # (G, 160) = [same 80 | diff 80]
        else:
            qkvs = _dot(x, wr_ref[layer - 1]) + br_ref[layer - 1]
        x1 = attn_head(qkvs[:, :4 * H2_DIM], ms)
        x2 = attn_head(qkvs[:, 4 * H2_DIM:], md)
        x = _leaky((w_same * x1 + w_diff * x2) * bn_scale)    # blend + BN(eval) + leaky
        # out_fc(concat(fc)) == sum over layers of x_layer @ Wout[20*l : 20*(l+1)]
        acc = acc + _dot(x, wo_ref[layer])
    out_ref[...] = acc


def hpg_forward(p, embeddings, mask_same, mask_diff):
    g = embeddings.shape[0]
    args = (embeddings, mask_same, mask_diff,
            p["w0"], p["b0"], p["wr"], p["br"], p["wout"], p["bout"])
    return pl.pallas_call(
        hpg_kernel,
        out_shape=jax.ShapeDtypeStruct((g, 2), jnp.float32),
        in_specs=[pl.BlockSpec(memory_space=pltpu.MemorySpace.VMEM)] * len(args),
        out_specs=pl.BlockSpec(memory_space=pltpu.MemorySpace.VMEM),
    )(*args)


def fc_hgnn_forward(params, adjs, feats, mask_same, mask_diff):
    h2 = brain_forward_batched(params["brain"], adjs, feats)  # (G, 100, 20)
    embeddings = h2.reshape(adjs.shape[0], EMB_DIM)           # row-major == torch .view(1,-1)
    return hpg_forward(params["hpg"], embeddings, mask_same, mask_diff)


# ------------------------------ parameter init --------------------------------
def init_params(key):
    ks = iter(jax.random.split(key, 32))

    def rnd(shape, scale=0.1):
        return scale * jax.random.normal(next(ks), shape, dtype=jnp.float32)

    # packed bias slab: one (8, 64)-word VMEM window instead of 7 separate tiny refs
    biases = jnp.zeros((8, 64), jnp.float32)
    biases = biases.at[0, :H1_DIM].set(rnd((H1_DIM,), 0.02))      # bl1
    biases = biases.at[1, :H1_DIM].set(rnd((H1_DIM,), 0.02))      # br1
    biases = biases.at[2, :H2_DIM].set(rnd((H2_DIM,), 0.02))      # bl2
    biases = biases.at[3, :H2_DIM].set(rnd((H2_DIM,), 0.02))      # br2
    biases = biases.at[4, :H2_DIM].set(rnd((H2_DIM,), 0.02))      # bg1
    biases = biases.at[5, 0].set(0.01)                            # brel (GraphConv bias)
    biases = biases.at[6, :N_CLUST].set(rnd((N_CLUST,), 0.02))    # bc (ChebConv bias)

    brain = {
        "biases": biases,
        # left|right GCN weights packed along lanes
        "w1_lr": jnp.concatenate([rnd((F_IN, H1_DIM)), rnd((F_IN, H1_DIM))], axis=1),   # (111,128)
        "w2_lr": jnp.concatenate([rnd((H1_DIM, H2_DIM)), rnd((H1_DIM, H2_DIM))], axis=1),  # (64,40)
        "wg1": rnd((H2_DIM, H2_DIM)),
        "wsc": rnd((H2_DIM, 2)),                 # [Wrel | Wroot] of the SAGPooling GraphConv
        "wcheb": rnd((3, H2_DIM, N_CLUST)),      # ChebConv K=3 weights [W0, W1, W2]
    }

    hpg = {
        # layer 0: both TransformerConvs' Q|K|V|skip projections packed -> (2000, 160)
        "w0": rnd((EMB_DIM, 8 * H2_DIM), 0.05),
        "b0": rnd((1, 8 * H2_DIM), 0.02),
        # layers 1..3: packed (20, 160) projections
        "wr": rnd((3, H2_DIM, 8 * H2_DIM)),
        "br": rnd((3, 1, 8 * H2_DIM), 0.02),
        # out_fc (80, 2) split per 20-wide layer chunk so fc never has to be concatenated
        "wout": rnd((4, H2_DIM, 2)),
        "bout": rnd((1, 2), 0.02),
    }
    return {"brain": brain, "hpg": hpg}


# ----------------------------------- main --------------------------------------
if __name__ == "__main__":
    key = jax.random.PRNGKey(0)
    kp, ka, kf = jax.random.split(key, 3)
    params = init_params(kp)

    # deterministic synthetic per-subject brain graphs
    a = jax.random.uniform(ka, (N_GRAPHS, N_NODES, N_NODES), dtype=jnp.float32)
    adjs = 0.5 * (a + jnp.swapaxes(a, 1, 2))                  # symmetric weighted adjacency
    adjs = adjs * (1.0 - jnp.eye(N_NODES, dtype=jnp.float32))
    feats = jax.random.normal(kf, (N_GRAPHS, N_NODES, F_IN), dtype=jnp.float32)

    # TODO(synk): dataloader().get_inputs builds same/diff population edges from non-imaging
    # data + phonetic scores; synthesized deterministically here instead.
    same_edges = jnp.array([[0, 1, 1, 2, 2, 3, 3, 0],
                            [1, 0, 2, 1, 3, 2, 0, 3]], dtype=jnp.int32)
    diff_edges = jnp.array([[0, 2, 1, 3],
                            [2, 0, 3, 1]], dtype=jnp.int32)

    def edges_to_mask(edge_index, n):
        src, dst = edge_index
        return jnp.zeros((n, n), jnp.float32).at[dst, src].set(1.0)

    mask_same = edges_to_mask(same_edges, N_GRAPHS)
    mask_diff = edges_to_mask(diff_edges, N_GRAPHS)

    fwd = jax.jit(fc_hgnn_forward)
    preds = fwd(params, adjs, feats, mask_same, mask_diff)
    jax.block_until_ready(preds)
    assert preds.shape == (N_GRAPHS, 2) and preds.dtype == jnp.float32
    assert bool(jnp.all(jnp.isfinite(preds)))
    print("KERNEL_OK")
</pallas_src>

<mosaic_0001>
module attributes {stable_mosaic.version = 11 : i64} {
  func.func @hpg_kernel(%arg0: memref<4x2000xf32, #tpu.memory_space<vmem>>, %arg1: memref<4x4xf32, #tpu.memory_space<vmem>>, %arg2: memref<4x4xf32, #tpu.memory_space<vmem>>, %arg3: memref<2000x160xf32, #tpu.memory_space<vmem>>, %arg4: memref<1x160xf32, #tpu.memory_space<vmem>>, %arg5: memref<3x20x160xf32, #tpu.memory_space<vmem>>, %arg6: memref<3x1x160xf32, #tpu.memory_space<vmem>>, %arg7: memref<4x20x2xf32, #tpu.memory_space<vmem>>, %arg8: memref<1x2xf32, #tpu.memory_space<vmem>>, %arg9: memref<4x2xf32, #tpu.memory_space<vmem>>) attributes {dimension_semantics = [], scalar_prefetch = 0 : i64, scratch_operands = 0 : i64, tpu.core_type = #tpu.core_type<tc>} {
    %c0 = arith.constant 0 : index
    %c0_0 = arith.constant 0 : index
    %0 = vector.load %arg1[%c0, %c0_0] : memref<4x4xf32, #tpu.memory_space<vmem>>, vector<4x4xf32>
    %c0_1 = arith.constant 0 : index
    %c0_2 = arith.constant 0 : index
    %1 = vector.load %arg2[%c0_1, %c0_2] : memref<4x4xf32, #tpu.memory_space<vmem>>, vector<4x4xf32>
    %c0_3 = arith.constant 0 : index
    %c0_4 = arith.constant 0 : index
    %2 = vector.load %arg0[%c0_3, %c0_4] : memref<4x2000xf32, #tpu.memory_space<vmem>>, vector<4x2000xf32>
    %cst = arith.constant 0.000000e+00 : f32
    %3 = vector.broadcast %cst : f32 to vector<4x2xf32>
    %c0_5 = arith.constant 0 : index
    %c0_6 = arith.constant 0 : index
    %4 = vector.load %arg8[%c0_5, %c0_6] : memref<1x2xf32, #tpu.memory_space<vmem>>, vector<1x2xf32>
    %5 = vector.broadcast %4 : vector<1x2xf32> to vector<4x2xf32>
    %6 = arith.addf %3, %5 : vector<4x2xf32>
    %c0_7 = arith.constant 0 : index
    %c0_8 = arith.constant 0 : index
    %7 = vector.load %arg3[%c0_7, %c0_8] : memref<2000x160xf32, #tpu.memory_space<vmem>>, vector<2000x160xf32>
    %cst_9 = arith.constant dense<0.000000e+00> : vector<4x160xf32>
    %8 = tpu.matmul %2, %7, %cst_9 {dimension_numbers = #tpu.dot_dimension_numbers<[1], [0], [0], [1], [0, 0, 1, 1], [], []>} : vector<4x2000xf32>, vector<2000x160xf32>, vector<4x160xf32> -> vector<4x160xf32>
    %c0_10 = arith.constant 0 : index
    %c0_11 = arith.constant 0 : index
    %9 = vector.load %arg4[%c0_10, %c0_11] : memref<1x160xf32, #tpu.memory_space<vmem>>, vector<1x160xf32>
    %10 = vector.broadcast %9 : vector<1x160xf32> to vector<4x160xf32>
    %11 = arith.addf %8, %10 : vector<4x160xf32>
    %12 = vector.extract_strided_slice %11 {offsets = [0, 0], sizes = [4, 80], strides = [1, 1]} : vector<4x160xf32> to vector<4x80xf32>
    %13 = vector.extract_strided_slice %12 {offsets = [0, 0], sizes = [4, 20], strides = [1, 1]} : vector<4x80xf32> to vector<4x20xf32>
    %14 = vector.extract_strided_slice %12 {offsets = [0, 20], sizes = [4, 20], strides = [1, 1]} : vector<4x80xf32> to vector<4x20xf32>
    %15 = vector.extract_strided_slice %12 {offsets = [0, 40], sizes = [4, 20], strides = [1, 1]} : vector<4x80xf32> to vector<4x20xf32>
    %16 = vector.extract_strided_slice %12 {offsets = [0, 60], sizes = [4, 20], strides = [1, 1]} : vector<4x80xf32> to vector<4x20xf32>
    %cst_12 = arith.constant dense<0.000000e+00> : vector<4x4xf32>
    %17 = tpu.matmul %13, %14, %cst_12 {dimension_numbers = #tpu.dot_dimension_numbers<[1], [1], [0], [0], [0, 0, 1, 0], [], []>} : vector<4x20xf32>, vector<4x20xf32>, vector<4x4xf32> -> vector<4x4xf32>
    %cst_13 = arith.constant 0.223606795 : f32
    %18 = vector.broadcast %cst_13 : f32 to vector<4x4xf32>
    %19 = arith.mulf %17, %18 : vector<4x4xf32>
    %cst_14 = arith.constant 0.000000e+00 : f32
    %20 = vector.broadcast %cst_14 : f32 to vector<4x4xf32>
    %21 = arith.cmpf ogt, %0, %20 : vector<4x4xf32>
    %cst_15 = arith.constant -1.000000e+30 : f32
    %22 = vector.broadcast %cst_15 : f32 to vector<4x4xf32>
    %23 = arith.select %21, %19, %22 : vector<4x4xi1>, vector<4x4xf32>
    %cst_16 = arith.constant dense<0xFF800000> : vector<4xf32>
    %24 = vector.multi_reduction <maximumf>, %23, %cst_16 [1] : vector<4x4xf32> to vector<4xf32>
    %25 = vector.shape_cast %24 : vector<4xf32> to vector<4x1xf32>
    %26 = vector.broadcast %25 : vector<4x1xf32> to vector<4x4xf32>
    %27 = arith.subf %23, %26 : vector<4x4xf32>
    %28 = math.exp %27 : vector<4x4xf32>
    %29 = arith.mulf %28, %0 : vector<4x4xf32>
    %cst_17 = arith.constant dense<0.000000e+00> : vector<4xf32>
    %30 = vector.multi_reduction <add>, %29, %cst_17 [1] : vector<4x4xf32> to vector<4xf32>
    %31 = vector.shape_cast %30 : vector<4xf32> to vector<4x1xf32>
    %cst_18 = arith.constant 1.000000e-16 : f32
    %32 = vector.broadcast %cst_18 : f32 to vector<4x1xf32>
    %33 = arith.maximumf %31, %32 : vector<4x1xf32>
    %34 = tpu.reciprocal %33 {approx = true} : vector<4x1xf32> -> vector<4x1xf32>
    %35 = vector.broadcast %34 : vector<4x1xf32> to vector<4x4xf32>
    %36 = arith.mulf %29, %35 : vector<4x4xf32>
    %cst_19 = arith.constant dense<0.000000e+00> : vector<4x20xf32>
    %37 = tpu.matmul %36, %15, %cst_19 {dimension_numbers = #tpu.dot_dimension_numbers<[1], [0], [0], [1], [0, 0, 1, 1], [], []>} : vector<4x4xf32>, vector<4x20xf32>, vector<4x20xf32> -> vector<4x20xf32>
    %38 = arith.addf %16, %37 : vector<4x20xf32>
    %39 = vector.extract_strided_slice %11 {offsets = [0, 80], sizes = [4, 80], strides = [1, 1]} : vector<4x160xf32> to vector<4x80xf32>
    %40 = vector.extract_strided_slice %39 {offsets = [0, 0], sizes = [4, 20], strides = [1, 1]} : vector<4x80xf32> to vector<4x20xf32>
    %41 = vector.extract_strided_slice %39 {offsets = [0, 20], sizes = [4, 20], strides = [1, 1]} : vector<4x80xf32> to vector<4x20xf32>
    %42 = vector.extract_strided_slice %39 {offsets = [0, 40], sizes = [4, 20], strides = [1, 1]} : vector<4x80xf32> to vector<4x20xf32>
    %43 = vector.extract_strided_slice %39 {offsets = [0, 60], sizes = [4, 20], strides = [1, 1]} : vector<4x80xf32> to vector<4x20xf32>
    %cst_20 = arith.constant dense<0.000000e+00> : vector<4x4xf32>
    %44 = tpu.matmul %40, %41, %cst_20 {dimension_numbers = #tpu.dot_dimension_numbers<[1], [1], [0], [0], [0, 0, 1, 0], [], []>} : vector<4x20xf32>, vector<4x20xf32>, vector<4x4xf32> -> vector<4x4xf32>
    %cst_21 = arith.constant 0.223606795 : f32
    %45 = vector.broadcast %cst_21 : f32 to vector<4x4xf32>
    %46 = arith.mulf %44, %45 : vector<4x4xf32>
    %cst_22 = arith.constant 0.000000e+00 : f32
    %47 = vector.broadcast %cst_22 : f32 to vector<4x4xf32>
    %48 = arith.cmpf ogt, %1, %47 : vector<4x4xf32>
    %cst_23 = arith.constant -1.000000e+30 : f32
    %49 = vector.broadcast %cst_23 : f32 to vector<4x4xf32>
    %50 = arith.select %48, %46, %49 : vector<4x4xi1>, vector<4x4xf32>
    %cst_24 = arith.constant dense<0xFF800000> : vector<4xf32>
    %51 = vector.multi_reduction <maximumf>, %50, %cst_24 [1] : vector<4x4xf32> to vector<4xf32>
    %52 = vector.shape_cast %51 : vector<4xf32> to vector<4x1xf32>
    %53 = vector.broadcast %52 : vector<4x1xf32> to vector<4x4xf32>
    %54 = arith.subf %50, %53 : vector<4x4xf32>
    %55 = math.exp %54 : vector<4x4xf32>
    %56 = arith.mulf %55, %1 : vector<4x4xf32>
    %cst_25 = arith.constant dense<0.000000e+00> : vector<4xf32>
    %57 = vector.multi_reduction <add>, %56, %cst_25 [1] : vector<4x4xf32> to vector<4xf32>
    %58 = vector.shape_cast %57 : vector<4xf32> to vector<4x1xf32>
    %cst_26 = arith.constant 1.000000e-16 : f32
    %59 = vector.broadcast %cst_26 : f32 to vector<4x1xf32>
    %60 = arith.maximumf %58, %59 : vector<4x1xf32>
    %61 = tpu.reciprocal %60 {approx = true} : vector<4x1xf32> -> vector<4x1xf32>
    %62 = vector.broadcast %61 : vector<4x1xf32> to vector<4x4xf32>
    %63 = arith.mulf %56, %62 : vector<4x4xf32>
    %cst_27 = arith.constant dense<0.000000e+00> : vector<4x20xf32>
    %64 = tpu.matmul %63, %42, %cst_27 {dimension_numbers = #tpu.dot_dimension_numbers<[1], [0], [0], [1], [0, 0, 1, 1], [], []>} : vector<4x4xf32>, vector<4x20xf32>, vector<4x20xf32> -> vector<4x20xf32>
    %65 = arith.addf %43, %64 : vector<4x20xf32>
    %cst_28 = arith.constant 8.000000e-01 : f32
    %66 = vector.broadcast %cst_28 : f32 to vector<4x20xf32>
    %67 = arith.mulf %66, %38 : vector<4x20xf32>
    %cst_29 = arith.constant 2.000000e-01 : f32
    %68 = vector.broadcast %cst_29 : f32 to vector<4x20xf32>
    %69 = arith.mulf %68, %65 : vector<4x20xf32>
    %70 = arith.addf %67, %69 : vector<4x20xf32>
    %cst_30 = arith.constant 0.999994993 : f32
    %71 = vector.broadcast %cst_30 : f32 to vector<4x20xf32>
    %72 = arith.mulf %70, %71 : vector<4x20xf32>
    %cst_31 = arith.constant 0.000000e+00 : f32
    %73 = vector.broadcast %cst_31 : f32 to vector<4x20xf32>
    %74 = arith.cmpf ogt, %72, %73 : vector<4x20xf32>
    %cst_32 = arith.constant 0.00999999977 : f32
    %75 = vector.broadcast %cst_32 : f32 to vector<4x20xf32>
    %76 = arith.mulf %75, %72 : vector<4x20xf32>
    %77 = arith.select %74, %72, %76 : vector<4x20xi1>, vector<4x20xf32>
    %c0_33 = arith.constant 0 : index
    %c0_34 = arith.constant 0 : index
    %c0_35 = arith.constant 0 : index
    %78 = vector.load %arg7[%c0_33, %c0_34, %c0_35] : memref<4x20x2xf32, #tpu.memory_space<vmem>>, vector<1x20x2xf32>
    %79 = vector.shape_cast %78 : vector<1x20x2xf32> to vector<20x2xf32>
    %cst_36 = arith.constant dense<0.000000e+00> : vector<4x2xf32>
    %80 = tpu.matmul %77, %79, %cst_36 {dimension_numbers = #tpu.dot_dimension_numbers<[1], [0], [0], [1], [0, 0, 1, 1], [], []>} : vector<4x20xf32>, vector<20x2xf32>, vector<4x2xf32> -> vector<4x2xf32>
    %81 = arith.addf %6, %80 : vector<4x2xf32>
    %c0_37 = arith.constant 0 : index
    %c0_38 = arith.constant 0 : index
    %c0_39 = arith.constant 0 : index
    %82 = vector.load %arg5[%c0_37, %c0_38, %c0_39] : memref<3x20x160xf32, #tpu.memory_space<vmem>>, vector<1x20x160xf32>
    %83 = vector.shape_cast %82 : vector<1x20x160xf32> to vector<20x160xf32>
    %cst_40 = arith.constant dense<0.000000e+00> : vector<4x160xf32>
    %84 = tpu.matmul %77, %83, %cst_40 {dimension_numbers = #tpu.dot_dimension_numbers<[1], [0], [0], [1], [0, 0, 1, 1], [], []>} : vector<4x20xf32>, vector<20x160xf32>, vector<4x160xf32> -> vector<4x160xf32>
    %c0_41 = arith.constant 0 : index
    %c0_42 = arith.constant 0 : index
    %c0_43 = arith.constant 0 : index
    %85 = vector.load %arg6[%c0_41, %c0_42, %c0_43] : memref<3x1x160xf32, #tpu.memory_space<vmem>>, vector<1x1x160xf32>
    %86 = vector.shape_cast %85 : vector<1x1x160xf32> to vector<1x160xf32>
    %87 = vector.broadcast %86 : vector<1x160xf32> to vector<4x160xf32>
    %88 = arith.addf %84, %87 : vector<4x160xf32>
    %89 = vector.extract_strided_slice %88 {offsets = [0, 0], sizes = [4, 80], strides = [1, 1]} : vector<4x160xf32> to vector<4x80xf32>
    %90 = vector.extract_strided_slice %89 {offsets = [0, 0], sizes = [4, 20], strides = [1, 1]} : vector<4x80xf32> to vector<4x20xf32>
    %91 = vector.extract_strided_slice %89 {offsets = [0, 20], sizes = [4, 20], strides = [1, 1]} : vector<4x80xf32> to vector<4x20xf32>
    %92 = vector.extract_strided_slice %89 {offsets = [0, 40], sizes = [4, 20], strides = [1, 1]} : vector<4x80xf32> to vector<4x20xf32>
    %93 = vector.extract_strided_slice %89 {offsets = [0, 60], sizes = [4, 20], strides = [1, 1]} : vector<4x80xf32> to vector<4x20xf32>
    %cst_44 = arith.constant dense<0.000000e+00> : vector<4x4xf32>
    %94 = tpu.matmul %90, %91, %cst_44 {dimension_numbers = #tpu.dot_dimension_numbers<[1], [1], [0], [0], [0, 0, 1, 0], [], []>} : vector<4x20xf32>, vector<4x20xf32>, vector<4x4xf32> -> vector<4x4xf32>
    %cst_45 = arith.constant 0.223606795 : f32
    %95 = vector.broadcast %cst_45 : f32 to vector<4x4xf32>
    %96 = arith.mulf %94, %95 : vector<4x4xf32>
    %cst_46 = arith.constant 0.000000e+00 : f32
    %97 = vector.broadcast %cst_46 : f32 to vector<4x4xf32>
    %98 = arith.cmpf ogt, %0, %97 : vector<4x4xf32>
    %cst_47 = arith.constant -1.000000e+30 : f32
    %99 = vector.broadcast %cst_47 : f32 to vector<4x4xf32>
    %100 = arith.select %98, %96, %99 : vector<4x4xi1>, vector<4x4xf32>
    %cst_48 = arith.constant dense<0xFF800000> : vector<4xf32>
    %101 = vector.multi_reduction <maximumf>, %100, %cst_48 [1] : vector<4x4xf32> to vector<4xf32>
    %102 = vector.shape_cast %101 : vector<4xf32> to vector<4x1xf32>
    %103 = vector.broadcast %102 : vector<4x1xf32> to vector<4x4xf32>
    %104 = arith.subf %100, %103 : vector<4x4xf32>
    %105 = math.exp %104 : vector<4x4xf32>
    %106 = arith.mulf %105, %0 : vector<4x4xf32>
    %cst_49 = arith.constant dense<0.000000e+00> : vector<4xf32>
    %107 = vector.multi_reduction <add>, %106, %cst_49 [1] : vector<4x4xf32> to vector<4xf32>
    %108 = vector.shape_cast %107 : vector<4xf32> to vector<4x1xf32>
    %cst_50 = arith.constant 1.000000e-16 : f32
    %109 = vector.broadcast %cst_50 : f32 to vector<4x1xf32>
    %110 = arith.maximumf %108, %109 : vector<4x1xf32>
    %111 = tpu.reciprocal %110 {approx = true} : vector<4x1xf32> -> vector<4x1xf32>
    %112 = vector.broadcast %111 : vector<4x1xf32> to vector<4x4xf32>
    %113 = arith.mulf %106, %112 : vector<4x4xf32>
    %cst_51 = arith.constant dense<0.000000e+00> : vector<4x20xf32>
    %114 = tpu.matmul %113, %92, %cst_51 {dimension_numbers = #tpu.dot_dimension_numbers<[1], [0], [0], [1], [0, 0, 1, 1], [], []>} : vector<4x4xf32>, vector<4x20xf32>, vector<4x20xf32> -> vector<4x20xf32>
    %115 = arith.addf %93, %114 : vector<4x20xf32>
    %116 = vector.extract_strided_slice %88 {offsets = [0, 80], sizes = [4, 80], strides = [1, 1]} : vector<4x160xf32> to vector<4x80xf32>
    %117 = vector.extract_strided_slice %116 {offsets = [0, 0], sizes = [4, 20], strides = [1, 1]} : vector<4x80xf32> to vector<4x20xf32>
    %118 = vector.extract_strided_slice %116 {offsets = [0, 20], sizes = [4, 20], strides = [1, 1]} : vector<4x80xf32> to vector<4x20xf32>
    %119 = vector.extract_strided_slice %116 {offsets = [0, 40], sizes = [4, 20], strides = [1, 1]} : vector<4x80xf32> to vector<4x20xf32>
    %120 = vector.extract_strided_slice %116 {offsets = [0, 60], sizes = [4, 20], strides = [1, 1]} : vector<4x80xf32> to vector<4x20xf32>
    %cst_52 = arith.constant dense<0.000000e+00> : vector<4x4xf32>
    %121 = tpu.matmul %117, %118, %cst_52 {dimension_numbers = #tpu.dot_dimension_numbers<[1], [1], [0], [0], [0, 0, 1, 0], [], []>} : vector<4x20xf32>, vector<4x20xf32>, vector<4x4xf32> -> vector<4x4xf32>
    %cst_53 = arith.constant 0.223606795 : f32
    %122 = vector.broadcast %cst_53 : f32 to vector<4x4xf32>
    %123 = arith.mulf %121, %122 : vector<4x4xf32>
    %cst_54 = arith.constant 0.000000e+00 : f32
    %124 = vector.broadcast %cst_54 : f32 to vector<4x4xf32>
    %125 = arith.cmpf ogt, %1, %124 : vector<4x4xf32>
    %cst_55 = arith.constant -1.000000e+30 : f32
    %126 = vector.broadcast %cst_55 : f32 to vector<4x4xf32>
    %127 = arith.select %125, %123, %126 : vector<4x4xi1>, vector<4x4xf32>
    %cst_56 = arith.constant dense<0xFF800000> : vector<4xf32>
    %128 = vector.multi_reduction <maximumf>, %127, %cst_56 [1] : vector<4x4xf32> to vector<4xf32>
    %129 = vector.shape_cast %128 : vector<4xf32> to vector<4x1xf32>
    %130 = vector.broadcast %129 : vector<4x1xf32> to vector<4x4xf32>
    %131 = arith.subf %127, %130 : vector<4x4xf32>
    %132 = math.exp %131 : vector<4x4xf32>
    %133 = arith.mulf %132, %1 : vector<4x4xf32>
    %cst_57 = arith.constant dense<0.000000e+00> : vector<4xf32>
    %134 = vector.multi_reduction <add>, %133, %cst_57 [1] : vector<4x4xf32> to vector<4xf32>
    %135 = vector.shape_cast %134 : vector<4xf32> to vector<4x1xf32>
    %cst_58 = arith.constant 1.000000e-16 : f32
    %136 = vector.broadcast %cst_58 : f32 to vector<4x1xf32>
    %137 = arith.maximumf %135, %136 : vector<4x1xf32>
    %138 = tpu.reciprocal %137 {approx = true} : vector<4x1xf32> -> vector<4x1xf32>
    %139 = vector.broadcast %138 : vector<4x1xf32> to vector<4x4xf32>
    %140 = arith.mulf %133, %139 : vector<4x4xf32>
    %cst_59 = arith.constant dense<0.000000e+00> : vector<4x20xf32>
    %141 = tpu.matmul %140, %119, %cst_59 {dimension_numbers = #tpu.dot_dimension_numbers<[1], [0], [0], [1], [0, 0, 1, 1], [], []>} : vector<4x4xf32>, vector<4x20xf32>, vector<4x20xf32> -> vector<4x20xf32>
    %142 = arith.addf %120, %141 : vector<4x20xf32>
    %cst_60 = arith.constant 8.000000e-01 : f32
    %143 = vector.broadcast %cst_60 : f32 to vector<4x20xf32>
    %144 = arith.mulf %143, %115 : vector<4x20xf32>
    %cst_61 = arith.constant 2.000000e-01 : f32
    %145 = vector.broadcast %cst_61 : f32 to vector<4x20xf32>
    %146 = arith.mulf %145, %142 : vector<4x20xf32>
    %147 = arith.addf %144, %146 : vector<4x20xf32>
    %cst_62 = arith.constant 0.999994993 : f32
    %148 = vector.broadcast %cst_62 : f32 to vector<4x20xf32>
    %149 = arith.mulf %147, %148 : vector<4x20xf32>
    %cst_63 = arith.constant 0.000000e+00 : f32
    %150 = vector.broadcast %cst_63 : f32 to vector<4x20xf32>
    %151 = arith.cmpf ogt, %149, %150 : vector<4x20xf32>
    %cst_64 = arith.constant 0.00999999977 : f32
    %152 = vector.broadcast %cst_64 : f32 to vector<4x20xf32>
    %153 = arith.mulf %152, %149 : vector<4x20xf32>
    %154 = arith.select %151, %149, %153 : vector<4x20xi1>, vector<4x20xf32>
    %c1 = arith.constant 1 : index
    %c0_65 = arith.constant 0 : index
    %c0_66 = arith.constant 0 : index
    %155 = vector.load %arg7[%c1, %c0_65, %c0_66] : memref<4x20x2xf32, #tpu.memory_space<vmem>>, vector<1x20x2xf32>
    %156 = vector.shape_cast %155 : vector<1x20x2xf32> to vector<20x2xf32>
    %cst_67 = arith.constant dense<0.000000e+00> : vector<4x2xf32>
    %157 = tpu.matmul %154, %156, %cst_67 {dimension_numbers = #tpu.dot_dimension_numbers<[1], [0], [0], [1], [0, 0, 1, 1], [], []>} : vector<4x20xf32>, vector<20x2xf32>, vector<4x2xf32> -> vector<4x2xf32>
    %158 = arith.addf %81, %157 : vector<4x2xf32>
    %c1_68 = arith.constant 1 : index
    %c0_69 = arith.constant 0 : index
    %c0_70 = arith.constant 0 : index
    %159 = vector.load %arg5[%c1_68, %c0_69, %c0_70] : memref<3x20x160xf32, #tpu.memory_space<vmem>>, vector<1x20x160xf32>
    %160 = vector.shape_cast %159 : vector<1x20x160xf32> to vector<20x160xf32>
    %cst_71 = arith.constant dense<0.000000e+00> : vector<4x160xf32>
    %161 = tpu.matmul %154, %160, %cst_71 {dimension_numbers = #tpu.dot_dimension_numbers<[1], [0], [0], [1], [0, 0, 1, 1], [], []>} : vector<4x20xf32>, vector<20x160xf32>, vector<4x160xf32> -> vector<4x160xf32>
    %c1_72 = arith.constant 1 : index
    %c0_73 = arith.constant 0 : index
    %c0_74 = arith.constant 0 : index
    %162 = vector.load %arg6[%c1_72, %c0_73, %c0_74] : memref<3x1x160xf32, #tpu.memory_space<vmem>>, vector<1x1x160xf32>
    %163 = vector.shape_cast %162 : vector<1x1x160xf32> to vector<1x160xf32>
    %164 = vector.broadcast %163 : vector<1x160xf32> to vector<4x160xf32>
    %165 = arith.addf %161, %164 : vector<4x160xf32>
    %166 = vector.extract_strided_slice %165 {offsets = [0, 0], sizes = [4, 80], strides = [1, 1]} : vector<4x160xf32> to vector<4x80xf32>
    %167 = vector.extract_strided_slice %166 {offsets = [0, 0], sizes = [4, 20], strides = [1, 1]} : vector<4x80xf32> to vector<4x20xf32>
    %168 = vector.extract_strided_slice %166 {offsets = [0, 20], sizes = [4, 20], strides = [1, 1]} : vector<4x80xf32> to vector<4x20xf32>
    %169 = vector.extract_strided_slice %166 {offsets = [0, 40], sizes = [4, 20], strides = [1, 1]} : vector<4x80xf32> to vector<4x20xf32>
    %170 = vector.extract_strided_slice %166 {offsets = [0, 60], sizes = [4, 20], strides = [1, 1]} : vector<4x80xf32> to vector<4x20xf32>
    %cst_75 = arith.constant dense<0.000000e+00> : vector<4x4xf32>
    %171 = tpu.matmul %167, %168, %cst_75 {dimension_numbers = #tpu.dot_dimension_numbers<[1], [1], [0], [0], [0, 0, 1, 0], [], []>} : vector<4x20xf32>, vector<4x20xf32>, vector<4x4xf32> -> vector<4x4xf32>
    %cst_76 = arith.constant 0.223606795 : f32
    %172 = vector.broadcast %cst_76 : f32 to vector<4x4xf32>
    %173 = arith.mulf %171, %172 : vector<4x4xf32>
    %cst_77 = arith.constant 0.000000e+00 : f32
    %174 = vector.broadcast %cst_77 : f32 to vector<4x4xf32>
    %175 = arith.cmpf ogt, %0, %174 : vector<4x4xf32>
    %cst_78 = arith.constant -1.000000e+30 : f32
    %176 = vector.broadcast %cst_78 : f32 to vector<4x4xf32>
    %177 = arith.select %175, %173, %176 : vector<4x4xi1>, vector<4x4xf32>
    %cst_79 = arith.constant dense<0xFF800000> : vector<4xf32>
    %178 = vector.multi_reduction <maximumf>, %177, %cst_79 [1] : vector<4x4xf32> to vector<4xf32>
    %179 = vector.shape_cast %178 : vector<4xf32> to vector<4x1xf32>
    %180 = vector.broadcast %179 : vector<4x1xf32> to vector<4x4xf32>
    %181 = arith.subf %177, %180 : vector<4x4xf32>
    %182 = math.exp %181 : vector<4x4xf32>
    %183 = arith.mulf %182, %0 : vector<4x4xf32>
    %cst_80 = arith.constant dense<0.000000e+00> : vector<4xf32>
    %184 = vector.multi_reduction <add>, %183, %cst_80 [1] : vector<4x4xf32> to vector<4xf32>
    %185 = vector.shape_cast %184 : vector<4xf32> to vector<4x1xf32>
    %cst_81 = arith.constant 1.000000e-16 : f32
    %186 = vector.broadcast %cst_81 : f32 to vector<4x1xf32>
    %187 = arith.maximumf %185, %186 : vector<4x1xf32>
    %188 = tpu.reciprocal %187 {approx = true} : vector<4x1xf32> -> vector<4x1xf32>
    %189 = vector.broadcast %188 : vector<4x1xf32> to vector<4x4xf32>
    %190 = arith.mulf %183, %189 : vector<4x4xf32>
    %cst_82 = arith.constant dense<0.000000e+00> : vector<4x20xf32>
    %191 = tpu.matmul %190, %169, %cst_82 {dimension_numbers = #tpu.dot_dimension_numbers<[1], [0], [0], [1], [0, 0, 1, 1], [], []>} : vector<4x4xf32>, vector<4x20xf32>, vector<4x20xf32> -> vector<4x20xf32>
    %192 = arith.addf %170, %191 : vector<4x20xf32>
    %193 = vector.extract_strided_slice %165 {offsets = [0, 80], sizes = [4, 80], strides = [1, 1]} : vector<4x160xf32> to vector<4x80xf32>
    %194 = vector.extract_strided_slice %193 {offsets = [0, 0], sizes = [4, 20], strides = [1, 1]} : vector<4x80xf32> to vector<4x20xf32>
    %195 = vector.extract_strided_slice %193 {offsets = [0, 20], sizes = [4, 20], strides = [1, 1]} : vector<4x80xf32> to vector<4x20xf32>
    %196 = vector.extract_strided_slice %193 {offsets = [0, 40], sizes = [4, 20], strides = [1, 1]} : vector<4x80xf32> to vector<4x20xf32>
    %197 = vector.extract_strided_slice %193 {offsets = [0, 60], sizes = [4, 20], strides = [1, 1]} : vector<4x80xf32> to vector<4x20xf32>
    %cst_83 = arith.constant dense<0.000000e+00> : vector<4x4xf32>
    %198 = tpu.matmul %194, %195, %cst_83 {dimension_numbers = #tpu.dot_dimension_numbers<[1], [1], [0], [0], [0, 0, 1, 0], [], []>} : vector<4x20xf32>, vector<4x20xf32>, vector<4x4xf32> -> vector<4x4xf32>
    %cst_84 = arith.constant 0.223606795 : f32
    %199 = vector.broadcast %cst_84 : f32 to vector<4x4xf32>
    %200 = arith.mulf %198, %199 : vector<4x4xf32>
    %cst_85 = arith.constant 0.000000e+00 : f32
    %201 = vector.broadcast %cst_85 : f32 to vector<4x4xf32>
    %202 = arith.cmpf ogt, %1, %201 : vector<4x4xf32>
    %cst_86 = arith.constant -1.000000e+30 : f32
    %203 = vector.broadcast %cst_86 : f32 to vector<4x4xf32>
    %204 = arith.select %202, %200, %203 : vector<4x4xi1>, vector<4x4xf32>
    %cst_87 = arith.constant dense<0xFF800000> : vector<4xf32>
    %205 = vector.multi_reduction <maximumf>, %204, %cst_87 [1] : vector<4x4xf32> to vector<4xf32>
    %206 = vector.shape_cast %205 : vector<4xf32> to vector<4x1xf32>
    %207 = vector.broadcast %206 : vector<4x1xf32> to vector<4x4xf32>
    %208 = arith.subf %204, %207 : vector<4x4xf32>
    %209 = math.exp %208 : vector<4x4xf32>
    %210 = arith.mulf %209, %1 : vector<4x4xf32>
    %cst_88 = arith.constant dense<0.000000e+00> : vector<4xf32>
    %211 = vector.multi_reduction <add>, %210, %cst_88 [1] : vector<4x4xf32> to vector<4xf32>
    %212 = vector.shape_cast %211 : vector<4xf32> to vector<4x1xf32>
    %cst_89 = arith.constant 1.000000e-16 : f32
    %213 = vector.broadcast %cst_89 : f32 to vector<4x1xf32>
    %214 = arith.maximumf %212, %213 : vector<4x1xf32>
    %215 = tpu.reciprocal %214 {approx = true} : vector<4x1xf32> -> vector<4x1xf32>
    %216 = vector.broadcast %215 : vector<4x1xf32> to vector<4x4xf32>
    %217 = arith.mulf %210, %216 : vector<4x4xf32>
    %cst_90 = arith.constant dense<0.000000e+00> : vector<4x20xf32>
    %218 = tpu.matmul %217, %196, %cst_90 {dimension_numbers = #tpu.dot_dimension_numbers<[1], [0], [0], [1], [0, 0, 1, 1], [], []>} : vector<4x4xf32>, vector<4x20xf32>, vector<4x20xf32> -> vector<4x20xf32>
    %219 = arith.addf %197, %218 : vector<4x20xf32>
    %cst_91 = arith.constant 8.000000e-01 : f32
    %220 = vector.broadcast %cst_91 : f32 to vector<4x20xf32>
    %221 = arith.mulf %220, %192 : vector<4x20xf32>
    %cst_92 = arith.constant 2.000000e-01 : f32
    %222 = vector.broadcast %cst_92 : f32 to vector<4x20xf32>
    %223 = arith.mulf %222, %219 : vector<4x20xf32>
    %224 = arith.addf %221, %223 : vector<4x20xf32>
    %cst_93 = arith.constant 0.999994993 : f32
    %225 = vector.broadcast %cst_93 : f32 to vector<4x20xf32>
    %226 = arith.mulf %224, %225 : vector<4x20xf32>
    %cst_94 = arith.constant 0.000000e+00 : f32
    %227 = vector.broadcast %cst_94 : f32 to vector<4x20xf32>
    %228 = arith.cmpf ogt, %226, %227 : vector<4x20xf32>
    %cst_95 = arith.constant 0.00999999977 : f32
    %229 = vector.broadcast %cst_95 : f32 to vector<4x20xf32>
    %230 = arith.mulf %229, %226 : vector<4x20xf32>
    %231 = arith.select %228, %226, %230 : vector<4x20xi1>, vector<4x20xf32>
    %c2 = arith.constant 2 : index
    %c0_96 = arith.constant 0 : index
    %c0_97 = arith.constant 0 : index
    %232 = vector.load %arg7[%c2, %c0_96, %c0_97] : memref<4x20x2xf32, #tpu.memory_space<vmem>>, vector<1x20x2xf32>
    %233 = vector.shape_cast %232 : vector<1x20x2xf32> to vector<20x2xf32>
    %cst_98 = arith.constant dense<0.000000e+00> : vector<4x2xf32>
    %234 = tpu.matmul %231, %233, %cst_98 {dimension_numbers = #tpu.dot_dimension_numbers<[1], [0], [0], [1], [0, 0, 1, 1], [], []>} : vector<4x20xf32>, vector<20x2xf32>, vector<4x2xf32> -> vector<4x2xf32>
    %235 = arith.addf %158, %234 : vector<4x2xf32>
    %c2_99 = arith.constant 2 : index
    %c0_100 = arith.constant 0 : index
    %c0_101 = arith.constant 0 : index
    %236 = vector.load %arg5[%c2_99, %c0_100, %c0_101] : memref<3x20x160xf32, #tpu.memory_space<vmem>>, vector<1x20x160xf32>
    %237 = vector.shape_cast %236 : vector<1x20x160xf32> to vector<20x160xf32>
    %cst_102 = arith.constant dense<0.000000e+00> : vector<4x160xf32>
    %238 = tpu.matmul %231, %237, %cst_102 {dimension_numbers = #tpu.dot_dimension_numbers<[1], [0], [0], [1], [0, 0, 1, 1], [], []>} : vector<4x20xf32>, vector<20x160xf32>, vector<4x160xf32> -> vector<4x160xf32>
    %c2_103 = arith.constant 2 : index
    %c0_104 = arith.constant 0 : index
    %c0_105 = arith.constant 0 : index
    %239 = vector.load %arg6[%c2_103, %c0_104, %c0_105] : memref<3x1x160xf32, #tpu.memory_space<vmem>>, vector<1x1x160xf32>
    %240 = vector.shape_cast %239 : vector<1x1x160xf32> to vector<1x160xf32>
    %241 = vector.broadcast %240 : vector<1x160xf32> to vector<4x160xf32>
    %242 = arith.addf %238, %241 : vector<4x160xf32>
    %243 = vector.extract_strided_slice %242 {offsets = [0, 0], sizes = [4, 80], strides = [1, 1]} : vector<4x160xf32> to vector<4x80xf32>
    %244 = vector.extract_strided_slice %243 {offsets = [0, 0], sizes = [4, 20], strides = [1, 1]} : vector<4x80xf32> to vector<4x20xf32>
    %245 = vector.extract_strided_slice %243 {offsets = [0, 20], sizes = [4, 20], strides = [1, 1]} : vector<4x80xf32> to vector<4x20xf32>
    %246 = vector.extract_strided_slice %243 {offsets = [0, 40], sizes = [4, 20], strides = [1, 1]} : vector<4x80xf32> to vector<4x20xf32>
    %247 = vector.extract_strided_slice %243 {offsets = [0, 60], sizes = [4, 20], strides = [1, 1]} : vector<4x80xf32> to vector<4x20xf32>
    %cst_106 = arith.constant dense<0.000000e+00> : vector<4x4xf32>
    %248 = tpu.matmul %244, %245, %cst_106 {dimension_numbers = #tpu.dot_dimension_numbers<[1], [1], [0], [0], [0, 0, 1, 0], [], []>} : vector<4x20xf32>, vector<4x20xf32>, vector<4x4xf32> -> vector<4x4xf32>
    %cst_107 = arith.constant 0.223606795 : f32
    %249 = vector.broadcast %cst_107 : f32 to vector<4x4xf32>
    %250 = arith.mulf %248, %249 : vector<4x4xf32>
    %cst_108 = arith.constant 0.000000e+00 : f32
    %251 = vector.broadcast %cst_108 : f32 to vector<4x4xf32>
    %252 = arith.cmpf ogt, %0, %251 : vector<4x4xf32>
    %cst_109 = arith.constant -1.000000e+30 : f32
    %253 = vector.broadcast %cst_109 : f32 to vector<4x4xf32>
    %254 = arith.select %252, %250, %253 : vector<4x4xi1>, vector<4x4xf32>
    %cst_110 = arith.constant dense<0xFF800000> : vector<4xf32>
    %255 = vector.multi_reduction <maximumf>, %254, %cst_110 [1] : vector<4x4xf32> to vector<4xf32>
    %256 = vector.shape_cast %255 : vector<4xf32> to vector<4x1xf32>
    %257 = vector.broadcast %256 : vector<4x1xf32> to vector<4x4xf32>
    %258 = arith.subf %254, %257 : vector<4x4xf32>
    %259 = math.exp %258 : vector<4x4xf32>
    %260 = arith.mulf %259, %0 : vector<4x4xf32>
    %cst_111 = arith.constant dense<0.000000e+00> : vector<4xf32>
    %261 = vector.multi_reduction <add>, %260, %cst_111 [1] : vector<4x4xf32> to vector<4xf32>
    %262 = vector.shape_cast %261 : vector<4xf32> to vector<4x1xf32>
    %cst_112 = arith.constant 1.000000e-16 : f32
    %263 = vector.broadcast %cst_112 : f32 to vector<4x1xf32>
    %264 = arith.maximumf %262, %263 : vector<4x1xf32>
    %265 = tpu.reciprocal %264 {approx = true} : vector<4x1xf32> -> vector<4x1xf32>
    %266 = vector.broadcast %265 : vector<4x1xf32> to vector<4x4xf32>
    %267 = arith.mulf %260, %266 : vector<4x4xf32>
    %cst_113 = arith.constant dense<0.000000e+00> : vector<4x20xf32>
    %268 = tpu.matmul %267, %246, %cst_113 {dimension_numbers = #tpu.dot_dimension_numbers<[1], [0], [0], [1], [0, 0, 1, 1], [], []>} : vector<4x4xf32>, vector<4x20xf32>, vector<4x20xf32> -> vector<4x20xf32>
    %269 = arith.addf %247, %268 : vector<4x20xf32>
    %270 = vector.extract_strided_slice %242 {offsets = [0, 80], sizes = [4, 80], strides = [1, 1]} : vector<4x160xf32> to vector<4x80xf32>
    %271 = vector.extract_strided_slice %270 {offsets = [0, 0], sizes = [4, 20], strides = [1, 1]} : vector<4x80xf32> to vector<4x20xf32>
    %272 = vector.extract_strided_slice %270 {offsets = [0, 20], sizes = [4, 20], strides = [1, 1]} : vector<4x80xf32> to vector<4x20xf32>
    %273 = vector.extract_strided_slice %270 {offsets = [0, 40], sizes = [4, 20], strides = [1, 1]} : vector<4x80xf32> to vector<4x20xf32>
    %274 = vector.extract_strided_slice %270 {offsets = [0, 60], sizes = [4, 20], strides = [1, 1]} : vector<4x80xf32> to vector<4x20xf32>
    %cst_114 = arith.constant dense<0.000000e+00> : vector<4x4xf32>
    %275 = tpu.matmul %271, %272, %cst_114 {dimension_numbers = #tpu.dot_dimension_numbers<[1], [1], [0], [0], [0, 0, 1, 0], [], []>} : vector<4x20xf32>, vector<4x20xf32>, vector<4x4xf32> -> vector<4x4xf32>
    %cst_115 = arith.constant 0.223606795 : f32
    %276 = vector.broadcast %cst_115 : f32 to vector<4x4xf32>
    %277 = arith.mulf %275, %276 : vector<4x4xf32>
    %cst_116 = arith.constant 0.000000e+00 : f32
    %278 = vector.broadcast %cst_116 : f32 to vector<4x4xf32>
    %279 = arith.cmpf ogt, %1, %278 : vector<4x4xf32>
    %cst_117 = arith.constant -1.000000e+30 : f32
    %280 = vector.broadcast %cst_117 : f32 to vector<4x4xf32>
    %281 = arith.select %279, %277, %280 : vector<4x4xi1>, vector<4x4xf32>
    %cst_118 = arith.constant dense<0xFF800000> : vector<4xf32>
    %282 = vector.multi_reduction <maximumf>, %281, %cst_118 [1] : vector<4x4xf32> to vector<4xf32>
    %283 = vector.shape_cast %282 : vector<4xf32> to vector<4x1xf32>
    %284 = vector.broadcast %283 : vector<4x1xf32> to vector<4x4xf32>
    %285 = arith.subf %281, %284 : vector<4x4xf32>
    %286 = math.exp %285 : vector<4x4xf32>
    %287 = arith.mulf %286, %1 : vector<4x4xf32>
    %cst_119 = arith.constant dense<0.000000e+00> : vector<4xf32>
    %288 = vector.multi_reduction <add>, %287, %cst_119 [1] : vector<4x4xf32> to vector<4xf32>
    %289 = vector.shape_cast %288 : vector<4xf32> to vector<4x1xf32>
    %cst_120 = arith.constant 1.000000e-16 : f32
    %290 = vector.broadcast %cst_120 : f32 to vector<4x1xf32>
    %291 = arith.maximumf %289, %290 : vector<4x1xf32>
    %292 = tpu.reciprocal %291 {approx = true} : vector<4x1xf32> -> vector<4x1xf32>
    %293 = vector.broadcast %292 : vector<4x1xf32> to vector<4x4xf32>
    %294 = arith.mulf %287, %293 : vector<4x4xf32>
    %cst_121 = arith.constant dense<0.000000e+00> : vector<4x20xf32>
    %295 = tpu.matmul %294, %273, %cst_121 {dimension_numbers = #tpu.dot_dimension_numbers<[1], [0], [0], [1], [0, 0, 1, 1], [], []>} : vector<4x4xf32>, vector<4x20xf32>, vector<4x20xf32> -> vector<4x20xf32>
    %296 = arith.addf %274, %295 : vector<4x20xf32>
    %cst_122 = arith.constant 8.000000e-01 : f32
    %297 = vector.broadcast %cst_122 : f32 to vector<4x20xf32>
    %298 = arith.mulf %297, %269 : vector<4x20xf32>
    %cst_123 = arith.constant 2.000000e-01 : f32
    %299 = vector.broadcast %cst_123 : f32 to vector<4x20xf32>
    %300 = arith.mulf %299, %296 : vector<4x20xf32>
    %301 = arith.addf %298, %300 : vector<4x20xf32>
    %cst_124 = arith.constant 0.999994993 : f32
    %302 = vector.broadcast %cst_124 : f32 to vector<4x20xf32>
    %303 = arith.mulf %301, %302 : vector<4x20xf32>
    %cst_125 = arith.constant 0.000000e+00 : f32
    %304 = vector.broadcast %cst_125 : f32 to vector<4x20xf32>
    %305 = arith.cmpf ogt, %303, %304 : vector<4x20xf32>
    %cst_126 = arith.constant 0.00999999977 : f32
    %306 = vector.broadcast %cst_126 : f32 to vector<4x20xf32>
    %307 = arith.mulf %306, %303 : vector<4x20xf32>
    %308 = arith.select %305, %303, %307 : vector<4x20xi1>, vector<4x20xf32>
    %c3 = arith.constant 3 : index
    %c0_127 = arith.constant 0 : index
    %c0_128 = arith.constant 0 : index
    %309 = vector.load %arg7[%c3, %c0_127, %c0_128] : memref<4x20x2xf32, #tpu.memory_space<vmem>>, vector<1x20x2xf32>
    %310 = vector.shape_cast %309 : vector<1x20x2xf32> to vector<20x2xf32>
    %cst_129 = arith.constant dense<0.000000e+00> : vector<4x2xf32>
    %311 = tpu.matmul %308, %310, %cst_129 {dimension_numbers = #tpu.dot_dimension_numbers<[1], [0], [0], [1], [0, 0, 1, 1], [], []>} : vector<4x20xf32>, vector<20x2xf32>, vector<4x2xf32> -> vector<4x2xf32>
    %312 = arith.addf %235, %311 : vector<4x2xf32>
    %c0_130 = arith.constant 0 : index
    %c0_131 = arith.constant 0 : index
    %313 = vector.load %arg9[%c0_130, %c0_131] : memref<4x2xf32, #tpu.memory_space<vmem>>, vector<4x2xf32>
    tpu.vector_store %arg9[%c0_130, %c0_131], %312 {strides = array<i32>} : memref<4x2xf32, #tpu.memory_space<vmem>>, vector<4x2xf32>,
    return
  }
}

module attributes {stable_mosaic.version = 11 : i64} {
  func.func @brain_kernel(%arg0: i32, %arg1: memref<1x111x111xf32, #tpu.memory_space<vmem>>, %arg2: memref<1x111x111xf32, #tpu.memory_space<vmem>>, %arg3: memref<111x3xf32, #tpu.memory_space<vmem>>, %arg4: memref<8x64xf32, #tpu.memory_space<vmem>>, %arg5: memref<111x128xf32, #tpu.memory_space<vmem>>, %arg6: memref<64x40xf32, #tpu.memory_space<vmem>>, %arg7: memref<20x20xf32, #tpu.memory_space<vmem>>, %arg8: memref<20x2xf32, #tpu.memory_space<vmem>>, %arg9: memref<3x20x56xf32, #tpu.memory_space<vmem>>, %arg10: memref<1x100x20xf32, #tpu.memory_space<vmem>>) attributes {dimension_semantics = [#tpu.dimension_semantics<parallel>], iteration_bounds = array<i64: 4>, scalar_prefetch = 0 : i64, scratch_operands = 0 : i64, tpu.core_type = #tpu.core_type<tc>, window_params = [{transform_indices = @transform_0, window_bounds = array<i64: 1, 111, 111>}, {transform_indices = @transform_1, window_bounds = array<i64: 1, 111, 111>}, {pipeline_mode = #tpu.pipeline_mode<synchronous>, transform_indices = @transform_2, window_bounds = array<i64: 111, 3>}, {pipeline_mode = #tpu.pipeline_mode<synchronous>, transform_indices = @transform_3, window_bounds = array<i64: 8, 64>}, {pipeline_mode = #tpu.pipeline_mode<synchronous>, transform_indices = @transform_4, window_bounds = array<i64: 111, 128>}, {pipeline_mode = #tpu.pipeline_mode<synchronous>, transform_indices = @transform_5, window_bounds = array<i64: 64, 40>}, {pipeline_mode = #tpu.pipeline_mode<synchronous>, transform_indices = @transform_6, window_bounds = array<i64: 20, 20>}, {pipeline_mode = #tpu.pipeline_mode<synchronous>, transform_indices = @transform_7, window_bounds = array<i64: 20, 2>}, {pipeline_mode = #tpu.pipeline_mode<synchronous>, transform_indices = @transform_8, window_bounds = array<i64: 3, 20, 56>}, {transform_indices = @transform_9, window_bounds = array<i64: 1, 100, 20>}]} {
    %c0 = arith.constant 0 : index
    %c0_0 = arith.constant 0 : index
    %c0_1 = arith.constant 0 : index
    %0 = vector.load %arg1[%c0, %c0_0, %c0_1] : memref<1x111x111xf32, #tpu.memory_space<vmem>>, vector<1x111x111xf32>
    %1 = vector.shape_cast %0 : vector<1x111x111xf32> to vector<111x111xf32>
    %c0_2 = arith.constant 0 : index
    %c0_3 = arith.constant 0 : index
    %c0_4 = arith.constant 0 : index
    %2 = vector.load %arg2[%c0_2, %c0_3, %c0_4] : memref<1x111x111xf32, #tpu.memory_space<vmem>>, vector<1x111x111xf32>
    %3 = vector.shape_cast %2 : vector<1x111x111xf32> to vector<111x111xf32>
    %c0_5 = arith.constant 0 : index
    %c0_6 = arith.constant 0 : index
    %4 = vector.load %arg3[%c0_5, %c0_6] : memref<111x3xf32, #tpu.memory_space<vmem>>, vector<111x3xf32>
    %5 = vector.extract_strided_slice %4 {offsets = [0, 0], sizes = [111, 1], strides = [1, 1]} : vector<111x3xf32> to vector<111x1xf32>
    %6 = vector.extract_strided_slice %4 {offsets = [0, 1], sizes = [111, 1], strides = [1, 1]} : vector<111x3xf32> to vector<111x1xf32>
    %c0_7 = arith.constant 0 : index
    %c0_8 = arith.constant 0 : index
    %7 = vector.load %arg4[%c0_7, %c0_8] : memref<8x64xf32, #tpu.memory_space<vmem>>, vector<8x64xf32>
    %8 = vector.extract_strided_slice %7 {offsets = [0, 0], sizes = [1, 64], strides = [1, 1]} : vector<8x64xf32> to vector<1x64xf32>
    %9 = vector.extract_strided_slice %7 {offsets = [1, 0], sizes = [1, 64], strides = [1, 1]} : vector<8x64xf32> to vector<1x64xf32>
    %10 = vector.extract_strided_slice %7 {offsets = [2, 0], sizes = [1, 20], strides = [1, 1]} : vector<8x64xf32> to vector<1x20xf32>
    %11 = vector.extract_strided_slice %7 {offsets = [3, 0], sizes = [1, 20], strides = [1, 1]} : vector<8x64xf32> to vector<1x20xf32>
    %12 = vector.extract_strided_slice %7 {offsets = [4, 0], sizes = [1, 20], strides = [1, 1]} : vector<8x64xf32> to vector<1x20xf32>
    %13 = vector.extract_strided_slice %7 {offsets = [5, 0], sizes = [1, 1], strides = [1, 1]} : vector<8x64xf32> to vector<1x1xf32>
    %14 = vector.extract_strided_slice %7 {offsets = [6, 0], sizes = [1, 56], strides = [1, 1]} : vector<8x64xf32> to vector<1x56xf32>
    %cst = arith.constant dense<0.000000e+00> : vector<111x3xf32>
    %15 = tpu.matmul %1, %4, %cst {dimension_numbers = #tpu.dot_dimension_numbers<[1], [0], [0], [1], [0, 0, 1, 1], [], []>} : vector<111x111xf32>, vector<111x3xf32>, vector<111x3xf32> -> vector<111x3xf32>
    %16 = vector.extract_strided_slice %15 {offsets = [0, 0], sizes = [111, 1], strides = [1, 1]} : vector<111x3xf32> to vector<111x1xf32>
    %17 = arith.mulf %5, %16 : vector<111x1xf32>
    %cst_9 = arith.constant 1.000000e+00 : f32
    %18 = vector.broadcast %cst_9 : f32 to vector<111x1xf32>
    %19 = arith.addf %17, %18 : vector<111x1xf32>
    %20 = math.rsqrt %19 : vector<111x1xf32>
    %21 = vector.extract_strided_slice %15 {offsets = [0, 1], sizes = [111, 1], strides = [1, 1]} : vector<111x3xf32> to vector<111x1xf32>
    %22 = arith.mulf %6, %21 : vector<111x1xf32>
    %cst_10 = arith.constant 1.000000e+00 : f32
    %23 = vector.broadcast %cst_10 : f32 to vector<111x1xf32>
    %24 = arith.addf %22, %23 : vector<111x1xf32>
    %25 = math.rsqrt %24 : vector<111x1xf32>
    %26 = vector.extract_strided_slice %15 {offsets = [0, 2], sizes = [111, 1], strides = [1, 1]} : vector<111x3xf32> to vector<111x1xf32>
    %cst_11 = arith.constant 1.000000e+00 : f32
    %27 = vector.broadcast %cst_11 : f32 to vector<111x1xf32>
    %28 = arith.addf %26, %27 : vector<111x1xf32>
    %29 = math.rsqrt %28 : vector<111x1xf32>
    %c0_12 = arith.constant 0 : index
    %c0_13 = arith.constant 0 : index
    %30 = vector.load %arg5[%c0_12, %c0_13] : memref<111x128xf32, #tpu.memory_space<vmem>>, vector<111x128xf32>
    %31 = vector.broadcast %20 : vector<111x1xf32> to vector<111x111xf32>
    %32 = arith.mulf %31, %3 : vector<111x111xf32>
    %33 = vector.broadcast %5 : vector<111x1xf32> to vector<111x111xf32>
    %34 = arith.mulf %33, %32 : vector<111x111xf32>
    %cst_14 = arith.constant dense<0.000000e+00> : vector<111x111xf32>
    %35 = tpu.matmul %1, %34, %cst_14 {dimension_numbers = #tpu.dot_dimension_numbers<[1], [0], [0], [1], [0, 0, 1, 1], [], []>} : vector<111x111xf32>, vector<111x111xf32>, vector<111x111xf32> -> vector<111x111xf32>
    %36 = vector.broadcast %5 : vector<111x1xf32> to vector<111x111xf32>
    %37 = arith.mulf %36, %35 : vector<111x111xf32>
    %38 = arith.addf %37, %32 : vector<111x111xf32>
    %39 = vector.broadcast %20 : vector<111x1xf32> to vector<111x111xf32>
    %40 = arith.mulf %39, %38 : vector<111x111xf32>
    %41 = vector.extract_strided_slice %30 {offsets = [0, 0], sizes = [111, 64], strides = [1, 1]} : vector<111x128xf32> to vector<111x64xf32>
    %cst_15 = arith.constant dense<0.000000e+00> : vector<111x64xf32>
    %42 = tpu.matmul %40, %41, %cst_15 {dimension_numbers = #tpu.dot_dimension_numbers<[1], [0], [0], [1], [0, 0, 1, 1], [], []>} : vector<111x111xf32>, vector<111x64xf32>, vector<111x64xf32> -> vector<111x64xf32>
    %43 = vector.broadcast %8 : vector<1x64xf32> to vector<111x64xf32>
    %44 = arith.addf %42, %43 : vector<111x64xf32>
    %cst_16 = arith.constant 0.000000e+00 : f32
    %45 = vector.broadcast %cst_16 : f32 to vector<111x64xf32>
    %46 = arith.cmpf ogt, %44, %45 : vector<111x64xf32>
    %cst_17 = arith.constant 0.00999999977 : f32
    %47 = vector.broadcast %cst_17 : f32 to vector<111x64xf32>
    %48 = arith.mulf %47, %44 : vector<111x64xf32>
    %49 = arith.select %46, %44, %48 : vector<111x64xi1>, vector<111x64xf32>
    %50 = vector.broadcast %5 : vector<111x1xf32> to vector<111x64xf32>
    %51 = arith.mulf %50, %49 : vector<111x64xf32>
    %52 = vector.broadcast %25 : vector<111x1xf32> to vector<111x111xf32>
    %53 = arith.mulf %52, %3 : vector<111x111xf32>
    %54 = vector.broadcast %6 : vector<111x1xf32> to vector<111x111xf32>
    %55 = arith.mulf %54, %53 : vector<111x111xf32>
    %cst_18 = arith.constant dense<0.000000e+00> : vector<111x111xf32>
    %56 = tpu.matmul %1, %55, %cst_18 {dimension_numbers = #tpu.dot_dimension_numbers<[1], [0], [0], [1], [0, 0, 1, 1], [], []>} : vector<111x111xf32>, vector<111x111xf32>, vector<111x111xf32> -> vector<111x111xf32>
    %57 = vector.broadcast %6 : vector<111x1xf32> to vector<111x111xf32>
    %58 = arith.mulf %57, %56 : vector<111x111xf32>
    %59 = arith.addf %58, %53 : vector<111x111xf32>
    %60 = vector.broadcast %25 : vector<111x1xf32> to vector<111x111xf32>
    %61 = arith.mulf %60, %59 : vector<111x111xf32>
    %62 = vector.extract_strided_slice %30 {offsets = [0, 64], sizes = [111, 64], strides = [1, 1]} : vector<111x128xf32> to vector<111x64xf32>
    %cst_19 = arith.constant dense<0.000000e+00> : vector<111x64xf32>
    %63 = tpu.matmul %61, %62, %cst_19 {dimension_numbers = #tpu.dot_dimension_numbers<[1], [0], [0], [1], [0, 0, 1, 1], [], []>} : vector<111x111xf32>, vector<111x64xf32>, vector<111x64xf32> -> vector<111x64xf32>
    %64 = vector.broadcast %9 : vector<1x64xf32> to vector<111x64xf32>
    %65 = arith.addf %63, %64 : vector<111x64xf32>
    %cst_20 = arith.constant 0.000000e+00 : f32
    %66 = vector.broadcast %cst_20 : f32 to vector<111x64xf32>
    %67 = arith.cmpf ogt, %65, %66 : vector<111x64xf32>
    %cst_21 = arith.constant 0.00999999977 : f32
    %68 = vector.broadcast %cst_21 : f32 to vector<111x64xf32>
    %69 = arith.mulf %68, %65 : vector<111x64xf32>
    %70 = arith.select %67, %65, %69 : vector<111x64xi1>, vector<111x64xf32>
    %71 = vector.broadcast %6 : vector<111x1xf32> to vector<111x64xf32>
    %72 = arith.mulf %71, %70 : vector<111x64xf32>
    %73 = arith.addf %51, %72 : vector<111x64xf32>
    %c0_22 = arith.constant 0 : index
    %c0_23 = arith.constant 0 : index
    %74 = vector.load %arg6[%c0_22, %c0_23] : memref<64x40xf32, #tpu.memory_space<vmem>>, vector<64x40xf32>
    %75 = vector.broadcast %20 : vector<111x1xf32> to vector<111x64xf32>
    %76 = arith.mulf %75, %73 : vector<111x64xf32>
    %77 = vector.broadcast %5 : vector<111x1xf32> to vector<111x64xf32>
    %78 = arith.mulf %77, %76 : vector<111x64xf32>
    %cst_24 = arith.constant dense<0.000000e+00> : vector<111x64xf32>
    %79 = tpu.matmul %1, %78, %cst_24 {dimension_numbers = #tpu.dot_dimension_numbers<[1], [0], [0], [1], [0, 0, 1, 1], [], []>} : vector<111x111xf32>, vector<111x64xf32>, vector<111x64xf32> -> vector<111x64xf32>
    %80 = vector.broadcast %5 : vector<111x1xf32> to vector<111x64xf32>
    %81 = arith.mulf %80, %79 : vector<111x64xf32>
    %82 = arith.addf %81, %76 : vector<111x64xf32>
    %83 = vector.broadcast %20 : vector<111x1xf32> to vector<111x64xf32>
    %84 = arith.mulf %83, %82 : vector<111x64xf32>
    %85 = vector.extract_strided_slice %74 {offsets = [0, 0], sizes = [64, 20], strides = [1, 1]} : vector<64x40xf32> to vector<64x20xf32>
    %cst_25 = arith.constant dense<0.000000e+00> : vector<111x20xf32>
    %86 = tpu.matmul %84, %85, %cst_25 {dimension_numbers = #tpu.dot_dimension_numbers<[1], [0], [0], [1], [0, 0, 1, 1], [], []>} : vector<111x64xf32>, vector<64x20xf32>, vector<111x20xf32> -> vector<111x20xf32>
    %87 = vector.broadcast %10 : vector<1x20xf32> to vector<111x20xf32>
    %88 = arith.addf %86, %87 : vector<111x20xf32>
    %cst_26 = arith.constant 0.000000e+00 : f32
    %89 = vector.broadcast %cst_26 : f32 to vector<111x20xf32>
    %90 = arith.cmpf ogt, %88, %89 : vector<111x20xf32>
    %cst_27 = arith.constant 0.00999999977 : f32
    %91 = vector.broadcast %cst_27 : f32 to vector<111x20xf32>
    %92 = arith.mulf %91, %88 : vector<111x20xf32>
    %93 = arith.select %90, %88, %92 : vector<111x20xi1>, vector<111x20xf32>
    %94 = vector.broadcast %5 : vector<111x1xf32> to vector<111x20xf32>
    %95 = arith.mulf %94, %93 : vector<111x20xf32>
    %96 = vector.broadcast %25 : vector<111x1xf32> to vector<111x64xf32>
    %97 = arith.mulf %96, %73 : vector<111x64xf32>
    %98 = vector.broadcast %6 : vector<111x1xf32> to vector<111x64xf32>
    %99 = arith.mulf %98, %97 : vector<111x64xf32>
    %cst_28 = arith.constant dense<0.000000e+00> : vector<111x64xf32>
    %100 = tpu.matmul %1, %99, %cst_28 {dimension_numbers = #tpu.dot_dimension_numbers<[1], [0], [0], [1], [0, 0, 1, 1], [], []>} : vector<111x111xf32>, vector<111x64xf32>, vector<111x64xf32> -> vector<111x64xf32>
    %101 = vector.broadcast %6 : vector<111x1xf32> to vector<111x64xf32>
    %102 = arith.mulf %101, %100 : vector<111x64xf32>
    %103 = arith.addf %102, %97 : vector<111x64xf32>
    %104 = vector.broadcast %25 : vector<111x1xf32> to vector<111x64xf32>
    %105 = arith.mulf %104, %103 : vector<111x64xf32>
    %106 = vector.extract_strided_slice %74 {offsets = [0, 20], sizes = [64, 20], strides = [1, 1]} : vector<64x40xf32> to vector<64x20xf32>
    %cst_29 = arith.constant dense<0.000000e+00> : vector<111x20xf32>
    %107 = tpu.matmul %105, %106, %cst_29 {dimension_numbers = #tpu.dot_dimension_numbers<[1], [0], [0], [1], [0, 0, 1, 1], [], []>} : vector<111x64xf32>, vector<64x20xf32>, vector<111x20xf32> -> vector<111x20xf32>
    %108 = vector.broadcast %11 : vector<1x20xf32> to vector<111x20xf32>
    %109 = arith.addf %107, %108 : vector<111x20xf32>
    %cst_30 = arith.constant 0.000000e+00 : f32
    %110 = vector.broadcast %cst_30 : f32 to vector<111x20xf32>
    %111 = arith.cmpf ogt, %109, %110 : vector<111x20xf32>
    %cst_31 = arith.constant 0.00999999977 : f32
    %112 = vector.broadcast %cst_31 : f32 to vector<111x20xf32>
    %113 = arith.mulf %112, %109 : vector<111x20xf32>
    %114 = arith.select %111, %109, %113 : vector<111x20xi1>, vector<111x20xf32>
    %115 = vector.broadcast %6 : vector<111x1xf32> to vector<111x20xf32>
    %116 = arith.mulf %115, %114 : vector<111x20xf32>
    %117 = arith.addf %95, %116 : vector<111x20xf32>
    %118 = vector.broadcast %29 : vector<111x1xf32> to vector<111x20xf32>
    %119 = arith.mulf %118, %117 : vector<111x20xf32>
    %cst_32 = arith.constant dense<0.000000e+00> : vector<111x20xf32>
    %120 = tpu.matmul %1, %119, %cst_32 {dimension_numbers = #tpu.dot_dimension_numbers<[1], [0], [0], [1], [0, 0, 1, 1], [], []>} : vector<111x111xf32>, vector<111x20xf32>, vector<111x20xf32> -> vector<111x20xf32>
    %121 = arith.addf %120, %119 : vector<111x20xf32>
    %122 = vector.broadcast %29 : vector<111x1xf32> to vector<111x20xf32>
    %123 = arith.mulf %122, %121 : vector<111x20xf32>
    %c0_33 = arith.constant 0 : index
    %c0_34 = arith.constant 0 : index
    %124 = vector.load %arg7[%c0_33, %c0_34] : memref<20x20xf32, #tpu.memory_space<vmem>>, vector<20x20xf32>
    %cst_35 = arith.constant dense<0.000000e+00> : vector<111x20xf32>
    %125 = tpu.matmul %123, %124, %cst_35 {dimension_numbers = #tpu.dot_dimension_numbers<[1], [0], [0], [1], [0, 0, 1, 1], [], []>} : vector<111x20xf32>, vector<20x20xf32>, vector<111x20xf32> -> vector<111x20xf32>
    %126 = vector.broadcast %12 : vector<1x20xf32> to vector<111x20xf32>
    %127 = arith.addf %125, %126 : vector<111x20xf32>
    %cst_36 = arith.constant 0.000000e+00 : f32
    %128 = vector.broadcast %cst_36 : f32 to vector<111x20xf32>
    %129 = arith.cmpf ogt, %127, %128 : vector<111x20xf32>
    %cst_37 = arith.constant 0.00999999977 : f32
    %130 = vector.broadcast %cst_37 : f32 to vector<111x20xf32>
    %131 = arith.mulf %130, %127 : vector<111x20xf32>
    %132 = arith.select %129, %127, %131 : vector<111x20xi1>, vector<111x20xf32>
    %c0_38 = arith.constant 0 : index
    %c0_39 = arith.constant 0 : index
    %133 = vector.load %arg8[%c0_38, %c0_39] : memref<20x2xf32, #tpu.memory_space<vmem>>, vector<20x2xf32>
    %cst_40 = arith.constant dense<0.000000e+00> : vector<111x20xf32>
    %134 = tpu.matmul %1, %132, %cst_40 {dimension_numbers = #tpu.dot_dimension_numbers<[1], [0], [0], [1], [0, 0, 1, 1], [], []>} : vector<111x111xf32>, vector<111x20xf32>, vector<111x20xf32> -> vector<111x20xf32>
    %135 = vector.extract_strided_slice %133 {offsets = [0, 0], sizes = [20, 1], strides = [1, 1]} : vector<20x2xf32> to vector<20x1xf32>
    %cst_41 = arith.constant dense<0.000000e+00> : vector<111x1xf32>
    %136 = tpu.matmul %134, %135, %cst_41 {dimension_numbers = #tpu.dot_dimension_numbers<[1], [0], [0], [1], [0, 0, 1, 1], [], []>} : vector<111x20xf32>, vector<20x1xf32>, vector<111x1xf32> -> vector<111x1xf32>
    %137 = vector.extract_strided_slice %133 {offsets = [0, 1], sizes = [20, 1], strides = [1, 1]} : vector<20x2xf32> to vector<20x1xf32>
    %cst_42 = arith.constant dense<0.000000e+00> : vector<111x1xf32>
    %138 = tpu.matmul %132, %137, %cst_42 {dimension_numbers = #tpu.dot_dimension_numbers<[1], [0], [0], [1], [0, 0, 1, 1], [], []>} : vector<111x20xf32>, vector<20x1xf32>, vector<111x1xf32> -> vector<111x1xf32>
    %139 = arith.addf %136, %138 : vector<111x1xf32>
    %140 = vector.broadcast %13 : vector<1x1xf32> to vector<111x1xf32>
    %141 = arith.addf %139, %140 : vector<111x1xf32>
    %142 = tpu.iota {dimensions = array<i32: 0>} : vector<111x111xi32>
    %143 = tpu.iota {dimensions = array<i32: 1>} : vector<111x111xi32>
    %144 = vector.shape_cast %141 : vector<111x1xf32> to vector<111x1xf32>
    %145 = vector.broadcast %144 : vector<111x1xf32> to vector<111x111xf32>
    %cst_43 = arith.constant 1.000000e+00 : f32
    %146 = vector.broadcast %cst_43 : f32 to vector<111x1xf32>
    %cst_44 = arith.constant dense<0.000000e+00> : vector<111x111xf32>
    %147 = tpu.matmul %146, %141, %cst_44 {dimension_numbers = #tpu.dot_dimension_numbers<[1], [1], [0], [0], [0, 0, 1, 0], [], []>} : vector<111x1xf32>, vector<111x1xf32>, vector<111x111xf32> -> vector<111x111xf32>
    %148 = arith.cmpf ogt, %147, %145 : vector<111x111xf32>
    %149 = arith.cmpf oeq, %147, %145 : vector<111x111xf32>
    %150 = arith.cmpi slt, %143, %142 : vector<111x111xi32>
    %151 = arith.andi %149, %150 : vector<111x111xi1>
    %152 = arith.ori %148, %151 : vector<111x111xi1>
    %153 = arith.extui %152 : vector<111x111xi1> to vector<111x111xi32>
    %154 = arith.sitofp %153 : vector<111x111xi32> to vector<111x111xf32>
    %cst_45 = arith.constant dense<0.000000e+00> : vector<111xf32>
    %155 = vector.multi_reduction <add>, %154, %cst_45 [1] : vector<111x111xf32> to vector<111xf32>
    %156 = vector.shape_cast %155 : vector<111xf32> to vector<111x1xf32>
    %cst_46 = arith.constant 1.000000e+00 : f32
    %157 = vector.broadcast %cst_46 : f32 to vector<111x1xf32>
    %cst_47 = arith.constant dense<0.000000e+00> : vector<111x111xf32>
    %158 = tpu.matmul %157, %156, %cst_47 {dimension_numbers = #tpu.dot_dimension_numbers<[1], [1], [0], [0], [0, 0, 1, 0], [], []>} : vector<111x1xf32>, vector<111x1xf32>, vector<111x111xf32> -> vector<111x111xf32>
    %159 = arith.sitofp %142 : vector<111x111xi32> to vector<111x111xf32>
    %160 = arith.cmpf oeq, %158, %159 : vector<111x111xf32>
    %c100_i32 = arith.constant 100 : i32
    %161 = vector.broadcast %c100_i32 : i32 to vector<111x111xi32>
    %162 = arith.cmpi slt, %142, %161 : vector<111x111xi32>
    %163 = arith.andi %160, %162 : vector<111x111xi1>
    %164 = arith.extui %163 : vector<111x111xi1> to vector<111x111xi32>
    %165 = arith.sitofp %164 : vector<111x111xi32> to vector<111x111xf32>
    %166 = vector.extract_strided_slice %165 {offsets = [0, 0], sizes = [100, 111], strides = [1, 1]} : vector<111x111xf32> to vector<100x111xf32>
    %cst_48 = arith.constant dense<0.000000e+00> : vector<100x20xf32>
    %167 = tpu.matmul %166, %132, %cst_48 {dimension_numbers = #tpu.dot_dimension_numbers<[1], [0], [0], [1], [0, 0, 1, 1], [], []>} : vector<100x111xf32>, vector<111x20xf32>, vector<100x20xf32> -> vector<100x20xf32>
    %cst_49 = arith.constant dense<0.000000e+00> : vector<100x1xf32>
    %168 = tpu.matmul %166, %141, %cst_49 {dimension_numbers = #tpu.dot_dimension_numbers<[1], [0], [0], [1], [0, 0, 1, 1], [], []>} : vector<100x111xf32>, vector<111x1xf32>, vector<100x1xf32> -> vector<100x1xf32>
    %169 = math.tanh %168 : vector<100x1xf32>
    %170 = vector.broadcast %169 : vector<100x1xf32> to vector<100x20xf32>
    %171 = arith.mulf %167, %170 : vector<100x20xf32>
    %cst_50 = arith.constant 0.000000e+00 : f32
    %172 = vector.broadcast %cst_50 : f32 to vector<111x111xf32>
    %173 = arith.cmpf ogt, %1, %172 : vector<111x111xf32>
    %174 = arith.extui %173 : vector<111x111xi1> to vector<111x111xi32>
    %175 = arith.sitofp %174 : vector<111x111xi32> to vector<111x111xf32>
    %cst_51 = arith.constant dense<0.000000e+00> : vector<111x111xf32>
    %176 = tpu.matmul %165, %175, %cst_51 {dimension_numbers = #tpu.dot_dimension_numbers<[1], [0], [0], [1], [0, 0, 1, 1], [], []>} : vector<111x111xf32>, vector<111x111xf32>, vector<111x111xf32> -> vector<111x111xf32>
    %cst_52 = arith.constant dense<0.000000e+00> : vector<111x111xf32>
    %177 = tpu.matmul %176, %165, %cst_52 {dimension_numbers = #tpu.dot_dimension_numbers<[1], [1], [0], [0], [0, 0, 1, 0], [], []>} : vector<111x111xf32>, vector<111x111xf32>, vector<111x111xf32> -> vector<111x111xf32>
    %cst_53 = arith.constant dense<0.000000e+00> : vector<111xf32>
    %178 = vector.multi_reduction <add>, %177, %cst_53 [1] : vector<111x111xf32> to vector<111xf32>
    %179 = vector.shape_cast %178 : vector<111xf32> to vector<111x1xf32>
    %cst_54 = arith.constant 0.000000e+00 : f32
    %180 = vector.broadcast %cst_54 : f32 to vector<111x1xf32>
    %181 = arith.cmpf ogt, %179, %180 : vector<111x1xf32>
    %cst_55 = arith.constant 9.99999996E-13 : f32
    %182 = vector.broadcast %cst_55 : f32 to vector<111x1xf32>
    %183 = arith.maximumf %179, %182 : vector<111x1xf32>
    %184 = math.rsqrt %183 : vector<111x1xf32>
    %cst_56 = arith.constant 0.000000e+00 : f32
    %185 = vector.broadcast %cst_56 : f32 to vector<111x1xf32>
    %186 = arith.select %181, %184, %185 : vector<111x1xi1>, vector<111x1xf32>
    %187 = vector.broadcast %186 : vector<111x1xf32> to vector<111x20xf32>
    %188 = arith.mulf %187, %132 : vector<111x20xf32>
    %cst_57 = arith.constant dense<0.000000e+00> : vector<111x20xf32>
    %189 = tpu.matmul %177, %188, %cst_57 {dimension_numbers = #tpu.dot_dimension_numbers<[1], [0], [0], [1], [0, 0, 1, 1], [], []>} : vector<111x111xf32>, vector<111x20xf32>, vector<111x20xf32> -> vector<111x20xf32>
    %190 = vector.broadcast %186 : vector<111x1xf32> to vector<111x20xf32>
    %191 = arith.mulf %190, %189 : vector<111x20xf32>
    %cst_58 = arith.constant 0.000000e+00 : f32
    %192 = vector.broadcast %cst_58 : f32 to vector<111x20xf32>
    %193 = arith.subf %192, %191 : vector<111x20xf32>
    %194 = vector.broadcast %186 : vector<111x1xf32> to vector<111x20xf32>
    %195 = arith.mulf %194, %193 : vector<111x20xf32>
    %cst_59 = arith.constant dense<0.000000e+00> : vector<111x20xf32>
    %196 = tpu.matmul %177, %195, %cst_59 {dimension_numbers = #tpu.dot_dimension_numbers<[1], [0], [0], [1], [0, 0, 1, 1], [], []>} : vector<111x111xf32>, vector<111x20xf32>, vector<111x20xf32> -> vector<111x20xf32>
    %197 = vector.broadcast %186 : vector<111x1xf32> to vector<111x20xf32>
    %198 = arith.mulf %197, %196 : vector<111x20xf32>
    %cst_60 = arith.constant 0.000000e+00 : f32
    %199 = vector.broadcast %cst_60 : f32 to vector<111x20xf32>
    %200 = arith.subf %199, %198 : vector<111x20xf32>
    %cst_61 = arith.constant 2.000000e+00 : f32
    %201 = vector.broadcast %cst_61 : f32 to vector<111x20xf32>
    %202 = arith.mulf %201, %200 : vector<111x20xf32>
    %203 = arith.subf %202, %132 : vector<111x20xf32>
    %c0_62 = arith.constant 0 : index
    %c0_63 = arith.constant 0 : index
    %c0_64 = arith.constant 0 : index
    %204 = vector.load %arg9[%c0_62, %c0_63, %c0_64] : memref<3x20x56xf32, #tpu.memory_space<vmem>>, vector<1x20x56xf32>
    %205 = vector.shape_cast %204 : vector<1x20x56xf32> to vector<20x56xf32>
    %cst_65 = arith.constant dense<0.000000e+00> : vector<111x56xf32>
    %206 = tpu.matmul %132, %205, %cst_65 {dimension_numbers = #tpu.dot_dimension_numbers<[1], [0], [0], [1], [0, 0, 1, 1], [], []>} : vector<111x20xf32>, vector<20x56xf32>, vector<111x56xf32> -> vector<111x56xf32>
    %c1 = arith.constant 1 : index
    %c0_66 = arith.constant 0 : index
    %c0_67 = arith.constant 0 : index
    %207 = vector.load %arg9[%c1, %c0_66, %c0_67] : memref<3x20x56xf32, #tpu.memory_space<vmem>>, vector<1x20x56xf32>
    %208 = vector.shape_cast %207 : vector<1x20x56xf32> to vector<20x56xf32>
    %cst_68 = arith.constant dense<0.000000e+00> : vector<111x56xf32>
    %209 = tpu.matmul %193, %208, %cst_68 {dimension_numbers = #tpu.dot_dimension_numbers<[1], [0], [0], [1], [0, 0, 1, 1], [], []>} : vector<111x20xf32>, vector<20x56xf32>, vector<111x56xf32> -> vector<111x56xf32>
    %210 = arith.addf %206, %209 : vector<111x56xf32>
    %c2 = arith.constant 2 : index
    %c0_69 = arith.constant 0 : index
    %c0_70 = arith.constant 0 : index
    %211 = vector.load %arg9[%c2, %c0_69, %c0_70] : memref<3x20x56xf32, #tpu.memory_space<vmem>>, vector<1x20x56xf32>
    %212 = vector.shape_cast %211 : vector<1x20x56xf32> to vector<20x56xf32>
    %cst_71 = arith.constant dense<0.000000e+00> : vector<111x56xf32>
    %213 = tpu.matmul %203, %212, %cst_71 {dimension_numbers = #tpu.dot_dimension_numbers<[1], [0], [0], [1], [0, 0, 1, 1], [], []>} : vector<111x20xf32>, vector<20x56xf32>, vector<111x56xf32> -> vector<111x56xf32>
    %214 = arith.addf %210, %213 : vector<111x56xf32>
    %215 = vector.broadcast %14 : vector<1x56xf32> to vector<111x56xf32>
    %216 = arith.addf %214, %215 : vector<111x56xf32>
    %cst_72 = arith.constant dense<0xFF800000> : vector<111xf32>
    %217 = vector.multi_reduction <maximumf>, %216, %cst_72 [1] : vector<111x56xf32> to vector<111xf32>
    %218 = vector.shape_cast %217 : vector<111xf32> to vector<111x1xf32>
    %219 = vector.broadcast %218 : vector<111x1xf32> to vector<111x56xf32>
    %220 = arith.subf %216, %219 : vector<111x56xf32>
    %221 = math.exp %220 : vector<111x56xf32>
    %cst_73 = arith.constant dense<0.000000e+00> : vector<111xf32>
    %222 = vector.multi_reduction <add>, %221, %cst_73 [1] : vector<111x56xf32> to vector<111xf32>
    %223 = vector.shape_cast %222 : vector<111xf32> to vector<111x1xf32>
    %224 = tpu.reciprocal %223 {approx = true} : vector<111x1xf32> -> vector<111x1xf32>
    %225 = vector.broadcast %224 : vector<111x1xf32> to vector<111x56xf32>
    %226 = arith.mulf %221, %225 : vector<111x56xf32>
    %cst_74 = arith.constant dense<0xFF800000> : vector<111xf32>
    %227 = vector.multi_reduction <maximumf>, %226, %cst_74 [1] : vector<111x56xf32> to vector<111xf32>
    %228 = vector.shape_cast %227 : vector<111xf32> to vector<111x1xf32>
    %229 = vector.broadcast %228 : vector<111x1xf32> to vector<111x56xf32>
    %230 = arith.subf %226, %229 : vector<111x56xf32>
    %231 = math.exp %230 : vector<111x56xf32>
    %cst_75 = arith.constant dense<0.000000e+00> : vector<111xf32>
    %232 = vector.multi_reduction <add>, %231, %cst_75 [1] : vector<111x56xf32> to vector<111xf32>
    %233 = vector.shape_cast %232 : vector<111xf32> to vector<111x1xf32>
    %234 = tpu.reciprocal %233 {approx = true} : vector<111x1xf32> -> vector<111x1xf32>
    %235 = vector.broadcast %234 : vector<111x1xf32> to vector<111x56xf32>
    %236 = arith.mulf %231, %235 : vector<111x56xf32>
    %237 = tpu.iota {dimensions = array<i32: 0>} : vector<111x1xi32>
    %cst_76 = arith.constant 1.000000e+02 : f32
    %238 = vector.broadcast %cst_76 : f32 to vector<111x1xf32>
    %239 = arith.cmpf olt, %156, %238 : vector<111x1xf32>
    %c110_i32 = arith.constant 110 : i32
    %240 = vector.broadcast %c110_i32 : i32 to vector<111x1xi32>
    %241 = arith.cmpi slt, %237, %240 : vector<111x1xi32>
    %242 = arith.andi %239, %241 : vector<111x1xi1>
    %243 = arith.extui %242 : vector<111x1xi1> to vector<111x1xi32>
    %244 = arith.sitofp %243 : vector<111x1xi32> to vector<111x1xf32>
    %245 = arith.cmpi sle, %143, %142 : vector<111x111xi32>
    %246 = arith.extui %245 : vector<111x111xi1> to vector<111x111xi32>
    %247 = arith.sitofp %246 : vector<111x111xi32> to vector<111x111xf32>
    %cst_77 = arith.constant dense<0.000000e+00> : vector<111x1xf32>
    %248 = tpu.matmul %247, %244, %cst_77 {dimension_numbers = #tpu.dot_dimension_numbers<[1], [0], [0], [1], [0, 0, 1, 1], [], []>} : vector<111x111xf32>, vector<111x1xf32>, vector<111x1xf32> -> vector<111x1xf32>
    %cst_78 = arith.constant 1.000000e+00 : f32
    %249 = vector.broadcast %cst_78 : f32 to vector<111x1xf32>
    %250 = arith.subf %248, %249 : vector<111x1xf32>
    %cst_79 = arith.constant 0.000000e+00 : f32
    %251 = vector.broadcast %cst_79 : f32 to vector<111x1xf32>
    %252 = arith.cmpf ogt, %244, %251 : vector<111x1xf32>
    %cst_80 = arith.constant -1.000000e+00 : f32
    %253 = vector.broadcast %cst_80 : f32 to vector<111x1xf32>
    %254 = arith.select %252, %250, %253 : vector<111x1xi1>, vector<111x1xf32>
    %255 = tpu.iota {dimensions = array<i32: 0>} : vector<100x111xi32>
    %256 = arith.sitofp %255 : vector<100x111xi32> to vector<100x111xf32>
    %cst_81 = arith.constant 1.000000e+00 : f32
    %257 = vector.broadcast %cst_81 : f32 to vector<100x1xf32>
    %cst_82 = arith.constant dense<0.000000e+00> : vector<100x111xf32>
    %258 = tpu.matmul %257, %254, %cst_82 {dimension_numbers = #tpu.dot_dimension_numbers<[1], [1], [0], [0], [0, 0, 1, 0], [], []>} : vector<100x1xf32>, vector<111x1xf32>, vector<100x111xf32> -> vector<100x111xf32>
    %259 = arith.cmpf oeq, %256, %258 : vector<100x111xf32>
    %260 = arith.extui %259 : vector<100x111xi1> to vector<100x111xi32>
    %261 = arith.sitofp %260 : vector<100x111xi32> to vector<100x111xf32>
    %cst_83 = arith.constant dense<0.000000e+00> : vector<100x56xf32>
    %262 = tpu.matmul %261, %226, %cst_83 {dimension_numbers = #tpu.dot_dimension_numbers<[1], [0], [0], [1], [0, 0, 1, 1], [], []>} : vector<100x111xf32>, vector<111x56xf32>, vector<100x56xf32> -> vector<100x56xf32>
    %cst_84 = arith.constant dense<0.000000e+00> : vector<100x111xf32>
    %263 = tpu.matmul %262, %236, %cst_84 {dimension_numbers = #tpu.dot_dimension_numbers<[1], [1], [0], [0], [0, 0, 1, 0], [], []>} : vector<100x56xf32>, vector<111x56xf32>, vector<100x111xf32> -> vector<100x111xf32>
    %cst_85 = arith.constant dense<0.000000e+00> : vector<100x20xf32>
    %264 = tpu.matmul %263, %132, %cst_85 {dimension_numbers = #tpu.dot_dimension_numbers<[1], [0], [0], [1], [0, 0, 1, 1], [], []>} : vector<100x111xf32>, vector<111x20xf32>, vector<100x20xf32> -> vector<100x20xf32>
    %265 = arith.addf %171, %264 : vector<100x20xf32>
    %c0_86 = arith.constant 0 : index
    %c0_87 = arith.constant 0 : index
    %c0_88 = arith.constant 0 : index
    %266 = vector.load %arg10[%c0_86, %c0_87, %c0_88] : memref<1x100x20xf32, #tpu.memory_space<vmem>>, vector<1x100x20xf32>
    %267 = vector.shape_cast %266 : vector<1x100x20xf32> to vector<100x20xf32>
    %268 = vector.shape_cast %265 : vector<100x20xf32> to vector<1x100x20xf32>
    tpu.vector_store %arg10[%c0_86, %c0_87, %c0_88], %268 {strides = array<i32>} : memref<1x100x20xf32, #tpu.memory_space<vmem>>, vector<1x100x20xf32>,
    return
  }
  func.func @transform_0(%arg0: i32) -> (i32, i32, i32) {
    %c0_i32 = arith.constant 0 : i32
    %c0_i32_0 = arith.constant 0 : i32
    %c0_i32_1 = arith.constant 0 : i32
    return %arg0, %c0_i32, %c0_i32_0 : i32, i32, i32
  }
  func.func @transform_1(%arg0: i32) -> (i32, i32, i32) {
    %c0_i32 = arith.constant 0 : i32
    %c0_i32_0 = arith.constant 0 : i32
    %c0_i32_1 = arith.constant 0 : i32
    return %arg0, %c0_i32, %c0_i32_0 : i32, i32, i32
  }
  func.func @transform_2(%arg0: i32) -> (i32, i32) {
    %c0_i32 = arith.constant 0 : i32
    %c0_i32_0 = arith.constant 0 : i32
    %c0_i32_1 = arith.constant 0 : i32
    return %c0_i32, %c0_i32_0 : i32, i32
  }
  func.func @transform_3(%arg0: i32) -> (i32, i32) {
    %c0_i32 = arith.constant 0 : i32
    %c0_i32_0 = arith.constant 0 : i32
    %c0_i32_1 = arith.constant 0 : i32
    return %c0_i32, %c0_i32_0 : i32, i32
  }
  func.func @transform_4(%arg0: i32) -> (i32, i32) {
    %c0_i32 = arith.constant 0 : i32
    %c0_i32_0 = arith.constant 0 : i32
    %c0_i32_1 = arith.constant 0 : i32
    return %c0_i32, %c0_i32_0 : i32, i32
  }
  func.func @transform_5(%arg0: i32) -> (i32, i32) {
    %c0_i32 = arith.constant 0 : i32
    %c0_i32_0 = arith.constant 0 : i32
    %c0_i32_1 = arith.constant 0 : i32
    return %c0_i32, %c0_i32_0 : i32, i32
  }
  func.func @transform_6(%arg0: i32) -> (i32, i32) {
    %c0_i32 = arith.constant 0 : i32
    %c0_i32_0 = arith.constant 0 : i32
    %c0_i32_1 = arith.constant 0 : i32
    return %c0_i32, %c0_i32_0 : i32, i32
  }
  func.func @transform_7(%arg0: i32) -> (i32, i32) {
    %c0_i32 = arith.constant 0 : i32
    %c0_i32_0 = arith.constant 0 : i32
    %c0_i32_1 = arith.constant 0 : i32
    return %c0_i32, %c0_i32_0 : i32, i32
  }
  func.func @transform_8(%arg0: i32) -> (i32, i32, i32) {
    %c0_i32 = arith.constant 0 : i32
    %c0_i32_0 = arith.constant 0 : i32
    %c0_i32_1 = arith.constant 0 : i32
    %c0_i32_2 = arith.constant 0 : i32
    return %c0_i32, %c0_i32_0, %c0_i32_1 : i32, i32, i32
  }
  func.func @transform_9(%arg0: i32) -> (i32, i32, i32) {
    %c0_i32 = arith.constant 0 : i32
    %c0_i32_0 = arith.constant 0 : i32
    %c0_i32_1 = arith.constant 0 : i32
    return %arg0, %c0_i32, %c0_i32_0 : i32, i32, i32
  }
}

</mosaic_0001>

<llo_original>
// kernel: fc_hgnn_forward.3
$region0: #{fc_hgnn_forward.3}
  #allocation0 [shape = 'u32[]', space=smem, size = 0x4, offset = 0x4, fixed_abs, tag = 'smem constant byte address 0x4 - core index']
  #allocation1 [shape = 'u32[72,128]{1,0:T(1,128)}', space=vmem, size = 0x9000, scoped, tag = 'internal scratch']
  %s0 = inlined_call_operand.vmem [shape: f32[4,2000], index: 0, kind: input, shape index: {}]
  %s1 = inlined_call_operand.vmem [shape: f32[4,4], index: 1, kind: input, shape index: {}]
  %s2 = inlined_call_operand.vmem [shape: f32[4,4], index: 2, kind: input, shape index: {}]
  %s3 = inlined_call_operand.vmem [shape: f32[2000,160], index: 3, kind: input, shape index: {}]
  %s4 = inlined_call_operand.vmem [shape: f32[1,160], index: 4, kind: input, shape index: {}]
  %s5 = inlined_call_operand.vmem [shape: f32[3,20,160], index: 5, kind: input, shape index: {}]
  %s6 = inlined_call_operand.vmem [shape: f32[3,1,160], index: 6, kind: input, shape index: {}]
  %s7 = inlined_call_operand.vmem [shape: f32[4,20,2], index: 7, kind: input, shape index: {}]
  %s8 = inlined_call_operand.vmem [shape: f32[1,2], index: 8, kind: input, shape index: {}]
  %s9 = inlined_call_operand.vmem [shape: f32[4,2], index: 9, kind: output, shape index: {}]
  %s10 = sld [smem:[#allocation0]]
  $region46: #{fc_hgnn_forward.3} parent=0
    _
  %s12 = ssub.s32 1, %s10
  %s13 = scalar_select 0, %s12, %s10
  // Predicated region
  $region2: #{fc_hgnn_forward.3} parent=0 // pred_check
    _
  $region3: #{fc_hgnn_forward.3} parent=0 // pred_check_branch
    %15 = sbr.rel (0) target = $region5
  $region4: #{fc_hgnn_forward.3} parent=0 // pred_region
    _
  $region5: #{fc_hgnn_forward.3} parent=0 // pred_fallthru
    _
  // Predicated region
  $region6: #{fc_hgnn_forward.3} parent=0 // pred_check
    _
  $region7: #{fc_hgnn_forward.3} parent=0 // pred_check_branch
    %17 = sbr.rel (0) target = $region9
  $region8: #{fc_hgnn_forward.3} parent=0 // pred_region
    _
  $region9: #{fc_hgnn_forward.3} parent=0 // pred_fallthru
    _
  // Predicated region
  $region10: #{fc_hgnn_forward.3} parent=0 // pred_check
    _
  $region11: #{fc_hgnn_forward.3} parent=0 // pred_check_branch
    %19 = sbr.rel (0) target = $region13
  $region12: #{fc_hgnn_forward.3} parent=0 // pred_region
    _
  $region13: #{fc_hgnn_forward.3} parent=0 // pred_fallthru
    _
  // Predicated region
  $region14: #{fc_hgnn_forward.3} parent=0 // pred_check
    _
  $region15: #{fc_hgnn_forward.3} parent=0 // pred_check_branch
    %21 = sbr.rel (0) target = $region17
  $region16: #{fc_hgnn_forward.3} parent=0 // pred_region
    _
  $region17: #{fc_hgnn_forward.3} parent=0 // pred_fallthru
    _
  // Predicated region
  $region18: #{fc_hgnn_forward.3} parent=0 // pred_check
    _
  $region19: #{fc_hgnn_forward.3} parent=0 // pred_check_branch
    %23 = sbr.rel (0) target = $region21
  $region20: #{fc_hgnn_forward.3} parent=0 // pred_region
    _
  $region21: #{fc_hgnn_forward.3} parent=0 // pred_fallthru
    _
  // Predicated region
  $region22: #{fc_hgnn_forward.3} parent=0 // pred_check
    _
  $region23: #{fc_hgnn_forward.3} parent=0 // pred_check_branch
    %25 = sbr.rel (0) target = $region25
  $region24: #{fc_hgnn_forward.3} parent=0 // pred_region
    _
  $region25: #{fc_hgnn_forward.3} parent=0 // pred_fallthru
    _
  // Predicated region
  $region26: #{fc_hgnn_forward.3} parent=0 // pred_check
    _
  $region27: #{fc_hgnn_forward.3} parent=0 // pred_check_branch
    %27 = sbr.rel (0) target = $region29
  $region28: #{fc_hgnn_forward.3} parent=0 // pred_region
    _
  $region29: #{fc_hgnn_forward.3} parent=0 // pred_fallthru
    _
  // Predicated region
  $region30: #{fc_hgnn_forward.3} parent=0 // pred_check
    _
  $region31: #{fc_hgnn_forward.3} parent=0 // pred_check_branch
    %29 = sbr.rel (0) target = $region33
  $region32: #{fc_hgnn_forward.3} parent=0 // pred_region
    _
  $region33: #{fc_hgnn_forward.3} parent=0 // pred_fallthru
    _
  // Predicated region
  $region34: #{fc_hgnn_forward.3} parent=0 // pred_check
    _
  $region35: #{fc_hgnn_forward.3} parent=0 // pred_check_branch
    %31 = sbr.rel (0) target = $region37
  $region36: #{fc_hgnn_forward.3} parent=0 // pred_region
    _
  $region37: #{fc_hgnn_forward.3} parent=0 // pred_fallthru
    _
  %v32 = vld [vmem:[%s1] sm:$0xf]
  %v33 = vld [vmem:[%s2] sm:$0xf]
  %v34 = vld [vmem:[%s0] sm:$0xff]
  %v35 = vld [vmem:[%s0 + $0x8] sm:$0xff]
  %v36 = vld [vmem:[%s0 + $0x10] sm:$0xff]
  %v37 = vld [vmem:[%s0 + $0x18] sm:$0xff]
  %v38 = vld [vmem:[%s0 + $0x20] sm:$0xff]
  %v39 = vld [vmem:[%s0 + $0x28] sm:$0xff]
  %v40 = vld [vmem:[%s0 + $0x30] sm:$0xff]
  %v41 = vld [vmem:[%s0 + $0x38] sm:$0xff]
  %v42 = vld [vmem:[%s8] sm:$0x1]
  %v44 = vperm.slane %v42, 0
  %v46 = vadd.f32 %v44, 0.0
  %v47 = vld [vmem:[%s3] sm:$0xff]
  %v48 = vld [vmem:[%s3 + $0x8] sm:$0xff]
  %v49 = vld [vmem:[%s3 + $0x10] sm:$0xff]
  %v50 = vld [vmem:[%s3 + $0x18] sm:$0xff]
  %v51 = vld [vmem:[%s3 + $0x20] sm:$0xff]
  %v52 = vld [vmem:[%s3 + $0x28] sm:$0xff]
  %v53 = vld [vmem:[%s3 + $0x30] sm:$0xff]
  %v54 = vld [vmem:[%s3 + $0x38] sm:$0xff]
  %v55 = vld [vmem:[%s3 + $0x40] sm:$0xff]
  %v56 = vld [vmem:[%s3 + $0x48] sm:$0xff]
  %v57 = vld [vmem:[%s3 + $0x50] sm:$0xff]
  %v58 = vld [vmem:[%s3 + $0x58] sm:$0xff]
  %v59 = vld [vmem:[%s3 + $0x60] sm:$0xff]
  %v60 = vld [vmem:[%s3 + $0x68] sm:$0xff]
  %v61 = vld [vmem:[%s3 + $0x70] sm:$0xff]
  %v62 = vld [vmem:[%s3 + $0x78] sm:$0xff]
  %v63 = vld [vmem:[%s3 + $0x80] sm:$0xff]
  %v64 = vld [vmem:[%s3 + $0x88] sm:$0xff]
  %v65 = vld [vmem:[%s3 + $0x90] sm:$0xff]
  %v66 = vld [vmem:[%s3 + $0x98] sm:$0xff]
  %v67 = vld [vmem:[%s3 + $0xa0] sm:$0xff]
  %v68 = vld [vmem:[%s3 + $0xa8] sm:$0xff]
  %v69 = vld [vmem:[%s3 + $0xb0] sm:$0xff]
  %v70 = vld [vmem:[%s3 + $0xb8] sm:$0xff]
  %v71 = vld [vmem:[%s3 + $0xc0] sm:$0xff]
  %v72 = vld [vmem:[%s3 + $0xc8] sm:$0xff]
  %v73 = vld [vmem:[%s3 + $0xd0] sm:$0xff]
  %v74 = vld [vmem:[%s3 + $0xd8] sm:$0xff]
  %v75 = vld [vmem:[%s3 + $0xe0] sm:$0xff]
  %v76 = vld [vmem:[%s3 + $0xe8] sm:$0xff]
  %v77 = vld [vmem:[%s3 + $0xf0] sm:$0xff]
  %v78 = vld [vmem:[%s3 + $0xf8] sm:$0xff]
  %v79 = vld [vmem:[%s3 + $0x100] sm:$0xff]
  %v80 = vld [vmem:[%s3 + $0x108] sm:$0xff]
  %v81 = vld [vmem:[%s3 + $0x110] sm:$0xff]
  %v82 = vld [vmem:[%s3 + $0x118] sm:$0xff]
  %v83 = vld [vmem:[%s3 + $0x120] sm:$0xff]
  %v84 = vld [vmem:[%s3 + $0x128] sm:$0xff]
  %v85 = vld [vmem:[%s3 + $0x130] sm:$0xff]
  %v86 = vld [vmem:[%s3 + $0x138] sm:$0xff]
  %v87 = vld [vmem:[%s3 + $0x140] sm:$0xff]
  %v88 = vld [vmem:[%s3 + $0x148] sm:$0xff]
  %v89 = vld [vmem:[%s3 + $0x150] sm:$0xff]
  %v90 = vld [vmem:[%s3 + $0x158] sm:$0xff]
  %v91 = vld [vmem:[%s3 + $0x160] sm:$0xff]
  %v92 = vld [vmem:[%s3 + $0x168] sm:$0xff]
  %v93 = vld [vmem:[%s3 + $0x170] sm:$0xff]
  %v94 = vld [vmem:[%s3 + $0x178] sm:$0xff]
  %v95 = vld [vmem:[%s3 + $0x180] sm:$0xff]
  %v96 = vld [vmem:[%s3 + $0x188] sm:$0xff]
  %v97 = vld [vmem:[%s3 + $0x190] sm:$0xff]
  %v98 = vld [vmem:[%s3 + $0x198] sm:$0xff]
  %v99 = vld [vmem:[%s3 + $0x1a0] sm:$0xff]
  %v100 = vld [vmem:[%s3 + $0x1a8] sm:$0xff]
  %v101 = vld [vmem:[%s3 + $0x1b0] sm:$0xff]
  %v102 = vld [vmem:[%s3 + $0x1b8] sm:$0xff]
  %v103 = vld [vmem:[%s3 + $0x1c0] sm:$0xff]
  %v104 = vld [vmem:[%s3 + $0x1c8] sm:$0xff]
  %v105 = vld [vmem:[%s3 + $0x1d0] sm:$0xff]
  %v106 = vld [vmem:[%s3 + $0x1d8] sm:$0xff]
  %v107 = vld [vmem:[%s3 + $0x1e0] sm:$0xff]
  %v108 = vld [vmem:[%s3 + $0x1e8] sm:$0xff]
  %v109 = vld [vmem:[%s3 + $0x1f0] sm:$0xff]
  %v110 = vld [vmem:[%s3 + $0x1f8] sm:$0xff]
  %v111 = vld [vmem:[%s3 + $0x200] sm:$0xff]
  %v112 = vld [vmem:[%s3 + $0x208] sm:$0xff]
  %v113 = vld [vmem:[%s3 + $0x210] sm:$0xff]
  %v114 = vld [vmem:[%s3 + $0x218] sm:$0xff]
  %v115 = vld [vmem:[%s3 + $0x220] sm:$0xff]
  %v116 = vld [vmem:[%s3 + $0x228] sm:$0xff]
  %v117 = vld [vmem:[%s3 + $0x230] sm:$0xff]
  %v118 = vld [vmem:[%s3 + $0x238] sm:$0xff]
  %v119 = vld [vmem:[%s3 + $0x240] sm:$0xff]
  %v120 = vld [vmem:[%s3 + $0x248] sm:$0xff]
  %v121 = vld [vmem:[%s3 + $0x250] sm:$0xff]
  %v122 = vld [vmem:[%s3 + $0x258] sm:$0xff]
  %v123 = vld [vmem:[%s3 + $0x260] sm:$0xff]
  %v124 = vld [vmem:[%s3 + $0x268] sm:$0xff]
  %v125 = vld [vmem:[%s3 + $0x270] sm:$0xff]
  %v126 = vld [vmem:[%s3 + $0x278] sm:$0xff]
  %v127 = vld [vmem:[%s3 + $0x280] sm:$0xff]
  %v128 = vld [vmem:[%s3 + $0x288] sm:$0xff]
  %v129 = vld [vmem:[%s3 + $0x290] sm:$0xff]
  %v130 = vld [vmem:[%s3 + $0x298] sm:$0xff]
  %v131 = vld [vmem:[%s3 + $0x2a0] sm:$0xff]
  %v132 = vld [vmem:[%s3 + $0x2a8] sm:$0xff]
  %v133 = vld [vmem:[%s3 + $0x2b0] sm:$0xff]
  %v134 = vld [vmem:[%s3 + $0x2b8] sm:$0xff]
  %v135 = vld [vmem:[%s3 + $0x2c0] sm:$0xff]
  %v136 = vld [vmem:[%s3 + $0x2c8] sm:$0xff]
  %v137 = vld [vmem:[%s3 + $0x2d0] sm:$0xff]
  %v138 = vld [vmem:[%s3 + $0x2d8] sm:$0xff]
  %v139 = vld [vmem:[%s3 + $0x2e0] sm:$0xff]
  %v140 = vld [vmem:[%s3 + $0x2e8] sm:$0xff]
  %v141 = vld [vmem:[%s3 + $0x2f0] sm:$0xff]
  %v142 = vld [vmem:[%s3 + $0x2f8] sm:$0xff]
  %v143 = vld [vmem:[%s3 + $0x300] sm:$0xff]
  %v144 = vld [vmem:[%s3 + $0x308] sm:$0xff]
  %v145 = vld [vmem:[%s3 + $0x310] sm:$0xff]
  %v146 = vld [vmem:[%s3 + $0x318] sm:$0xff]
  %v147 = vld [vmem:[%s3 + $0x320] sm:$0xff]
  %v148 = vld [vmem:[%s3 + $0x328] sm:$0xff]
  %v149 = vld [vmem:[%s3 + $0x330] sm:$0xff]
  %v150 = vld [vmem:[%s3 + $0x338] sm:$0xff]
  %v151 = vld [vmem:[%s3 + $0x340] sm:$0xff]
  %v152 = vld [vmem:[%s3 + $0x348] sm:$0xff]
  %v153 = vld [vmem:[%s3 + $0x350] sm:$0xff]
  %v154 = vld [vmem:[%s3 + $0x358] sm:$0xff]
  %v155 = vld [vmem:[%s3 + $0x360] sm:$0xff]
  %v156 = vld [vmem:[%s3 + $0x368] sm:$0xff]
  %v157 = vld [vmem:[%s3 + $0x370] sm:$0xff]
  %v158 = vld [vmem:[%s3 + $0x378] sm:$0xff]
  %v159 = vld [vmem:[%s3 + $0x380] sm:$0xff]
  %v160 = vld [vmem:[%s3 + $0x388] sm:$0xff]
  %v161 = vld [vmem:[%s3 + $0x390] sm:$0xff]
  %v162 = vld [vmem:[%s3 + $0x398] sm:$0xff]
  %v163 = vld [vmem:[%s3 + $0x3a0] sm:$0xff]
  %v164 = vld [vmem:[%s3 + $0x3a8] sm:$0xff]
  %v165 = vld [vmem:[%s3 + $0x3b0] sm:$0xff]
  %v166 = vld [vmem:[%s3 + $0x3b8] sm:$0xff]
  %v167 = vld [vmem:[%s3 + $0x3c0] sm:$0xff]
  %v168 = vld [vmem:[%s3 + $0x3c8] sm:$0xff]
  %v169 = vld [vmem:[%s3 + $0x3d0] sm:$0xff]
  %v170 = vld [vmem:[%s3 + $0x3d8] sm:$0xff]
  %v171 = vld [vmem:[%s3 + $0x3e0] sm:$0xff]
  %v172 = vld [vmem:[%s3 + $0x3e8] sm:$0xff]
  %v173 = vld [vmem:[%s3 + $0x3f0] sm:$0xff]
  %v174 = vld [vmem:[%s3 + $0x3f8] sm:$0xff]
  %v175 = vld [vmem:[%s3 + $0x400] sm:$0xff]
  %v176 = vld [vmem:[%s3 + $0x408] sm:$0xff]
  %v177 = vld [vmem:[%s3 + $0x410] sm:$0xff]
  %v178 = vld [vmem:[%s3 + $0x418] sm:$0xff]
  %v179 = vld [vmem:[%s3 + $0x420] sm:$0xff]
  %v180 = vld [vmem:[%s3 + $0x428] sm:$0xff]
  %v181 = vld [vmem:[%s3 + $0x430] sm:$0xff]
  %v182 = vld [vmem:[%s3 + $0x438] sm:$0xff]
  %v183 = vld [vmem:[%s3 + $0x440] sm:$0xff]
  %v184 = vld [vmem:[%s3 + $0x448] sm:$0xff]
  %v185 = vld [vmem:[%s3 + $0x450] sm:$0xff]
  %v186 = vld [vmem:[%s3 + $0x458] sm:$0xff]
  %v187 = vld [vmem:[%s3 + $0x460] sm:$0xff]
  %v188 = vld [vmem:[%s3 + $0x468] sm:$0xff]
  %v189 = vld [vmem:[%s3 + $0x470] sm:$0xff]
  %v190 = vld [vmem:[%s3 + $0x478] sm:$0xff]
  %v191 = vld [vmem:[%s3 + $0x480] sm:$0xff]
  %v192 = vld [vmem:[%s3 + $0x488] sm:$0xff]
  %v193 = vld [vmem:[%s3 + $0x490] sm:$0xff]
  %v194 = vld [vmem:[%s3 + $0x498] sm:$0xff]
  %v195 = vld [vmem:[%s3 + $0x4a0] sm:$0xff]
  %v196 = vld [vmem:[%s3 + $0x4a8] sm:$0xff]
  %v197 = vld [vmem:[%s3 + $0x4b0] sm:$0xff]
  %v198 = vld [vmem:[%s3 + $0x4b8] sm:$0xff]
  %v199 = vld [vmem:[%s3 + $0x4c0] sm:$0xff]
  %v200 = vld [vmem:[%s3 + $0x4c8] sm:$0xff]
  %v201 = vld [vmem:[%s3 + $0x4d0] sm:$0xff]
  %v202 = vld [vmem:[%s3 + $0x4d8] sm:$0xff]
  %v203 = vld [vmem:[%s3 + $0x4e0] sm:$0xff]
  %v204 = vld [vmem:[%s3 + $0x4e8] sm:$0xff]
  %v205 = vld [vmem:[%s3 + $0x4f0] sm:$0xff]
  %v206 = vld [vmem:[%s3 + $0x4f8] sm:$0xff]
  %v207 = vld [vmem:[%s3 + $0x500] sm:$0xff]
  %v208 = vld [vmem:[%s3 + $0x508] sm:$0xff]
  %v209 = vld [vmem:[%s3 + $0x510] sm:$0xff]
  %v210 = vld [vmem:[%s3 + $0x518] sm:$0xff]
  %v211 = vld [vmem:[%s3 + $0x520] sm:$0xff]
  %v212 = vld [vmem:[%s3 + $0x528] sm:$0xff]
  %v213 = vld [vmem:[%s3 + $0x530] sm:$0xff]
  %v214 = vld [vmem:[%s3 + $0x538] sm:$0xff]
  %v215 = vld [vmem:[%s3 + $0x540] sm:$0xff]
  %v216 = vld [vmem:[%s3 + $0x548] sm:$0xff]
  %v217 = vld [vmem:[%s3 + $0x550] sm:$0xff]
  %v218 = vld [vmem:[%s3 + $0x558] sm:$0xff]
  %v219 = vld [vmem:[%s3 + $0x560] sm:$0xff]
  %v220 = vld [vmem:[%s3 + $0x568] sm:$0xff]
  %v221 = vld [vmem:[%s3 + $0x570] sm:$0xff]
  %v222 = vld [vmem:[%s3 + $0x578] sm:$0xff]
  %v223 = vld [vmem:[%s3 + $0x580] sm:$0xff]
  %v224 = vld [vmem:[%s3 + $0x588] sm:$0xff]
  %v225 = vld [vmem:[%s3 + $0x590] sm:$0xff]
  %v226 = vld [vmem:[%s3 + $0x598] sm:$0xff]
  %v227 = vld [vmem:[%s3 + $0x5a0] sm:$0xff]
  %v228 = vld [vmem:[%s3 + $0x5a8] sm:$0xff]
  %v229 = vld [vmem:[%s3 + $0x5b0] sm:$0xff]
  %v230 = vld [vmem:[%s3 + $0x5b8] sm:$0xff]
  %v231 = vld [vmem:[%s3 + $0x5c0] sm:$0xff]
  %v232 = vld [vmem:[%s3 + $0x5c8] sm:$0xff]
  %v233 = vld [vmem:[%s3 + $0x5d0] sm:$0xff]
  %v234 = vld [vmem:[%s3 + $0x5d8] sm:$0xff]
  %v235 = vld [vmem:[%s3 + $0x5e0] sm:$0xff]
  %v236 = vld [vmem:[%s3 + $0x5e8] sm:$0xff]
  %v237 = vld [vmem:[%s3 + $0x5f0] sm:$0xff]
  %v238 = vld [vmem:[%s3 + $0x5f8] sm:$0xff]
  %v239 = vld [vmem:[%s3 + $0x600] sm:$0xff]
  %v240 = vld [vmem:[%s3 + $0x608] sm:$0xff]
  %v241 = vld [vmem:[%s3 + $0x610] sm:$0xff]
  %v242 = vld [vmem:[%s3 + $0x618] sm:$0xff]
  %v243 = vld [vmem:[%s3 + $0x620] sm:$0xff]
  %v244 = vld [vmem:[%s3 + $0x628] sm:$0xff]
  %v245 = vld [vmem:[%s3 + $0x630] sm:$0xff]
  %v246 = vld [vmem:[%s3 + $0x638] sm:$0xff]
  %v247 = vld [vmem:[%s3 + $0x640] sm:$0xff]
  %v248 = vld [vmem:[%s3 + $0x648] sm:$0xff]
  %v249 = vld [vmem:[%s3 + $0x650] sm:$0xff]
  %v250 = vld [vmem:[%s3 + $0x658] sm:$0xff]
  %v251 = vld [vmem:[%s3 + $0x660] sm:$0xff]
  %v252 = vld [vmem:[%s3 + $0x668] sm:$0xff]
  %v253 = vld [vmem:[%s3 + $0x670] sm:$0xff]
  %v254 = vld [vmem:[%s3 + $0x678] sm:$0xff]
  %v255 = vld [vmem:[%s3 + $0x680] sm:$0xff]
  %v256 = vld [vmem:[%s3 + $0x688] sm:$0xff]
  %v257 = vld [vmem:[%s3 + $0x690] sm:$0xff]
  %v258 = vld [vmem:[%s3 + $0x698] sm:$0xff]
  %v259 = vld [vmem:[%s3 + $0x6a0] sm:$0xff]
  %v260 = vld [vmem:[%s3 + $0x6a8] sm:$0xff]
  %v261 = vld [vmem:[%s3 + $0x6b0] sm:$0xff]
  %v262 = vld [vmem:[%s3 + $0x6b8] sm:$0xff]
  %v263 = vld [vmem:[%s3 + $0x6c0] sm:$0xff]
  %v264 = vld [vmem:[%s3 + $0x6c8] sm:$0xff]
  %v265 = vld [vmem:[%s3 + $0x6d0] sm:$0xff]
  %v266 = vld [vmem:[%s3 + $0x6d8] sm:$0xff]
  %v267 = vld [vmem:[%s3 + $0x6e0] sm:$0xff]
  %v268 = vld [vmem:[%s3 + $0x6e8] sm:$0xff]
  %v269 = vld [vmem:[%s3 + $0x6f0] sm:$0xff]
  %v270 = vld [vmem:[%s3 + $0x6f8] sm:$0xff]
  %v271 = vld [vmem:[%s3 + $0x700] sm:$0xff]
  %v272 = vld [vmem:[%s3 + $0x708] sm:$0xff]
  %v273 = vld [vmem:[%s3 + $0x710] sm:$0xff]
  %v274 = vld [vmem:[%s3 + $0x718] sm:$0xff]
  %v275 = vld [vmem:[%s3 + $0x720] sm:$0xff]
  %v276 = vld [vmem:[%s3 + $0x728] sm:$0xff]
  %v277 = vld [vmem:[%s3 + $0x730] sm:$0xff]
  %v278 = vld [vmem:[%s3 + $0x738] sm:$0xff]
  %v279 = vld [vmem:[%s3 + $0x740] sm:$0xff]
  %v280 = vld [vmem:[%s3 + $0x748] sm:$0xff]
  %v281 = vld [vmem:[%s3 + $0x750] sm:$0xff]
  %v282 = vld [vmem:[%s3 + $0x758] sm:$0xff]
  %v283 = vld [vmem:[%s3 + $0x760] sm:$0xff]
  %v284 = vld [vmem:[%s3 + $0x768] sm:$0xff]
  %v285 = vld [vmem:[%s3 + $0x770] sm:$0xff]
  %v286 = vld [vmem:[%s3 + $0x778] sm:$0xff]
  %v287 = vld [vmem:[%s3 + $0x780] sm:$0xff]
  %v288 = vld [vmem:[%s3 + $0x788] sm:$0xff]
  %v289 = vld [vmem:[%s3 + $0x790] sm:$0xff]
  %v290 = vld [vmem:[%s3 + $0x798] sm:$0xff]
  %v291 = vld [vmem:[%s3 + $0x7a0] sm:$0xff]
  %v292 = vld [vmem:[%s3 + $0x7a8] sm:$0xff]
  %v293 = vld [vmem:[%s3 + $0x7b0] sm:$0xff]
  %v294 = vld [vmem:[%s3 + $0x7b8] sm:$0xff]
  %v295 = vld [vmem:[%s3 + $0x7c0] sm:$0xff]
  %v296 = vld [vmem:[%s3 + $0x7c8] sm:$0xff]
  %v297 = vld [vmem:[%s3 + $0x7d0] sm:$0xff]
  %v298 = vld [vmem:[%s3 + $0x7d8] sm:$0xff]
  %v299 = vld [vmem:[%s3 + $0x7e0] sm:$0xff]
  %v300 = vld [vmem:[%s3 + $0x7e8] sm:$0xff]
  %v301 = vld [vmem:[%s3 + $0x7f0] sm:$0xff]
  %v302 = vld [vmem:[%s3 + $0x7f8] sm:$0xff]
  %v303 = vld [vmem:[%s3 + $0x800] sm:$0xff]
  %v304 = vld [vmem:[%s3 + $0x808] sm:$0xff]
  %v305 = vld [vmem:[%s3 + $0x810] sm:$0xff]
  %v306 = vld [vmem:[%s3 + $0x818] sm:$0xff]
  %v307 = vld [vmem:[%s3 + $0x820] sm:$0xff]
  %v308 = vld [vmem:[%s3 + $0x828] sm:$0xff]
  %v309 = vld [vmem:[%s3 + $0x830] sm:$0xff]
  %v310 = vld [vmem:[%s3 + $0x838] sm:$0xff]
  %v311 = vld [vmem:[%s3 + $0x840] sm:$0xff]
  %v312 = vld [vmem:[%s3 + $0x848] sm:$0xff]
  %v313 = vld [vmem:[%s3 + $0x850] sm:$0xff]
  %v314 = vld [vmem:[%s3 + $0x858] sm:$0xff]
  %v315 = vld [vmem:[%s3 + $0x860] sm:$0xff]
  %v316 = vld [vmem:[%s3 + $0x868] sm:$0xff]
  %v317 = vld [vmem:[%s3 + $0x870] sm:$0xff]
  %v318 = vld [vmem:[%s3 + $0x878] sm:$0xff]
  %v319 = vld [vmem:[%s3 + $0x880] sm:$0xff]
  %v320 = vld [vmem:[%s3 + $0x888] sm:$0xff]
  %v321 = vld [vmem:[%s3 + $0x890] sm:$0xff]
  %v322 = vld [vmem:[%s3 + $0x898] sm:$0xff]
  %v323 = vld [vmem:[%s3 + $0x8a0] sm:$0xff]
  %v324 = vld [vmem:[%s3 + $0x8a8] sm:$0xff]
  %v325 = vld [vmem:[%s3 + $0x8b0] sm:$0xff]
  %v326 = vld [vmem:[%s3 + $0x8b8] sm:$0xff]
  %v327 = vld [vmem:[%s3 + $0x8c0] sm:$0xff]
  %v328 = vld [vmem:[%s3 + $0x8c8] sm:$0xff]
  %v329 = vld [vmem:[%s3 + $0x8d0] sm:$0xff]
  %v330 = vld [vmem:[%s3 + $0x8d8] sm:$0xff]
  %v331 = vld [vmem:[%s3 + $0x8e0] sm:$0xff]
  %v332 = vld [vmem:[%s3 + $0x8e8] sm:$0xff]
  %v333 = vld [vmem:[%s3 + $0x8f0] sm:$0xff]
  %v334 = vld [vmem:[%s3 + $0x8f8] sm:$0xff]
  %v335 = vld [vmem:[%s3 + $0x900] sm:$0xff]
  %v336 = vld [vmem:[%s3 + $0x908] sm:$0xff]
  %v337 = vld [vmem:[%s3 + $0x910] sm:$0xff]
  %v338 = vld [vmem:[%s3 + $0x918] sm:$0xff]
  %v339 = vld [vmem:[%s3 + $0x920] sm:$0xff]
  %v340 = vld [vmem:[%s3 + $0x928] sm:$0xff]
  %v341 = vld [vmem:[%s3 + $0x930] sm:$0xff]
  %v342 = vld [vmem:[%s3 + $0x938] sm:$0xff]
  %v343 = vld [vmem:[%s3 + $0x940] sm:$0xff]
  %v344 = vld [vmem:[%s3 + $0x948] sm:$0xff]
  %v345 = vld [vmem:[%s3 + $0x950] sm:$0xff]
  %v346 = vld [vmem:[%s3 + $0x958] sm:$0xff]
  %v347 = vld [vmem:[%s3 + $0x960] sm:$0xff]
  %v348 = vld [vmem:[%s3 + $0x968] sm:$0xff]
  %v349 = vld [vmem:[%s3 + $0x970] sm:$0xff]
  %v350 = vld [vmem:[%s3 + $0x978] sm:$0xff]
  %v351 = vld [vmem:[%s3 + $0x980] sm:$0xff]
  %v352 = vld [vmem:[%s3 + $0x988] sm:$0xff]
  %v353 = vld [vmem:[%s3 + $0x990] sm:$0xff]
  %v354 = vld [vmem:[%s3 + $0x998] sm:$0xff]
  %v355 = vld [vmem:[%s3 + $0x9a0] sm:$0xff]
  %v356 = vld [vmem:[%s3 + $0x9a8] sm:$0xff]
  %v357 = vld [vmem:[%s3 + $0x9b0] sm:$0xff]
  %v358 = vld [vmem:[%s3 + $0x9b8] sm:$0xff]
  %v359 = vld [vmem:[%s3 + $0x9c0] sm:$0xff]
  %v360 = vld [vmem:[%s3 + $0x9c8] sm:$0xff]
  %v361 = vld [vmem:[%s3 + $0x9d0] sm:$0xff]
  %v362 = vld [vmem:[%s3 + $0x9d8] sm:$0xff]
  %v363 = vld [vmem:[%s3 + $0x9e0] sm:$0xff]
  %v364 = vld [vmem:[%s3 + $0x9e8] sm:$0xff]
  %v365 = vld [vmem:[%s3 + $0x9f0] sm:$0xff]
  %v366 = vld [vmem:[%s3 + $0x9f8] sm:$0xff]
  %v367 = vld [vmem:[%s3 + $0xa00] sm:$0xff]
  %v368 = vld [vmem:[%s3 + $0xa08] sm:$0xff]
  %v369 = vld [vmem:[%s3 + $0xa10] sm:$0xff]
  %v370 = vld [vmem:[%s3 + $0xa18] sm:$0xff]
  %v371 = vld [vmem:[%s3 + $0xa20] sm:$0xff]
  %v372 = vld [vmem:[%s3 + $0xa28] sm:$0xff]
  %v373 = vld [vmem:[%s3 + $0xa30] sm:$0xff]
  %v374 = vld [vmem:[%s3 + $0xa38] sm:$0xff]
  %v375 = vld [vmem:[%s3 + $0xa40] sm:$0xff]
  %v376 = vld [vmem:[%s3 + $0xa48] sm:$0xff]
  %v377 = vld [vmem:[%s3 + $0xa50] sm:$0xff]
  %v378 = vld [vmem:[%s3 + $0xa58] sm:$0xff]
  %v379 = vld [vmem:[%s3 + $0xa60] sm:$0xff]
  %v380 = vld [vmem:[%s3 + $0xa68] sm:$0xff]
  %v381 = vld [vmem:[%s3 + $0xa70] sm:$0xff]
  %v382 = vld [vmem:[%s3 + $0xa78] sm:$0xff]
  %v383 = vld [vmem:[%s3 + $0xa80] sm:$0xff]
  %v384 = vld [vmem:[%s3 + $0xa88] sm:$0xff]
  %v385 = vld [vmem:[%s3 + $0xa90] sm:$0xff]
  %v386 = vld [vmem:[%s3 + $0xa98] sm:$0xff]
  %v387 = vld [vmem:[%s3 + $0xaa0] sm:$0xff]
  %v388 = vld [vmem:[%s3 + $0xaa8] sm:$0xff]
  %v389 = vld [vmem:[%s3 + $0xab0] sm:$0xff]
  %v390 = vld [vmem:[%s3 + $0xab8] sm:$0xff]
  %v391 = vld [vmem:[%s3 + $0xac0] sm:$0xff]
  %v392 = vld [vmem:[%s3 + $0xac8] sm:$0xff]
  %v393 = vld [vmem:[%s3 + $0xad0] sm:$0xff]
  %v394 = vld [vmem:[%s3 + $0xad8] sm:$0xff]
  %v395 = vld [vmem:[%s3 + $0xae0] sm:$0xff]
  %v396 = vld [vmem:[%s3 + $0xae8] sm:$0xff]
  %v397 = vld [vmem:[%s3 + $0xaf0] sm:$0xff]
  %v398 = vld [vmem:[%s3 + $0xaf8] sm:$0xff]
  %v399 = vld [vmem:[%s3 + $0xb00] sm:$0xff]
  %v400 = vld [vmem:[%s3 + $0xb08] sm:$0xff]
  %v401 = vld [vmem:[%s3 + $0xb10] sm:$0xff]
  %v402 = vld [vmem:[%s3 + $0xb18] sm:$0xff]
  %v403 = vld [vmem:[%s3 + $0xb20] sm:$0xff]
  %v404 = vld [vmem:[%s3 + $0xb28] sm:$0xff]
  %v405 = vld [vmem:[%s3 + $0xb30] sm:$0xff]
  %v406 = vld [vmem:[%s3 + $0xb38] sm:$0xff]
  %v407 = vld [vmem:[%s3 + $0xb40] sm:$0xff]
  %v408 = vld [vmem:[%s3 + $0xb48] sm:$0xff]
  %v409 = vld [vmem:[%s3 + $0xb50] sm:$0xff]
  %v410 = vld [vmem:[%s3 + $0xb58] sm:$0xff]
  %v411 = vld [vmem:[%s3 + $0xb60] sm:$0xff]
  %v412 = vld [vmem:[%s3 + $0xb68] sm:$0xff]
  %v413 = vld [vmem:[%s3 + $0xb70] sm:$0xff]
  %v414 = vld [vmem:[%s3 + $0xb78] sm:$0xff]
  %v415 = vld [vmem:[%s3 + $0xb80] sm:$0xff]
  %v416 = vld [vmem:[%s3 + $0xb88] sm:$0xff]
  %v417 = vld [vmem:[%s3 + $0xb90] sm:$0xff]
  %v418 = vld [vmem:[%s3 + $0xb98] sm:$0xff]
  %v419 = vld [vmem:[%s3 + $0xba0] sm:$0xff]
  %v420 = vld [vmem:[%s3 + $0xba8] sm:$0xff]
  %v421 = vld [vmem:[%s3 + $0xbb0] sm:$0xff]
  %v422 = vld [vmem:[%s3 + $0xbb8] sm:$0xff]
  %v423 = vld [vmem:[%s3 + $0xbc0] sm:$0xff]
  %v424 = vld [vmem:[%s3 + $0xbc8] sm:$0xff]
  %v425 = vld [vmem:[%s3 + $0xbd0] sm:$0xff]
  %v426 = vld [vmem:[%s3 + $0xbd8] sm:$0xff]
  %v427 = vld [vmem:[%s3 + $0xbe0] sm:$0xff]
  %v428 = vld [vmem:[%s3 + $0xbe8] sm:$0xff]
  %v429 = vld [vmem:[%s3 + $0xbf0] sm:$0xff]
  %v430 = vld [vmem:[%s3 + $0xbf8] sm:$0xff]
  %v431 = vld [vmem:[%s3 + $0xc00] sm:$0xff]
  %v432 = vld [vmem:[%s3 + $0xc08] sm:$0xff]
  %v433 = vld [vmem:[%s3 + $0xc10] sm:$0xff]
  %v434 = vld [vmem:[%s3 + $0xc18] sm:$0xff]
  %v435 = vld [vmem:[%s3 + $0xc20] sm:$0xff]
  %v436 = vld [vmem:[%s3 + $0xc28] sm:$0xff]
  %v437 = vld [vmem:[%s3 + $0xc30] sm:$0xff]
  %v438 = vld [vmem:[%s3 + $0xc38] sm:$0xff]
  %v439 = vld [vmem:[%s3 + $0xc40] sm:$0xff]
  %v440 = vld [vmem:[%s3 + $0xc48] sm:$0xff]
  %v441 = vld [vmem:[%s3 + $0xc50] sm:$0xff]
  %v442 = vld [vmem:[%s3 + $0xc58] sm:$0xff]
  %v443 = vld [vmem:[%s3 + $0xc60] sm:$0xff]
  %v444 = vld [vmem:[%s3 + $0xc68] sm:$0xff]
  %v445 = vld [vmem:[%s3 + $0xc70] sm:$0xff]
  %v446 = vld [vmem:[%s3 + $0xc78] sm:$0xff]
  %v447 = vld [vmem:[%s3 + $0xc80] sm:$0xff]
  %v448 = vld [vmem:[%s3 + $0xc88] sm:$0xff]
  %v449 = vld [vmem:[%s3 + $0xc90] sm:$0xff]
  %v450 = vld [vmem:[%s3 + $0xc98] sm:$0xff]
  %v451 = vld [vmem:[%s3 + $0xca0] sm:$0xff]
  %v452 = vld [vmem:[%s3 + $0xca8] sm:$0xff]
  %v453 = vld [vmem:[%s3 + $0xcb0] sm:$0xff]
  %v454 = vld [vmem:[%s3 + $0xcb8] sm:$0xff]
  %v455 = vld [vmem:[%s3 + $0xcc0] sm:$0xff]
  %v456 = vld [vmem:[%s3 + $0xcc8] sm:$0xff]
  %v457 = vld [vmem:[%s3 + $0xcd0] sm:$0xff]
  %v458 = vld [vmem:[%s3 + $0xcd8] sm:$0xff]
  %v459 = vld [vmem:[%s3 + $0xce0] sm:$0xff]
  %v460 = vld [vmem:[%s3 + $0xce8] sm:$0xff]
  %v461 = vld [vmem:[%s3 + $0xcf0] sm:$0xff]
  %v462 = vld [vmem:[%s3 + $0xcf8] sm:$0xff]
  %v463 = vld [vmem:[%s3 + $0xd00] sm:$0xff]
  %v464 = vld [vmem:[%s3 + $0xd08] sm:$0xff]
  %v465 = vld [vmem:[%s3 + $0xd10] sm:$0xff]
  %v466 = vld [vmem:[%s3 + $0xd18] sm:$0xff]
  %v467 = vld [vmem:[%s3 + $0xd20] sm:$0xff]
  %v468 = vld [vmem:[%s3 + $0xd28] sm:$0xff]
  %v469 = vld [vmem:[%s3 + $0xd30] sm:$0xff]
  %v470 = vld [vmem:[%s3 + $0xd38] sm:$0xff]
  %v471 = vld [vmem:[%s3 + $0xd40] sm:$0xff]
  %v472 = vld [vmem:[%s3 + $0xd48] sm:$0xff]
  %v473 = vld [vmem:[%s3 + $0xd50] sm:$0xff]
  %v474 = vld [vmem:[%s3 + $0xd58] sm:$0xff]
  %v475 = vld [vmem:[%s3 + $0xd60] sm:$0xff]
  %v476 = vld [vmem:[%s3 + $0xd68] sm:$0xff]
  %v477 = vld [vmem:[%s3 + $0xd70] sm:$0xff]
  %v478 = vld [vmem:[%s3 + $0xd78] sm:$0xff]
  %v479 = vld [vmem:[%s3 + $0xd80] sm:$0xff]
  %v480 = vld [vmem:[%s3 + $0xd88] sm:$0xff]
  %v481 = vld [vmem:[%s3 + $0xd90] sm:$0xff]
  %v482 = vld [vmem:[%s3 + $0xd98] sm:$0xff]
  %v483 = vld [vmem:[%s3 + $0xda0] sm:$0xff]
  %v484 = vld [vmem:[%s3 + $0xda8] sm:$0xff]
  %v485 = vld [vmem:[%s3 + $0xdb0] sm:$0xff]
  %v486 = vld [vmem:[%s3 + $0xdb8] sm:$0xff]
  %v487 = vld [vmem:[%s3 + $0xdc0] sm:$0xff]
  %v488 = vld [vmem:[%s3 + $0xdc8] sm:$0xff]
  %v489 = vld [vmem:[%s3 + $0xdd0] sm:$0xff]
  %v490 = vld [vmem:[%s3 + $0xdd8] sm:$0xff]
  %v491 = vld [vmem:[%s3 + $0xde0] sm:$0xff]
  %v492 = vld [vmem:[%s3 + $0xde8] sm:$0xff]
  %v493 = vld [vmem:[%s3 + $0xdf0] sm:$0xff]
  %v494 = vld [vmem:[%s3 + $0xdf8] sm:$0xff]
  %v495 = vld [vmem:[%s3 + $0xe00] sm:$0xff]
  %v496 = vld [vmem:[%s3 + $0xe08] sm:$0xff]
  %v497 = vld [vmem:[%s3 + $0xe10] sm:$0xff]
  %v498 = vld [vmem:[%s3 + $0xe18] sm:$0xff]
  %v499 = vld [vmem:[%s3 + $0xe20] sm:$0xff]
  %v500 = vld [vmem:[%s3 + $0xe28] sm:$0xff]
  %v501 = vld [vmem:[%s3 + $0xe30] sm:$0xff]
  %v502 = vld [vmem:[%s3 + $0xe38] sm:$0xff]
  %v503 = vld [vmem:[%s3 + $0xe40] sm:$0xff]
  %v504 = vld [vmem:[%s3 + $0xe48] sm:$0xff]
  %v505 = vld [vmem:[%s3 + $0xe50] sm:$0xff]
  %v506 = vld [vmem:[%s3 + $0xe58] sm:$0xff]
  %v507 = vld [vmem:[%s3 + $0xe60] sm:$0xff]
  %v508 = vld [vmem:[%s3 + $0xe68] sm:$0xff]
  %v509 = vld [vmem:[%s3 + $0xe70] sm:$0xff]
  %v510 = vld [vmem:[%s3 + $0xe78] sm:$0xff]
  %v511 = vld [vmem:[%s3 + $0xe80] sm:$0xff]
  %v512 = vld [vmem:[%s3 + $0xe88] sm:$0xff]
  %v513 = vld [vmem:[%s3 + $0xe90] sm:$0xff]
  %v514 = vld [vmem:[%s3 + $0xe98] sm:$0xff]
  %v515 = vld [vmem:[%s3 + $0xea0] sm:$0xff]
  %v516 = vld [vmem:[%s3 + $0xea8] sm:$0xff]
  %v517 = vld [vmem:[%s3 + $0xeb0] sm:$0xff]
  %v518 = vld [vmem:[%s3 + $0xeb8] sm:$0xff]
  %v519 = vld [vmem:[%s3 + $0xec0] sm:$0xff]
  %v520 = vld [vmem:[%s3 + $0xec8] sm:$0xff]
  %v521 = vld [vmem:[%s3 + $0xed0] sm:$0xff]
  %v522 = vld [vmem:[%s3 + $0xed8] sm:$0xff]
  %v523 = vld [vmem:[%s3 + $0xee0] sm:$0xff]
  %v524 = vld [vmem:[%s3 + $0xee8] sm:$0xff]
  %v525 = vld [vmem:[%s3 + $0xef0] sm:$0xff]
  %v526 = vld [vmem:[%s3 + $0xef8] sm:$0xff]
  %v527 = vld [vmem:[%s3 + $0xf00] sm:$0xff]
  %v528 = vld [vmem:[%s3 + $0xf08] sm:$0xff]
  %v529 = vld [vmem:[%s3 + $0xf10] sm:$0xff]
  %v530 = vld [vmem:[%s3 + $0xf18] sm:$0xff]
  %v531 = vld [vmem:[%s3 + $0xf20] sm:$0xff]
  %v532 = vld [vmem:[%s3 + $0xf28] sm:$0xff]
  %v533 = vld [vmem:[%s3 + $0xf30] sm:$0xff]
  %v534 = vld [vmem:[%s3 + $0xf38] sm:$0xff]
  %v535 = vld [vmem:[%s3 + $0xf40] sm:$0xff]
  %v536 = vld [vmem:[%s3 + $0xf48] sm:$0xff]
  %v537 = vld [vmem:[%s3 + $0xf50] sm:$0xff]
  %v538 = vld [vmem:[%s3 + $0xf58] sm:$0xff]
  %v539 = vld [vmem:[%s3 + $0xf60] sm:$0xff]
  %v540 = vld [vmem:[%s3 + $0xf68] sm:$0xff]
  %v541 = vld [vmem:[%s3 + $0xf70] sm:$0xff]
  %v542 = vld [vmem:[%s3 + $0xf78] sm:$0xff]
  %v543 = vld [vmem:[%s3 + $0xf80] sm:$0xff]
  %v544 = vld [vmem:[%s3 + $0xf88] sm:$0xff]
  %v545 = vld [vmem:[%s3 + $0xf90] sm:$0xff]
  %v546 = vld [vmem:[%s3 + $0xf98] sm:$0xff]
  %v547 = vld [vmem:[%s4] sm:$0x3]
  %v549 = vperm.slane %v547, 0
  %v550 = vperm.slane %v547, 1
  %561 = vst [vmem:[#allocation1] ss:$2 sm:$0xff] %v34
  %s562 = scalar_lea.vmem [#allocation1], 16
  %563 = vst [vmem:[%s562] ss:$2 sm:$0xff] %v35
  %s564 = scalar_lea.vmem [#allocation1], 32
  %565 = vst [vmem:[%s564] ss:$2 sm:$0xff] %v36
  %s566 = scalar_lea.vmem [#allocation1], 48
  %567 = vst [vmem:[%s566] ss:$2 sm:$0xff] %v37
  %v568 = vld.sshfl [vmem:[#allocation1] sm:$0xff pattern:$0x75316420]
  %v569 = vld.sshfl [vmem:[#allocation1 + $0x8] sm:$0xff pattern:$0x75316420]
  %v570 = vld.sshfl [vmem:[#allocation1 + $0x10] sm:$0xff pattern:$0x75316420]
  %v571 = vld.sshfl [vmem:[#allocation1 + $0x18] sm:$0xff pattern:$0x75316420]
  %v572 = vld.sshfl [vmem:[#allocation1 + $0x20] sm:$0xff pattern:$0x75316420]
  %v573 = vld.sshfl [vmem:[#allocation1 + $0x28] sm:$0xff pattern:$0x75316420]
  %v574 = vld.sshfl [vmem:[#allocation1 + $0x30] sm:$0xff pattern:$0x75316420]
  %v575 = vld.sshfl [vmem:[#allocation1 + $0x38] sm:$0xff pattern:$0x75316420]
  %576 = vst [vmem:[#allocation1] ss:$2 sm:$0xff] %v38
  %577 = vst [vmem:[%s562] ss:$2 sm:$0xff] %v39
  %578 = vst [vmem:[%s564] ss:$2 sm:$0xff] %v40
  %579 = vst [vmem:[%s566] ss:$2 sm:$0xff] %v41
  %v580 = vld.sshfl [vmem:[#allocation1] sm:$0xff pattern:$0x75316420]
  %v581 = vld.sshfl [vmem:[#allocation1 + $0x8] sm:$0xff pattern:$0x75316420]
  %v582 = vld.sshfl [vmem:[#allocation1 + $0x10] sm:$0xff pattern:$0x75316420]
  %v583 = vld.sshfl [vmem:[#allocation1 + $0x18] sm:$0xff pattern:$0x75316420]
  %v584 = vld.sshfl [vmem:[#allocation1 + $0x20] sm:$0xff pattern:$0x75316420]
  %v585 = vld.sshfl [vmem:[#allocation1 + $0x28] sm:$0xff pattern:$0x75316420]
  %v586 = vld.sshfl [vmem:[#allocation1 + $0x30] sm:$0xff pattern:$0x75316420]
  %v587 = vld.sshfl [vmem:[#allocation1 + $0x38] sm:$0xff pattern:$0x75316420]
  %vm603 = vcmask 654336
  %v604 = vsel %vm603, %v587, 0
  %606 = vmatpush.msra.mxu0 %v77
  %607 = vmatpush.msra.mxu0 %v75
  %608 = vmatpush.msra.mxu0 %v73
  %609 = vmatpush.msra.mxu0 %v71
  %610 = vmatpush.msra.mxu0 %v69
  %611 = vmatpush.msra.mxu0 %v67
  %612 = vmatpush.msra.mxu0 %v65
  %613 = vmatpush.msra.mxu0 %v63
  %614 = vmatpush.msra.mxu0 %v61
  %615 = vmatpush.msra.mxu0 %v59
  %616 = vmatpush.msra.mxu0 %v57
  %617 = vmatpush.msra.mxu0 %v55
  %618 = vmatpush.msra.mxu0 %v53
  %619 = vmatpush.msra.mxu0 %v51
  %620 = vmatpush.msra.mxu0 %v49
  %621 = vmatpush.msra.mxu0 %v47
  %622 = vmatmul.f32.gmra.mxu0 %v568
  %v623 = vpop.f32.mrf.mxu0
  %v624 = vadd.f32 %v549, %v623
  %625 = vdwg.mxu0
  %626 = vmatpush.msra.mxu0 %v109
  %627 = vmatpush.msra.mxu0 %v107
  %628 = vmatpush.msra.mxu0 %v105
  %629 = vmatpush.msra.mxu0 %v103
  %630 = vmatpush.msra.mxu0 %v101
  %631 = vmatpush.msra.mxu0 %v99
  %632 = vmatpush.msra.mxu0 %v97
  %633 = vmatpush.msra.mxu0 %v95
  %634 = vmatpush.msra.mxu0 %v93
  %635 = vmatpush.msra.mxu0 %v91
  %636 = vmatpush.msra.mxu0 %v89
  %637 = vmatpush.msra.mxu0 %v87
  %638 = vmatpush.msra.mxu0 %v85
  %639 = vmatpush.msra.mxu0 %v83
  %640 = vmatpush.msra.mxu0 %v81
  %641 = vmatpush.msra.mxu0 %v79
  %642 = vmatmul.f32.gmra.mxu0 %v569
  %v643 = vpop.f32.mrf.mxu0
  %v644 = vadd.f32 %v624, %v643
  %645 = vdwg.mxu0
  %646 = vmatpush.msra.mxu0 %v141
  %647 = vmatpush.msra.mxu0 %v139
  %648 = vmatpush.msra.mxu0 %v137
  %649 = vmatpush.msra.mxu0 %v135
  %650 = vmatpush.msra.mxu0 %v133
  %651 = vmatpush.msra.mxu0 %v131
  %652 = vmatpush.msra.mxu0 %v129
  %653 = vmatpush.msra.mxu0 %v127
  %654 = vmatpush.msra.mxu0 %v125
  %655 = vmatpush.msra.mxu0 %v123
  %656 = vmatpush.msra.mxu0 %v121
  %657 = vmatpush.msra.mxu0 %v119
  %658 = vmatpush.msra.mxu0 %v117
  %659 = vmatpush.msra.mxu0 %v115
  %660 = vmatpush.msra.mxu0 %v113
  %661 = vmatpush.msra.mxu0 %v111
  %662 = vmatmul.f32.gmra.mxu0 %v570
  %v663 = vpop.f32.mrf.mxu0
  %v664 = vadd.f32 %v644, %v663
  %665 = vdwg.mxu0
  %666 = vmatpush.msra.mxu0 %v173
  %667 = vmatpush.msra.mxu0 %v171
  %668 = vmatpush.msra.mxu0 %v169
  %669 = vmatpush.msra.mxu0 %v167
  %670 = vmatpush.msra.mxu0 %v165
  %671 = vmatpush.msra.mxu0 %v163
  %672 = vmatpush.msra.mxu0 %v161
  %673 = vmatpush.msra.mxu0 %v159
  %674 = vmatpush.msra.mxu0 %v157
  %675 = vmatpush.msra.mxu0 %v155
  %676 = vmatpush.msra.mxu0 %v153
  %677 = vmatpush.msra.mxu0 %v151
  %678 = vmatpush.msra.mxu0 %v149
  %679 = vmatpush.msra.mxu0 %v147
  %680 = vmatpush.msra.mxu0 %v145
  %681 = vmatpush.msra.mxu0 %v143
  %682 = vmatmul.f32.gmra.mxu0 %v571
  %v683 = vpop.f32.mrf.mxu0
  %v684 = vadd.f32 %v664, %v683
  %685 = vdwg.mxu0
  %686 = vmatpush.msra.mxu0 %v205
  %687 = vmatpush.msra.mxu0 %v203
  %688 = vmatpush.msra.mxu0 %v201
  %689 = vmatpush.msra.mxu0 %v199
  %690 = vmatpush.msra.mxu0 %v197
  %691 = vmatpush.msra.mxu0 %v195
  %692 = vmatpush.msra.mxu0 %v193
  %693 = vmatpush.msra.mxu0 %v191
  %694 = vmatpush.msra.mxu0 %v189
  %695 = vmatpush.msra.mxu0 %v187
  %696 = vmatpush.msra.mxu0 %v185
  %697 = vmatpush.msra.mxu0 %v183
  %698 = vmatpush.msra.mxu0 %v181
  %699 = vmatpush.msra.mxu0 %v179
  %700 = vmatpush.msra.mxu0 %v177
  %701 = vmatpush.msra.mxu0 %v175
  %702 = vmatmul.f32.gmra.mxu0 %v572
  %v703 = vpop.f32.mrf.mxu0
  %v704 = vadd.f32 %v684, %v703
  %705 = vdwg.mxu0
  %706 = vmatpush.msra.mxu0 %v237
  %707 = vmatpush.msra.mxu0 %v235
  %708 = vmatpush.msra.mxu0 %v233
  %709 = vmatpush.msra.mxu0 %v231
  %710 = vmatpush.msra.mxu0 %v229
  %711 = vmatpush.msra.mxu0 %v227
  %712 = vmatpush.msra.mxu0 %v225
  %713 = vmatpush.msra.mxu0 %v223
  %714 = vmatpush.msra.mxu0 %v221
  %715 = vmatpush.msra.mxu0 %v219
  %716 = vmatpush.msra.mxu0 %v217
  %717 = vmatpush.msra.mxu0 %v215
  %718 = vmatpush.msra.mxu0 %v213
  %719 = vmatpush.msra.mxu0 %v211
  %720 = vmatpush.msra.mxu0 %v209
  %721 = vmatpush.msra.mxu0 %v207
  %722 = vmatmul.f32.gmra.mxu0 %v573
  %v723 = vpop.f32.mrf.mxu0
  %v724 = vadd.f32 %v704, %v723
  %725 = vdwg.mxu0
  %726 = vmatpush.msra.mxu0 %v269
  %727 = vmatpush.msra.mxu0 %v267
  %728 = vmatpush.msra.mxu0 %v265
  %729 = vmatpush.msra.mxu0 %v263
  %730 = vmatpush.msra.mxu0 %v261
  %731 = vmatpush.msra.mxu0 %v259
  %732 = vmatpush.msra.mxu0 %v257
  %733 = vmatpush.msra.mxu0 %v255
  %734 = vmatpush.msra.mxu0 %v253
  %735 = vmatpush.msra.mxu0 %v251
  %736 = vmatpush.msra.mxu0 %v249
  %737 = vmatpush.msra.mxu0 %v247
  %738 = vmatpush.msra.mxu0 %v245
  %739 = vmatpush.msra.mxu0 %v243
  %740 = vmatpush.msra.mxu0 %v241
  %741 = vmatpush.msra.mxu0 %v239
  %742 = vmatmul.f32.gmra.mxu0 %v574
  %v743 = vpop.f32.mrf.mxu0
  %v744 = vadd.f32 %v724, %v743
  %745 = vdwg.mxu0
  %746 = vmatpush.msra.mxu0 %v301
  %747 = vmatpush.msra.mxu0 %v299
  %748 = vmatpush.msra.mxu0 %v297
  %749 = vmatpush.msra.mxu0 %v295
  %750 = vmatpush.msra.mxu0 %v293
  %751 = vmatpush.msra.mxu0 %v291
  %752 = vmatpush.msra.mxu0 %v289
  %753 = vmatpush.msra.mxu0 %v287
  %754 = vmatpush.msra.mxu0 %v285
  %755 = vmatpush.msra.mxu0 %v283
  %756 = vmatpush.msra.mxu0 %v281
  %757 = vmatpush.msra.mxu0 %v279
  %758 = vmatpush.msra.mxu0 %v277
  %759 = vmatpush.msra.mxu0 %v275
  %760 = vmatpush.msra.mxu0 %v273
  %761 = vmatpush.msra.mxu0 %v271
  %762 = vmatmul.f32.gmra.mxu0 %v575
  %v763 = vpop.f32.mrf.mxu0
  %v764 = vadd.f32 %v744, %v763
  %765 = vdwg.mxu0
  %766 = vmatpush.msra.mxu0 %v333
  %767 = vmatpush.msra.mxu0 %v331
  %768 = vmatpush.msra.mxu0 %v329
  %769 = vmatpush.msra.mxu0 %v327
  %770 = vmatpush.msra.mxu0 %v325
  %771 = vmatpush.msra.mxu0 %v323
  %772 = vmatpush.msra.mxu0 %v321
  %773 = vmatpush.msra.mxu0 %v319
  %774 = vmatpush.msra.mxu0 %v317
  %775 = vmatpush.msra.mxu0 %v315
  %776 = vmatpush.msra.mxu0 %v313
  %777 = vmatpush.msra.mxu0 %v311
  %778 = vmatpush.msra.mxu0 %v309
  %779 = vmatpush.msra.mxu0 %v307
  %780 = vmatpush.msra.mxu0 %v305
  %781 = vmatpush.msra.mxu0 %v303
  %782 = vmatmul.f32.gmra.mxu0 %v580
  %v783 = vpop.f32.mrf.mxu0
  %v784 = vadd.f32 %v764, %v783
  %785 = vdwg.mxu0
  %786 = vmatpush.msra.mxu0 %v365
  %787 = vmatpush.msra.mxu0 %v363
  %788 = vmatpush.msra.mxu0 %v361
  %789 = vmatpush.msra.mxu0 %v359
  %790 = vmatpush.msra.mxu0 %v357
  %791 = vmatpush.msra.mxu0 %v355
  %792 = vmatpush.msra.mxu0 %v353
  %793 = vmatpush.msra.mxu0 %v351
  %794 = vmatpush.msra.mxu0 %v349
  %795 = vmatpush.msra.mxu0 %v347
  %796 = vmatpush.msra.mxu0 %v345
  %797 = vmatpush.msra.mxu0 %v343
  %798 = vmatpush.msra.mxu0 %v341
  %799 = vmatpush.msra.mxu0 %v339
  %800 = vmatpush.msra.mxu0 %v337
  %801 = vmatpush.msra.mxu0 %v335
  %802 = vmatmul.f32.gmra.mxu0 %v581
  %v803 = vpop.f32.mrf.mxu0
  %v804 = vadd.f32 %v784, %v803
  %805 = vdwg.mxu0
  %806 = vmatpush.msra.mxu0 %v397
  %807 = vmatpush.msra.mxu0 %v395
  %808 = vmatpush.msra.mxu0 %v393
  %809 = vmatpush.msra.mxu0 %v391
  %810 = vmatpush.msra.mxu0 %v389
  %811 = vmatpush.msra.mxu0 %v387
  %812 = vmatpush.msra.mxu0 %v385
  %813 = vmatpush.msra.mxu0 %v383
  %814 = vmatpush.msra.mxu0 %v381
  %815 = vmatpush.msra.mxu0 %v379
  %816 = vmatpush.msra.mxu0 %v377
  %817 = vmatpush.msra.mxu0 %v375
  %818 = vmatpush.msra.mxu0 %v373
  %819 = vmatpush.msra.mxu0 %v371
  %820 = vmatpush.msra.mxu0 %v369
  %821 = vmatpush.msra.mxu0 %v367
  %822 = vmatmul.f32.gmra.mxu0 %v582
  %v823 = vpop.f32.mrf.mxu0
  %v824 = vadd.f32 %v804, %v823
  %825 = vdwg.mxu0
  %826 = vmatpush.msra.mxu0 %v429
  %827 = vmatpush.msra.mxu0 %v427
  %828 = vmatpush.msra.mxu0 %v425
  %829 = vmatpush.msra.mxu0 %v423
  %830 = vmatpush.msra.mxu0 %v421
  %831 = vmatpush.msra.mxu0 %v419
  %832 = vmatpush.msra.mxu0 %v417
  %833 = vmatpush.msra.mxu0 %v415
  %834 = vmatpush.msra.mxu0 %v413
  %835 = vmatpush.msra.mxu0 %v411
  %836 = vmatpush.msra.mxu0 %v409
  %837 = vmatpush.msra.mxu0 %v407
  %838 = vmatpush.msra.mxu0 %v405
  %839 = vmatpush.msra.mxu0 %v403
  %840 = vmatpush.msra.mxu0 %v401
  %841 = vmatpush.msra.mxu0 %v399
  %842 = vmatmul.f32.gmra.mxu0 %v583
  %v843 = vpop.f32.mrf.mxu0
  %v844 = vadd.f32 %v824, %v843
  %845 = vdwg.mxu0
  %846 = vmatpush.msra.mxu0 %v461
  %847 = vmatpush.msra.mxu0 %v459
  %848 = vmatpush.msra.mxu0 %v457
  %849 = vmatpush.msra.mxu0 %v455
  %850 = vmatpush.msra.mxu0 %v453
  %851 = vmatpush.msra.mxu0 %v451
  %852 = vmatpush.msra.mxu0 %v449
  %853 = vmatpush.msra.mxu0 %v447
  %854 = vmatpush.msra.mxu0 %v445
  %855 = vmatpush.msra.mxu0 %v443
  %856 = vmatpush.msra.mxu0 %v441
  %857 = vmatpush.msra.mxu0 %v439
  %858 = vmatpush.msra.mxu0 %v437
  %859 = vmatpush.msra.mxu0 %v435
  %860 = vmatpush.msra.mxu0 %v433
  %861 = vmatpush.msra.mxu0 %v431
  %862 = vmatmul.f32.gmra.mxu0 %v584
  %v863 = vpop.f32.mrf.mxu0
  %v864 = vadd.f32 %v844, %v863
  %865 = vdwg.mxu0
  %866 = vmatpush.msra.mxu0 %v493
  %867 = vmatpush.msra.mxu0 %v491
  %868 = vmatpush.msra.mxu0 %v489
  %869 = vmatpush.msra.mxu0 %v487
  %870 = vmatpush.msra.mxu0 %v485
  %871 = vmatpush.msra.mxu0 %v483
  %872 = vmatpush.msra.mxu0 %v481
  %873 = vmatpush.msra.mxu0 %v479
  %874 = vmatpush.msra.mxu0 %v477
  %875 = vmatpush.msra.mxu0 %v475
  %876 = vmatpush.msra.mxu0 %v473
  %877 = vmatpush.msra.mxu0 %v471
  %878 = vmatpush.msra.mxu0 %v469
  %879 = vmatpush.msra.mxu0 %v467
  %880 = vmatpush.msra.mxu0 %v465
  %881 = vmatpush.msra.mxu0 %v463
  %882 = vmatmul.f32.gmra.mxu0 %v585
  %v883 = vpop.f32.mrf.mxu0
  %v884 = vadd.f32 %v864, %v883
  %885 = vdwg.mxu0
  %886 = vmatpush.msra.mxu0 %v525
  %887 = vmatpush.msra.mxu0 %v523
  %888 = vmatpush.msra.mxu0 %v521
  %889 = vmatpush.msra.mxu0 %v519
  %890 = vmatpush.msra.mxu0 %v517
  %891 = vmatpush.msra.mxu0 %v515
  %892 = vmatpush.msra.mxu0 %v513
  %893 = vmatpush.msra.mxu0 %v511
  %894 = vmatpush.msra.mxu0 %v509
  %895 = vmatpush.msra.mxu0 %v507
  %896 = vmatpush.msra.mxu0 %v505
  %897 = vmatpush.msra.mxu0 %v503
  %898 = vmatpush.msra.mxu0 %v501
  %899 = vmatpush.msra.mxu0 %v499
  %900 = vmatpush.msra.mxu0 %v497
  %901 = vmatpush.msra.mxu0 %v495
  %902 = vmatmul.f32.gmra.mxu0 %v586
  %v903 = vpop.f32.mrf.mxu0
  %v904 = vadd.f32 %v884, %v903
  %905 = vdwg.mxu0
  %906 = vmatpush.msra.mxu0 0.0
  %907 = vmatpush.msra.mxu0 0.0
  %908 = vmatpush.msra.mxu0 0.0
  %909 = vmatpush.msra.mxu0 0.0
  %910 = vmatpush.msra.mxu0 0.0
  %911 = vmatpush.msra.mxu0 0.0
  %912 = vmatpush.msra.mxu0 %v545
  %913 = vmatpush.msra.mxu0 %v543
  %914 = vmatpush.msra.mxu0 %v541
  %915 = vmatpush.msra.mxu0 %v539
  %916 = vmatpush.msra.mxu0 %v537
  %917 = vmatpush.msra.mxu0 %v535
  %918 = vmatpush.msra.mxu0 %v533
  %919 = vmatpush.msra.mxu0 %v531
  %920 = vmatpush.msra.mxu0 %v529
  %921 = vmatpush.msra.mxu0 %v527
  %922 = vmatmul.f32.gmra.mxu0 %v604
  %v923 = vpop.f32.mrf.mxu0
  %v924 = vadd.f32 %v904, %v923
  %925 = vdwg.mxu0
  %926 = vmatpush.msra.mxu0 %v78
  %927 = vmatpush.msra.mxu0 %v76
  %928 = vmatpush.msra.mxu0 %v74
  %929 = vmatpush.msra.mxu0 %v72
  %930 = vmatpush.msra.mxu0 %v70
  %931 = vmatpush.msra.mxu0 %v68
  %932 = vmatpush.msra.mxu0 %v66
  %933 = vmatpush.msra.mxu0 %v64
  %934 = vmatpush.msra.mxu0 %v62
  %935 = vmatpush.msra.mxu0 %v60
  %936 = vmatpush.msra.mxu0 %v58
  %937 = vmatpush.msra.mxu0 %v56
  %938 = vmatpush.msra.mxu0 %v54
  %939 = vmatpush.msra.mxu0 %v52
  %940 = vmatpush.msra.mxu0 %v50
  %941 = vmatpush.msra.mxu0 %v48
  %942 = vmatmul.f32.gmra.mxu0 %v568
  %v943 = vpop.f32.mrf.mxu0
  %v944 = vadd.f32 %v550, %v943
  %945 = vdwg.mxu0
  %946 = vmatpush.msra.mxu0 %v110
  %947 = vmatpush.msra.mxu0 %v108
  %948 = vmatpush.msra.mxu0 %v106
  %949 = vmatpush.msra.mxu0 %v104
  %950 = vmatpush.msra.mxu0 %v102
  %951 = vmatpush.msra.mxu0 %v100
  %952 = vmatpush.msra.mxu0 %v98
  %953 = vmatpush.msra.mxu0 %v96
  %954 = vmatpush.msra.mxu0 %v94
  %955 = vmatpush.msra.mxu0 %v92
  %956 = vmatpush.msra.mxu0 %v90
  %957 = vmatpush.msra.mxu0 %v88
  %958 = vmatpush.msra.mxu0 %v86
  %959 = vmatpush.msra.mxu0 %v84
  %960 = vmatpush.msra.mxu0 %v82
  %961 = vmatpush.msra.mxu0 %v80
  %962 = vmatmul.f32.gmra.mxu0 %v569
  %v963 = vpop.f32.mrf.mxu0
  %v964 = vadd.f32 %v944, %v963
  %965 = vdwg.mxu0
  %966 = vmatpush.msra.mxu0 %v142
  %967 = vmatpush.msra.mxu0 %v140
  %968 = vmatpush.msra.mxu0 %v138
  %969 = vmatpush.msra.mxu0 %v136
  %970 = vmatpush.msra.mxu0 %v134
  %971 = vmatpush.msra.mxu0 %v132
  %972 = vmatpush.msra.mxu0 %v130
  %973 = vmatpush.msra.mxu0 %v128
  %974 = vmatpush.msra.mxu0 %v126
  %975 = vmatpush.msra.mxu0 %v124
  %976 = vmatpush.msra.mxu0 %v122
  %977 = vmatpush.msra.mxu0 %v120
  %978 = vmatpush.msra.mxu0 %v118
  %979 = vmatpush.msra.mxu0 %v116
  %980 = vmatpush.msra.mxu0 %v114
  %981 = vmatpush.msra.mxu0 %v112
  %982 = vmatmul.f32.gmra.mxu0 %v570
  %v983 = vpop.f32.mrf.mxu0
  %v984 = vadd.f32 %v964, %v983
  %985 = vdwg.mxu0
  %986 = vmatpush.msra.mxu0 %v174
  %987 = vmatpush.msra.mxu0 %v172
  %988 = vmatpush.msra.mxu0 %v170
  %989 = vmatpush.msra.mxu0 %v168
  %990 = vmatpush.msra.mxu0 %v166
  %991 = vmatpush.msra.mxu0 %v164
  %992 = vmatpush.msra.mxu0 %v162
  %993 = vmatpush.msra.mxu0 %v160
  %994 = vmatpush.msra.mxu0 %v158
  %995 = vmatpush.msra.mxu0 %v156
  %996 = vmatpush.msra.mxu0 %v154
  %997 = vmatpush.msra.mxu0 %v152
  %998 = vmatpush.msra.mxu0 %v150
  %999 = vmatpush.msra.mxu0 %v148
  %1000 = vmatpush.msra.mxu0 %v146
  %1001 = vmatpush.msra.mxu0 %v144
  %1002 = vmatmul.f32.gmra.mxu0 %v571
  %v1003 = vpop.f32.mrf.mxu0
  %v1004 = vadd.f32 %v984, %v1003
  %1005 = vdwg.mxu0
  %1006 = vmatpush.msra.mxu0 %v206
  %1007 = vmatpush.msra.mxu0 %v204
  %1008 = vmatpush.msra.mxu0 %v202
  %1009 = vmatpush.msra.mxu0 %v200
  %1010 = vmatpush.msra.mxu0 %v198
  %1011 = vmatpush.msra.mxu0 %v196
  %1012 = vmatpush.msra.mxu0 %v194
  %1013 = vmatpush.msra.mxu0 %v192
  %1014 = vmatpush.msra.mxu0 %v190
  %1015 = vmatpush.msra.mxu0 %v188
  %1016 = vmatpush.msra.mxu0 %v186
  %1017 = vmatpush.msra.mxu0 %v184
  %1018 = vmatpush.msra.mxu0 %v182
  %1019 = vmatpush.msra.mxu0 %v180
  %1020 = vmatpush.msra.mxu0 %v178
  %1021 = vmatpush.msra.mxu0 %v176
  %1022 = vmatmul.f32.gmra.mxu0 %v572
  %v1023 = vpop.f32.mrf.mxu0
  %v1024 = vadd.f32 %v1004, %v1023
  %1025 = vdwg.mxu0
  %1026 = vmatpush.msra.mxu0 %v238
  %1027 = vmatpush.msra.mxu0 %v236
  %1028 = vmatpush.msra.mxu0 %v234
  %1029 = vmatpush.msra.mxu0 %v232
  %1030 = vmatpush.msra.mxu0 %v230
  %1031 = vmatpush.msra.mxu0 %v228
  %1032 = vmatpush.msra.mxu0 %v226
  %1033 = vmatpush.msra.mxu0 %v224
  %1034 = vmatpush.msra.mxu0 %v222
  %1035 = vmatpush.msra.mxu0 %v220
  %1036 = vmatpush.msra.mxu0 %v218
  %1037 = vmatpush.msra.mxu0 %v216
  %1038 = vmatpush.msra.mxu0 %v214
  %1039 = vmatpush.msra.mxu0 %v212
  %1040 = vmatpush.msra.mxu0 %v210
  %1041 = vmatpush.msra.mxu0 %v208
  %1042 = vmatmul.f32.gmra.mxu0 %v573
  %v1043 = vpop.f32.mrf.mxu0
  %v1044 = vadd.f32 %v1024, %v1043
  %1045 = vdwg.mxu0
  %1046 = vmatpush.msra.mxu0 %v270
  %1047 = vmatpush.msra.mxu0 %v268
  %1048 = vmatpush.msra.mxu0 %v266
  %1049 = vmatpush.msra.mxu0 %v264
  %1050 = vmatpush.msra.mxu0 %v262
  %1051 = vmatpush.msra.mxu0 %v260
  %1052 = vmatpush.msra.mxu0 %v258
  %1053 = vmatpush.msra.mxu0 %v256
  %1054 = vmatpush.msra.mxu0 %v254
  %1055 = vmatpush.msra.mxu0 %v252
  %1056 = vmatpush.msra.mxu0 %v250
  %1057 = vmatpush.msra.mxu0 %v248
  %1058 = vmatpush.msra.mxu0 %v246
  %1059 = vmatpush.msra.mxu0 %v244
  %1060 = vmatpush.msra.mxu0 %v242
  %1061 = vmatpush.msra.mxu0 %v240
  %1062 = vmatmul.f32.gmra.mxu0 %v574
  %v1063 = vpop.f32.mrf.mxu0
  %v1064 = vadd.f32 %v1044, %v1063
  %1065 = vdwg.mxu0
  %1066 = vmatpush.msra.mxu0 %v302
  %1067 = vmatpush.msra.mxu0 %v300
  %1068 = vmatpush.msra.mxu0 %v298
  %1069 = vmatpush.msra.mxu0 %v296
  %1070 = vmatpush.msra.mxu0 %v294
  %1071 = vmatpush.msra.mxu0 %v292
  %1072 = vmatpush.msra.mxu0 %v290
  %1073 = vmatpush.msra.mxu0 %v288
  %1074 = vmatpush.msra.mxu0 %v286
  %1075 = vmatpush.msra.mxu0 %v284
  %1076 = vmatpush.msra.mxu0 %v282
  %1077 = vmatpush.msra.mxu0 %v280
  %1078 = vmatpush.msra.mxu0 %v278
  %1079 = vmatpush.msra.mxu0 %v276
  %1080 = vmatpush.msra.mxu0 %v274
  %1081 = vmatpush.msra.mxu0 %v272
  %1082 = vmatmul.f32.gmra.mxu0 %v575
  %v1083 = vpop.f32.mrf.mxu0
  %v1084 = vadd.f32 %v1064, %v1083
  %1085 = vdwg.mxu0
  %1086 = vmatpush.msra.mxu0 %v334
  %1087 = vmatpush.msra.mxu0 %v332
  %1088 = vmatpush.msra.mxu0 %v330
  %1089 = vmatpush.msra.mxu0 %v328
  %1090 = vmatpush.msra.mxu0 %v326
  %1091 = vmatpush.msra.mxu0 %v324
  %1092 = vmatpush.msra.mxu0 %v322
  %1093 = vmatpush.msra.mxu0 %v320
  %1094 = vmatpush.msra.mxu0 %v318
  %1095 = vmatpush.msra.mxu0 %v316
  %1096 = vmatpush.msra.mxu0 %v314
  %1097 = vmatpush.msra.mxu0 %v312
  %1098 = vmatpush.msra.mxu0 %v310
  %1099 = vmatpush.msra.mxu0 %v308
  %1100 = vmatpush.msra.mxu0 %v306
  %1101 = vmatpush.msra.mxu0 %v304
  %1102 = vmatmul.f32.gmra.mxu0 %v580
  %v1103 = vpop.f32.mrf.mxu0
  %v1104 = vadd.f32 %v1084, %v1103
  %1105 = vdwg.mxu0
  %1106 = vmatpush.msra.mxu0 %v366
  %1107 = vmatpush.msra.mxu0 %v364
  %1108 = vmatpush.msra.mxu0 %v362
  %1109 = vmatpush.msra.mxu0 %v360
  %1110 = vmatpush.msra.mxu0 %v358
  %1111 = vmatpush.msra.mxu0 %v356
  %1112 = vmatpush.msra.mxu0 %v354
  %1113 = vmatpush.msra.mxu0 %v352
  %1114 = vmatpush.msra.mxu0 %v350
  %1115 = vmatpush.msra.mxu0 %v348
  %1116 = vmatpush.msra.mxu0 %v346
  %1117 = vmatpush.msra.mxu0 %v344
  %1118 = vmatpush.msra.mxu0 %v342
  %1119 = vmatpush.msra.mxu0 %v340
  %1120 = vmatpush.msra.mxu0 %v338
  %1121 = vmatpush.msra.mxu0 %v336
  %1122 = vmatmul.f32.gmra.mxu0 %v581
  %v1123 = vpop.f32.mrf.mxu0
  %v1124 = vadd.f32 %v1104, %v1123
  %1125 = vdwg.mxu0
  %1126 = vmatpush.msra.mxu0 %v398
  %1127 = vmatpush.msra.mxu0 %v396
  %1128 = vmatpush.msra.mxu0 %v394
  %1129 = vmatpush.msra.mxu0 %v392
  %1130 = vmatpush.msra.mxu0 %v390
  %1131 = vmatpush.msra.mxu0 %v388
  %1132 = vmatpush.msra.mxu0 %v386
  %1133 = vmatpush.msra.mxu0 %v384
  %1134 = vmatpush.msra.mxu0 %v382
  %1135 = vmatpush.msra.mxu0 %v380
  %1136 = vmatpush.msra.mxu0 %v378
  %1137 = vmatpush.msra.mxu0 %v376
  %1138 = vmatpush.msra.mxu0 %v374
  %1139 = vmatpush.msra.mxu0 %v372
  %1140 = vmatpush.msra.mxu0 %v370
  %1141 = vmatpush.msra.mxu0 %v368
  %1142 = vmatmul.f32.gmra.mxu0 %v582
  %v1143 = vpop.f32.mrf.mxu0
  %v1144 = vadd.f32 %v1124, %v1143
  %1145 = vdwg.mxu0
  %1146 = vmatpush.msra.mxu0 %v430
  %1147 = vmatpush.msra.mxu0 %v428
  %1148 = vmatpush.msra.mxu0 %v426
  %1149 = vmatpush.msra.mxu0 %v424
  %1150 = vmatpush.msra.mxu0 %v422
  %1151 = vmatpush.msra.mxu0 %v420
  %1152 = vmatpush.msra.mxu0 %v418
  %1153 = vmatpush.msra.mxu0 %v416
  %1154 = vmatpush.msra.mxu0 %v414
  %1155 = vmatpush.msra.mxu0 %v412
  %1156 = vmatpush.msra.mxu0 %v410
  %1157 = vmatpush.msra.mxu0 %v408
  %1158 = vmatpush.msra.mxu0 %v406
  %1159 = vmatpush.msra.mxu0 %v404
  %1160 = vmatpush.msra.mxu0 %v402
  %1161 = vmatpush.msra.mxu0 %v400
  %1162 = vmatmul.f32.gmra.mxu0 %v583
  %v1163 = vpop.f32.mrf.mxu0
  %v1164 = vadd.f32 %v1144, %v1163
  %1165 = vdwg.mxu0
  %1166 = vmatpush.msra.mxu0 %v462
  %1167 = vmatpush.msra.mxu0 %v460
  %1168 = vmatpush.msra.mxu0 %v458
  %1169 = vmatpush.msra.mxu0 %v456
  %1170 = vmatpush.msra.mxu0 %v454
  %1171 = vmatpush.msra.mxu0 %v452
  %1172 = vmatpush.msra.mxu0 %v450
  %1173 = vmatpush.msra.mxu0 %v448
  %1174 = vmatpush.msra.mxu0 %v446
  %1175 = vmatpush.msra.mxu0 %v444
  %1176 = vmatpush.msra.mxu0 %v442
  %1177 = vmatpush.msra.mxu0 %v440
  %1178 = vmatpush.msra.mxu0 %v438
  %1179 = vmatpush.msra.mxu0 %v436
  %1180 = vmatpush.msra.mxu0 %v434
  %1181 = vmatpush.msra.mxu0 %v432
  %1182 = vmatmul.f32.gmra.mxu0 %v584
  %v1183 = vpop.f32.mrf.mxu0
  %v1184 = vadd.f32 %v1164, %v1183
  %1185 = vdwg.mxu0
  %1186 = vmatpush.msra.mxu0 %v494
  %1187 = vmatpush.msra.mxu0 %v492
  %1188 = vmatpush.msra.mxu0 %v490
  %1189 = vmatpush.msra.mxu0 %v488
  %1190 = vmatpush.msra.mxu0 %v486
  %1191 = vmatpush.msra.mxu0 %v484
  %1192 = vmatpush.msra.mxu0 %v482
  %1193 = vmatpush.msra.mxu0 %v480
  %1194 = vmatpush.msra.mxu0 %v478
  %1195 = vmatpush.msra.mxu0 %v476
  %1196 = vmatpush.msra.mxu0 %v474
  %1197 = vmatpush.msra.mxu0 %v472
  %1198 = vmatpush.msra.mxu0 %v470
  %1199 = vmatpush.msra.mxu0 %v468
  %1200 = vmatpush.msra.mxu0 %v466
  %1201 = vmatpush.msra.mxu0 %v464
  %1202 = vmatmul.f32.gmra.mxu0 %v585
  %v1203 = vpop.f32.mrf.mxu0
  %v1204 = vadd.f32 %v1184, %v1203
  %1205 = vdwg.mxu0
  %1206 = vmatpush.msra.mxu0 %v526
  %1207 = vmatpush.msra.mxu0 %v524
  %1208 = vmatpush.msra.mxu0 %v522
  %1209 = vmatpush.msra.mxu0 %v520
  %1210 = vmatpush.msra.mxu0 %v518
  %1211 = vmatpush.msra.mxu0 %v516
  %1212 = vmatpush.msra.mxu0 %v514
  %1213 = vmatpush.msra.mxu0 %v512
  %1214 = vmatpush.msra.mxu0 %v510
  %1215 = vmatpush.msra.mxu0 %v508
  %1216 = vmatpush.msra.mxu0 %v506
  %1217 = vmatpush.msra.mxu0 %v504
  %1218 = vmatpush.msra.mxu0 %v502
  %1219 = vmatpush.msra.mxu0 %v500
  %1220 = vmatpush.msra.mxu0 %v498
  %1221 = vmatpush.msra.mxu0 %v496
  %1222 = vmatmul.f32.gmra.mxu0 %v586
  %v1223 = vpop.f32.mrf.mxu0
  %v1224 = vadd.f32 %v1204, %v1223
  %1225 = vdwg.mxu0
  %1226 = vmatpush.msra.mxu0 0.0
  %1227 = vmatpush.msra.mxu0 0.0
  %1228 = vmatpush.msra.mxu0 0.0
  %1229 = vmatpush.msra.mxu0 0.0
  %1230 = vmatpush.msra.mxu0 0.0
  %1231 = vmatpush.msra.mxu0 0.0
  %1232 = vmatpush.msra.mxu0 %v546
  %1233 = vmatpush.msra.mxu0 %v544
  %1234 = vmatpush.msra.mxu0 %v542
  %1235 = vmatpush.msra.mxu0 %v540
  %1236 = vmatpush.msra.mxu0 %v538
  %1237 = vmatpush.msra.mxu0 %v536
  %1238 = vmatpush.msra.mxu0 %v534
  %1239 = vmatpush.msra.mxu0 %v532
  %1240 = vmatpush.msra.mxu0 %v530
  %1241 = vmatpush.msra.mxu0 %v528
  %1242 = vmatmul.f32.gmra.mxu0 %v604
  %v1243 = vpop.f32.mrf.mxu0
  %v1244 = vadd.f32 %v1224, %v1243
  %1245 = vdwg.mxu0
  %1247 = vrot.lane.b32.xlu0 %v924, 108
  %v1248 = vpop.permute.xlu0 %1247
  %vm1249 = vcmask 162816
  %v1250 = vsel %vm1249, %v924, 0
  %v1252 = vsel %vm1249, %v1248, 0
  %1254 = vmatpush.xpose.msra.mxu0 0.0
  %1255 = vmatpush.xpose.msra.mxu0 0.0
  %1256 = vmatpush.xpose.msra.mxu0 0.0
  %1257 = vmatpush.xpose.msra.mxu0 0.0
  %1258 = vmatpush.xpose.msra.mxu0 0.0
  %1259 = vmatpush.xpose.msra.mxu0 0.0
  %1260 = vmatpush.xpose.msra.mxu0 0.0
  %1261 = vmatpush.xpose.msra.mxu0 0.0
  %1262 = vmatpush.xpose.msra.mxu0 0.0
  %1263 = vmatpush.xpose.msra.mxu0 0.0
  %1264 = vmatpush.xpose.msra.mxu0 0.0
  %1265 = vmatpush.xpose.msra.mxu0 0.0
  %1266 = vmatpush.xpose.msra.mxu0 0.0
  %1267 = vmatpush.xpose.msra.mxu0 0.0
  %1268 = vmatpush.xpose.msra.mxu0 0.0
  %1269 = vmatpush.xpose.msra.mxu0 %v1252
  %1270 = vmatmul.f32.gmra.mxu0 %v1250
  %v1271 = vpop.f32.mrf.mxu0
  %v1272 = vadd.f32 0.0, %v1271
  %1273 = vdwg.mxu0
  %v1274 = vmul.f32 %v1272, 0.2236068
  %vm1275 = vcmp.gt.f32.partialorder %v32, 0.0
  %v1276 = vsel %vm1275, %v1274, -1e+30
  %vm1277 = vcmask 27648
  %v1278 = vsel %vm1277, %v1276, -inf
  %1279 = vmax.xlane.f32.xlu0 %v1278
  %v1280 = vpop.xlane.xlu0 %1279
  %v1281 = vsub.f32 %v1276, %v1280
  %v1282 = vmul.f32 %v1281, 1.442695
  %v1283 = vpow.pop %v1282
  %v1284 = vmul.f32 %v1283, %v32
  %v1285 = vsel %vm1277, %v1284, 0.0
  %1286 = vadd.xlane.f32.xlu0 %v1285
  %v1287 = vpop.xlane.xlu0 %1286
  %v1288 = vmax.f32 %v1287, 1e-16
  %v1289 = vrcp.pop %v1288
  %v1290 = vmul.f32 %v1284, %v1289
  %1291 = vrot.lane.b32.xlu0 %v924, 88
  %v1292 = vpop.permute.xlu0 %1291
  %vm1293 = vcmask 31744
  %v1295 = vsel %vm1293, %v1290, 0
  %vm1297 = vcmask 1043456
  %v1298 = vsel %vm1297, %v1292, 0
  %1300 = vmatpush.msra.mxu0 0.0
  %1301 = vmatpush.msra.mxu0 0.0
  %1302 = vmatpush.msra.mxu0 0.0
  %1303 = vmatpush.msra.mxu0 0.0
  %1304 = vmatpush.msra.mxu0 0.0
  %1305 = vmatpush.msra.mxu0 0.0
  %1306 = vmatpush.msra.mxu0 0.0
  %1307 = vmatpush.msra.mxu0 0.0
  %1308 = vmatpush.msra.mxu0 0.0
  %1309 = vmatpush.msra.mxu0 0.0
  %1310 = vmatpush.msra.mxu0 0.0
  %1311 = vmatpush.msra.mxu0 0.0
  %1312 = vmatpush.msra.mxu0 0.0
  %1313 = vmatpush.msra.mxu0 0.0
  %1314 = vmatpush.msra.mxu0 0.0
  %1315 = vmatpush.msra.mxu0 %v1298
  %1316 = vmatmul.f32.gmra.mxu0 %v1295
  %v1317 = vpop.f32.mrf.mxu0
  %v1318 = vadd.f32 0.0, %v1317
  %1319 = vdwg.mxu0
  %1321 = vrot.lane.b32.xlu0 %v1318, 60
  %v1322 = vpop.permute.xlu0 %1321
  %v1324 = vadd.f32 %v924, %v1322
  %1325 = vrot.lane.b32.xlu0 %v924, 48
  %v1326 = vpop.permute.xlu0 %1325
  %1327 = vrot.lane.b32.xlu0 %v924, 28
  %v1328 = vpop.permute.xlu0 %1327
  %v1329 = vsel %vm1249, %v1326, 0
  %v1331 = vsel %vm1249, %v1328, 0
  %1333 = vmatpush.xpose.msra.mxu0 0.0
  %1334 = vmatpush.xpose.msra.mxu0 0.0
  %1335 = vmatpush.xpose.msra.mxu0 0.0
  %1336 = vmatpush.xpose.msra.mxu0 0.0
  %1337 = vmatpush.xpose.msra.mxu0 0.0
  %1338 = vmatpush.xpose.msra.mxu0 0.0
  %1339 = vmatpush.xpose.msra.mxu0 0.0
  %1340 = vmatpush.xpose.msra.mxu0 0.0
  %1341 = vmatpush.xpose.msra.mxu0 0.0
  %1342 = vmatpush.xpose.msra.mxu0 0.0
  %1343 = vmatpush.xpose.msra.mxu0 0.0
  %1344 = vmatpush.xpose.msra.mxu0 0.0
  %1345 = vmatpush.xpose.msra.mxu0 0.0
  %1346 = vmatpush.xpose.msra.mxu0 0.0
  %1347 = vmatpush.xpose.msra.mxu0 0.0
  %1348 = vmatpush.xpose.msra.mxu0 %v1331
  %1349 = vmatmul.f32.gmra.mxu0 %v1329
  %v1350 = vpop.f32.mrf.mxu0
  %v1351 = vadd.f32 0.0, %v1350
  %1352 = vdwg.mxu0
  %v1353 = vmul.f32 %v1351, 0.2236068
  %vm1354 = vcmp.gt.f32.partialorder %v33, 0.0
  %v1355 = vsel %vm1354, %v1353, -1e+30
  %v1356 = vsel %vm1277, %v1355, -inf
  %1357 = vmax.xlane.f32.xlu0 %v1356
  %v1358 = vpop.xlane.xlu0 %1357
  %v1359 = vsub.f32 %v1355, %v1358
  %v1360 = vmul.f32 %v1359, 1.442695
  %v1361 = vpow.pop %v1360
  %v1362 = vmul.f32 %v1361, %v33
  %v1363 = vsel %vm1277, %v1362, 0.0
  %1364 = vadd.xlane.f32.xlu0 %v1363
  %v1365 = vpop.xlane.xlu0 %1364
  %v1366 = vmax.f32 %v1365, 1e-16
  %v1367 = vrcp.pop %v1366
  %v1368 = vmul.f32 %v1362, %v1367
  %1370 = vrot.lane.b32.xlu0 %v924, 8
  %v1371 = vpop.permute.xlu0 %1370
  %1372 = vrot.lane.b32.xlu0 %v1244, 8
  %v1373 = vpop.permute.xlu0 %1372
  %vm1374 = vcmask 64512
  %v1375 = vsel %vm1374, %v1371, %v1373
  %v1377 = vsel %vm1293, %v1368, 0
  %v1379 = vsel %vm1297, %v1375, 0
  %1381 = vmatpush.msra.mxu0 0.0
  %1382 = vmatpush.msra.mxu0 0.0
  %1383 = vmatpush.msra.mxu0 0.0
  %1384 = vmatpush.msra.mxu0 0.0
  %1385 = vmatpush.msra.mxu0 0.0
  %1386 = vmatpush.msra.mxu0 0.0
  %1387 = vmatpush.msra.mxu0 0.0
  %1388 = vmatpush.msra.mxu0 0.0
  %1389 = vmatpush.msra.mxu0 0.0
  %1390 = vmatpush.msra.mxu0 0.0
  %1391 = vmatpush.msra.mxu0 0.0
  %1392 = vmatpush.msra.mxu0 0.0
  %1393 = vmatpush.msra.mxu0 0.0
  %1394 = vmatpush.msra.mxu0 0.0
  %1395 = vmatpush.msra.mxu0 0.0
  %1396 = vmatpush.msra.mxu0 %v1379
  %1397 = vmatmul.f32.gmra.mxu0 %v1377
  %v1398 = vpop.f32.mrf.mxu0
  %v1399 = vadd.f32 0.0, %v1398
  %1400 = vdwg.mxu0
  %1402 = vrot.lane.b32.xlu0 %v1399, 12
  %v1403 = vpop.permute.xlu0 %1402
  %v1405 = vadd.f32 %v1244, %v1403
  %v1406 = vmul.f32 %v1324, 0.8
  %v1407 = vmul.f32 %v1405, 0.2
  %1409 = vrot.lane.b32.xlu0 %v1407, 48
  %v1410 = vpop.permute.xlu0 %1409
  %v1412 = vadd.f32 %v1406, %v1410
  %v1413 = vmul.f32 %v1412, 0.999995
  %vm1414 = vcmp.gt.f32.partialorder %v1413, 0.0
  %v1415 = vmul.f32 %v1413, 0.01
  %v1416 = vsel %vm1414, %v1413, %v1415
  %v1417 = vld [vmem:[%s7] sm:$0xff]
  %v1418 = vld [vmem:[%s7 + $0x8] sm:$0xff]
  %v1419 = vld [vmem:[%s7 + $0x10] sm:$0xf]
  %1421 = vrot.lane.b32.xlu0 %v1416, 68
  %v1422 = vpop.permute.xlu0 %1421
  %v1423 = vsel %vm1249, %v1422, 0
  %v1426 = vsel %vm1297, %v1419, 0
  %1428 = vmatpush.msra.mxu0 0.0
  %1429 = vmatpush.msra.mxu0 0.0
  %1430 = vmatpush.msra.mxu0 0.0
  %1431 = vmatpush.msra.mxu0 0.0
  %1432 = vmatpush.msra.mxu0 0.0
  %1433 = vmatpush.msra.mxu0 0.0
  %1434 = vmatpush.msra.mxu0 0.0
  %1435 = vmatpush.msra.mxu0 0.0
  %1436 = vmatpush.msra.mxu0 0.0
  %1437 = vmatpush.msra.mxu0 0.0
  %1438 = vmatpush.msra.mxu0 0.0
  %1439 = vmatpush.msra.mxu0 0.0
  %1440 = vmatpush.msra.mxu0 0.0
  %1441 = vmatpush.msra.mxu0 %v1426
  %1442 = vmatpush.msra.mxu0 %v1418
  %1443 = vmatpush.msra.mxu0 %v1417
  %1444 = vmatmul.f32.gmra.mxu0 %v1423
  %v1445 = vpop.f32.mrf.mxu0
  %v1446 = vadd.f32 0.0, %v1445
  %1447 = vdwg.mxu0
  %v1448 = vadd.f32 %v46, %v1446
  %v1449 = vld [vmem:[%s5] sm:$0xff]
  %v1450 = vld [vmem:[%s5 + $0x8] sm:$0xff]
  %v1451 = vld [vmem:[%s5 + $0x10] sm:$0xff]
  %v1452 = vld [vmem:[%s5 + $0x18] sm:$0xff]
  %v1453 = vld [vmem:[%s5 + $0x20] sm:$0xf]
  %v1454 = vld [vmem:[%s5 + $0x28] sm:$0xf]
  %v1455 = vld [vmem:[%s6] sm:$0x3]
  %v1457 = vperm.slane %v1455, 0
  %v1458 = vperm.slane %v1455, 1
  %v1462 = vsel %vm1297, %v1453, 0
  %v1465 = vsel %vm1297, %v1454, 0
  %1467 = vmatpush.msra.mxu0 0.0
  %1468 = vmatpush.msra.mxu0 0.0
  %1469 = vmatpush.msra.mxu0 0.0
  %1470 = vmatpush.msra.mxu0 0.0
  %1471 = vmatpush.msra.mxu0 0.0
  %1472 = vmatpush.msra.mxu0 0.0
  %1473 = vmatpush.msra.mxu0 0.0
  %1474 = vmatpush.msra.mxu0 0.0
  %1475 = vmatpush.msra.mxu0 0.0
  %1476 = vmatpush.msra.mxu0 0.0
  %1477 = vmatpush.msra.mxu0 0.0
  %1478 = vmatpush.msra.mxu0 0.0
  %1479 = vmatpush.msra.mxu0 0.0
  %1480 = vmatpush.msra.mxu0 %v1462
  %1481 = vmatpush.msra.mxu0 %v1451
  %1482 = vmatpush.msra.mxu0 %v1449
  %1483 = vmatmul.f32.gmra.mxu0 %v1423
  %v1484 = vpop.f32.mrf.mxu0
  %v1485 = vadd.f32 %v1457, %v1484
  %1486 = vdwg.mxu0
  %1487 = vmatpush.msra.mxu0 0.0
  %1488 = vmatpush.msra.mxu0 0.0
  %1489 = vmatpush.msra.mxu0 0.0
  %1490 = vmatpush.msra.mxu0 0.0
  %1491 = vmatpush.msra.mxu0 0.0
  %1492 = vmatpush.msra.mxu0 0.0
  %1493 = vmatpush.msra.mxu0 0.0
  %1494 = vmatpush.msra.mxu0 0.0
  %1495 = vmatpush.msra.mxu0 0.0
  %1496 = vmatpush.msra.mxu0 0.0
  %1497 = vmatpush.msra.mxu0 0.0
  %1498 = vmatpush.msra.mxu0 0.0
  %1499 = vmatpush.msra.mxu0 0.0
  %1500 = vmatpush.msra.mxu0 %v1465
  %1501 = vmatpush.msra.mxu0 %v1452
  %1502 = vmatpush.msra.mxu0 %v1450
  %1503 = vmatmul.f32.gmra.mxu0 %v1423
  %v1504 = vpop.f32.mrf.mxu0
  %v1505 = vadd.f32 %v1458, %v1504
  %1506 = vdwg.mxu0
  %1508 = vrot.lane.b32.xlu0 %v1485, 108
  %v1509 = vpop.permute.xlu0 %1508
  %v1510 = vsel %vm1249, %v1485, 0
  %v1512 = vsel %vm1249, %v1509, 0
  %1514 = vmatpush.xpose.msra.mxu0 0.0
  %1515 = vmatpush.xpose.msra.mxu0 0.0
  %1516 = vmatpush.xpose.msra.mxu0 0.0
  %1517 = vmatpush.xpose.msra.mxu0 0.0
  %1518 = vmatpush.xpose.msra.mxu0 0.0
  %1519 = vmatpush.xpose.msra.mxu0 0.0
  %1520 = vmatpush.xpose.msra.mxu0 0.0
  %1521 = vmatpush.xpose.msra.mxu0 0.0
  %1522 = vmatpush.xpose.msra.mxu0 0.0
  %1523 = vmatpush.xpose.msra.mxu0 0.0
  %1524 = vmatpush.xpose.msra.mxu0 0.0
  %1525 = vmatpush.xpose.msra.mxu0 0.0
  %1526 = vmatpush.xpose.msra.mxu0 0.0
  %1527 = vmatpush.xpose.msra.mxu0 0.0
  %1528 = vmatpush.xpose.msra.mxu0 0.0
  %1529 = vmatpush.xpose.msra.mxu0 %v1512
  %1530 = vmatmul.f32.gmra.mxu0 %v1510
  %v1531 = vpop.f32.mrf.mxu0
  %v1532 = vadd.f32 0.0, %v1531
  %1533 = vdwg.mxu0
  %v1534 = vmul.f32 %v1532, 0.2236068
  %v1535 = vsel %vm1275, %v1534, -1e+30
  %v1536 = vsel %vm1277, %v1535, -inf
  %1537 = vmax.xlane.f32.xlu0 %v1536
  %v1538 = vpop.xlane.xlu0 %1537
  %v1539 = vsub.f32 %v1535, %v1538
  %v1540 = vmul.f32 %v1539, 1.442695
  %v1541 = vpow.pop %v1540
  %v1542 = vmul.f32 %v1541, %v32
  %v1543 = vsel %vm1277, %v1542, 0.0
  %1544 = vadd.xlane.f32.xlu0 %v1543
  %v1545 = vpop.xlane.xlu0 %1544
  %v1546 = vmax.f32 %v1545, 1e-16
  %v1547 = vrcp.pop %v1546
  %v1548 = vmul.f32 %v1542, %v1547
  %1549 = vrot.lane.b32.xlu0 %v1485, 88
  %v1550 = vpop.permute.xlu0 %1549
  %v1552 = vsel %vm1293, %v1548, 0
  %v1554 = vsel %vm1297, %v1550, 0
  %1556 = vmatpush.msra.mxu0 0.0
  %1557 = vmatpush.msra.mxu0 0.0
  %1558 = vmatpush.msra.mxu0 0.0
  %1559 = vmatpush.msra.mxu0 0.0
  %1560 = vmatpush.msra.mxu0 0.0
  %1561 = vmatpush.msra.mxu0 0.0
  %1562 = vmatpush.msra.mxu0 0.0
  %1563 = vmatpush.msra.mxu0 0.0
  %1564 = vmatpush.msra.mxu0 0.0
  %1565 = vmatpush.msra.mxu0 0.0
  %1566 = vmatpush.msra.mxu0 0.0
  %1567 = vmatpush.msra.mxu0 0.0
  %1568 = vmatpush.msra.mxu0 0.0
  %1569 = vmatpush.msra.mxu0 0.0
  %1570 = vmatpush.msra.mxu0 0.0
  %1571 = vmatpush.msra.mxu0 %v1554
  %1572 = vmatmul.f32.gmra.mxu0 %v1552
  %v1573 = vpop.f32.mrf.mxu0
  %v1574 = vadd.f32 0.0, %v1573
  %1575 = vdwg.mxu0
  %1577 = vrot.lane.b32.xlu0 %v1574, 60
  %v1578 = vpop.permute.xlu0 %1577
  %v1580 = vadd.f32 %v1485, %v1578
  %1581 = vrot.lane.b32.xlu0 %v1485, 48
  %v1582 = vpop.permute.xlu0 %1581
  %1583 = vrot.lane.b32.xlu0 %v1485, 28
  %v1584 = vpop.permute.xlu0 %1583
  %v1585 = vsel %vm1249, %v1582, 0
  %v1587 = vsel %vm1249, %v1584, 0
  %1589 = vmatpush.xpose.msra.mxu0 0.0
  %1590 = vmatpush.xpose.msra.mxu0 0.0
  %1591 = vmatpush.xpose.msra.mxu0 0.0
  %1592 = vmatpush.xpose.msra.mxu0 0.0
  %1593 = vmatpush.xpose.msra.mxu0 0.0
  %1594 = vmatpush.xpose.msra.mxu0 0.0
  %1595 = vmatpush.xpose.msra.mxu0 0.0
  %1596 = vmatpush.xpose.msra.mxu0 0.0
  %1597 = vmatpush.xpose.msra.mxu0 0.0
  %1598 = vmatpush.xpose.msra.mxu0 0.0
  %1599 = vmatpush.xpose.msra.mxu0 0.0
  %1600 = vmatpush.xpose.msra.mxu0 0.0
  %1601 = vmatpush.xpose.msra.mxu0 0.0
  %1602 = vmatpush.xpose.msra.mxu0 0.0
  %1603 = vmatpush.xpose.msra.mxu0 0.0
  %1604 = vmatpush.xpose.msra.mxu0 %v1587
  %1605 = vmatmul.f32.gmra.mxu0 %v1585
  %v1606 = vpop.f32.mrf.mxu0
  %v1607 = vadd.f32 0.0, %v1606
  %1608 = vdwg.mxu0
  %v1609 = vmul.f32 %v1607, 0.2236068
  %v1610 = vsel %vm1354, %v1609, -1e+30
  %v1611 = vsel %vm1277, %v1610, -inf
  %1612 = vmax.xlane.f32.xlu0 %v1611
  %v1613 = vpop.xlane.xlu0 %1612
  %v1614 = vsub.f32 %v1610, %v1613
  %v1615 = vmul.f32 %v1614, 1.442695
  %v1616 = vpow.pop %v1615
  %v1617 = vmul.f32 %v1616, %v33
  %v1618 = vsel %vm1277, %v1617, 0.0
  %1619 = vadd.xlane.f32.xlu0 %v1618
  %v1620 = vpop.xlane.xlu0 %1619
  %v1621 = vmax.f32 %v1620, 1e-16
  %v1622 = vrcp.pop %v1621
  %v1623 = vmul.f32 %v1617, %v1622
  %1625 = vrot.lane.b32.xlu0 %v1485, 8
  %v1626 = vpop.permute.xlu0 %1625
  %1627 = vrot.lane.b32.xlu0 %v1505, 8
  %v1628 = vpop.permute.xlu0 %1627
  %v1629 = vsel %vm1374, %v1626, %v1628
  %v1631 = vsel %vm1293, %v1623, 0
  %v1633 = vsel %vm1297, %v1629, 0
  %1635 = vmatpush.msra.mxu0 0.0
  %1636 = vmatpush.msra.mxu0 0.0
  %1637 = vmatpush.msra.mxu0 0.0
  %1638 = vmatpush.msra.mxu0 0.0
  %1639 = vmatpush.msra.mxu0 0.0
  %1640 = vmatpush.msra.mxu0 0.0
  %1641 = vmatpush.msra.mxu0 0.0
  %1642 = vmatpush.msra.mxu0 0.0
  %1643 = vmatpush.msra.mxu0 0.0
  %1644 = vmatpush.msra.mxu0 0.0
  %1645 = vmatpush.msra.mxu0 0.0
  %1646 = vmatpush.msra.mxu0 0.0
  %1647 = vmatpush.msra.mxu0 0.0
  %1648 = vmatpush.msra.mxu0 0.0
  %1649 = vmatpush.msra.mxu0 0.0
  %1650 = vmatpush.msra.mxu0 %v1633
  %1651 = vmatmul.f32.gmra.mxu0 %v1631
  %v1652 = vpop.f32.mrf.mxu0
  %v1653 = vadd.f32 0.0, %v1652
  %1654 = vdwg.mxu0
  %1656 = vrot.lane.b32.xlu0 %v1653, 12
  %v1657 = vpop.permute.xlu0 %1656
  %v1659 = vadd.f32 %v1505, %v1657
  %v1660 = vmul.f32 %v1580, 0.8
  %v1661 = vmul.f32 %v1659, 0.2
  %1663 = vrot.lane.b32.xlu0 %v1661, 48
  %v1664 = vpop.permute.xlu0 %1663
  %v1666 = vadd.f32 %v1660, %v1664
  %v1667 = vmul.f32 %v1666, 0.999995
  %vm1668 = vcmp.gt.f32.partialorder %v1667, 0.0
  %v1669 = vmul.f32 %v1667, 0.01
  %v1670 = vsel %vm1668, %v1667, %v1669
  %s1671 = scalar_lea.vmem %s7, 24
  %v1672 = vld [vmem:[%s1671] sm:$0xff]
  %v1673 = vld [vmem:[%s1671 + $0x8] sm:$0xff]
  %v1674 = vld [vmem:[%s1671 + $0x10] sm:$0xf]
  %1676 = vrot.lane.b32.xlu0 %v1670, 68
  %v1677 = vpop.permute.xlu0 %1676
  %v1678 = vsel %vm1249, %v1677, 0
  %v1681 = vsel %vm1297, %v1674, 0
  %1683 = vmatpush.msra.mxu0 0.0
  %1684 = vmatpush.msra.mxu0 0.0
  %1685 = vmatpush.msra.mxu0 0.0
  %1686 = vmatpush.msra.mxu0 0.0
  %1687 = vmatpush.msra.mxu0 0.0
  %1688 = vmatpush.msra.mxu0 0.0
  %1689 = vmatpush.msra.mxu0 0.0
  %1690 = vmatpush.msra.mxu0 0.0
  %1691 = vmatpush.msra.mxu0 0.0
  %1692 = vmatpush.msra.mxu0 0.0
  %1693 = vmatpush.msra.mxu0 0.0
  %1694 = vmatpush.msra.mxu0 0.0
  %1695 = vmatpush.msra.mxu0 0.0
  %1696 = vmatpush.msra.mxu0 %v1681
  %1697 = vmatpush.msra.mxu0 %v1673
  %1698 = vmatpush.msra.mxu0 %v1672
  %1699 = vmatmul.f32.gmra.mxu0 %v1678
  %v1700 = vpop.f32.mrf.mxu0
  %v1701 = vadd.f32 0.0, %v1700
  %1702 = vdwg.mxu0
  %v1703 = vadd.f32 %v1448, %v1701
  %s1704 = scalar_lea.vmem %s5, 48
  %v1705 = vld [vmem:[%s1704] sm:$0xff]
  %v1706 = vld [vmem:[%s1704 + $0x8] sm:$0xff]
  %v1707 = vld [vmem:[%s1704 + $0x10] sm:$0xff]
  %v1708 = vld [vmem:[%s1704 + $0x18] sm:$0xff]
  %v1709 = vld [vmem:[%s1704 + $0x20] sm:$0xf]
  %v1710 = vld [vmem:[%s1704 + $0x28] sm:$0xf]
  %s1711 = scalar_lea.vmem %s6, 2
  %v1712 = vld [vmem:[%s1711] sm:$0x3]
  %v1714 = vperm.slane %v1712, 0
  %v1715 = vperm.slane %v1712, 1
  %v1719 = vsel %vm1297, %v1709, 0
  %v1722 = vsel %vm1297, %v1710, 0
  %1724 = vmatpush.msra.mxu0 0.0
  %1725 = vmatpush.msra.mxu0 0.0
  %1726 = vmatpush.msra.mxu0 0.0
  %1727 = vmatpush.msra.mxu0 0.0
  %1728 = vmatpush.msra.mxu0 0.0
  %1729 = vmatpush.msra.mxu0 0.0
  %1730 = vmatpush.msra.mxu0 0.0
  %1731 = vmatpush.msra.mxu0 0.0
  %1732 = vmatpush.msra.mxu0 0.0
  %1733 = vmatpush.msra.mxu0 0.0
  %1734 = vmatpush.msra.mxu0 0.0
  %1735 = vmatpush.msra.mxu0 0.0
  %1736 = vmatpush.msra.mxu0 0.0
  %1737 = vmatpush.msra.mxu0 %v1719
  %1738 = vmatpush.msra.mxu0 %v1707
  %1739 = vmatpush.msra.mxu0 %v1705
  %1740 = vmatmul.f32.gmra.mxu0 %v1678
  %v1741 = vpop.f32.mrf.mxu0
  %v1742 = vadd.f32 %v1714, %v1741
  %1743 = vdwg.mxu0
  %1744 = vmatpush.msra.mxu0 0.0
  %1745 = vmatpush.msra.mxu0 0.0
  %1746 = vmatpush.msra.mxu0 0.0
  %1747 = vmatpush.msra.mxu0 0.0
  %1748 = vmatpush.msra.mxu0 0.0
  %1749 = vmatpush.msra.mxu0 0.0
  %1750 = vmatpush.msra.mxu0 0.0
  %1751 = vmatpush.msra.mxu0 0.0
  %1752 = vmatpush.msra.mxu0 0.0
  %1753 = vmatpush.msra.mxu0 0.0
  %1754 = vmatpush.msra.mxu0 0.0
  %1755 = vmatpush.msra.mxu0 0.0
  %1756 = vmatpush.msra.mxu0 0.0
  %1757 = vmatpush.msra.mxu0 %v1722
  %1758 = vmatpush.msra.mxu0 %v1708
  %1759 = vmatpush.msra.mxu0 %v1706
  %1760 = vmatmul.f32.gmra.mxu0 %v1678
  %v1761 = vpop.f32.mrf.mxu0
  %v1762 = vadd.f32 %v1715, %v1761
  %1763 = vdwg.mxu0
  %1765 = vrot.lane.b32.xlu0 %v1742, 108
  %v1766 = vpop.permute.xlu0 %1765
  %v1767 = vsel %vm1249, %v1742, 0
  %v1769 = vsel %vm1249, %v1766, 0
  %1771 = vmatpush.xpose.msra.mxu0 0.0
  %1772 = vmatpush.xpose.msra.mxu0 0.0
  %1773 = vmatpush.xpose.msra.mxu0 0.0
  %1774 = vmatpush.xpose.msra.mxu0 0.0
  %1775 = vmatpush.xpose.msra.mxu0 0.0
  %1776 = vmatpush.xpose.msra.mxu0 0.0
  %1777 = vmatpush.xpose.msra.mxu0 0.0
  %1778 = vmatpush.xpose.msra.mxu0 0.0
  %1779 = vmatpush.xpose.msra.mxu0 0.0
  %1780 = vmatpush.xpose.msra.mxu0 0.0
  %1781 = vmatpush.xpose.msra.mxu0 0.0
  %1782 = vmatpush.xpose.msra.mxu0 0.0
  %1783 = vmatpush.xpose.msra.mxu0 0.0
  %1784 = vmatpush.xpose.msra.mxu0 0.0
  %1785 = vmatpush.xpose.msra.mxu0 0.0
  %1786 = vmatpush.xpose.msra.mxu0 %v1769
  %1787 = vmatmul.f32.gmra.mxu0 %v1767
  %v1788 = vpop.f32.mrf.mxu0
  %v1789 = vadd.f32 0.0, %v1788
  %1790 = vdwg.mxu0
  %v1791 = vmul.f32 %v1789, 0.2236068
  %v1792 = vsel %vm1275, %v1791, -1e+30
  %v1793 = vsel %vm1277, %v1792, -inf
  %1794 = vmax.xlane.f32.xlu0 %v1793
  %v1795 = vpop.xlane.xlu0 %1794
  %v1796 = vsub.f32 %v1792, %v1795
  %v1797 = vmul.f32 %v1796, 1.442695
  %v1798 = vpow.pop %v1797
  %v1799 = vmul.f32 %v1798, %v32
  %v1800 = vsel %vm1277, %v1799, 0.0
  %1801 = vadd.xlane.f32.xlu0 %v1800
  %v1802 = vpop.xlane.xlu0 %1801
  %v1803 = vmax.f32 %v1802, 1e-16
  %v1804 = vrcp.pop %v1803
  %v1805 = vmul.f32 %v1799, %v1804
  %1806 = vrot.lane.b32.xlu0 %v1742, 88
  %v1807 = vpop.permute.xlu0 %1806
  %v1809 = vsel %vm1293, %v1805, 0
  %v1811 = vsel %vm1297, %v1807, 0
  %1813 = vmatpush.msra.mxu0 0.0
  %1814 = vmatpush.msra.mxu0 0.0
  %1815 = vmatpush.msra.mxu0 0.0
  %1816 = vmatpush.msra.mxu0 0.0
  %1817 = vmatpush.msra.mxu0 0.0
  %1818 = vmatpush.msra.mxu0 0.0
  %1819 = vmatpush.msra.mxu0 0.0
  %1820 = vmatpush.msra.mxu0 0.0
  %1821 = vmatpush.msra.mxu0 0.0
  %1822 = vmatpush.msra.mxu0 0.0
  %1823 = vmatpush.msra.mxu0 0.0
  %1824 = vmatpush.msra.mxu0 0.0
  %1825 = vmatpush.msra.mxu0 0.0
  %1826 = vmatpush.msra.mxu0 0.0
  %1827 = vmatpush.msra.mxu0 0.0
  %1828 = vmatpush.msra.mxu0 %v1811
  %1829 = vmatmul.f32.gmra.mxu0 %v1809
  %v1830 = vpop.f32.mrf.mxu0
  %v1831 = vadd.f32 0.0, %v1830
  %1832 = vdwg.mxu0
  %1834 = vrot.lane.b32.xlu0 %v1831, 60
  %v1835 = vpop.permute.xlu0 %1834
  %v1837 = vadd.f32 %v1742, %v1835
  %1838 = vrot.lane.b32.xlu0 %v1742, 48
  %v1839 = vpop.permute.xlu0 %1838
  %1840 = vrot.lane.b32.xlu0 %v1742, 28
  %v1841 = vpop.permute.xlu0 %1840
  %v1842 = vsel %vm1249, %v1839, 0
  %v1844 = vsel %vm1249, %v1841, 0
  %1846 = vmatpush.xpose.msra.mxu0 0.0
  %1847 = vmatpush.xpose.msra.mxu0 0.0
  %1848 = vmatpush.xpose.msra.mxu0 0.0
  %1849 = vmatpush.xpose.msra.mxu0 0.0
  %1850 = vmatpush.xpose.msra.mxu0 0.0
  %1851 = vmatpush.xpose.msra.mxu0 0.0
  %1852 = vmatpush.xpose.msra.mxu0 0.0
  %1853 = vmatpush.xpose.msra.mxu0 0.0
  %1854 = vmatpush.xpose.msra.mxu0 0.0
  %1855 = vmatpush.xpose.msra.mxu0 0.0
  %1856 = vmatpush.xpose.msra.mxu0 0.0
  %1857 = vmatpush.xpose.msra.mxu0 0.0
  %1858 = vmatpush.xpose.msra.mxu0 0.0
  %1859 = vmatpush.xpose.msra.mxu0 0.0
  %1860 = vmatpush.xpose.msra.mxu0 0.0
  %1861 = vmatpush.xpose.msra.mxu0 %v1844
  %1862 = vmatmul.f32.gmra.mxu0 %v1842
  %v1863 = vpop.f32.mrf.mxu0
  %v1864 = vadd.f32 0.0, %v1863
  %1865 = vdwg.mxu0
  %v1866 = vmul.f32 %v1864, 0.2236068
  %v1867 = vsel %vm1354, %v1866, -1e+30
  %v1868 = vsel %vm1277, %v1867, -inf
  %1869 = vmax.xlane.f32.xlu0 %v1868
  %v1870 = vpop.xlane.xlu0 %1869
  %v1871 = vsub.f32 %v1867, %v1870
  %v1872 = vmul.f32 %v1871, 1.442695
  %v1873 = vpow.pop %v1872
  %v1874 = vmul.f32 %v1873, %v33
  %v1875 = vsel %vm1277, %v1874, 0.0
  %1876 = vadd.xlane.f32.xlu0 %v1875
  %v1877 = vpop.xlane.xlu0 %1876
  %v1878 = vmax.f32 %v1877, 1e-16
  %v1879 = vrcp.pop %v1878
  %v1880 = vmul.f32 %v1874, %v1879
  %1882 = vrot.lane.b32.xlu0 %v1742, 8
  %v1883 = vpop.permute.xlu0 %1882
  %1884 = vrot.lane.b32.xlu0 %v1762, 8
  %v1885 = vpop.permute.xlu0 %1884
  %v1886 = vsel %vm1374, %v1883, %v1885
  %v1888 = vsel %vm1293, %v1880, 0
  %v1890 = vsel %vm1297, %v1886, 0
  %1892 = vmatpush.msra.mxu0 0.0
  %1893 = vmatpush.msra.mxu0 0.0
  %1894 = vmatpush.msra.mxu0 0.0
  %1895 = vmatpush.msra.mxu0 0.0
  %1896 = vmatpush.msra.mxu0 0.0
  %1897 = vmatpush.msra.mxu0 0.0
  %1898 = vmatpush.msra.mxu0 0.0
  %1899 = vmatpush.msra.mxu0 0.0
  %1900 = vmatpush.msra.mxu0 0.0
  %1901 = vmatpush.msra.mxu0 0.0
  %1902 = vmatpush.msra.mxu0 0.0
  %1903 = vmatpush.msra.mxu0 0.0
  %1904 = vmatpush.msra.mxu0 0.0
  %1905 = vmatpush.msra.mxu0 0.0
  %1906 = vmatpush.msra.mxu0 0.0
  %1907 = vmatpush.msra.mxu0 %v1890
  %1908 = vmatmul.f32.gmra.mxu0 %v1888
  %v1909 = vpop.f32.mrf.mxu0
  %v1910 = vadd.f32 0.0, %v1909
  %1911 = vdwg.mxu0
  %1913 = vrot.lane.b32.xlu0 %v1910, 12
  %v1914 = vpop.permute.xlu0 %1913
  %v1916 = vadd.f32 %v1762, %v1914
  %v1917 = vmul.f32 %v1837, 0.8
  %v1918 = vmul.f32 %v1916, 0.2
  %1920 = vrot.lane.b32.xlu0 %v1918, 48
  %v1921 = vpop.permute.xlu0 %1920
  %v1923 = vadd.f32 %v1917, %v1921
  %v1924 = vmul.f32 %v1923, 0.999995
  %vm1925 = vcmp.gt.f32.partialorder %v1924, 0.0
  %v1926 = vmul.f32 %v1924, 0.01
  %v1927 = vsel %vm1925, %v1924, %v1926
  %s1928 = scalar_lea.vmem %s7, 48
  %v1929 = vld [vmem:[%s1928] sm:$0xff]
  %v1930 = vld [vmem:[%s1928 + $0x8] sm:$0xff]
  %v1931 = vld [vmem:[%s1928 + $0x10] sm:$0xf]
  %1933 = vrot.lane.b32.xlu0 %v1927, 68
  %v1934 = vpop.permute.xlu0 %1933
  %v1935 = vsel %vm1249, %v1934, 0
  %v1938 = vsel %vm1297, %v1931, 0
  %1940 = vmatpush.msra.mxu0 0.0
  %1941 = vmatpush.msra.mxu0 0.0
  %1942 = vmatpush.msra.mxu0 0.0
  %1943 = vmatpush.msra.mxu0 0.0
  %1944 = vmatpush.msra.mxu0 0.0
  %1945 = vmatpush.msra.mxu0 0.0
  %1946 = vmatpush.msra.mxu0 0.0
  %1947 = vmatpush.msra.mxu0 0.0
  %1948 = vmatpush.msra.mxu0 0.0
  %1949 = vmatpush.msra.mxu0 0.0
  %1950 = vmatpush.msra.mxu0 0.0
  %1951 = vmatpush.msra.mxu0 0.0
  %1952 = vmatpush.msra.mxu0 0.0
  %1953 = vmatpush.msra.mxu0 %v1938
  %1954 = vmatpush.msra.mxu0 %v1930
  %1955 = vmatpush.msra.mxu0 %v1929
  %1956 = vmatmul.f32.gmra.mxu0 %v1935
  %v1957 = vpop.f32.mrf.mxu0
  %v1958 = vadd.f32 0.0, %v1957
  %1959 = vdwg.mxu0
  %v1960 = vadd.f32 %v1703, %v1958
  %s1961 = scalar_lea.vmem %s5, 96
  %v1962 = vld [vmem:[%s1961] sm:$0xff]
  %v1963 = vld [vmem:[%s1961 + $0x8] sm:$0xff]
  %v1964 = vld [vmem:[%s1961 + $0x10] sm:$0xff]
  %v1965 = vld [vmem:[%s1961 + $0x18] sm:$0xff]
  %v1966 = vld [vmem:[%s1961 + $0x20] sm:$0xf]
  %v1967 = vld [vmem:[%s1961 + $0x28] sm:$0xf]
  %s1968 = scalar_lea.vmem %s6, 4
  %v1969 = vld [vmem:[%s1968] sm:$0x3]
  %v1971 = vperm.slane %v1969, 0
  %v1972 = vperm.slane %v1969, 1
  %v1976 = vsel %vm1297, %v1966, 0
  %v1979 = vsel %vm1297, %v1967, 0
  %1981 = vmatpush.msra.mxu0 0.0
  %1982 = vmatpush.msra.mxu0 0.0
  %1983 = vmatpush.msra.mxu0 0.0
  %1984 = vmatpush.msra.mxu0 0.0
  %1985 = vmatpush.msra.mxu0 0.0
  %1986 = vmatpush.msra.mxu0 0.0
  %1987 = vmatpush.msra.mxu0 0.0
  %1988 = vmatpush.msra.mxu0 0.0
  %1989 = vmatpush.msra.mxu0 0.0
  %1990 = vmatpush.msra.mxu0 0.0
  %1991 = vmatpush.msra.mxu0 0.0
  %1992 = vmatpush.msra.mxu0 0.0
  %1993 = vmatpush.msra.mxu0 0.0
  %1994 = vmatpush.msra.mxu0 %v1976
  %1995 = vmatpush.msra.mxu0 %v1964
  %1996 = vmatpush.msra.mxu0 %v1962
  %1997 = vmatmul.f32.gmra.mxu0 %v1935
  %v1998 = vpop.f32.mrf.mxu0
  %v1999 = vadd.f32 %v1971, %v1998
  %2000 = vdwg.mxu0
  %2001 = vmatpush.msra.mxu0 0.0
  %2002 = vmatpush.msra.mxu0 0.0
  %2003 = vmatpush.msra.mxu0 0.0
  %2004 = vmatpush.msra.mxu0 0.0
  %2005 = vmatpush.msra.mxu0 0.0
  %2006 = vmatpush.msra.mxu0 0.0
  %2007 = vmatpush.msra.mxu0 0.0
  %2008 = vmatpush.msra.mxu0 0.0
  %2009 = vmatpush.msra.mxu0 0.0
  %2010 = vmatpush.msra.mxu0 0.0
  %2011 = vmatpush.msra.mxu0 0.0
  %2012 = vmatpush.msra.mxu0 0.0
  %2013 = vmatpush.msra.mxu0 0.0
  %2014 = vmatpush.msra.mxu0 %v1979
  %2015 = vmatpush.msra.mxu0 %v1965
  %2016 = vmatpush.msra.mxu0 %v1963
  %2017 = vmatmul.f32.gmra.mxu0 %v1935
  %v2018 = vpop.f32.mrf.mxu0
  %v2019 = vadd.f32 %v1972, %v2018
  %2020 = vdwg.mxu0
  %2022 = vrot.lane.b32.xlu0 %v1999, 108
  %v2023 = vpop.permute.xlu0 %2022
  %v2024 = vsel %vm1249, %v1999, 0
  %v2026 = vsel %vm1249, %v2023, 0
  %2028 = vmatpush.xpose.msra.mxu0 0.0
  %2029 = vmatpush.xpose.msra.mxu0 0.0
  %2030 = vmatpush.xpose.msra.mxu0 0.0
  %2031 = vmatpush.xpose.msra.mxu0 0.0
  %2032 = vmatpush.xpose.msra.mxu0 0.0
  %2033 = vmatpush.xpose.msra.mxu0 0.0
  %2034 = vmatpush.xpose.msra.mxu0 0.0
  %2035 = vmatpush.xpose.msra.mxu0 0.0
  %2036 = vmatpush.xpose.msra.mxu0 0.0
  %2037 = vmatpush.xpose.msra.mxu0 0.0
  %2038 = vmatpush.xpose.msra.mxu0 0.0
  %2039 = vmatpush.xpose.msra.mxu0 0.0
  %2040 = vmatpush.xpose.msra.mxu0 0.0
  %2041 = vmatpush.xpose.msra.mxu0 0.0
  %2042 = vmatpush.xpose.msra.mxu0 0.0
  %2043 = vmatpush.xpose.msra.mxu0 %v2026
  %2044 = vmatmul.f32.gmra.mxu0 %v2024
  %v2045 = vpop.f32.mrf.mxu0
  %v2046 = vadd.f32 0.0, %v2045
  %2047 = vdwg.mxu0
  %v2048 = vmul.f32 %v2046, 0.2236068
  %v2049 = vsel %vm1275, %v2048, -1e+30
  %v2050 = vsel %vm1277, %v2049, -inf
  %2051 = vmax.xlane.f32.xlu0 %v2050
  %v2052 = vpop.xlane.xlu0 %2051
  %v2053 = vsub.f32 %v2049, %v2052
  %v2054 = vmul.f32 %v2053, 1.442695
  %v2055 = vpow.pop %v2054
  %v2056 = vmul.f32 %v2055, %v32
  %v2057 = vsel %vm1277, %v2056, 0.0
  %2058 = vadd.xlane.f32.xlu0 %v2057
  %v2059 = vpop.xlane.xlu0 %2058
  %v2060 = vmax.f32 %v2059, 1e-16
  %v2061 = vrcp.pop %v2060
  %v2062 = vmul.f32 %v2056, %v2061
  %2063 = vrot.lane.b32.xlu0 %v1999, 88
  %v2064 = vpop.permute.xlu0 %2063
  %v2066 = vsel %vm1293, %v2062, 0
  %v2068 = vsel %vm1297, %v2064, 0
  %2070 = vmatpush.msra.mxu0 0.0
  %2071 = vmatpush.msra.mxu0 0.0
  %2072 = vmatpush.msra.mxu0 0.0
  %2073 = vmatpush.msra.mxu0 0.0
  %2074 = vmatpush.msra.mxu0 0.0
  %2075 = vmatpush.msra.mxu0 0.0
  %2076 = vmatpush.msra.mxu0 0.0
  %2077 = vmatpush.msra.mxu0 0.0
  %2078 = vmatpush.msra.mxu0 0.0
  %2079 = vmatpush.msra.mxu0 0.0
  %2080 = vmatpush.msra.mxu0 0.0
  %2081 = vmatpush.msra.mxu0 0.0
  %2082 = vmatpush.msra.mxu0 0.0
  %2083 = vmatpush.msra.mxu0 0.0
  %2084 = vmatpush.msra.mxu0 0.0
  %2085 = vmatpush.msra.mxu0 %v2068
  %2086 = vmatmul.f32.gmra.mxu0 %v2066
  %v2087 = vpop.f32.mrf.mxu0
  %v2088 = vadd.f32 0.0, %v2087
  %2089 = vdwg.mxu0
  %2091 = vrot.lane.b32.xlu0 %v2088, 60
  %v2092 = vpop.permute.xlu0 %2091
  %v2094 = vadd.f32 %v1999, %v2092
  %2095 = vrot.lane.b32.xlu0 %v1999, 48
  %v2096 = vpop.permute.xlu0 %2095
  %2097 = vrot.lane.b32.xlu0 %v1999, 28
  %v2098 = vpop.permute.xlu0 %2097
  %v2099 = vsel %vm1249, %v2096, 0
  %v2101 = vsel %vm1249, %v2098, 0
  %2103 = vmatpush.xpose.msra.mxu0 0.0
  %2104 = vmatpush.xpose.msra.mxu0 0.0
  %2105 = vmatpush.xpose.msra.mxu0 0.0
  %2106 = vmatpush.xpose.msra.mxu0 0.0
  %2107 = vmatpush.xpose.msra.mxu0 0.0
  %2108 = vmatpush.xpose.msra.mxu0 0.0
  %2109 = vmatpush.xpose.msra.mxu0 0.0
  %2110 = vmatpush.xpose.msra.mxu0 0.0
  %2111 = vmatpush.xpose.msra.mxu0 0.0
  %2112 = vmatpush.xpose.msra.mxu0 0.0
  %2113 = vmatpush.xpose.msra.mxu0 0.0
  %2114 = vmatpush.xpose.msra.mxu0 0.0
  %2115 = vmatpush.xpose.msra.mxu0 0.0
  %2116 = vmatpush.xpose.msra.mxu0 0.0
  %2117 = vmatpush.xpose.msra.mxu0 0.0
  %2118 = vmatpush.xpose.msra.mxu0 %v2101
  %2119 = vmatmul.f32.gmra.mxu0 %v2099
  %v2120 = vpop.f32.mrf.mxu0
  %v2121 = vadd.f32 0.0, %v2120
  %2122 = vdwg.mxu0
  %v2123 = vmul.f32 %v2121, 0.2236068
  %v2124 = vsel %vm1354, %v2123, -1e+30
  %v2125 = vsel %vm1277, %v2124, -inf
  %2126 = vmax.xlane.f32.xlu0 %v2125
  %v2127 = vpop.xlane.xlu0 %2126
  %v2128 = vsub.f32 %v2124, %v2127
  %v2129 = vmul.f32 %v2128, 1.442695
  %v2130 = vpow.pop %v2129
  %v2131 = vmul.f32 %v2130, %v33
  %v2132 = vsel %vm1277, %v2131, 0.0
  %2133 = vadd.xlane.f32.xlu0 %v2132
  %v2134 = vpop.xlane.xlu0 %2133
  %v2135 = vmax.f32 %v2134, 1e-16
  %v2136 = vrcp.pop %v2135
  %v2137 = vmul.f32 %v2131, %v2136
  %2139 = vrot.lane.b32.xlu0 %v1999, 8
  %v2140 = vpop.permute.xlu0 %2139
  %2141 = vrot.lane.b32.xlu0 %v2019, 8
  %v2142 = vpop.permute.xlu0 %2141
  %v2143 = vsel %vm1374, %v2140, %v2142
  %v2145 = vsel %vm1293, %v2137, 0
  %v2147 = vsel %vm1297, %v2143, 0
  %2149 = vmatpush.msra.mxu0 0.0
  %2150 = vmatpush.msra.mxu0 0.0
  %2151 = vmatpush.msra.mxu0 0.0
  %2152 = vmatpush.msra.mxu0 0.0
  %2153 = vmatpush.msra.mxu0 0.0
  %2154 = vmatpush.msra.mxu0 0.0
  %2155 = vmatpush.msra.mxu0 0.0
  %2156 = vmatpush.msra.mxu0 0.0
  %2157 = vmatpush.msra.mxu0 0.0
  %2158 = vmatpush.msra.mxu0 0.0
  %2159 = vmatpush.msra.mxu0 0.0
  %2160 = vmatpush.msra.mxu0 0.0
  %2161 = vmatpush.msra.mxu0 0.0
  %2162 = vmatpush.msra.mxu0 0.0
  %2163 = vmatpush.msra.mxu0 0.0
  %2164 = vmatpush.msra.mxu0 %v2147
  %2165 = vmatmul.f32.gmra.mxu0 %v2145
  %v2166 = vpop.f32.mrf.mxu0
  %v2167 = vadd.f32 0.0, %v2166
  %2168 = vdwg.mxu0
  %2170 = vrot.lane.b32.xlu0 %v2167, 12
  %v2171 = vpop.permute.xlu0 %2170
  %v2173 = vadd.f32 %v2019, %v2171
  %v2174 = vmul.f32 %v2094, 0.8
  %v2175 = vmul.f32 %v2173, 0.2
  %2177 = vrot.lane.b32.xlu0 %v2175, 48
  %v2178 = vpop.permute.xlu0 %2177
  %v2180 = vadd.f32 %v2174, %v2178
  %v2181 = vmul.f32 %v2180, 0.999995
  %vm2182 = vcmp.gt.f32.partialorder %v2181, 0.0
  %v2183 = vmul.f32 %v2181, 0.01
  %v2184 = vsel %vm2182, %v2181, %v2183
  %s2185 = scalar_lea.vmem %s7, 72
  %v2186 = vld [vmem:[%s2185] sm:$0xff]
  %v2187 = vld [vmem:[%s2185 + $0x8] sm:$0xff]
  %v2188 = vld [vmem:[%s2185 + $0x10] sm:$0xf]
  %2190 = vrot.lane.b32.xlu0 %v2184, 68
  %v2191 = vpop.permute.xlu0 %2190
  %v2192 = vsel %vm1249, %v2191, 0
  %v2195 = vsel %vm1297, %v2188, 0
  %2197 = vmatpush.msra.mxu0 0.0
  %2198 = vmatpush.msra.mxu0 0.0
  %2199 = vmatpush.msra.mxu0 0.0
  %2200 = vmatpush.msra.mxu0 0.0
  %2201 = vmatpush.msra.mxu0 0.0
  %2202 = vmatpush.msra.mxu0 0.0
  %2203 = vmatpush.msra.mxu0 0.0
  %2204 = vmatpush.msra.mxu0 0.0
  %2205 = vmatpush.msra.mxu0 0.0
  %2206 = vmatpush.msra.mxu0 0.0
  %2207 = vmatpush.msra.mxu0 0.0
  %2208 = vmatpush.msra.mxu0 0.0
  %2209 = vmatpush.msra.mxu0 0.0
  %2210 = vmatpush.msra.mxu0 %v2195
  %2211 = vmatpush.msra.mxu0 %v2187
  %2212 = vmatpush.msra.mxu0 %v2186
  %2213 = vmatmul.f32.gmra.mxu0 %v2192
  %v2214 = vpop.f32.mrf.mxu0
  %v2215 = vadd.f32 0.0, %v2214
  %2216 = vdwg.mxu0
  %v2217 = vadd.f32 %v1960, %v2215
  %vm2218 = vcmask 11264
  %2219 = vst.msk [vmem:[%s9] sm:$0xf] %vm2218, %v2217
  // Predicated region
  $region38: #{fc_hgnn_forward.3} parent=0 // pred_check
    _
  $region39: #{fc_hgnn_forward.3} parent=0 // pred_check_branch
    %2221 = sbr.rel (0) target = $region41
  $region40: #{fc_hgnn_forward.3} parent=0 // pred_region
    _
  $region41: #{fc_hgnn_forward.3} parent=0 // pred_fallthru
    _
  // Predicated region
  $region42: #{fc_hgnn_forward.3} parent=0 // pred_check
    _
  $region43: #{fc_hgnn_forward.3} parent=0 // pred_check_branch
    %2223 = sbr.rel (0) target = $region45
  $region44: #{fc_hgnn_forward.3} parent=0 // pred_region
    _
  $region45: #{fc_hgnn_forward.3} parent=0 // pred_fallthru
    _

// kernel: fc_hgnn_forward.2
$region0: #{fc_hgnn_forward.2}
  #allocation0 [shape = 'u32[]', space=smem, size = 0x4, offset = 0x4, fixed_abs, tag = 'smem constant byte address 0x4 - core index']
  #allocation1 [shape = 'u32[72,128]{1,0:T(1,128)}', space=vmem, size = 0x9000, scoped, tag = 'internal scratch']
  %s0 = inlined_call_operand.vmem [shape: f32[4,111,111], index: 0, kind: input, shape index: {}]
  %s1 = inlined_call_operand.vmem [shape: f32[4,111,111], index: 1, kind: input, shape index: {}]
  %s2 = inlined_call_operand.hbm [shape: f32[111,3], index: 2, kind: input, shape index: {}]
  %s3 = inlined_call_operand.hbm [shape: f32[8,64], index: 3, kind: input, shape index: {}]
  %s4 = inlined_call_operand.hbm [shape: f32[111,128], index: 4, kind: input, shape index: {}]
  %s5 = inlined_call_operand.vmem [shape: f32[64,40], index: 5, kind: input, shape index: {}]
  %s6 = inlined_call_operand.hbm [shape: f32[20,20], index: 6, kind: input, shape index: {}]
  %s7 = inlined_call_operand.vmem [shape: f32[20,2], index: 7, kind: input, shape index: {}]
  %s8 = inlined_call_operand.hbm [shape: f32[3,20,56], index: 8, kind: input, shape index: {}]
  %s9 = inlined_call_operand.vmem [shape: f32[4,100,20], index: 9, kind: output, shape index: {}]
  %s10 = sld [smem:[#allocation0]]
  $region89: #{fc_hgnn_forward.2} parent=0
    _
  %s12 = ssub.s32 1, %s10
  %s13 = scalar_select 0, %s12, %s10
  $region1: #{fc_hgnn_forward.2} parent=0
    #allocation2 [shape = 'u8[57344]{0}', space=vmem, size = 0xe000, scoped, tag = 'input window, operand 2, single buffered']
    #allocation3 [shape = 's32[2]{0}', space=sflag, size = 0x8, scoped, tag = 'scoped memory for fc_hgnn_forward.2']
    #allocation4 [shape = 'u8[4096]{0}', space=vmem, size = 0x1000, scoped, tag = 'input window, operand 3, single buffered']
    #allocation5 [shape = 's32[1]{0}', space=sflag, size = 0x4, scoped, tag = 'scoped memory for fc_hgnn_forward.2']
    #allocation6 [shape = 'u8[57344]{0}', space=vmem, size = 0xe000, scoped, tag = 'input window, operand 4, single buffered']
    #allocation7 [shape = 'u8[12288]{0}', space=vmem, size = 0x3000, scoped, tag = 'input window, operand 6, single buffered']
    #allocation8 [shape = 's32[1]{0}', space=sflag, size = 0x4, scoped, tag = 'scoped memory for fc_hgnn_forward.2']
    #allocation9 [shape = 'u8[36864]{0}', space=vmem, size = 0x9000, scoped, tag = 'input window, operand 8, single buffered']
    %14 = vsyncpa [#allocation3], 0
    %15 = vsyncpa [#allocation5], 0
    %16 = vsyncpa [#allocation8], 0
    loop: start=0, step=1, limit=6
    $region2: #{fc_hgnn_forward.2} parent=1 // loop_pre_header
      _
    $region3: #{fc_hgnn_forward.2} parent=1 // loop_header
      %s18 = sphi 0, %s22
      %p19 = scmp.ge.s32.totalorder %s18, 6
      %s28 = sphi 0, %s30
      %s31 = sphi 0, %s28
      %s32 = sphi 0, %s31
      %s48 = sphi 0, %s32
      %s54 = sphi 0, %s56
      %s57 = sphi 0, %s54
      %s58 = sphi 0, %s57
      %s74 = sphi 0, %s58
      %s78 = sphi 0, %s78
      %s80 = sphi 0, %s78
      %s81 = sphi 0, %s80
      %s95 = sphi 0, %s81
      %s99 = sphi 0, %s99
      %s101 = sphi 0, %s99
      %s102 = sphi 0, %s101
      %s116 = sphi 0, %s102
      %s120 = sphi 0, %s120
      %s122 = sphi 0, %s120
      %s123 = sphi 0, %s122
      %s137 = sphi 0, %s123
      %s141 = sphi 0, %s141
      %s143 = sphi 0, %s141
      %s144 = sphi 0, %s143
      %s158 = sphi 0, %s144
      %s162 = sphi 0, %s162
      %s164 = sphi 0, %s162
      %s165 = sphi 0, %s164
      %s179 = sphi 0, %s165
      %s183 = sphi 0, %s183
      %s185 = sphi 0, %s183
      %s186 = sphi 0, %s185
      %s200 = sphi 0, %s186
      %s204 = sphi 0, %s204
      %s206 = sphi 0, %s204
      %s207 = sphi 0, %s206
      %s221 = sphi 0, %s207
      %s227 = sphi 0, %s229
      %s230 = sphi 0, %s227
      %s231 = sphi 0, %s230
      %s247 = sphi 0, %s231
    $region4: #{fc_hgnn_forward.2} parent=1 // loop_header_branch
      %21 = sbr.rel (%p19) target = $region8
    $region5: #{fc_hgnn_forward.2} parent=1 // loop_body
      %s23 = ssub.s32 %s18, 1
      %s24 = ssub.s32 %s18, 2
      %s25 = sadd.s32 %s18, 1
      %s26 = ssub.s32 %s18, %s25
      %p27 = scmp.eq.s32.totalorder %s26, 0
      %s29 = sadd.s32 %s28, 1
      %s30 = scalar_select %p27, %s28, %s29
      %p33 = pneg %p27
      %p34 = scmp.eq.s32.totalorder %s18, 3
      %p35 = por %p33, %p34
      %p36 = scmp.ne.s32.totalorder %s28, %s31
      %p37 = scmp.eq.s32.totalorder %s18, 0
      %p38 = por %p36, %p37
      %p39 = scmp.ne.s32.totalorder %s28, %s31
      %p40 = scmp.eq.s32.totalorder %s23, 3
      %p41 = por %p39, %p40
      %p42 = scmp.ne.s32.totalorder %s31, %s32
      %p43 = scmp.eq.s32.totalorder %s23, 0
      %p44 = por %p42, %p43
      %p45 = scmp.ne.s32.totalorder %s31, %s32
      %p46 = scmp.eq.s32.totalorder %s24, 3
      %p47 = por %p45, %p46
      %p49 = scmp.ne.s32.totalorder %s32, %s48
      %p50 = scmp.eq.s32.totalorder %s24, 0
      %p51 = por %p49, %p50
      %s52 = ssub.s32 %s18, %s25
      %p53 = scmp.eq.s32.totalorder %s52, 0
      %s55 = sadd.s32 %s54, 1
      %s56 = scalar_select %p53, %s54, %s55
      %p59 = pneg %p53
      %p60 = scmp.eq.s32.totalorder %s18, 3
      %p61 = por %p59, %p60
      %p62 = scmp.ne.s32.totalorder %s54, %s57
      %p63 = scmp.eq.s32.totalorder %s18, 0
      %p64 = por %p62, %p63
      %p65 = scmp.ne.s32.totalorder %s54, %s57
      %p66 = scmp.eq.s32.totalorder %s23, 3
      %p67 = por %p65, %p66
      %p68 = scmp.ne.s32.totalorder %s57, %s58
      %p69 = scmp.eq.s32.totalorder %s23, 0
      %p70 = por %p68, %p69
      %p71 = scmp.ne.s32.totalorder %s57, %s58
      %p72 = scmp.eq.s32.totalorder %s24, 3
      %p73 = por %p71, %p72
      %p75 = scmp.ne.s32.totalorder %s58, %s74
      %p76 = scmp.eq.s32.totalorder %s24, 0
      %p77 = por %p75, %p76
      %s79 = sadd.s32 %s78, 1
      %p82 = scmp.eq.s32.totalorder %s18, 3
      %p83 = scmp.ne.s32.totalorder %s78, %s80
      %p84 = scmp.eq.s32.totalorder %s18, 0
      %p85 = por %p83, %p84
      %p86 = scmp.ne.s32.totalorder %s78, %s80
      %p87 = scmp.eq.s32.totalorder %s23, 3
      %p88 = por %p86, %p87
      %p89 = scmp.ne.s32.totalorder %s80, %s81
      %p90 = scmp.eq.s32.totalorder %s23, 0
      %p91 = por %p89, %p90
      %p92 = scmp.ne.s32.totalorder %s80, %s81
      %p93 = scmp.eq.s32.totalorder %s24, 3
      %p94 = por %p92, %p93
      %p96 = scmp.ne.s32.totalorder %s81, %s95
      %p97 = scmp.eq.s32.totalorder %s24, 0
      %p98 = por %p96, %p97
      %s100 = sadd.s32 %s99, 1
      %p103 = scmp.eq.s32.totalorder %s18, 3
      %p104 = scmp.ne.s32.totalorder %s99, %s101
      %p105 = scmp.eq.s32.totalorder %s18, 0
      %p106 = por %p104, %p105
      %p107 = scmp.ne.s32.totalorder %s99, %s101
      %p108 = scmp.eq.s32.totalorder %s23, 3
      %p109 = por %p107, %p108
      %p110 = scmp.ne.s32.totalorder %s101, %s102
      %p111 = scmp.eq.s32.totalorder %s23, 0
      %p112 = por %p110, %p111
      %p113 = scmp.ne.s32.totalorder %s101, %s102
      %p114 = scmp.eq.s32.totalorder %s24, 3
      %p115 = por %p113, %p114
      %p117 = scmp.ne.s32.totalorder %s102, %s116
      %p118 = scmp.eq.s32.totalorder %s24, 0
      %p119 = por %p117, %p118
      %s121 = sadd.s32 %s120, 1
      %p124 = scmp.eq.s32.totalorder %s18, 3
      %p125 = scmp.ne.s32.totalorder %s120, %s122
      %p126 = scmp.eq.s32.totalorder %s18, 0
      %p127 = por %p125, %p126
      %p128 = scmp.ne.s32.totalorder %s120, %s122
      %p129 = scmp.eq.s32.totalorder %s23, 3
      %p130 = por %p128, %p129
      %p131 = scmp.ne.s32.totalorder %s122, %s123
      %p132 = scmp.eq.s32.totalorder %s23, 0
      %p133 = por %p131, %p132
      %p134 = scmp.ne.s32.totalorder %s122, %s123
      %p135 = scmp.eq.s32.totalorder %s24, 3
      %p136 = por %p134, %p135
      %p138 = scmp.ne.s32.totalorder %s123, %s137
      %p139 = scmp.eq.s32.totalorder %s24, 0
      %p140 = por %p138, %p139
      %s142 = sadd.s32 %s141, 1
      %p145 = scmp.eq.s32.totalorder %s18, 3
      %p146 = scmp.ne.s32.totalorder %s141, %s143
      %p147 = scmp.eq.s32.totalorder %s18, 0
      %p148 = por %p146, %p147
      %p149 = scmp.ne.s32.totalorder %s141, %s143
      %p150 = scmp.eq.s32.totalorder %s23, 3
      %p151 = por %p149, %p150
      %p152 = scmp.ne.s32.totalorder %s143, %s144
      %p153 = scmp.eq.s32.totalorder %s23, 0
      %p154 = por %p152, %p153
      %p155 = scmp.ne.s32.totalorder %s143, %s144
      %p156 = scmp.eq.s32.totalorder %s24, 3
      %p157 = por %p155, %p156
      %p159 = scmp.ne.s32.totalorder %s144, %s158
      %p160 = scmp.eq.s32.totalorder %s24, 0
      %p161 = por %p159, %p160
      %s163 = sadd.s32 %s162, 1
      %p166 = scmp.eq.s32.totalorder %s18, 3
      %p167 = scmp.ne.s32.totalorder %s162, %s164
      %p168 = scmp.eq.s32.totalorder %s18, 0
      %p169 = por %p167, %p168
      %p170 = scmp.ne.s32.totalorder %s162, %s164
      %p171 = scmp.eq.s32.totalorder %s23, 3
      %p172 = por %p170, %p171
      %p173 = scmp.ne.s32.totalorder %s164, %s165
      %p174 = scmp.eq.s32.totalorder %s23, 0
      %p175 = por %p173, %p174
      %p176 = scmp.ne.s32.totalorder %s164, %s165
      %p177 = scmp.eq.s32.totalorder %s24, 3
      %p178 = por %p176, %p177
      %p180 = scmp.ne.s32.totalorder %s165, %s179
      %p181 = scmp.eq.s32.totalorder %s24, 0
      %p182 = por %p180, %p181
      %s184 = sadd.s32 %s183, 1
      %p187 = scmp.eq.s32.totalorder %s18, 3
      %p188 = scmp.ne.s32.totalorder %s183, %s185
      %p189 = scmp.eq.s32.totalorder %s18, 0
      %p190 = por %p188, %p189
      %p191 = scmp.ne.s32.totalorder %s183, %s185
      %p192 = scmp.eq.s32.totalorder %s23, 3
      %p193 = por %p191, %p192
      %p194 = scmp.ne.s32.totalorder %s185, %s186
      %p195 = scmp.eq.s32.totalorder %s23, 0
      %p196 = por %p194, %p195
      %p197 = scmp.ne.s32.totalorder %s185, %s186
      %p198 = scmp.eq.s32.totalorder %s24, 3
      %p199 = por %p197, %p198
      %p201 = scmp.ne.s32.totalorder %s186, %s200
      %p202 = scmp.eq.s32.totalorder %s24, 0
      %p203 = por %p201, %p202
      %s205 = sadd.s32 %s204, 1
      %p208 = scmp.eq.s32.totalorder %s18, 3
      %p209 = scmp.ne.s32.totalorder %s204, %s206
      %p210 = scmp.eq.s32.totalorder %s18, 0
      %p211 = por %p209, %p210
      %p212 = scmp.ne.s32.totalorder %s204, %s206
      %p213 = scmp.eq.s32.totalorder %s23, 3
      %p214 = por %p212, %p213
      %p215 = scmp.ne.s32.totalorder %s206, %s207
      %p216 = scmp.eq.s32.totalorder %s23, 0
      %p217 = por %p215, %p216
      %p218 = scmp.ne.s32.totalorder %s206, %s207
      %p219 = scmp.eq.s32.totalorder %s24, 3
      %p220 = por %p218, %p219
      %p222 = scmp.ne.s32.totalorder %s207, %s221
      %p223 = scmp.eq.s32.totalorder %s24, 0
      %p224 = por %p222, %p223
      %s225 = ssub.s32 %s18, %s25
      %p226 = scmp.eq.s32.totalorder %s225, 0
      %s228 = sadd.s32 %s227, 1
      %s229 = scalar_select %p226, %s227, %s228
      %p232 = pneg %p226
      %p233 = scmp.eq.s32.totalorder %s18, 3
      %p234 = por %p232, %p233
      %p235 = scmp.ne.s32.totalorder %s227, %s230
      %p236 = scmp.eq.s32.totalorder %s18, 0
      %p237 = por %p235, %p236
      %p238 = scmp.ne.s32.totalorder %s227, %s230
      %p239 = scmp.eq.s32.totalorder %s23, 3
      %p240 = por %p238, %p239
      %p241 = scmp.ne.s32.totalorder %s230, %s231
      %p242 = scmp.eq.s32.totalorder %s23, 0
      %p243 = por %p241, %p242
      %p244 = scmp.ne.s32.totalorder %s230, %s231
      %p245 = scmp.eq.s32.totalorder %s24, 3
      %p246 = por %p244, %p245
      %p248 = scmp.ne.s32.totalorder %s231, %s247
      %p249 = scmp.eq.s32.totalorder %s24, 0
      %p250 = por %p248, %p249
      %p251 = scmp.le.s32.totalorder 1, %s18
      %p252 = scmp.lt.s32.totalorder %s18, 5
      %p253 = pnand %p251, %p252
      %p254 = pneg %p253
      // Predicated region
      $region9: #{fc_hgnn_forward.2} parent=5 // pred_check
        _
      $region10: #{fc_hgnn_forward.2} parent=5 // pred_check_branch
        %256 = sbr.rel (%p253) target = $region12
      $region11: #{fc_hgnn_forward.2} parent=5 // pred_region
        %s257 = ssub.s32 %s18, 1
        // Predicated region
        $region13: #{fc_hgnn_forward.2} parent=11 // pred_check
          %p258 = pneg %p91
        $region14: #{fc_hgnn_forward.2} parent=11 // pred_check_branch
          %260 = sbr.rel (%p258) target = $region16
        $region15: #{fc_hgnn_forward.2} parent=11 // pred_region
          %262 = vsyncadd [#allocation3], 0
          %s263 = sshll.u32 %s2, 4
          %s264 = int_to_ptr.hbm [resolvable:$true] %s263
          %s265 = sshll.u32 [#allocation2], 4
          %s266 = int_to_ptr.vmem [resolvable:$true] %s265
          %271 = dma.hbm_to_vmem [thread:$0]  %s264, 1792, %s266, [#allocation3], 128, 128, 8
        $region16: #{fc_hgnn_forward.2} parent=11 // pred_fallthru
          _
        // Predicated region
        $region17: #{fc_hgnn_forward.2} parent=11 // pred_check
          %p272 = pneg %p112
        $region18: #{fc_hgnn_forward.2} parent=11 // pred_check_branch
          %274 = sbr.rel (%p272) target = $region20
        $region19: #{fc_hgnn_forward.2} parent=11 // pred_region
          %276 = vsyncadd [#allocation5], 0
          %s278 = sshll.u32 %s3, 4
          %s279 = int_to_ptr.hbm [resolvable:$true] %s278
          %s280 = sshll.u32 [#allocation4], 4
          %s281 = int_to_ptr.vmem [resolvable:$true] %s280
          %283 = dma.hbm_to_vmem [thread:$0]  %s279, 128, %s281, [#allocation5]
        $region20: #{fc_hgnn_forward.2} parent=11 // pred_fallthru
          _
        // Predicated region
        $region21: #{fc_hgnn_forward.2} parent=11 // pred_check
          %p284 = pneg %p133
        $region22: #{fc_hgnn_forward.2} parent=11 // pred_check_branch
          %286 = sbr.rel (%p284) target = $region24
        $region23: #{fc_hgnn_forward.2} parent=11 // pred_region
          %288 = vsyncadd [#allocation5], 0
          %s289 = sshll.u32 %s4, 4
          %s290 = int_to_ptr.hbm [resolvable:$true] %s289
          %s291 = sshll.u32 [#allocation6], 4
          %s292 = int_to_ptr.vmem [resolvable:$true] %s291
          %297 = dma.hbm_to_vmem [thread:$0]  %s290, 1792, %s292, [#allocation5], 128, 128, 8
        $region24: #{fc_hgnn_forward.2} parent=11 // pred_fallthru
          _
        // Predicated region
        $region25: #{fc_hgnn_forward.2} parent=11 // pred_check
          %p298 = pneg %p154
        $region26: #{fc_hgnn_forward.2} parent=11 // pred_check_branch
          %300 = sbr.rel (%p298) target = $region28
        $region27: #{fc_hgnn_forward.2} parent=11 // pred_region
          _
        $region28: #{fc_hgnn_forward.2} parent=11 // pred_fallthru
          _
        // Predicated region
        $region29: #{fc_hgnn_forward.2} parent=11 // pred_check
          %p301 = pneg %p175
        $region30: #{fc_hgnn_forward.2} parent=11 // pred_check_branch
          %303 = sbr.rel (%p301) target = $region32
        $region31: #{fc_hgnn_forward.2} parent=11 // pred_region
          %305 = vsyncadd [#allocation8], 0
          %s306 = sshll.u32 %s6, 4
          %s307 = int_to_ptr.hbm [resolvable:$true] %s306
          %s308 = sshll.u32 [#allocation7], 4
          %s309 = int_to_ptr.vmem [resolvable:$true] %s308
          %314 = dma.hbm_to_vmem [thread:$0]  %s307, 384, %s309, [#allocation8], 128, 128, 8
        $region32: #{fc_hgnn_forward.2} parent=11 // pred_fallthru
          _
        // Predicated region
        $region33: #{fc_hgnn_forward.2} parent=11 // pred_check
          %p315 = pneg %p196
        $region34: #{fc_hgnn_forward.2} parent=11 // pred_check_branch
          %317 = sbr.rel (%p315) target = $region36
        $region35: #{fc_hgnn_forward.2} parent=11 // pred_region
          _
        $region36: #{fc_hgnn_forward.2} parent=11 // pred_fallthru
          _
        // Predicated region
        $region37: #{fc_hgnn_forward.2} parent=11 // pred_check
          %p318 = pneg %p217
        $region38: #{fc_hgnn_forward.2} parent=11 // pred_check_branch
          %320 = sbr.rel (%p318) target = $region40
        $region39: #{fc_hgnn_forward.2} parent=11 // pred_region
          %322 = vsyncadd [#allocation8], 0
          %s323 = sshll.u32 %s8, 4
          %s324 = int_to_ptr.hbm [resolvable:$true] %s323
          %s325 = sshll.u32 [#allocation9], 4
          %s326 = int_to_ptr.vmem [resolvable:$true] %s325
          %331 = dma.hbm_to_vmem [thread:$0]  %s324, 1152, %s326, [#allocation8], 128, 128, 8
        $region40: #{fc_hgnn_forward.2} parent=11 // pred_fallthru
          _
      $region12: #{fc_hgnn_forward.2} parent=5 // pred_fallthru
        _
      %p332 = scmp.lt.s32.totalorder %s18, 4
      // Predicated region
      $region41: #{fc_hgnn_forward.2} parent=5 // pred_check
        %p333 = pneg %p332
      $region42: #{fc_hgnn_forward.2} parent=5 // pred_check_branch
        %335 = sbr.rel (%p333) target = $region44
      $region43: #{fc_hgnn_forward.2} parent=5 // pred_region
        // Predicated region
        $region45: #{fc_hgnn_forward.2} parent=43 // pred_check
          %p336 = pneg %p38
        $region46: #{fc_hgnn_forward.2} parent=43 // pred_check_branch
          %338 = sbr.rel (%p336) target = $region48
        $region47: #{fc_hgnn_forward.2} parent=43 // pred_region
          %p339 = scmp.lt.s32.totalorder %s18, 3
          %s340 = scalar_select %p339, %s18, 3
          %s341 = smul.addr %s340, 14
          %s342 = smul.addr %s341, 8
          %s343 = scalar_lea.vmem %s0, %s342
        $region48: #{fc_hgnn_forward.2} parent=43 // pred_fallthru
          _
        // Predicated region
        $region49: #{fc_hgnn_forward.2} parent=43 // pred_check
          %p344 = pneg %p64
        $region50: #{fc_hgnn_forward.2} parent=43 // pred_check_branch
          %346 = sbr.rel (%p344) target = $region52
        $region51: #{fc_hgnn_forward.2} parent=43 // pred_region
          %p347 = scmp.lt.s32.totalorder %s18, 3
          %s348 = scalar_select %p347, %s18, 3
          %s349 = smul.addr %s348, 14
          %s350 = smul.addr %s349, 8
          %s351 = scalar_lea.vmem %s1, %s350
        $region52: #{fc_hgnn_forward.2} parent=43 // pred_fallthru
          _
      $region44: #{fc_hgnn_forward.2} parent=5 // pred_fallthru
        _
      %p352 = scmp.le.s32.totalorder 1, %s18
      %p353 = scmp.lt.s32.totalorder %s18, 5
      %p354 = pnand %p352, %p353
      %p355 = pneg %p354
      // Predicated region
      $region53: #{fc_hgnn_forward.2} parent=5 // pred_check
        _
      $region54: #{fc_hgnn_forward.2} parent=5 // pred_check_branch
        %357 = sbr.rel (%p354) target = $region56
      $region55: #{fc_hgnn_forward.2} parent=5 // pred_region
        %s358 = ssub.s32 %s18, 1
        // Predicated region
        $region57: #{fc_hgnn_forward.2} parent=55 // pred_check
          %p359 = pneg %p91
        $region58: #{fc_hgnn_forward.2} parent=55 // pred_check_branch
          %361 = sbr.rel (%p359) target = $region60
        $region59: #{fc_hgnn_forward.2} parent=55 // pred_region
          %363 = dma.done [#allocation3], 1792
        $region60: #{fc_hgnn_forward.2} parent=55 // pred_fallthru
          _
        // Predicated region
        $region61: #{fc_hgnn_forward.2} parent=55 // pred_check
          %p364 = pneg %p112
        $region62: #{fc_hgnn_forward.2} parent=55 // pred_check_branch
          %366 = sbr.rel (%p364) target = $region64
        $region63: #{fc_hgnn_forward.2} parent=55 // pred_region
          %368 = dma.done [#allocation5], 128
        $region64: #{fc_hgnn_forward.2} parent=55 // pred_fallthru
          _
        // Predicated region
        $region65: #{fc_hgnn_forward.2} parent=55 // pred_check
          %p369 = pneg %p133
        $region66: #{fc_hgnn_forward.2} parent=55 // pred_check_branch
          %371 = sbr.rel (%p369) target = $region68
        $region67: #{fc_hgnn_forward.2} parent=55 // pred_region
          %373 = dma.done [#allocation5], 1792
        $region68: #{fc_hgnn_forward.2} parent=55 // pred_fallthru
          _
        // Predicated region
        $region69: #{fc_hgnn_forward.2} parent=55 // pred_check
          %p374 = pneg %p175
        $region70: #{fc_hgnn_forward.2} parent=55 // pred_check_branch
          %376 = sbr.rel (%p374) target = $region72
        $region71: #{fc_hgnn_forward.2} parent=55 // pred_region
          %378 = dma.done [#allocation8], 384
        $region72: #{fc_hgnn_forward.2} parent=55 // pred_fallthru
          _
        // Predicated region
        $region73: #{fc_hgnn_forward.2} parent=55 // pred_check
          %p379 = pneg %p217
        $region74: #{fc_hgnn_forward.2} parent=55 // pred_check_branch
          %381 = sbr.rel (%p379) target = $region76
        $region75: #{fc_hgnn_forward.2} parent=55 // pred_region
          %383 = dma.done [#allocation8], 1152
        $region76: #{fc_hgnn_forward.2} parent=55 // pred_fallthru
          _
        %p384 = scmp.lt.s32.totalorder %s23, 3
        %s385 = scalar_select %p384, %s23, 3
        %s386 = smul.addr %s385, 14
        %s387 = smul.addr %s386, 8
        %s388 = scalar_lea.vmem %s0, %s387
        %p389 = pneg %p44
        %p390 = pneg %p41
        %p391 = scmp.lt.s32.totalorder %s23, 3
        %s392 = scalar_select %p391, %s23, 3
        %s393 = smul.addr %s392, 14
        %s394 = smul.addr %s393, 8
        %s395 = scalar_lea.vmem %s1, %s394
        %p396 = pneg %p70
        %p397 = pneg %p67
        %p398 = pneg %p91
        %p399 = pneg %p88
        %p400 = pneg %p112
        %p401 = pneg %p109
        %p402 = pneg %p133
        %p403 = pneg %p130
        %p404 = pneg %p154
        %p405 = pneg %p151
        %p406 = pneg %p175
        %p407 = pneg %p172
        %p408 = pneg %p196
        %p409 = pneg %p193
        %p410 = pneg %p217
        %p411 = pneg %p214
        %p412 = pneg %p243
        %p413 = pneg %p240
        %p414 = scmp.lt.s32.totalorder %s23, 3
        %s415 = scalar_select %p414, %s23, 3
        %s416 = smul.addr %s415, 13
        %s417 = smul.addr %s416, 8
        %s418 = scalar_lea.vmem %s9, %s417
        %p419 = scmp.lt.s32.totalorder %s23, 3
        %s420 = scalar_select %p419, %s23, 3
        %s421 = smul.addr %s420, 14
        %s422 = smul.addr %s421, 8
        %s423 = scalar_lea.vmem %s0, %s422
        %p424 = scmp.lt.s32.totalorder %s23, 3
        %s425 = scalar_select %p424, %s23, 3
        %s426 = smul.addr %s425, 14
        %s427 = smul.addr %s426, 8
        %s428 = scalar_lea.vmem %s1, %s427
        %p429 = scmp.lt.s32.totalorder %s23, 3
        %s430 = scalar_select %p429, %s23, 3
        %s431 = smul.addr %s430, 13
        %s432 = smul.addr %s431, 8
        %s433 = scalar_lea.vmem %s9, %s432
        %v434 = vld [vmem:[%s423] sm:$0xff]
        %v435 = vld [vmem:[%s423 + $0x8] sm:$0xff]
        %v436 = vld [vmem:[%s423 + $0x10] sm:$0xff]
        %v437 = vld [vmem:[%s423 + $0x18] sm:$0xff]
        %v438 = vld [vmem:[%s423 + $0x20] sm:$0xff]
        %v439 = vld [vmem:[%s423 + $0x28] sm:$0xff]
        %v440 = vld [vmem:[%s423 + $0x30] sm:$0xff]
        %v441 = vld [vmem:[%s423 + $0x38] sm:$0xff]
        %v442 = vld [vmem:[%s423 + $0x40] sm:$0xff]
        %v443 = vld [vmem:[%s423 + $0x48] sm:$0xff]
        %v444 = vld [vmem:[%s423 + $0x50] sm:$0xff]
        %v445 = vld [vmem:[%s423 + $0x58] sm:$0xff]
        %v446 = vld [vmem:[%s423 + $0x60] sm:$0xff]
        %v447 = vld [vmem:[%s423 + $0x68] sm:$0x7f]
        %v448 = vld [vmem:[%s428] sm:$0xff]
        %v449 = vld [vmem:[%s428 + $0x8] sm:$0xff]
        %v450 = vld [vmem:[%s428 + $0x10] sm:$0xff]
        %v451 = vld [vmem:[%s428 + $0x18] sm:$0xff]
        %v452 = vld [vmem:[%s428 + $0x20] sm:$0xff]
        %v453 = vld [vmem:[%s428 + $0x28] sm:$0xff]
        %v454 = vld [vmem:[%s428 + $0x30] sm:$0xff]
        %v455 = vld [vmem:[%s428 + $0x38] sm:$0xff]
        %v456 = vld [vmem:[%s428 + $0x40] sm:$0xff]
        %v457 = vld [vmem:[%s428 + $0x48] sm:$0xff]
        %v458 = vld [vmem:[%s428 + $0x50] sm:$0xff]
        %v459 = vld [vmem:[%s428 + $0x58] sm:$0xff]
        %v460 = vld [vmem:[%s428 + $0x60] sm:$0xff]
        %v461 = vld [vmem:[%s428 + $0x68] sm:$0x7f]
        %v462 = vld [vmem:[#allocation2] sm:$0xff]
        %v463 = vld [vmem:[#allocation2 + $0x8] sm:$0xff]
        %v464 = vld [vmem:[#allocation2 + $0x10] sm:$0xff]
        %v465 = vld [vmem:[#allocation2 + $0x18] sm:$0xff]
        %v466 = vld [vmem:[#allocation2 + $0x20] sm:$0xff]
        %v467 = vld [vmem:[#allocation2 + $0x28] sm:$0xff]
        %v468 = vld [vmem:[#allocation2 + $0x30] sm:$0xff]
        %v469 = vld [vmem:[#allocation2 + $0x38] sm:$0xff]
        %v470 = vld [vmem:[#allocation2 + $0x40] sm:$0xff]
        %v471 = vld [vmem:[#allocation2 + $0x48] sm:$0xff]
        %v472 = vld [vmem:[#allocation2 + $0x50] sm:$0xff]
        %v473 = vld [vmem:[#allocation2 + $0x58] sm:$0xff]
        %v474 = vld [vmem:[#allocation2 + $0x60] sm:$0xff]
        %v475 = vld [vmem:[#allocation2 + $0x68] sm:$0x7f]
        %v476 = vld [vmem:[#allocation4] sm:$0xff]
        %vm477 = vcmask 908288
        %v479 = vsel %vm477, %v434, 0
        %v482 = vsel %vm477, %v435, 0
        %v485 = vsel %vm477, %v436, 0
        %v488 = vsel %vm477, %v437, 0
        %v491 = vsel %vm477, %v438, 0
        %v494 = vsel %vm477, %v439, 0
        %v497 = vsel %vm477, %v440, 0
        %v500 = vsel %vm477, %v441, 0
        %v503 = vsel %vm477, %v442, 0
        %v506 = vsel %vm477, %v443, 0
        %v509 = vsel %vm477, %v444, 0
        %v512 = vsel %vm477, %v445, 0
        %v515 = vsel %vm477, %v446, 0
        %v518 = vsel %vm477, %v447, 0
        %vm520 = vcmask 1046528
        %v522 = vsel %vm520, %v475, 0
        %524 = vmatpush.msra.mxu0 0.0
        %525 = vmatpush.msra.mxu0 0.0
        %526 = vmatpush.msra.mxu0 %v522
        %527 = vmatpush.msra.mxu0 %v474
        %528 = vmatpush.msra.mxu0 %v473
        %529 = vmatpush.msra.mxu0 %v472
        %530 = vmatpush.msra.mxu0 %v471
        %531 = vmatpush.msra.mxu0 %v470
        %532 = vmatpush.msra.mxu0 %v469
        %533 = vmatpush.msra.mxu0 %v468
        %534 = vmatpush.msra.mxu0 %v467
        %535 = vmatpush.msra.mxu0 %v466
        %536 = vmatpush.msra.mxu0 %v465
        %537 = vmatpush.msra.mxu0 %v464
        %538 = vmatpush.msra.mxu0 %v463
        %539 = vmatpush.msra.mxu0 %v462
        %540 = vmatmul.f32.gmra.mxu0 %v479
        %v541 = vpop.f32.mrf.mxu0
        %v542 = vadd.f32 0.0, %v541
        %543 = vmatmul.f32.gmra.mxu0 %v482
        %v544 = vpop.f32.mrf.mxu0
        %v545 = vadd.f32 0.0, %v544
        %546 = vmatmul.f32.gmra.mxu0 %v485
        %v547 = vpop.f32.mrf.mxu0
        %v548 = vadd.f32 0.0, %v547
        %549 = vmatmul.f32.gmra.mxu0 %v488
        %v550 = vpop.f32.mrf.mxu0
        %v551 = vadd.f32 0.0, %v550
        %552 = vmatmul.f32.gmra.mxu0 %v491
        %v553 = vpop.f32.mrf.mxu0
        %v554 = vadd.f32 0.0, %v553
        %555 = vmatmul.f32.gmra.mxu0 %v494
        %v556 = vpop.f32.mrf.mxu0
        %v557 = vadd.f32 0.0, %v556
        %558 = vmatmul.f32.gmra.mxu0 %v497
        %v559 = vpop.f32.mrf.mxu0
        %v560 = vadd.f32 0.0, %v559
        %561 = vmatmul.f32.gmra.mxu0 %v500
        %v562 = vpop.f32.mrf.mxu0
        %v563 = vadd.f32 0.0, %v562
        %564 = vmatmul.f32.gmra.mxu0 %v503
        %v565 = vpop.f32.mrf.mxu0
        %v566 = vadd.f32 0.0, %v565
        %567 = vmatmul.f32.gmra.mxu0 %v506
        %v568 = vpop.f32.mrf.mxu0
        %v569 = vadd.f32 0.0, %v568
        %570 = vmatmul.f32.gmra.mxu0 %v509
        %v571 = vpop.f32.mrf.mxu0
        %v572 = vadd.f32 0.0, %v571
        %573 = vmatmul.f32.gmra.mxu0 %v512
        %v574 = vpop.f32.mrf.mxu0
        %v575 = vadd.f32 0.0, %v574
        %576 = vmatmul.f32.gmra.mxu0 %v515
        %v577 = vpop.f32.mrf.mxu0
        %v578 = vadd.f32 0.0, %v577
        %579 = vmatmul.f32.gmra.mxu0 %v518
        %v580 = vpop.f32.mrf.mxu0
        %v581 = vadd.f32 0.0, %v580
        %582 = vdwg.mxu0
        %v583 = vmul.f32 %v462, %v542
        %v584 = vmul.f32 %v463, %v545
        %v585 = vmul.f32 %v464, %v548
        %v586 = vmul.f32 %v465, %v551
        %v587 = vmul.f32 %v466, %v554
        %v588 = vmul.f32 %v467, %v557
        %v589 = vmul.f32 %v468, %v560
        %v590 = vmul.f32 %v469, %v563
        %v591 = vmul.f32 %v470, %v566
        %v592 = vmul.f32 %v471, %v569
        %v593 = vmul.f32 %v472, %v572
        %v594 = vmul.f32 %v473, %v575
        %v595 = vmul.f32 %v474, %v578
        %v596 = vmul.f32 %v475, %v581
        %v597 = vadd.f32 %v583, 1.0
        %v598 = vadd.f32 %v584, 1.0
        %v599 = vadd.f32 %v585, 1.0
        %v600 = vadd.f32 %v586, 1.0
        %v601 = vadd.f32 %v587, 1.0
        %v602 = vadd.f32 %v588, 1.0
        %v603 = vadd.f32 %v589, 1.0
        %v604 = vadd.f32 %v590, 1.0
        %v605 = vadd.f32 %v591, 1.0
        %v606 = vadd.f32 %v592, 1.0
        %v607 = vadd.f32 %v593, 1.0
        %v608 = vadd.f32 %v594, 1.0
        %v609 = vadd.f32 %v595, 1.0
        %v610 = vadd.f32 %v596, 1.0
        %v611 = vrsqrt.pop %v597
        %v612 = vmul.f32 %v611, %v597
        %v613 = vmul.f32 %v612, %v611
        %v614 = vmul.f32 0.5, %v613
        %v615 = vsub.f32 1.5, %v614
        %v616 = vmul.f32 %v611, %v615
        %vm617 = vweird.f32 %v597
        %vm618 = vweird.f32 %v611
        %vm619 = vmor %vm617, %vm618
        %v620 = vsel %vm619, %v611, %v616
        %v621 = vrsqrt.pop %v598
        %v622 = vmul.f32 %v621, %v598
        %v623 = vmul.f32 %v622, %v621
        %v624 = vmul.f32 0.5, %v623
        %v625 = vsub.f32 1.5, %v624
        %v626 = vmul.f32 %v621, %v625
        %vm627 = vweird.f32 %v598
        %vm628 = vweird.f32 %v621
        %vm629 = vmor %vm627, %vm628
        %v630 = vsel %vm629, %v621, %v626
        %v631 = vrsqrt.pop %v599
        %v632 = vmul.f32 %v631, %v599
        %v633 = vmul.f32 %v632, %v631
        %v634 = vmul.f32 0.5, %v633
        %v635 = vsub.f32 1.5, %v634
        %v636 = vmul.f32 %v631, %v635
        %vm637 = vweird.f32 %v599
        %vm638 = vweird.f32 %v631
        %vm639 = vmor %vm637, %vm638
        %v640 = vsel %vm639, %v631, %v636
        %v641 = vrsqrt.pop %v600
        %v642 = vmul.f32 %v641, %v600
        %v643 = vmul.f32 %v642, %v641
        %v644 = vmul.f32 0.5, %v643
        %v645 = vsub.f32 1.5, %v644
        %v646 = vmul.f32 %v641, %v645
        %vm647 = vweird.f32 %v600
        %vm648 = vweird.f32 %v641
        %vm649 = vmor %vm647, %vm648
        %v650 = vsel %vm649, %v641, %v646
        %v651 = vrsqrt.pop %v601
        %v652 = vmul.f32 %v651, %v601
        %v653 = vmul.f32 %v652, %v651
        %v654 = vmul.f32 0.5, %v653
        %v655 = vsub.f32 1.5, %v654
        %v656 = vmul.f32 %v651, %v655
        %vm657 = vweird.f32 %v601
        %vm658 = vweird.f32 %v651
        %vm659 = vmor %vm657, %vm658
        %v660 = vsel %vm659, %v651, %v656
        %v661 = vrsqrt.pop %v602
        %v662 = vmul.f32 %v661, %v602
        %v663 = vmul.f32 %v662, %v661
        %v664 = vmul.f32 0.5, %v663
        %v665 = vsub.f32 1.5, %v664
        %v666 = vmul.f32 %v661, %v665
        %vm667 = vweird.f32 %v602
        %vm668 = vweird.f32 %v661
        %vm669 = vmor %vm667, %vm668
        %v670 = vsel %vm669, %v661, %v666
        %v671 = vrsqrt.pop %v603
        %v672 = vmul.f32 %v671, %v603
        %v673 = vmul.f32 %v672, %v671
        %v674 = vmul.f32 0.5, %v673
        %v675 = vsub.f32 1.5, %v674
        %v676 = vmul.f32 %v671, %v675
        %vm677 = vweird.f32 %v603
        %vm678 = vweird.f32 %v671
        %vm679 = vmor %vm677, %vm678
        %v680 = vsel %vm679, %v671, %v676
        %v681 = vrsqrt.pop %v604
        %v682 = vmul.f32 %v681, %v604
        %v683 = vmul.f32 %v682, %v681
        %v684 = vmul.f32 0.5, %v683
        %v685 = vsub.f32 1.5, %v684
        %v686 = vmul.f32 %v681, %v685
        %vm687 = vweird.f32 %v604
        %vm688 = vweird.f32 %v681
        %vm689 = vmor %vm687, %vm688
        %v690 = vsel %vm689, %v681, %v686
        %v691 = vrsqrt.pop %v605
        %v692 = vmul.f32 %v691, %v605
        %v693 = vmul.f32 %v692, %v691
        %v694 = vmul.f32 0.5, %v693
        %v695 = vsub.f32 1.5, %v694
        %v696 = vmul.f32 %v691, %v695
        %vm697 = vweird.f32 %v605
        %vm698 = vweird.f32 %v691
        %vm699 = vmor %vm697, %vm698
        %v700 = vsel %vm699, %v691, %v696
        %v701 = vrsqrt.pop %v606
        %v702 = vmul.f32 %v701, %v606
        %v703 = vmul.f32 %v702, %v701
        %v704 = vmul.f32 0.5, %v703
        %v705 = vsub.f32 1.5, %v704
        %v706 = vmul.f32 %v701, %v705
        %vm707 = vweird.f32 %v606
        %vm708 = vweird.f32 %v701
        %vm709 = vmor %vm707, %vm708
        %v710 = vsel %vm709, %v701, %v706
        %v711 = vrsqrt.pop %v607
        %v712 = vmul.f32 %v711, %v607
        %v713 = vmul.f32 %v712, %v711
        %v714 = vmul.f32 0.5, %v713
        %v715 = vsub.f32 1.5, %v714
        %v716 = vmul.f32 %v711, %v715
        %vm717 = vweird.f32 %v607
        %vm718 = vweird.f32 %v711
        %vm719 = vmor %vm717, %vm718
        %v720 = vsel %vm719, %v711, %v716
        %v721 = vrsqrt.pop %v608
        %v722 = vmul.f32 %v721, %v608
        %v723 = vmul.f32 %v722, %v721
        %v724 = vmul.f32 0.5, %v723
        %v725 = vsub.f32 1.5, %v724
        %v726 = vmul.f32 %v721, %v725
        %vm727 = vweird.f32 %v608
        %vm728 = vweird.f32 %v721
        %vm729 = vmor %vm727, %vm728
        %v730 = vsel %vm729, %v721, %v726
        %v731 = vrsqrt.pop %v609
        %v732 = vmul.f32 %v731, %v609
        %v733 = vmul.f32 %v732, %v731
        %v734 = vmul.f32 0.5, %v733
        %v735 = vsub.f32 1.5, %v734
        %v736 = vmul.f32 %v731, %v735
        %vm737 = vweird.f32 %v609
        %vm738 = vweird.f32 %v731
        %vm739 = vmor %vm737, %vm738
        %v740 = vsel %vm739, %v731, %v736
        %v741 = vrsqrt.pop %v610
        %v742 = vmul.f32 %v741, %v610
        %v743 = vmul.f32 %v742, %v741
        %v744 = vmul.f32 0.5, %v743
        %v745 = vsub.f32 1.5, %v744
        %v746 = vmul.f32 %v741, %v745
        %vm747 = vweird.f32 %v610
        %vm748 = vweird.f32 %v741
        %vm749 = vmor %vm747, %vm748
        %v750 = vsel %vm749, %v741, %v746
        %v751 = vadd.f32 %v542, 1.0
        %v752 = vadd.f32 %v545, 1.0
        %v753 = vadd.f32 %v548, 1.0
        %v754 = vadd.f32 %v551, 1.0
        %v755 = vadd.f32 %v554, 1.0
        %v756 = vadd.f32 %v557, 1.0
        %v757 = vadd.f32 %v560, 1.0
        %v758 = vadd.f32 %v563, 1.0
        %v759 = vadd.f32 %v566, 1.0
        %v760 = vadd.f32 %v569, 1.0
        %v761 = vadd.f32 %v572, 1.0
        %v762 = vadd.f32 %v575, 1.0
        %v763 = vadd.f32 %v578, 1.0
        %v764 = vadd.f32 %v581, 1.0
        %v765 = vrsqrt.pop %v751
        %v766 = vmul.f32 %v765, %v751
        %v767 = vmul.f32 %v766, %v765
        %v768 = vmul.f32 0.5, %v767
        %v769 = vsub.f32 1.5, %v768
        %v770 = vmul.f32 %v765, %v769
        %vm771 = vweird.f32 %v751
        %vm772 = vweird.f32 %v765
        %vm773 = vmor %vm771, %vm772
        %v774 = vsel %vm773, %v765, %v770
        %v775 = vrsqrt.pop %v752
        %v776 = vmul.f32 %v775, %v752
        %v777 = vmul.f32 %v776, %v775
        %v778 = vmul.f32 0.5, %v777
        %v779 = vsub.f32 1.5, %v778
        %v780 = vmul.f32 %v775, %v779
        %vm781 = vweird.f32 %v752
        %vm782 = vweird.f32 %v775
        %vm783 = vmor %vm781, %vm782
        %v784 = vsel %vm783, %v775, %v780
        %v785 = vrsqrt.pop %v753
        %v786 = vmul.f32 %v785, %v753
        %v787 = vmul.f32 %v786, %v785
        %v788 = vmul.f32 0.5, %v787
        %v789 = vsub.f32 1.5, %v788
        %v790 = vmul.f32 %v785, %v789
        %vm791 = vweird.f32 %v753
        %vm792 = vweird.f32 %v785
        %vm793 = vmor %vm791, %vm792
        %v794 = vsel %vm793, %v785, %v790
        %v795 = vrsqrt.pop %v754
        %v796 = vmul.f32 %v795, %v754
        %v797 = vmul.f32 %v796, %v795
        %v798 = vmul.f32 0.5, %v797
        %v799 = vsub.f32 1.5, %v798
        %v800 = vmul.f32 %v795, %v799
        %vm801 = vweird.f32 %v754
        %vm802 = vweird.f32 %v795
        %vm803 = vmor %vm801, %vm802
        %v804 = vsel %vm803, %v795, %v800
        %v805 = vrsqrt.pop %v755
        %v806 = vmul.f32 %v805, %v755
        %v807 = vmul.f32 %v806, %v805
        %v808 = vmul.f32 0.5, %v807
        %v809 = vsub.f32 1.5, %v808
        %v810 = vmul.f32 %v805, %v809
        %vm811 = vweird.f32 %v755
        %vm812 = vweird.f32 %v805
        %vm813 = vmor %vm811, %vm812
        %v814 = vsel %vm813, %v805, %v810
        %v815 = vrsqrt.pop %v756
        %v816 = vmul.f32 %v815, %v756
        %v817 = vmul.f32 %v816, %v815
        %v818 = vmul.f32 0.5, %v817
        %v819 = vsub.f32 1.5, %v818
        %v820 = vmul.f32 %v815, %v819
        %vm821 = vweird.f32 %v756
        %vm822 = vweird.f32 %v815
        %vm823 = vmor %vm821, %vm822
        %v824 = vsel %vm823, %v815, %v820
        %v825 = vrsqrt.pop %v757
        %v826 = vmul.f32 %v825, %v757
        %v827 = vmul.f32 %v826, %v825
        %v828 = vmul.f32 0.5, %v827
        %v829 = vsub.f32 1.5, %v828
        %v830 = vmul.f32 %v825, %v829
        %vm831 = vweird.f32 %v757
        %vm832 = vweird.f32 %v825
        %vm833 = vmor %vm831, %vm832
        %v834 = vsel %vm833, %v825, %v830
        %v835 = vrsqrt.pop %v758
        %v836 = vmul.f32 %v835, %v758
        %v837 = vmul.f32 %v836, %v835
        %v838 = vmul.f32 0.5, %v837
        %v839 = vsub.f32 1.5, %v838
        %v840 = vmul.f32 %v835, %v839
        %vm841 = vweird.f32 %v758
        %vm842 = vweird.f32 %v835
        %vm843 = vmor %vm841, %vm842
        %v844 = vsel %vm843, %v835, %v840
        %v845 = vrsqrt.pop %v759
        %v846 = vmul.f32 %v845, %v759
        %v847 = vmul.f32 %v846, %v845
        %v848 = vmul.f32 0.5, %v847
        %v849 = vsub.f32 1.5, %v848
        %v850 = vmul.f32 %v845, %v849
        %vm851 = vweird.f32 %v759
        %vm852 = vweird.f32 %v845
        %vm853 = vmor %vm851, %vm852
        %v854 = vsel %vm853, %v845, %v850
        %v855 = vrsqrt.pop %v760
        %v856 = vmul.f32 %v855, %v760
        %v857 = vmul.f32 %v856, %v855
        %v858 = vmul.f32 0.5, %v857
        %v859 = vsub.f32 1.5, %v858
        %v860 = vmul.f32 %v855, %v859
        %vm861 = vweird.f32 %v760
        %vm862 = vweird.f32 %v855
        %vm863 = vmor %vm861, %vm862
        %v864 = vsel %vm863, %v855, %v860
        %v865 = vrsqrt.pop %v761
        %v866 = vmul.f32 %v865, %v761
        %v867 = vmul.f32 %v866, %v865
        %v868 = vmul.f32 0.5, %v867
        %v869 = vsub.f32 1.5, %v868
        %v870 = vmul.f32 %v865, %v869
        %vm871 = vweird.f32 %v761
        %vm872 = vweird.f32 %v865
        %vm873 = vmor %vm871, %vm872
        %v874 = vsel %vm873, %v865, %v870
        %v875 = vrsqrt.pop %v762
        %v876 = vmul.f32 %v875, %v762
        %v877 = vmul.f32 %v876, %v875
        %v878 = vmul.f32 0.5, %v877
        %v879 = vsub.f32 1.5, %v878
        %v880 = vmul.f32 %v875, %v879
        %vm881 = vweird.f32 %v762
        %vm882 = vweird.f32 %v875
        %vm883 = vmor %vm881, %vm882
        %v884 = vsel %vm883, %v875, %v880
        %v885 = vrsqrt.pop %v763
        %v886 = vmul.f32 %v885, %v763
        %v887 = vmul.f32 %v886, %v885
        %v888 = vmul.f32 0.5, %v887
        %v889 = vsub.f32 1.5, %v888
        %v890 = vmul.f32 %v885, %v889
        %vm891 = vweird.f32 %v763
        %vm892 = vweird.f32 %v885
        %vm893 = vmor %vm891, %vm892
        %v894 = vsel %vm893, %v885, %v890
        %v895 = vrsqrt.pop %v764
        %v896 = vmul.f32 %v895, %v764
        %v897 = vmul.f32 %v896, %v895
        %v898 = vmul.f32 0.5, %v897
        %v899 = vsub.f32 1.5, %v898
        %v900 = vmul.f32 %v895, %v899
        %vm901 = vweird.f32 %v764
        %vm902 = vweird.f32 %v895
        %vm903 = vmor %vm901, %vm902
        %v904 = vsel %vm903, %v895, %v900
        %v905 = vld [vmem:[#allocation6] sm:$0xff]
        %v906 = vld [vmem:[#allocation6 + $0x8] sm:$0xff]
        %v907 = vld [vmem:[#allocation6 + $0x10] sm:$0xff]
        %v908 = vld [vmem:[#allocation6 + $0x18] sm:$0xff]
        %v909 = vld [vmem:[#allocation6 + $0x20] sm:$0xff]
        %v910 = vld [vmem:[#allocation6 + $0x28] sm:$0xff]
        %v911 = vld [vmem:[#allocation6 + $0x30] sm:$0xff]
        %v912 = vld [vmem:[#allocation6 + $0x38] sm:$0xff]
        %v913 = vld [vmem:[#allocation6 + $0x40] sm:$0xff]
        %v914 = vld [vmem:[#allocation6 + $0x48] sm:$0xff]
        %v915 = vld [vmem:[#allocation6 + $0x50] sm:$0xff]
        %v916 = vld [vmem:[#allocation6 + $0x58] sm:$0xff]
        %v917 = vld [vmem:[#allocation6 + $0x60] sm:$0xff]
        %v918 = vld [vmem:[#allocation6 + $0x68] sm:$0x7f]
        %920 = vset.pattern.permute.xlu0 0
        %921 = vperm.xlu0 %920, %v620
        %v922 = vpop.permute.xlu0 %921
        %925 = vset.pattern.permute.xlu0 0
        %926 = vperm.xlu0 %925, %v630
        %v927 = vpop.permute.xlu0 %926
        %930 = vset.pattern.permute.xlu0 0
        %931 = vperm.xlu0 %930, %v640
        %v932 = vpop.permute.xlu0 %931
        %935 = vset.pattern.permute.xlu0 0
        %936 = vperm.xlu0 %935, %v650
        %v937 = vpop.permute.xlu0 %936
        %940 = vset.pattern.permute.xlu0 0
        %941 = vperm.xlu0 %940, %v660
        %v942 = vpop.permute.xlu0 %941
        %945 = vset.pattern.permute.xlu0 0
        %946 = vperm.xlu0 %945, %v670
        %v947 = vpop.permute.xlu0 %946
        %950 = vset.pattern.permute.xlu0 0
        %951 = vperm.xlu0 %950, %v680
        %v952 = vpop.permute.xlu0 %951
        %955 = vset.pattern.permute.xlu0 0
        %956 = vperm.xlu0 %955, %v690
        %v957 = vpop.permute.xlu0 %956
        %960 = vset.pattern.permute.xlu0 0
        %961 = vperm.xlu0 %960, %v700
        %v962 = vpop.permute.xlu0 %961
        %965 = vset.pattern.permute.xlu0 0
        %966 = vperm.xlu0 %965, %v710
        %v967 = vpop.permute.xlu0 %966
        %970 = vset.pattern.permute.xlu0 0
        %971 = vperm.xlu0 %970, %v720
        %v972 = vpop.permute.xlu0 %971
        %975 = vset.pattern.permute.xlu0 0
        %976 = vperm.xlu0 %975, %v730
        %v977 = vpop.permute.xlu0 %976
        %980 = vset.pattern.permute.xlu0 0
        %981 = vperm.xlu0 %980, %v740
        %v982 = vpop.permute.xlu0 %981
        %985 = vset.pattern.permute.xlu0 0
        %986 = vperm.xlu0 %985, %v750
        %v987 = vpop.permute.xlu0 %986
        %v989 = vmul.f32 %v922, %v448
        %v990 = vmul.f32 %v927, %v449
        %v991 = vmul.f32 %v932, %v450
        %v992 = vmul.f32 %v937, %v451
        %v993 = vmul.f32 %v942, %v452
        %v994 = vmul.f32 %v947, %v453
        %v995 = vmul.f32 %v952, %v454
        %v996 = vmul.f32 %v957, %v455
        %v997 = vmul.f32 %v962, %v456
        %v998 = vmul.f32 %v967, %v457
        %v999 = vmul.f32 %v972, %v458
        %v1000 = vmul.f32 %v977, %v459
        %v1001 = vmul.f32 %v982, %v460
        %v1002 = vmul.f32 %v987, %v461
        %1004 = vset.pattern.permute.xlu0 0
        %1005 = vperm.xlu0 %1004, %v462
        %v1006 = vpop.permute.xlu0 %1005
        %1009 = vset.pattern.permute.xlu0 0
        %1010 = vperm.xlu0 %1009, %v463
        %v1011 = vpop.permute.xlu0 %1010
        %1014 = vset.pattern.permute.xlu0 0
        %1015 = vperm.xlu0 %1014, %v464
        %v1016 = vpop.permute.xlu0 %1015
        %1019 = vset.pattern.permute.xlu0 0
        %1020 = vperm.xlu0 %1019, %v465
        %v1021 = vpop.permute.xlu0 %1020
        %1024 = vset.pattern.permute.xlu0 0
        %1025 = vperm.xlu0 %1024, %v466
        %v1026 = vpop.permute.xlu0 %1025
        %1029 = vset.pattern.permute.xlu0 0
        %1030 = vperm.xlu0 %1029, %v467
        %v1031 = vpop.permute.xlu0 %1030
        %1034 = vset.pattern.permute.xlu0 0
        %1035 = vperm.xlu0 %1034, %v468
        %v1036 = vpop.permute.xlu0 %1035
        %1039 = vset.pattern.permute.xlu0 0
        %1040 = vperm.xlu0 %1039, %v469
        %v1041 = vpop.permute.xlu0 %1040
        %1044 = vset.pattern.permute.xlu0 0
        %1045 = vperm.xlu0 %1044, %v470
        %v1046 = vpop.permute.xlu0 %1045
        %1049 = vset.pattern.permute.xlu0 0
        %1050 = vperm.xlu0 %1049, %v471
        %v1051 = vpop.permute.xlu0 %1050
        %1054 = vset.pattern.permute.xlu0 0
        %1055 = vperm.xlu0 %1054, %v472
        %v1056 = vpop.permute.xlu0 %1055
        %1059 = vset.pattern.permute.xlu0 0
        %1060 = vperm.xlu0 %1059, %v473
        %v1061 = vpop.permute.xlu0 %1060
        %1064 = vset.pattern.permute.xlu0 0
        %1065 = vperm.xlu0 %1064, %v474
        %v1066 = vpop.permute.xlu0 %1065
        %1068 = vset.pattern.permute.xlu0 0
        %1069 = vperm.xlu0 %1068, %v475
        %v1070 = vpop.permute.xlu0 %1069
        %v1072 = vmul.f32 %v1006, %v989
        %v1073 = vmul.f32 %v1011, %v990
        %v1074 = vmul.f32 %v1016, %v991
        %v1075 = vmul.f32 %v1021, %v992
        %v1076 = vmul.f32 %v1026, %v993
        %v1077 = vmul.f32 %v1031, %v994
        %v1078 = vmul.f32 %v1036, %v995
        %v1079 = vmul.f32 %v1041, %v996
        %v1080 = vmul.f32 %v1046, %v997
        %v1081 = vmul.f32 %v1051, %v998
        %v1082 = vmul.f32 %v1056, %v999
        %v1083 = vmul.f32 %v1061, %v1000
        %v1084 = vmul.f32 %v1066, %v1001
        %v1085 = vmul.f32 %v1070, %v1002
        %v1087 = vsel %vm520, %v1085, 0
        %1089 = vmatpush.msra.mxu0 0.0
        %1090 = vmatpush.msra.mxu0 0.0
        %1091 = vmatpush.msra.mxu0 %v1087
        %1092 = vmatpush.msra.mxu0 %v1084
        %1093 = vmatpush.msra.mxu0 %v1083
        %1094 = vmatpush.msra.mxu0 %v1082
        %1095 = vmatpush.msra.mxu0 %v1081
        %1096 = vmatpush.msra.mxu0 %v1080
        %1097 = vmatpush.msra.mxu0 %v1079
        %1098 = vmatpush.msra.mxu0 %v1078
        %1099 = vmatpush.msra.mxu0 %v1077
        %1100 = vmatpush.msra.mxu0 %v1076
        %1101 = vmatpush.msra.mxu0 %v1075
        %1102 = vmatpush.msra.mxu0 %v1074
        %1103 = vmatpush.msra.mxu0 %v1073
        %1104 = vmatpush.msra.mxu0 %v1072
        %1105 = vmatmul.f32.gmra.mxu0 %v479
        %v1106 = vpop.f32.mrf.mxu0
        %v1107 = vadd.f32 0.0, %v1106
        %1108 = vmatmul.f32.gmra.mxu0 %v482
        %v1109 = vpop.f32.mrf.mxu0
        %v1110 = vadd.f32 0.0, %v1109
        %1111 = vmatmul.f32.gmra.mxu0 %v485
        %v1112 = vpop.f32.mrf.mxu0
        %v1113 = vadd.f32 0.0, %v1112
        %1114 = vmatmul.f32.gmra.mxu0 %v488
        %v1115 = vpop.f32.mrf.mxu0
        %v1116 = vadd.f32 0.0, %v1115
        %1117 = vmatmul.f32.gmra.mxu0 %v491
        %v1118 = vpop.f32.mrf.mxu0
        %v1119 = vadd.f32 0.0, %v1118
        %1120 = vmatmul.f32.gmra.mxu0 %v494
        %v1121 = vpop.f32.mrf.mxu0
        %v1122 = vadd.f32 0.0, %v1121
        %1123 = vmatmul.f32.gmra.mxu0 %v497
        %v1124 = vpop.f32.mrf.mxu0
        %v1125 = vadd.f32 0.0, %v1124
        %1126 = vmatmul.f32.gmra.mxu0 %v500
        %v1127 = vpop.f32.mrf.mxu0
        %v1128 = vadd.f32 0.0, %v1127
        %1129 = vmatmul.f32.gmra.mxu0 %v503
        %v1130 = vpop.f32.mrf.mxu0
        %v1131 = vadd.f32 0.0, %v1130
        %1132 = vmatmul.f32.gmra.mxu0 %v506
        %v1133 = vpop.f32.mrf.mxu0
        %v1134 = vadd.f32 0.0, %v1133
        %1135 = vmatmul.f32.gmra.mxu0 %v509
        %v1136 = vpop.f32.mrf.mxu0
        %v1137 = vadd.f32 0.0, %v1136
        %1138 = vmatmul.f32.gmra.mxu0 %v512
        %v1139 = vpop.f32.mrf.mxu0
        %v1140 = vadd.f32 0.0, %v1139
        %1141 = vmatmul.f32.gmra.mxu0 %v515
        %v1142 = vpop.f32.mrf.mxu0
        %v1143 = vadd.f32 0.0, %v1142
        %1144 = vmatmul.f32.gmra.mxu0 %v518
        %v1145 = vpop.f32.mrf.mxu0
        %v1146 = vadd.f32 0.0, %v1145
        %1147 = vdwg.mxu0
        %v1148 = vmul.f32 %v1006, %v1107
        %v1149 = vmul.f32 %v1011, %v1110
        %v1150 = vmul.f32 %v1016, %v1113
        %v1151 = vmul.f32 %v1021, %v1116
        %v1152 = vmul.f32 %v1026, %v1119
        %v1153 = vmul.f32 %v1031, %v1122
        %v1154 = vmul.f32 %v1036, %v1125
        %v1155 = vmul.f32 %v1041, %v1128
        %v1156 = vmul.f32 %v1046, %v1131
        %v1157 = vmul.f32 %v1051, %v1134
        %v1158 = vmul.f32 %v1056, %v1137
        %v1159 = vmul.f32 %v1061, %v1140
        %v1160 = vmul.f32 %v1066, %v1143
        %v1161 = vmul.f32 %v1070, %v1146
        %v1162 = vadd.f32 %v1148, %v989
        %v1163 = vadd.f32 %v1149, %v990
        %v1164 = vadd.f32 %v1150, %v991
        %v1165 = vadd.f32 %v1151, %v992
        %v1166 = vadd.f32 %v1152, %v993
        %v1167 = vadd.f32 %v1153, %v994
        %v1168 = vadd.f32 %v1154, %v995
        %v1169 = vadd.f32 %v1155, %v996
        %v1170 = vadd.f32 %v1156, %v997
        %v1171 = vadd.f32 %v1157, %v998
        %v1172 = vadd.f32 %v1158, %v999
        %v1173 = vadd.f32 %v1159, %v1000
        %v1174 = vadd.f32 %v1160, %v1001
        %v1175 = vadd.f32 %v1161, %v1002
        %v1176 = vmul.f32 %v922, %v1162
        %v1177 = vmul.f32 %v927, %v1163
        %v1178 = vmul.f32 %v932, %v1164
        %v1179 = vmul.f32 %v937, %v1165
        %v1180 = vmul.f32 %v942, %v1166
        %v1181 = vmul.f32 %v947, %v1167
        %v1182 = vmul.f32 %v952, %v1168
        %v1183 = vmul.f32 %v957, %v1169
        %v1184 = vmul.f32 %v962, %v1170
        %v1185 = vmul.f32 %v967, %v1171
        %v1186 = vmul.f32 %v972, %v1172
        %v1187 = vmul.f32 %v977, %v1173
        %v1188 = vmul.f32 %v982, %v1174
        %v1189 = vmul.f32 %v987, %v1175
        %v1190 = vperm.slane %v476, 0
        %v1192 = vsel %vm477, %v1176, 0
        %v1195 = vsel %vm477, %v1177, 0
        %v1198 = vsel %vm477, %v1178, 0
        %v1201 = vsel %vm477, %v1179, 0
        %v1204 = vsel %vm477, %v1180, 0
        %v1207 = vsel %vm477, %v1181, 0
        %v1210 = vsel %vm477, %v1182, 0
        %v1213 = vsel %vm477, %v1183, 0
        %v1216 = vsel %vm477, %v1184, 0
        %v1219 = vsel %vm477, %v1185, 0
        %v1222 = vsel %vm477, %v1186, 0
        %v1225 = vsel %vm477, %v1187, 0
        %v1228 = vsel %vm477, %v1188, 0
        %v1231 = vsel %vm477, %v1189, 0
        %v1234 = vsel %vm520, %v918, 0
        %1236 = vmatpush.msra.mxu0 0.0
        %1237 = vmatpush.msra.mxu0 0.0
        %1238 = vmatpush.msra.mxu0 %v1234
        %1239 = vmatpush.msra.mxu0 %v917
        %1240 = vmatpush.msra.mxu0 %v916
        %1241 = vmatpush.msra.mxu0 %v915
        %1242 = vmatpush.msra.mxu0 %v914
        %1243 = vmatpush.msra.mxu0 %v913
        %1244 = vmatpush.msra.mxu0 %v912
        %1245 = vmatpush.msra.mxu0 %v911
        %1246 = vmatpush.msra.mxu0 %v910
        %1247 = vmatpush.msra.mxu0 %v909
        %1248 = vmatpush.msra.mxu0 %v908
        %1249 = vmatpush.msra.mxu0 %v907
        %1250 = vmatpush.msra.mxu0 %v906
        %1251 = vmatpush.msra.mxu0 %v905
        %1252 = vmatmul.f32.gmra.mxu0 %v1192
        %v1253 = vpop.f32.mrf.mxu0
        %v1254 = vadd.f32 %v1190, %v1253
        %1255 = vmatmul.f32.gmra.mxu0 %v1195
        %v1256 = vpop.f32.mrf.mxu0
        %v1257 = vadd.f32 %v1190, %v1256
        %1258 = vmatmul.f32.gmra.mxu0 %v1198
        %v1259 = vpop.f32.mrf.mxu0
        %v1260 = vadd.f32 %v1190, %v1259
        %1261 = vmatmul.f32.gmra.mxu0 %v1201
        %v1262 = vpop.f32.mrf.mxu0
        %v1263 = vadd.f32 %v1190, %v1262
        %1264 = vmatmul.f32.gmra.mxu0 %v1204
        %v1265 = vpop.f32.mrf.mxu0
        %v1266 = vadd.f32 %v1190, %v1265
        %1267 = vmatmul.f32.gmra.mxu0 %v1207
        %v1268 = vpop.f32.mrf.mxu0
        %v1269 = vadd.f32 %v1190, %v1268
        %1270 = vmatmul.f32.gmra.mxu0 %v1210
        %v1271 = vpop.f32.mrf.mxu0
        %v1272 = vadd.f32 %v1190, %v1271
        %1273 = vmatmul.f32.gmra.mxu0 %v1213
        %v1274 = vpop.f32.mrf.mxu0
        %v1275 = vadd.f32 %v1190, %v1274
        %1276 = vmatmul.f32.gmra.mxu0 %v1216
        %v1277 = vpop.f32.mrf.mxu0
        %v1278 = vadd.f32 %v1190, %v1277
        %1279 = vmatmul.f32.gmra.mxu0 %v1219
        %v1280 = vpop.f32.mrf.mxu0
        %v1281 = vadd.f32 %v1190, %v1280
        %1282 = vmatmul.f32.gmra.mxu0 %v1222
        %v1283 = vpop.f32.mrf.mxu0
        %v1284 = vadd.f32 %v1190, %v1283
        %1285 = vmatmul.f32.gmra.mxu0 %v1225
        %v1286 = vpop.f32.mrf.mxu0
        %v1287 = vadd.f32 %v1190, %v1286
        %1288 = vmatmul.f32.gmra.mxu0 %v1228
        %v1289 = vpop.f32.mrf.mxu0
        %v1290 = vadd.f32 %v1190, %v1289
        %1291 = vmatmul.f32.gmra.mxu0 %v1231
        %v1292 = vpop.f32.mrf.mxu0
        %v1293 = vadd.f32 %v1190, %v1292
        %1294 = vdwg.mxu0
        %vm1295 = vcmp.gt.f32.partialorder %v1254, 0.0
        %vm1296 = vcmp.gt.f32.partialorder %v1257, 0.0
        %vm1297 = vcmp.gt.f32.partialorder %v1260, 0.0
        %vm1298 = vcmp.gt.f32.partialorder %v1263, 0.0
        %vm1299 = vcmp.gt.f32.partialorder %v1266, 0.0
        %vm1300 = vcmp.gt.f32.partialorder %v1269, 0.0
        %vm1301 = vcmp.gt.f32.partialorder %v1272, 0.0
        %vm1302 = vcmp.gt.f32.partialorder %v1275, 0.0
        %vm1303 = vcmp.gt.f32.partialorder %v1278, 0.0
        %vm1304 = vcmp.gt.f32.partialorder %v1281, 0.0
        %vm1305 = vcmp.gt.f32.partialorder %v1284, 0.0
        %vm1306 = vcmp.gt.f32.partialorder %v1287, 0.0
        %vm1307 = vcmp.gt.f32.partialorder %v1290, 0.0
        %vm1308 = vcmp.gt.f32.partialorder %v1293, 0.0
        %v1309 = vmul.f32 %v1254, 0.01
        %v1310 = vmul.f32 %v1257, 0.01
        %v1311 = vmul.f32 %v1260, 0.01
        %v1312 = vmul.f32 %v1263, 0.01
        %v1313 = vmul.f32 %v1266, 0.01
        %v1314 = vmul.f32 %v1269, 0.01
        %v1315 = vmul.f32 %v1272, 0.01
        %v1316 = vmul.f32 %v1275, 0.01
        %v1317 = vmul.f32 %v1278, 0.01
        %v1318 = vmul.f32 %v1281, 0.01
        %v1319 = vmul.f32 %v1284, 0.01
        %v1320 = vmul.f32 %v1287, 0.01
        %v1321 = vmul.f32 %v1290, 0.01
        %v1322 = vmul.f32 %v1293, 0.01
        %v1323 = vsel %vm1295, %v1254, %v1309
        %v1324 = vsel %vm1296, %v1257, %v1310
        %v1325 = vsel %vm1297, %v1260, %v1311
        %v1326 = vsel %vm1298, %v1263, %v1312
        %v1327 = vsel %vm1299, %v1266, %v1313
        %v1328 = vsel %vm1300, %v1269, %v1314
        %v1329 = vsel %vm1301, %v1272, %v1315
        %v1330 = vsel %vm1302, %v1275, %v1316
        %v1331 = vsel %vm1303, %v1278, %v1317
        %v1332 = vsel %vm1304, %v1281, %v1318
        %v1333 = vsel %vm1305, %v1284, %v1319
        %v1334 = vsel %vm1306, %v1287, %v1320
        %v1335 = vsel %vm1307, %v1290, %v1321
        %v1336 = vsel %vm1308, %v1293, %v1322
        %v1337 = vmul.f32 %v1006, %v1323
        %v1338 = vmul.f32 %v1011, %v1324
        %v1339 = vmul.f32 %v1016, %v1325
        %v1340 = vmul.f32 %v1021, %v1326
        %v1341 = vmul.f32 %v1026, %v1327
        %v1342 = vmul.f32 %v1031, %v1328
        %v1343 = vmul.f32 %v1036, %v1329
        %v1344 = vmul.f32 %v1041, %v1330
        %v1345 = vmul.f32 %v1046, %v1331
        %v1346 = vmul.f32 %v1051, %v1332
        %v1347 = vmul.f32 %v1056, %v1333
        %v1348 = vmul.f32 %v1061, %v1334
        %v1349 = vmul.f32 %v1066, %v1335
        %v1350 = vmul.f32 %v1070, %v1336
        %1351 = vset.pattern.permute.xlu0 1
        %1352 = vperm.xlu0 %1351, %v620
        %v1353 = vpop.permute.xlu0 %1352
        %1355 = vset.pattern.permute.xlu0 1
        %1356 = vperm.xlu0 %1355, %v630
        %v1357 = vpop.permute.xlu0 %1356
        %1359 = vset.pattern.permute.xlu0 1
        %1360 = vperm.xlu0 %1359, %v640
        %v1361 = vpop.permute.xlu0 %1360
        %1363 = vset.pattern.permute.xlu0 1
        %1364 = vperm.xlu0 %1363, %v650
        %v1365 = vpop.permute.xlu0 %1364
        %1367 = vset.pattern.permute.xlu0 1
        %1368 = vperm.xlu0 %1367, %v660
        %v1369 = vpop.permute.xlu0 %1368
        %1371 = vset.pattern.permute.xlu0 1
        %1372 = vperm.xlu0 %1371, %v670
        %v1373 = vpop.permute.xlu0 %1372
        %1375 = vset.pattern.permute.xlu0 1
        %1376 = vperm.xlu0 %1375, %v680
        %v1377 = vpop.permute.xlu0 %1376
        %1379 = vset.pattern.permute.xlu0 1
        %1380 = vperm.xlu0 %1379, %v690
        %v1381 = vpop.permute.xlu0 %1380
        %1383 = vset.pattern.permute.xlu0 1
        %1384 = vperm.xlu0 %1383, %v700
        %v1385 = vpop.permute.xlu0 %1384
        %1387 = vset.pattern.permute.xlu0 1
        %1388 = vperm.xlu0 %1387, %v710
        %v1389 = vpop.permute.xlu0 %1388
        %1391 = vset.pattern.permute.xlu0 1
        %1392 = vperm.xlu0 %1391, %v720
        %v1393 = vpop.permute.xlu0 %1392
        %1395 = vset.pattern.permute.xlu0 1
        %1396 = vperm.xlu0 %1395, %v730
        %v1397 = vpop.permute.xlu0 %1396
        %1399 = vset.pattern.permute.xlu0 1
        %1400 = vperm.xlu0 %1399, %v740
        %v1401 = vpop.permute.xlu0 %1400
        %1403 = vset.pattern.permute.xlu0 1
        %1404 = vperm.xlu0 %1403, %v750
        %v1405 = vpop.permute.xlu0 %1404
        %v1407 = vmul.f32 %v1353, %v448
        %v1408 = vmul.f32 %v1357, %v449
        %v1409 = vmul.f32 %v1361, %v450
        %v1410 = vmul.f32 %v1365, %v451
        %v1411 = vmul.f32 %v1369, %v452
        %v1412 = vmul.f32 %v1373, %v453
        %v1413 = vmul.f32 %v1377, %v454
        %v1414 = vmul.f32 %v1381, %v455
        %v1415 = vmul.f32 %v1385, %v456
        %v1416 = vmul.f32 %v1389, %v457
        %v1417 = vmul.f32 %v1393, %v458
        %v1418 = vmul.f32 %v1397, %v459
        %v1419 = vmul.f32 %v1401, %v460
        %v1420 = vmul.f32 %v1405, %v461
        %1421 = vset.pattern.permute.xlu0 1
        %1422 = vperm.xlu0 %1421, %v462
        %v1423 = vpop.permute.xlu0 %1422
        %1425 = vset.pattern.permute.xlu0 1
        %1426 = vperm.xlu0 %1425, %v463
        %v1427 = vpop.permute.xlu0 %1426
        %1429 = vset.pattern.permute.xlu0 1
        %1430 = vperm.xlu0 %1429, %v464
        %v1431 = vpop.permute.xlu0 %1430
        %1433 = vset.pattern.permute.xlu0 1
        %1434 = vperm.xlu0 %1433, %v465
        %v1435 = vpop.permute.xlu0 %1434
        %1437 = vset.pattern.permute.xlu0 1
        %1438 = vperm.xlu0 %1437, %v466
        %v1439 = vpop.permute.xlu0 %1438
        %1441 = vset.pattern.permute.xlu0 1
        %1442 = vperm.xlu0 %1441, %v467
        %v1443 = vpop.permute.xlu0 %1442
        %1445 = vset.pattern.permute.xlu0 1
        %1446 = vperm.xlu0 %1445, %v468
        %v1447 = vpop.permute.xlu0 %1446
        %1449 = vset.pattern.permute.xlu0 1
        %1450 = vperm.xlu0 %1449, %v469
        %v1451 = vpop.permute.xlu0 %1450
        %1453 = vset.pattern.permute.xlu0 1
        %1454 = vperm.xlu0 %1453, %v470
        %v1455 = vpop.permute.xlu0 %1454
        %1457 = vset.pattern.permute.xlu0 1
        %1458 = vperm.xlu0 %1457, %v471
        %v1459 = vpop.permute.xlu0 %1458
        %1461 = vset.pattern.permute.xlu0 1
        %1462 = vperm.xlu0 %1461, %v472
        %v1463 = vpop.permute.xlu0 %1462
        %1465 = vset.pattern.permute.xlu0 1
        %1466 = vperm.xlu0 %1465, %v473
        %v1467 = vpop.permute.xlu0 %1466
        %1469 = vset.pattern.permute.xlu0 1
        %1470 = vperm.xlu0 %1469, %v474
        %v1471 = vpop.permute.xlu0 %1470
        %1473 = vset.pattern.permute.xlu0 1
        %1474 = vperm.xlu0 %1473, %v475
        %v1475 = vpop.permute.xlu0 %1474
        %v1477 = vmul.f32 %v1423, %v1407
        %v1478 = vmul.f32 %v1427, %v1408
        %v1479 = vmul.f32 %v1431, %v1409
        %v1480 = vmul.f32 %v1435, %v1410
        %v1481 = vmul.f32 %v1439, %v1411
        %v1482 = vmul.f32 %v1443, %v1412
        %v1483 = vmul.f32 %v1447, %v1413
        %v1484 = vmul.f32 %v1451, %v1414
        %v1485 = vmul.f32 %v1455, %v1415
        %v1486 = vmul.f32 %v1459, %v1416
        %v1487 = vmul.f32 %v1463, %v1417
        %v1488 = vmul.f32 %v1467, %v1418
        %v1489 = vmul.f32 %v1471, %v1419
        %v1490 = vmul.f32 %v1475, %v1420
        %v1492 = vsel %vm520, %v1490, 0
        %1494 = vmatpush.msra.mxu0 0.0
        %1495 = vmatpush.msra.mxu0 0.0
        %1496 = vmatpush.msra.mxu0 %v1492
        %1497 = vmatpush.msra.mxu0 %v1489
        %1498 = vmatpush.msra.mxu0 %v1488
        %1499 = vmatpush.msra.mxu0 %v1487
        %1500 = vmatpush.msra.mxu0 %v1486
        %1501 = vmatpush.msra.mxu0 %v1485
        %1502 = vmatpush.msra.mxu0 %v1484
        %1503 = vmatpush.msra.mxu0 %v1483
        %1504 = vmatpush.msra.mxu0 %v1482
        %1505 = vmatpush.msra.mxu0 %v1481
        %1506 = vmatpush.msra.mxu0 %v1480
        %1507 = vmatpush.msra.mxu0 %v1479
        %1508 = vmatpush.msra.mxu0 %v1478
        %1509 = vmatpush.msra.mxu0 %v1477
        %1510 = vmatmul.f32.gmra.mxu0 %v479
        %v1511 = vpop.f32.mrf.mxu0
        %v1512 = vadd.f32 0.0, %v1511
        %1513 = vmatmul.f32.gmra.mxu0 %v482
        %v1514 = vpop.f32.mrf.mxu0
        %v1515 = vadd.f32 0.0, %v1514
        %1516 = vmatmul.f32.gmra.mxu0 %v485
        %v1517 = vpop.f32.mrf.mxu0
        %v1518 = vadd.f32 0.0, %v1517
        %1519 = vmatmul.f32.gmra.mxu0 %v488
        %v1520 = vpop.f32.mrf.mxu0
        %v1521 = vadd.f32 0.0, %v1520
        %1522 = vmatmul.f32.gmra.mxu0 %v491
        %v1523 = vpop.f32.mrf.mxu0
        %v1524 = vadd.f32 0.0, %v1523
        %1525 = vmatmul.f32.gmra.mxu0 %v494
        %v1526 = vpop.f32.mrf.mxu0
        %v1527 = vadd.f32 0.0, %v1526
        %1528 = vmatmul.f32.gmra.mxu0 %v497
        %v1529 = vpop.f32.mrf.mxu0
        %v1530 = vadd.f32 0.0, %v1529
        %1531 = vmatmul.f32.gmra.mxu0 %v500
        %v1532 = vpop.f32.mrf.mxu0
        %v1533 = vadd.f32 0.0, %v1532
        %1534 = vmatmul.f32.gmra.mxu0 %v503
        %v1535 = vpop.f32.mrf.mxu0
        %v1536 = vadd.f32 0.0, %v1535
        %1537 = vmatmul.f32.gmra.mxu0 %v506
        %v1538 = vpop.f32.mrf.mxu0
        %v1539 = vadd.f32 0.0, %v1538
        %1540 = vmatmul.f32.gmra.mxu0 %v509
        %v1541 = vpop.f32.mrf.mxu0
        %v1542 = vadd.f32 0.0, %v1541
        %1543 = vmatmul.f32.gmra.mxu0 %v512
        %v1544 = vpop.f32.mrf.mxu0
        %v1545 = vadd.f32 0.0, %v1544
        %1546 = vmatmul.f32.gmra.mxu0 %v515
        %v1547 = vpop.f32.mrf.mxu0
        %v1548 = vadd.f32 0.0, %v1547
        %1549 = vmatmul.f32.gmra.mxu0 %v518
        %v1550 = vpop.f32.mrf.mxu0
        %v1551 = vadd.f32 0.0, %v1550
        %1552 = vdwg.mxu0
        %v1553 = vmul.f32 %v1423, %v1512
        %v1554 = vmul.f32 %v1427, %v1515
        %v1555 = vmul.f32 %v1431, %v1518
        %v1556 = vmul.f32 %v1435, %v1521
        %v1557 = vmul.f32 %v1439, %v1524
        %v1558 = vmul.f32 %v1443, %v1527
        %v1559 = vmul.f32 %v1447, %v1530
        %v1560 = vmul.f32 %v1451, %v1533
        %v1561 = vmul.f32 %v1455, %v1536
        %v1562 = vmul.f32 %v1459, %v1539
        %v1563 = vmul.f32 %v1463, %v1542
        %v1564 = vmul.f32 %v1467, %v1545
        %v1565 = vmul.f32 %v1471, %v1548
        %v1566 = vmul.f32 %v1475, %v1551
        %v1567 = vadd.f32 %v1553, %v1407
        %v1568 = vadd.f32 %v1554, %v1408
        %v1569 = vadd.f32 %v1555, %v1409
        %v1570 = vadd.f32 %v1556, %v1410
        %v1571 = vadd.f32 %v1557, %v1411
        %v1572 = vadd.f32 %v1558, %v1412
        %v1573 = vadd.f32 %v1559, %v1413
        %v1574 = vadd.f32 %v1560, %v1414
        %v1575 = vadd.f32 %v1561, %v1415
        %v1576 = vadd.f32 %v1562, %v1416
        %v1577 = vadd.f32 %v1563, %v1417
        %v1578 = vadd.f32 %v1564, %v1418
        %v1579 = vadd.f32 %v1565, %v1419
        %v1580 = vadd.f32 %v1566, %v1420
        %v1581 = vmul.f32 %v1353, %v1567
        %v1582 = vmul.f32 %v1357, %v1568
        %v1583 = vmul.f32 %v1361, %v1569
        %v1584 = vmul.f32 %v1365, %v1570
        %v1585 = vmul.f32 %v1369, %v1571
        %v1586 = vmul.f32 %v1373, %v1572
        %v1587 = vmul.f32 %v1377, %v1573
        %v1588 = vmul.f32 %v1381, %v1574
        %v1589 = vmul.f32 %v1385, %v1575
        %v1590 = vmul.f32 %v1389, %v1576
        %v1591 = vmul.f32 %v1393, %v1577
        %v1592 = vmul.f32 %v1397, %v1578
        %v1593 = vmul.f32 %v1401, %v1579
        %v1594 = vmul.f32 %v1405, %v1580
        %v1595 = vperm.slane %v476, 1
        %1609 = vrot.lane.b32.xlu0 %v905, 64
        %v1610 = vpop.permute.xlu0 %1609
        %1611 = vrot.lane.b32.xlu0 %v906, 64
        %v1612 = vpop.permute.xlu0 %1611
        %1613 = vrot.lane.b32.xlu0 %v907, 64
        %v1614 = vpop.permute.xlu0 %1613
        %1615 = vrot.lane.b32.xlu0 %v908, 64
        %v1616 = vpop.permute.xlu0 %1615
        %1617 = vrot.lane.b32.xlu0 %v909, 64
        %v1618 = vpop.permute.xlu0 %1617
        %1619 = vrot.lane.b32.xlu0 %v910, 64
        %v1620 = vpop.permute.xlu0 %1619
        %1621 = vrot.lane.b32.xlu0 %v911, 64
        %v1622 = vpop.permute.xlu0 %1621
        %1623 = vrot.lane.b32.xlu0 %v912, 64
        %v1624 = vpop.permute.xlu0 %1623
        %1625 = vrot.lane.b32.xlu0 %v913, 64
        %v1626 = vpop.permute.xlu0 %1625
        %1627 = vrot.lane.b32.xlu0 %v914, 64
        %v1628 = vpop.permute.xlu0 %1627
        %1629 = vrot.lane.b32.xlu0 %v915, 64
        %v1630 = vpop.permute.xlu0 %1629
        %1631 = vrot.lane.b32.xlu0 %v916, 64
        %v1632 = vpop.permute.xlu0 %1631
        %1633 = vrot.lane.b32.xlu0 %v917, 64
        %v1634 = vpop.permute.xlu0 %1633
        %1635 = vrot.lane.b32.xlu0 %v918, 64
        %v1636 = vpop.permute.xlu0 %1635
        %v1651 = vsel %vm477, %v1581, 0
        %v1654 = vsel %vm477, %v1582, 0
        %v1657 = vsel %vm477, %v1583, 0
        %v1660 = vsel %vm477, %v1584, 0
        %v1663 = vsel %vm477, %v1585, 0
        %v1666 = vsel %vm477, %v1586, 0
        %v1669 = vsel %vm477, %v1587, 0
        %v1672 = vsel %vm477, %v1588, 0
        %v1675 = vsel %vm477, %v1589, 0
        %v1678 = vsel %vm477, %v1590, 0
        %v1681 = vsel %vm477, %v1591, 0
        %v1684 = vsel %vm477, %v1592, 0
        %v1687 = vsel %vm477, %v1593, 0
        %v1690 = vsel %vm477, %v1594, 0
        %v1692 = vsel %vm520, %v1636, 0
        %1694 = vmatpush.msra.mxu0 0.0
        %1695 = vmatpush.msra.mxu0 0.0
        %1696 = vmatpush.msra.mxu0 %v1692
        %1697 = vmatpush.msra.mxu0 %v1634
        %1698 = vmatpush.msra.mxu0 %v1632
        %1699 = vmatpush.msra.mxu0 %v1630
        %1700 = vmatpush.msra.mxu0 %v1628
        %1701 = vmatpush.msra.mxu0 %v1626
        %1702 = vmatpush.msra.mxu0 %v1624
        %1703 = vmatpush.msra.mxu0 %v1622
        %1704 = vmatpush.msra.mxu0 %v1620
        %1705 = vmatpush.msra.mxu0 %v1618
        %1706 = vmatpush.msra.mxu0 %v1616
        %1707 = vmatpush.msra.mxu0 %v1614
        %1708 = vmatpush.msra.mxu0 %v1612
        %1709 = vmatpush.msra.mxu0 %v1610
        %1710 = vmatmul.f32.gmra.mxu0 %v1651
        %v1711 = vpop.f32.mrf.mxu0
        %v1712 = vadd.f32 %v1595, %v1711
        %1713 = vmatmul.f32.gmra.mxu0 %v1654
        %v1714 = vpop.f32.mrf.mxu0
        %v1715 = vadd.f32 %v1595, %v1714
        %1716 = vmatmul.f32.gmra.mxu0 %v1657
        %v1717 = vpop.f32.mrf.mxu0
        %v1718 = vadd.f32 %v1595, %v1717
        %1719 = vmatmul.f32.gmra.mxu0 %v1660
        %v1720 = vpop.f32.mrf.mxu0
        %v1721 = vadd.f32 %v1595, %v1720
        %1722 = vmatmul.f32.gmra.mxu0 %v1663
        %v1723 = vpop.f32.mrf.mxu0
        %v1724 = vadd.f32 %v1595, %v1723
        %1725 = vmatmul.f32.gmra.mxu0 %v1666
        %v1726 = vpop.f32.mrf.mxu0
        %v1727 = vadd.f32 %v1595, %v1726
        %1728 = vmatmul.f32.gmra.mxu0 %v1669
        %v1729 = vpop.f32.mrf.mxu0
        %v1730 = vadd.f32 %v1595, %v1729
        %1731 = vmatmul.f32.gmra.mxu0 %v1672
        %v1732 = vpop.f32.mrf.mxu0
        %v1733 = vadd.f32 %v1595, %v1732
        %1734 = vmatmul.f32.gmra.mxu0 %v1675
        %v1735 = vpop.f32.mrf.mxu0
        %v1736 = vadd.f32 %v1595, %v1735
        %1737 = vmatmul.f32.gmra.mxu0 %v1678
        %v1738 = vpop.f32.mrf.mxu0
        %v1739 = vadd.f32 %v1595, %v1738
        %1740 = vmatmul.f32.gmra.mxu0 %v1681
        %v1741 = vpop.f32.mrf.mxu0
        %v1742 = vadd.f32 %v1595, %v1741
        %1743 = vmatmul.f32.gmra.mxu0 %v1684
        %v1744 = vpop.f32.mrf.mxu0
        %v1745 = vadd.f32 %v1595, %v1744
        %1746 = vmatmul.f32.gmra.mxu0 %v1687
        %v1747 = vpop.f32.mrf.mxu0
        %v1748 = vadd.f32 %v1595, %v1747
        %1749 = vmatmul.f32.gmra.mxu0 %v1690
        %v1750 = vpop.f32.mrf.mxu0
        %v1751 = vadd.f32 %v1595, %v1750
        %1752 = vdwg.mxu0
        %vm1753 = vcmp.gt.f32.partialorder %v1712, 0.0
        %vm1754 = vcmp.gt.f32.partialorder %v1715, 0.0
        %vm1755 = vcmp.gt.f32.partialorder %v1718, 0.0
        %vm1756 = vcmp.gt.f32.partialorder %v1721, 0.0
        %vm1757 = vcmp.gt.f32.partialorder %v1724, 0.0
        %vm1758 = vcmp.gt.f32.partialorder %v1727, 0.0
        %vm1759 = vcmp.gt.f32.partialorder %v1730, 0.0
        %vm1760 = vcmp.gt.f32.partialorder %v1733, 0.0
        %vm1761 = vcmp.gt.f32.partialorder %v1736, 0.0
        %vm1762 = vcmp.gt.f32.partialorder %v1739, 0.0
        %vm1763 = vcmp.gt.f32.partialorder %v1742, 0.0
        %vm1764 = vcmp.gt.f32.partialorder %v1745, 0.0
        %vm1765 = vcmp.gt.f32.partialorder %v1748, 0.0
        %vm1766 = vcmp.gt.f32.partialorder %v1751, 0.0
        %v1767 = vmul.f32 %v1712, 0.01
        %v1768 = vmul.f32 %v1715, 0.01
        %v1769 = vmul.f32 %v1718, 0.01
        %v1770 = vmul.f32 %v1721, 0.01
        %v1771 = vmul.f32 %v1724, 0.01
        %v1772 = vmul.f32 %v1727, 0.01
        %v1773 = vmul.f32 %v1730, 0.01
        %v1774 = vmul.f32 %v1733, 0.01
        %v1775 = vmul.f32 %v1736, 0.01
        %v1776 = vmul.f32 %v1739, 0.01
        %v1777 = vmul.f32 %v1742, 0.01
        %v1778 = vmul.f32 %v1745, 0.01
        %v1779 = vmul.f32 %v1748, 0.01
        %v1780 = vmul.f32 %v1751, 0.01
        %v1781 = vsel %vm1753, %v1712, %v1767
        %v1782 = vsel %vm1754, %v1715, %v1768
        %v1783 = vsel %vm1755, %v1718, %v1769
        %v1784 = vsel %vm1756, %v1721, %v1770
        %v1785 = vsel %vm1757, %v1724, %v1771
        %v1786 = vsel %vm1758, %v1727, %v1772
        %v1787 = vsel %vm1759, %v1730, %v1773
        %v1788 = vsel %vm1760, %v1733, %v1774
        %v1789 = vsel %vm1761, %v1736, %v1775
        %v1790 = vsel %vm1762, %v1739, %v1776
        %v1791 = vsel %vm1763, %v1742, %v1777
        %v1792 = vsel %vm1764, %v1745, %v1778
        %v1793 = vsel %vm1765, %v1748, %v1779
        %v1794 = vsel %vm1766, %v1751, %v1780
        %v1795 = vmul.f32 %v1423, %v1781
        %v1796 = vmul.f32 %v1427, %v1782
        %v1797 = vmul.f32 %v1431, %v1783
        %v1798 = vmul.f32 %v1435, %v1784
        %v1799 = vmul.f32 %v1439, %v1785
        %v1800 = vmul.f32 %v1443, %v1786
        %v1801 = vmul.f32 %v1447, %v1787
        %v1802 = vmul.f32 %v1451, %v1788
        %v1803 = vmul.f32 %v1455, %v1789
        %v1804 = vmul.f32 %v1459, %v1790
        %v1805 = vmul.f32 %v1463, %v1791
        %v1806 = vmul.f32 %v1467, %v1792
        %v1807 = vmul.f32 %v1471, %v1793
        %v1808 = vmul.f32 %v1475, %v1794
        %v1809 = vadd.f32 %v1337, %v1795
        %v1810 = vadd.f32 %v1338, %v1796
        %v1811 = vadd.f32 %v1339, %v1797
        %v1812 = vadd.f32 %v1340, %v1798
        %v1813 = vadd.f32 %v1341, %v1799
        %v1814 = vadd.f32 %v1342, %v1800
        %v1815 = vadd.f32 %v1343, %v1801
        %v1816 = vadd.f32 %v1344, %v1802
        %v1817 = vadd.f32 %v1345, %v1803
        %v1818 = vadd.f32 %v1346, %v1804
        %v1819 = vadd.f32 %v1347, %v1805
        %v1820 = vadd.f32 %v1348, %v1806
        %v1821 = vadd.f32 %v1349, %v1807
        %v1822 = vadd.f32 %v1350, %v1808
        %v1823 = vld [vmem:[%s5] sm:$0xff]
        %v1824 = vld [vmem:[%s5 + $0x8] sm:$0xff]
        %v1825 = vld [vmem:[%s5 + $0x10] sm:$0xff]
        %v1826 = vld [vmem:[%s5 + $0x18] sm:$0xff]
        %v1827 = vld [vmem:[%s5 + $0x20] sm:$0xff]
        %v1828 = vld [vmem:[%s5 + $0x28] sm:$0xff]
        %v1829 = vld [vmem:[%s5 + $0x30] sm:$0xff]
        %v1830 = vld [vmem:[%s5 + $0x38] sm:$0xff]
        %v1831 = vmul.f32 %v922, %v1809
        %v1832 = vmul.f32 %v927, %v1810
        %v1833 = vmul.f32 %v932, %v1811
        %v1834 = vmul.f32 %v937, %v1812
        %v1835 = vmul.f32 %v942, %v1813
        %v1836 = vmul.f32 %v947, %v1814
        %v1837 = vmul.f32 %v952, %v1815
        %v1838 = vmul.f32 %v957, %v1816
        %v1839 = vmul.f32 %v962, %v1817
        %v1840 = vmul.f32 %v967, %v1818
        %v1841 = vmul.f32 %v972, %v1819
        %v1842 = vmul.f32 %v977, %v1820
        %v1843 = vmul.f32 %v982, %v1821
        %v1844 = vmul.f32 %v987, %v1822
        %v1845 = vmul.f32 %v1006, %v1831
        %v1846 = vmul.f32 %v1011, %v1832
        %v1847 = vmul.f32 %v1016, %v1833
        %v1848 = vmul.f32 %v1021, %v1834
        %v1849 = vmul.f32 %v1026, %v1835
        %v1850 = vmul.f32 %v1031, %v1836
        %v1851 = vmul.f32 %v1036, %v1837
        %v1852 = vmul.f32 %v1041, %v1838
        %v1853 = vmul.f32 %v1046, %v1839
        %v1854 = vmul.f32 %v1051, %v1840
        %v1855 = vmul.f32 %v1056, %v1841
        %v1856 = vmul.f32 %v1061, %v1842
        %v1857 = vmul.f32 %v1066, %v1843
        %v1858 = vmul.f32 %v1070, %v1844
        %v1860 = vsel %vm520, %v1858, 0
        %1862 = vmatpush.msra.mxu0 0.0
        %1863 = vmatpush.msra.mxu0 0.0
        %1864 = vmatpush.msra.mxu0 %v1860
        %1865 = vmatpush.msra.mxu0 %v1857
        %1866 = vmatpush.msra.mxu0 %v1856
        %1867 = vmatpush.msra.mxu0 %v1855
        %1868 = vmatpush.msra.mxu0 %v1854
        %1869 = vmatpush.msra.mxu0 %v1853
        %1870 = vmatpush.msra.mxu0 %v1852
        %1871 = vmatpush.msra.mxu0 %v1851
        %1872 = vmatpush.msra.mxu0 %v1850
        %1873 = vmatpush.msra.mxu0 %v1849
        %1874 = vmatpush.msra.mxu0 %v1848
        %1875 = vmatpush.msra.mxu0 %v1847
        %1876 = vmatpush.msra.mxu0 %v1846
        %1877 = vmatpush.msra.mxu0 %v1845
        %1878 = vmatmul.f32.gmra.mxu0 %v479
        %v1879 = vpop.f32.mrf.mxu0
        %v1880 = vadd.f32 0.0, %v1879
        %1881 = vmatmul.f32.gmra.mxu0 %v482
        %v1882 = vpop.f32.mrf.mxu0
        %v1883 = vadd.f32 0.0, %v1882
        %1884 = vmatmul.f32.gmra.mxu0 %v485
        %v1885 = vpop.f32.mrf.mxu0
        %v1886 = vadd.f32 0.0, %v1885
        %1887 = vmatmul.f32.gmra.mxu0 %v488
        %v1888 = vpop.f32.mrf.mxu0
        %v1889 = vadd.f32 0.0, %v1888
        %1890 = vmatmul.f32.gmra.mxu0 %v491
        %v1891 = vpop.f32.mrf.mxu0
        %v1892 = vadd.f32 0.0, %v1891
        %1893 = vmatmul.f32.gmra.mxu0 %v494
        %v1894 = vpop.f32.mrf.mxu0
        %v1895 = vadd.f32 0.0, %v1894
        %1896 = vmatmul.f32.gmra.mxu0 %v497
        %v1897 = vpop.f32.mrf.mxu0
        %v1898 = vadd.f32 0.0, %v1897
        %1899 = vmatmul.f32.gmra.mxu0 %v500
        %v1900 = vpop.f32.mrf.mxu0
        %v1901 = vadd.f32 0.0, %v1900
        %1902 = vmatmul.f32.gmra.mxu0 %v503
        %v1903 = vpop.f32.mrf.mxu0
        %v1904 = vadd.f32 0.0, %v1903
        %1905 = vmatmul.f32.gmra.mxu0 %v506
        %v1906 = vpop.f32.mrf.mxu0
        %v1907 = vadd.f32 0.0, %v1906
        %1908 = vmatmul.f32.gmra.mxu0 %v509
        %v1909 = vpop.f32.mrf.mxu0
        %v1910 = vadd.f32 0.0, %v1909
        %1911 = vmatmul.f32.gmra.mxu0 %v512
        %v1912 = vpop.f32.mrf.mxu0
        %v1913 = vadd.f32 0.0, %v1912
        %1914 = vmatmul.f32.gmra.mxu0 %v515
        %v1915 = vpop.f32.mrf.mxu0
        %v1916 = vadd.f32 0.0, %v1915
        %1917 = vmatmul.f32.gmra.mxu0 %v518
        %v1918 = vpop.f32.mrf.mxu0
        %v1919 = vadd.f32 0.0, %v1918
        %1920 = vdwg.mxu0
        %v1921 = vmul.f32 %v1006, %v1880
        %v1922 = vmul.f32 %v1011, %v1883
        %v1923 = vmul.f32 %v1016, %v1886
        %v1924 = vmul.f32 %v1021, %v1889
        %v1925 = vmul.f32 %v1026, %v1892
        %v1926 = vmul.f32 %v1031, %v1895
        %v1927 = vmul.f32 %v1036, %v1898
        %v1928 = vmul.f32 %v1041, %v1901
        %v1929 = vmul.f32 %v1046, %v1904
        %v1930 = vmul.f32 %v1051, %v1907
        %v1931 = vmul.f32 %v1056, %v1910
        %v1932 = vmul.f32 %v1061, %v1913
        %v1933 = vmul.f32 %v1066, %v1916
        %v1934 = vmul.f32 %v1070, %v1919
        %v1935 = vadd.f32 %v1921, %v1831
        %v1936 = vadd.f32 %v1922, %v1832
        %v1937 = vadd.f32 %v1923, %v1833
        %v1938 = vadd.f32 %v1924, %v1834
        %v1939 = vadd.f32 %v1925, %v1835
        %v1940 = vadd.f32 %v1926, %v1836
        %v1941 = vadd.f32 %v1927, %v1837
        %v1942 = vadd.f32 %v1928, %v1838
        %v1943 = vadd.f32 %v1929, %v1839
        %v1944 = vadd.f32 %v1930, %v1840
        %v1945 = vadd.f32 %v1931, %v1841
        %v1946 = vadd.f32 %v1932, %v1842
        %v1947 = vadd.f32 %v1933, %v1843
        %v1948 = vadd.f32 %v1934, %v1844
        %v1949 = vmul.f32 %v922, %v1935
        %v1950 = vmul.f32 %v927, %v1936
        %v1951 = vmul.f32 %v932, %v1937
        %v1952 = vmul.f32 %v937, %v1938
        %v1953 = vmul.f32 %v942, %v1939
        %v1954 = vmul.f32 %v947, %v1940
        %v1955 = vmul.f32 %v952, %v1941
        %v1956 = vmul.f32 %v957, %v1942
        %v1957 = vmul.f32 %v962, %v1943
        %v1958 = vmul.f32 %v967, %v1944
        %v1959 = vmul.f32 %v972, %v1945
        %v1960 = vmul.f32 %v977, %v1946
        %v1961 = vmul.f32 %v982, %v1947
        %v1962 = vmul.f32 %v987, %v1948
        %v1963 = vperm.slane %v476, 2
        %vm1964 = vcmask 523264
        %v1966 = vsel %vm1964, %v1949, 0
        %v1969 = vsel %vm1964, %v1950, 0
        %v1972 = vsel %vm1964, %v1951, 0
        %v1975 = vsel %vm1964, %v1952, 0
        %v1978 = vsel %vm1964, %v1953, 0
        %v1981 = vsel %vm1964, %v1954, 0
        %v1984 = vsel %vm1964, %v1955, 0
        %v1987 = vsel %vm1964, %v1956, 0
        %v1990 = vsel %vm1964, %v1957, 0
        %v1993 = vsel %vm1964, %v1958, 0
        %v1996 = vsel %vm1964, %v1959, 0
        %v1999 = vsel %vm1964, %v1960, 0
        %v2002 = vsel %vm1964, %v1961, 0
        %v2005 = vsel %vm1964, %v1962, 0
        %2007 = vmatpush.msra.mxu0 0.0
        %2008 = vmatpush.msra.mxu0 0.0
        %2009 = vmatpush.msra.mxu0 0.0
        %2010 = vmatpush.msra.mxu0 0.0
        %2011 = vmatpush.msra.mxu0 0.0
        %2012 = vmatpush.msra.mxu0 0.0
        %2013 = vmatpush.msra.mxu0 0.0
        %2014 = vmatpush.msra.mxu0 0.0
        %2015 = vmatpush.msra.mxu0 %v1830
        %2016 = vmatpush.msra.mxu0 %v1829
        %2017 = vmatpush.msra.mxu0 %v1828
        %2018 = vmatpush.msra.mxu0 %v1827
        %2019 = vmatpush.msra.mxu0 %v1826
        %2020 = vmatpush.msra.mxu0 %v1825
        %2021 = vmatpush.msra.mxu0 %v1824
        %2022 = vmatpush.msra.mxu0 %v1823
        %2023 = vmatmul.f32.gmra.mxu0 %v1966
        %v2024 = vpop.f32.mrf.mxu0
        %v2025 = vadd.f32 %v1963, %v2024
        %2026 = vmatmul.f32.gmra.mxu0 %v1969
        %v2027 = vpop.f32.mrf.mxu0
        %v2028 = vadd.f32 %v1963, %v2027
        %2029 = vmatmul.f32.gmra.mxu0 %v1972
        %v2030 = vpop.f32.mrf.mxu0
        %v2031 = vadd.f32 %v1963, %v2030
        %2032 = vmatmul.f32.gmra.mxu0 %v1975
        %v2033 = vpop.f32.mrf.mxu0
        %v2034 = vadd.f32 %v1963, %v2033
        %2035 = vmatmul.f32.gmra.mxu0 %v1978
        %v2036 = vpop.f32.mrf.mxu0
        %v2037 = vadd.f32 %v1963, %v2036
        %2038 = vmatmul.f32.gmra.mxu0 %v1981
        %v2039 = vpop.f32.mrf.mxu0
        %v2040 = vadd.f32 %v1963, %v2039
        %2041 = vmatmul.f32.gmra.mxu0 %v1984
        %v2042 = vpop.f32.mrf.mxu0
        %v2043 = vadd.f32 %v1963, %v2042
        %2044 = vmatmul.f32.gmra.mxu0 %v1987
        %v2045 = vpop.f32.mrf.mxu0
        %v2046 = vadd.f32 %v1963, %v2045
        %2047 = vmatmul.f32.gmra.mxu0 %v1990
        %v2048 = vpop.f32.mrf.mxu0
        %v2049 = vadd.f32 %v1963, %v2048
        %2050 = vmatmul.f32.gmra.mxu0 %v1993
        %v2051 = vpop.f32.mrf.mxu0
        %v2052 = vadd.f32 %v1963, %v2051
        %2053 = vmatmul.f32.gmra.mxu0 %v1996
        %v2054 = vpop.f32.mrf.mxu0
        %v2055 = vadd.f32 %v1963, %v2054
        %2056 = vmatmul.f32.gmra.mxu0 %v1999
        %v2057 = vpop.f32.mrf.mxu0
        %v2058 = vadd.f32 %v1963, %v2057
        %2059 = vmatmul.f32.gmra.mxu0 %v2002
        %v2060 = vpop.f32.mrf.mxu0
        %v2061 = vadd.f32 %v1963, %v2060
        %2062 = vmatmul.f32.gmra.mxu0 %v2005
        %v2063 = vpop.f32.mrf.mxu0
        %v2064 = vadd.f32 %v1963, %v2063
        %2065 = vdwg.mxu0
        %vm2066 = vcmp.gt.f32.partialorder %v2025, 0.0
        %vm2067 = vcmp.gt.f32.partialorder %v2028, 0.0
        %vm2068 = vcmp.gt.f32.partialorder %v2031, 0.0
        %vm2069 = vcmp.gt.f32.partialorder %v2034, 0.0
        %vm2070 = vcmp.gt.f32.partialorder %v2037, 0.0
        %vm2071 = vcmp.gt.f32.partialorder %v2040, 0.0
        %vm2072 = vcmp.gt.f32.partialorder %v2043, 0.0
        %vm2073 = vcmp.gt.f32.partialorder %v2046, 0.0
        %vm2074 = vcmp.gt.f32.partialorder %v2049, 0.0
        %vm2075 = vcmp.gt.f32.partialorder %v2052, 0.0
        %vm2076 = vcmp.gt.f32.partialorder %v2055, 0.0
        %vm2077 = vcmp.gt.f32.partialorder %v2058, 0.0
        %vm2078 = vcmp.gt.f32.partialorder %v2061, 0.0
        %vm2079 = vcmp.gt.f32.partialorder %v2064, 0.0
        %v2080 = vmul.f32 %v2025, 0.01
        %v2081 = vmul.f32 %v2028, 0.01
        %v2082 = vmul.f32 %v2031, 0.01
        %v2083 = vmul.f32 %v2034, 0.01
        %v2084 = vmul.f32 %v2037, 0.01
        %v2085 = vmul.f32 %v2040, 0.01
        %v2086 = vmul.f32 %v2043, 0.01
        %v2087 = vmul.f32 %v2046, 0.01
        %v2088 = vmul.f32 %v2049, 0.01
        %v2089 = vmul.f32 %v2052, 0.01
        %v2090 = vmul.f32 %v2055, 0.01
        %v2091 = vmul.f32 %v2058, 0.01
        %v2092 = vmul.f32 %v2061, 0.01
        %v2093 = vmul.f32 %v2064, 0.01
        %v2094 = vsel %vm2066, %v2025, %v2080
        %v2095 = vsel %vm2067, %v2028, %v2081
        %v2096 = vsel %vm2068, %v2031, %v2082
        %v2097 = vsel %vm2069, %v2034, %v2083
        %v2098 = vsel %vm2070, %v2037, %v2084
        %v2099 = vsel %vm2071, %v2040, %v2085
        %v2100 = vsel %vm2072, %v2043, %v2086
        %v2101 = vsel %vm2073, %v2046, %v2087
        %v2102 = vsel %vm2074, %v2049, %v2088
        %v2103 = vsel %vm2075, %v2052, %v2089
        %v2104 = vsel %vm2076, %v2055, %v2090
        %v2105 = vsel %vm2077, %v2058, %v2091
        %v2106 = vsel %vm2078, %v2061, %v2092
        %v2107 = vsel %vm2079, %v2064, %v2093
        %v2108 = vmul.f32 %v1006, %v2094
        %v2109 = vmul.f32 %v1011, %v2095
        %v2110 = vmul.f32 %v1016, %v2096
        %v2111 = vmul.f32 %v1021, %v2097
        %v2112 = vmul.f32 %v1026, %v2098
        %v2113 = vmul.f32 %v1031, %v2099
        %v2114 = vmul.f32 %v1036, %v2100
        %v2115 = vmul.f32 %v1041, %v2101
        %v2116 = vmul.f32 %v1046, %v2102
        %v2117 = vmul.f32 %v1051, %v2103
        %v2118 = vmul.f32 %v1056, %v2104
        %v2119 = vmul.f32 %v1061, %v2105
        %v2120 = vmul.f32 %v1066, %v2106
        %v2121 = vmul.f32 %v1070, %v2107
        %v2122 = vmul.f32 %v1353, %v1809
        %v2123 = vmul.f32 %v1357, %v1810
        %v2124 = vmul.f32 %v1361, %v1811
        %v2125 = vmul.f32 %v1365, %v1812
        %v2126 = vmul.f32 %v1369, %v1813
        %v2127 = vmul.f32 %v1373, %v1814
        %v2128 = vmul.f32 %v1377, %v1815
        %v2129 = vmul.f32 %v1381, %v1816
        %v2130 = vmul.f32 %v1385, %v1817
        %v2131 = vmul.f32 %v1389, %v1818
        %v2132 = vmul.f32 %v1393, %v1819
        %v2133 = vmul.f32 %v1397, %v1820
        %v2134 = vmul.f32 %v1401, %v1821
        %v2135 = vmul.f32 %v1405, %v1822
        %v2136 = vmul.f32 %v1423, %v2122
        %v2137 = vmul.f32 %v1427, %v2123
        %v2138 = vmul.f32 %v1431, %v2124
        %v2139 = vmul.f32 %v1435, %v2125
        %v2140 = vmul.f32 %v1439, %v2126
        %v2141 = vmul.f32 %v1443, %v2127
        %v2142 = vmul.f32 %v1447, %v2128
        %v2143 = vmul.f32 %v1451, %v2129
        %v2144 = vmul.f32 %v1455, %v2130
        %v2145 = vmul.f32 %v1459, %v2131
        %v2146 = vmul.f32 %v1463, %v2132
        %v2147 = vmul.f32 %v1467, %v2133
        %v2148 = vmul.f32 %v1471, %v2134
        %v2149 = vmul.f32 %v1475, %v2135
        %v2151 = vsel %vm520, %v2149, 0
        %2153 = vmatpush.msra.mxu0 0.0
        %2154 = vmatpush.msra.mxu0 0.0
        %2155 = vmatpush.msra.mxu0 %v2151
        %2156 = vmatpush.msra.mxu0 %v2148
        %2157 = vmatpush.msra.mxu0 %v2147
        %2158 = vmatpush.msra.mxu0 %v2146
        %2159 = vmatpush.msra.mxu0 %v2145
        %2160 = vmatpush.msra.mxu0 %v2144
        %2161 = vmatpush.msra.mxu0 %v2143
        %2162 = vmatpush.msra.mxu0 %v2142
        %2163 = vmatpush.msra.mxu0 %v2141
        %2164 = vmatpush.msra.mxu0 %v2140
        %2165 = vmatpush.msra.mxu0 %v2139
        %2166 = vmatpush.msra.mxu0 %v2138
        %2167 = vmatpush.msra.mxu0 %v2137
        %2168 = vmatpush.msra.mxu0 %v2136
        %2169 = vmatmul.f32.gmra.mxu0 %v479
        %v2170 = vpop.f32.mrf.mxu0
        %v2171 = vadd.f32 0.0, %v2170
        %2172 = vmatmul.f32.gmra.mxu0 %v482
        %v2173 = vpop.f32.mrf.mxu0
        %v2174 = vadd.f32 0.0, %v2173
        %2175 = vmatmul.f32.gmra.mxu0 %v485
        %v2176 = vpop.f32.mrf.mxu0
        %v2177 = vadd.f32 0.0, %v2176
        %2178 = vmatmul.f32.gmra.mxu0 %v488
        %v2179 = vpop.f32.mrf.mxu0
        %v2180 = vadd.f32 0.0, %v2179
        %2181 = vmatmul.f32.gmra.mxu0 %v491
        %v2182 = vpop.f32.mrf.mxu0
        %v2183 = vadd.f32 0.0, %v2182
        %2184 = vmatmul.f32.gmra.mxu0 %v494
        %v2185 = vpop.f32.mrf.mxu0
        %v2186 = vadd.f32 0.0, %v2185
        %2187 = vmatmul.f32.gmra.mxu0 %v497
        %v2188 = vpop.f32.mrf.mxu0
        %v2189 = vadd.f32 0.0, %v2188
        %2190 = vmatmul.f32.gmra.mxu0 %v500
        %v2191 = vpop.f32.mrf.mxu0
        %v2192 = vadd.f32 0.0, %v2191
        %2193 = vmatmul.f32.gmra.mxu0 %v503
        %v2194 = vpop.f32.mrf.mxu0
        %v2195 = vadd.f32 0.0, %v2194
        %2196 = vmatmul.f32.gmra.mxu0 %v506
        %v2197 = vpop.f32.mrf.mxu0
        %v2198 = vadd.f32 0.0, %v2197
        %2199 = vmatmul.f32.gmra.mxu0 %v509
        %v2200 = vpop.f32.mrf.mxu0
        %v2201 = vadd.f32 0.0, %v2200
        %2202 = vmatmul.f32.gmra.mxu0 %v512
        %v2203 = vpop.f32.mrf.mxu0
        %v2204 = vadd.f32 0.0, %v2203
        %2205 = vmatmul.f32.gmra.mxu0 %v515
        %v2206 = vpop.f32.mrf.mxu0
        %v2207 = vadd.f32 0.0, %v2206
        %2208 = vmatmul.f32.gmra.mxu0 %v518
        %v2209 = vpop.f32.mrf.mxu0
        %v2210 = vadd.f32 0.0, %v2209
        %2211 = vdwg.mxu0
        %v2212 = vmul.f32 %v1423, %v2171
        %v2213 = vmul.f32 %v1427, %v2174
        %v2214 = vmul.f32 %v1431, %v2177
        %v2215 = vmul.f32 %v1435, %v2180
        %v2216 = vmul.f32 %v1439, %v2183
        %v2217 = vmul.f32 %v1443, %v2186
        %v2218 = vmul.f32 %v1447, %v2189
        %v2219 = vmul.f32 %v1451, %v2192
        %v2220 = vmul.f32 %v1455, %v2195
        %v2221 = vmul.f32 %v1459, %v2198
        %v2222 = vmul.f32 %v1463, %v2201
        %v2223 = vmul.f32 %v1467, %v2204
        %v2224 = vmul.f32 %v1471, %v2207
        %v2225 = vmul.f32 %v1475, %v2210
        %v2226 = vadd.f32 %v2212, %v2122
        %v2227 = vadd.f32 %v2213, %v2123
        %v2228 = vadd.f32 %v2214, %v2124
        %v2229 = vadd.f32 %v2215, %v2125
        %v2230 = vadd.f32 %v2216, %v2126
        %v2231 = vadd.f32 %v2217, %v2127
        %v2232 = vadd.f32 %v2218, %v2128
        %v2233 = vadd.f32 %v2219, %v2129
        %v2234 = vadd.f32 %v2220, %v2130
        %v2235 = vadd.f32 %v2221, %v2131
        %v2236 = vadd.f32 %v2222, %v2132
        %v2237 = vadd.f32 %v2223, %v2133
        %v2238 = vadd.f32 %v2224, %v2134
        %v2239 = vadd.f32 %v2225, %v2135
        %v2240 = vmul.f32 %v1353, %v2226
        %v2241 = vmul.f32 %v1357, %v2227
        %v2242 = vmul.f32 %v1361, %v2228
        %v2243 = vmul.f32 %v1365, %v2229
        %v2244 = vmul.f32 %v1369, %v2230
        %v2245 = vmul.f32 %v1373, %v2231
        %v2246 = vmul.f32 %v1377, %v2232
        %v2247 = vmul.f32 %v1381, %v2233
        %v2248 = vmul.f32 %v1385, %v2234
        %v2249 = vmul.f32 %v1389, %v2235
        %v2250 = vmul.f32 %v1393, %v2236
        %v2251 = vmul.f32 %v1397, %v2237
        %v2252 = vmul.f32 %v1401, %v2238
        %v2253 = vmul.f32 %v1405, %v2239
        %v2254 = vperm.slane %v476, 3
        %2263 = vrot.lane.b32.xlu0 %v1823, 108
        %v2264 = vpop.permute.xlu0 %2263
        %2265 = vrot.lane.b32.xlu0 %v1824, 108
        %v2266 = vpop.permute.xlu0 %2265
        %2267 = vrot.lane.b32.xlu0 %v1825, 108
        %v2268 = vpop.permute.xlu0 %2267
        %2269 = vrot.lane.b32.xlu0 %v1826, 108
        %v2270 = vpop.permute.xlu0 %2269
        %2271 = vrot.lane.b32.xlu0 %v1827, 108
        %v2272 = vpop.permute.xlu0 %2271
        %2273 = vrot.lane.b32.xlu0 %v1828, 108
        %v2274 = vpop.permute.xlu0 %2273
        %2275 = vrot.lane.b32.xlu0 %v1829, 108
        %v2276 = vpop.permute.xlu0 %2275
        %2277 = vrot.lane.b32.xlu0 %v1830, 108
        %v2278 = vpop.permute.xlu0 %2277
        %v2288 = vsel %vm1964, %v2240, 0
        %v2291 = vsel %vm1964, %v2241, 0
        %v2294 = vsel %vm1964, %v2242, 0
        %v2297 = vsel %vm1964, %v2243, 0
        %v2300 = vsel %vm1964, %v2244, 0
        %v2303 = vsel %vm1964, %v2245, 0
        %v2306 = vsel %vm1964, %v2246, 0
        %v2309 = vsel %vm1964, %v2247, 0
        %v2312 = vsel %vm1964, %v2248, 0
        %v2315 = vsel %vm1964, %v2249, 0
        %v2318 = vsel %vm1964, %v2250, 0
        %v2321 = vsel %vm1964, %v2251, 0
        %v2324 = vsel %vm1964, %v2252, 0
        %v2327 = vsel %vm1964, %v2253, 0
        %2329 = vmatpush.msra.mxu0 0.0
        %2330 = vmatpush.msra.mxu0 0.0
        %2331 = vmatpush.msra.mxu0 0.0
        %2332 = vmatpush.msra.mxu0 0.0
        %2333 = vmatpush.msra.mxu0 0.0
        %2334 = vmatpush.msra.mxu0 0.0
        %2335 = vmatpush.msra.mxu0 0.0
        %2336 = vmatpush.msra.mxu0 0.0
        %2337 = vmatpush.msra.mxu0 %v2278
        %2338 = vmatpush.msra.mxu0 %v2276
        %2339 = vmatpush.msra.mxu0 %v2274
        %2340 = vmatpush.msra.mxu0 %v2272
        %2341 = vmatpush.msra.mxu0 %v2270
        %2342 = vmatpush.msra.mxu0 %v2268
        %2343 = vmatpush.msra.mxu0 %v2266
        %2344 = vmatpush.msra.mxu0 %v2264
        %2345 = vmatmul.f32.gmra.mxu0 %v2288
        %v2346 = vpop.f32.mrf.mxu0
        %v2347 = vadd.f32 %v2254, %v2346
        %2348 = vmatmul.f32.gmra.mxu0 %v2291
        %v2349 = vpop.f32.mrf.mxu0
        %v2350 = vadd.f32 %v2254, %v2349
        %2351 = vmatmul.f32.gmra.mxu0 %v2294
        %v2352 = vpop.f32.mrf.mxu0
        %v2353 = vadd.f32 %v2254, %v2352
        %2354 = vmatmul.f32.gmra.mxu0 %v2297
        %v2355 = vpop.f32.mrf.mxu0
        %v2356 = vadd.f32 %v2254, %v2355
        %2357 = vmatmul.f32.gmra.mxu0 %v2300
        %v2358 = vpop.f32.mrf.mxu0
        %v2359 = vadd.f32 %v2254, %v2358
        %2360 = vmatmul.f32.gmra.mxu0 %v2303
        %v2361 = vpop.f32.mrf.mxu0
        %v2362 = vadd.f32 %v2254, %v2361
        %2363 = vmatmul.f32.gmra.mxu0 %v2306
        %v2364 = vpop.f32.mrf.mxu0
        %v2365 = vadd.f32 %v2254, %v2364
        %2366 = vmatmul.f32.gmra.mxu0 %v2309
        %v2367 = vpop.f32.mrf.mxu0
        %v2368 = vadd.f32 %v2254, %v2367
        %2369 = vmatmul.f32.gmra.mxu0 %v2312
        %v2370 = vpop.f32.mrf.mxu0
        %v2371 = vadd.f32 %v2254, %v2370
        %2372 = vmatmul.f32.gmra.mxu0 %v2315
        %v2373 = vpop.f32.mrf.mxu0
        %v2374 = vadd.f32 %v2254, %v2373
        %2375 = vmatmul.f32.gmra.mxu0 %v2318
        %v2376 = vpop.f32.mrf.mxu0
        %v2377 = vadd.f32 %v2254, %v2376
        %2378 = vmatmul.f32.gmra.mxu0 %v2321
        %v2379 = vpop.f32.mrf.mxu0
        %v2380 = vadd.f32 %v2254, %v2379
        %2381 = vmatmul.f32.gmra.mxu0 %v2324
        %v2382 = vpop.f32.mrf.mxu0
        %v2383 = vadd.f32 %v2254, %v2382
        %2384 = vmatmul.f32.gmra.mxu0 %v2327
        %v2385 = vpop.f32.mrf.mxu0
        %v2386 = vadd.f32 %v2254, %v2385
        %2387 = vdwg.mxu0
        %vm2388 = vcmp.gt.f32.partialorder %v2347, 0.0
        %vm2389 = vcmp.gt.f32.partialorder %v2350, 0.0
        %vm2390 = vcmp.gt.f32.partialorder %v2353, 0.0
        %vm2391 = vcmp.gt.f32.partialorder %v2356, 0.0
        %vm2392 = vcmp.gt.f32.partialorder %v2359, 0.0
        %vm2393 = vcmp.gt.f32.partialorder %v2362, 0.0
        %vm2394 = vcmp.gt.f32.partialorder %v2365, 0.0
        %vm2395 = vcmp.gt.f32.partialorder %v2368, 0.0
        %vm2396 = vcmp.gt.f32.partialorder %v2371, 0.0
        %vm2397 = vcmp.gt.f32.partialorder %v2374, 0.0
        %vm2398 = vcmp.gt.f32.partialorder %v2377, 0.0
        %vm2399 = vcmp.gt.f32.partialorder %v2380, 0.0
        %vm2400 = vcmp.gt.f32.partialorder %v2383, 0.0
        %vm2401 = vcmp.gt.f32.partialorder %v2386, 0.0
        %v2402 = vmul.f32 %v2347, 0.01
        %v2403 = vmul.f32 %v2350, 0.01
        %v2404 = vmul.f32 %v2353, 0.01
        %v2405 = vmul.f32 %v2356, 0.01
        %v2406 = vmul.f32 %v2359, 0.01
        %v2407 = vmul.f32 %v2362, 0.01
        %v2408 = vmul.f32 %v2365, 0.01
        %v2409 = vmul.f32 %v2368, 0.01
        %v2410 = vmul.f32 %v2371, 0.01
        %v2411 = vmul.f32 %v2374, 0.01
        %v2412 = vmul.f32 %v2377, 0.01
        %v2413 = vmul.f32 %v2380, 0.01
        %v2414 = vmul.f32 %v2383, 0.01
        %v2415 = vmul.f32 %v2386, 0.01
        %v2416 = vsel %vm2388, %v2347, %v2402
        %v2417 = vsel %vm2389, %v2350, %v2403
        %v2418 = vsel %vm2390, %v2353, %v2404
        %v2419 = vsel %vm2391, %v2356, %v2405
        %v2420 = vsel %vm2392, %v2359, %v2406
        %v2421 = vsel %vm2393, %v2362, %v2407
        %v2422 = vsel %vm2394, %v2365, %v2408
        %v2423 = vsel %vm2395, %v2368, %v2409
        %v2424 = vsel %vm2396, %v2371, %v2410
        %v2425 = vsel %vm2397, %v2374, %v2411
        %v2426 = vsel %vm2398, %v2377, %v2412
        %v2427 = vsel %vm2399, %v2380, %v2413
        %v2428 = vsel %vm2400, %v2383, %v2414
        %v2429 = vsel %vm2401, %v2386, %v2415
        %v2430 = vmul.f32 %v1423, %v2416
        %v2431 = vmul.f32 %v1427, %v2417
        %v2432 = vmul.f32 %v1431, %v2418
        %v2433 = vmul.f32 %v1435, %v2419
        %v2434 = vmul.f32 %v1439, %v2420
        %v2435 = vmul.f32 %v1443, %v2421
        %v2436 = vmul.f32 %v1447, %v2422
        %v2437 = vmul.f32 %v1451, %v2423
        %v2438 = vmul.f32 %v1455, %v2424
        %v2439 = vmul.f32 %v1459, %v2425
        %v2440 = vmul.f32 %v1463, %v2426
        %v2441 = vmul.f32 %v1467, %v2427
        %v2442 = vmul.f32 %v1471, %v2428
        %v2443 = vmul.f32 %v1475, %v2429
        %v2444 = vadd.f32 %v2108, %v2430
        %v2445 = vadd.f32 %v2109, %v2431
        %v2446 = vadd.f32 %v2110, %v2432
        %v2447 = vadd.f32 %v2111, %v2433
        %v2448 = vadd.f32 %v2112, %v2434
        %v2449 = vadd.f32 %v2113, %v2435
        %v2450 = vadd.f32 %v2114, %v2436
        %v2451 = vadd.f32 %v2115, %v2437
        %v2452 = vadd.f32 %v2116, %v2438
        %v2453 = vadd.f32 %v2117, %v2439
        %v2454 = vadd.f32 %v2118, %v2440
        %v2455 = vadd.f32 %v2119, %v2441
        %v2456 = vadd.f32 %v2120, %v2442
        %v2457 = vadd.f32 %v2121, %v2443
        %2459 = vset.pattern.permute.xlu0 2
        %2460 = vperm.xlu0 %2459, %v774
        %v2461 = vpop.permute.xlu0 %2460
        %2464 = vset.pattern.permute.xlu0 2
        %2465 = vperm.xlu0 %2464, %v784
        %v2466 = vpop.permute.xlu0 %2465
        %2469 = vset.pattern.permute.xlu0 2
        %2470 = vperm.xlu0 %2469, %v794
        %v2471 = vpop.permute.xlu0 %2470
        %2474 = vset.pattern.permute.xlu0 2
        %2475 = vperm.xlu0 %2474, %v804
        %v2476 = vpop.permute.xlu0 %2475
        %2479 = vset.pattern.permute.xlu0 2
        %2480 = vperm.xlu0 %2479, %v814
        %v2481 = vpop.permute.xlu0 %2480
        %2484 = vset.pattern.permute.xlu0 2
        %2485 = vperm.xlu0 %2484, %v824
        %v2486 = vpop.permute.xlu0 %2485
        %2489 = vset.pattern.permute.xlu0 2
        %2490 = vperm.xlu0 %2489, %v834
        %v2491 = vpop.permute.xlu0 %2490
        %2494 = vset.pattern.permute.xlu0 2
        %2495 = vperm.xlu0 %2494, %v844
        %v2496 = vpop.permute.xlu0 %2495
        %2499 = vset.pattern.permute.xlu0 2
        %2500 = vperm.xlu0 %2499, %v854
        %v2501 = vpop.permute.xlu0 %2500
        %2504 = vset.pattern.permute.xlu0 2
        %2505 = vperm.xlu0 %2504, %v864
        %v2506 = vpop.permute.xlu0 %2505
        %2509 = vset.pattern.permute.xlu0 2
        %2510 = vperm.xlu0 %2509, %v874
        %v2511 = vpop.permute.xlu0 %2510
        %2514 = vset.pattern.permute.xlu0 2
        %2515 = vperm.xlu0 %2514, %v884
        %v2516 = vpop.permute.xlu0 %2515
        %2519 = vset.pattern.permute.xlu0 2
        %2520 = vperm.xlu0 %2519, %v894
        %v2521 = vpop.permute.xlu0 %2520
        %2524 = vset.pattern.permute.xlu0 2
        %2525 = vperm.xlu0 %2524, %v904
        %v2526 = vpop.permute.xlu0 %2525
        %v2528 = vmul.f32 %v2461, %v2444
        %v2529 = vmul.f32 %v2466, %v2445
        %v2530 = vmul.f32 %v2471, %v2446
        %v2531 = vmul.f32 %v2476, %v2447
        %v2532 = vmul.f32 %v2481, %v2448
        %v2533 = vmul.f32 %v2486, %v2449
        %v2534 = vmul.f32 %v2491, %v2450
        %v2535 = vmul.f32 %v2496, %v2451
        %v2536 = vmul.f32 %v2501, %v2452
        %v2537 = vmul.f32 %v2506, %v2453
        %v2538 = vmul.f32 %v2511, %v2454
        %v2539 = vmul.f32 %v2516, %v2455
        %v2540 = vmul.f32 %v2521, %v2456
        %v2541 = vmul.f32 %v2526, %v2457
        %v2543 = vsel %vm520, %v2541, 0
        %2545 = vmatpush.msra.mxu0 0.0
        %2546 = vmatpush.msra.mxu0 0.0
        %2547 = vmatpush.msra.mxu0 %v2543
        %2548 = vmatpush.msra.mxu0 %v2540
        %2549 = vmatpush.msra.mxu0 %v2539
        %2550 = vmatpush.msra.mxu0 %v2538
        %2551 = vmatpush.msra.mxu0 %v2537
        %2552 = vmatpush.msra.mxu0 %v2536
        %2553 = vmatpush.msra.mxu0 %v2535
        %2554 = vmatpush.msra.mxu0 %v2534
        %2555 = vmatpush.msra.mxu0 %v2533
        %2556 = vmatpush.msra.mxu0 %v2532
        %2557 = vmatpush.msra.mxu0 %v2531
        %2558 = vmatpush.msra.mxu0 %v2530
        %2559 = vmatpush.msra.mxu0 %v2529
        %2560 = vmatpush.msra.mxu0 %v2528
        %2561 = vmatmul.f32.gmra.mxu0 %v479
        %v2562 = vpop.f32.mrf.mxu0
        %v2563 = vadd.f32 %v2528, %v2562
        %2564 = vmatmul.f32.gmra.mxu0 %v482
        %v2565 = vpop.f32.mrf.mxu0
        %v2566 = vadd.f32 %v2529, %v2565
        %2567 = vmatmul.f32.gmra.mxu0 %v485
        %v2568 = vpop.f32.mrf.mxu0
        %v2569 = vadd.f32 %v2530, %v2568
        %2570 = vmatmul.f32.gmra.mxu0 %v488
        %v2571 = vpop.f32.mrf.mxu0
        %v2572 = vadd.f32 %v2531, %v2571
        %2573 = vmatmul.f32.gmra.mxu0 %v491
        %v2574 = vpop.f32.mrf.mxu0
        %v2575 = vadd.f32 %v2532, %v2574
        %2576 = vmatmul.f32.gmra.mxu0 %v494
        %v2577 = vpop.f32.mrf.mxu0
        %v2578 = vadd.f32 %v2533, %v2577
        %2579 = vmatmul.f32.gmra.mxu0 %v497
        %v2580 = vpop.f32.mrf.mxu0
        %v2581 = vadd.f32 %v2534, %v2580
        %2582 = vmatmul.f32.gmra.mxu0 %v500
        %v2583 = vpop.f32.mrf.mxu0
        %v2584 = vadd.f32 %v2535, %v2583
        %2585 = vmatmul.f32.gmra.mxu0 %v503
        %v2586 = vpop.f32.mrf.mxu0
        %v2587 = vadd.f32 %v2536, %v2586
        %2588 = vmatmul.f32.gmra.mxu0 %v506
        %v2589 = vpop.f32.mrf.mxu0
        %v2590 = vadd.f32 %v2537, %v2589
        %2591 = vmatmul.f32.gmra.mxu0 %v509
        %v2592 = vpop.f32.mrf.mxu0
        %v2593 = vadd.f32 %v2538, %v2592
        %2594 = vmatmul.f32.gmra.mxu0 %v512
        %v2595 = vpop.f32.mrf.mxu0
        %v2596 = vadd.f32 %v2539, %v2595
        %2597 = vmatmul.f32.gmra.mxu0 %v515
        %v2598 = vpop.f32.mrf.mxu0
        %v2599 = vadd.f32 %v2540, %v2598
        %2600 = vmatmul.f32.gmra.mxu0 %v518
        %v2601 = vpop.f32.mrf.mxu0
        %v2602 = vadd.f32 %v2541, %v2601
        %2603 = vdwg.mxu0
        %v2604 = vmul.f32 %v2461, %v2563
        %v2605 = vmul.f32 %v2466, %v2566
        %v2606 = vmul.f32 %v2471, %v2569
        %v2607 = vmul.f32 %v2476, %v2572
        %v2608 = vmul.f32 %v2481, %v2575
        %v2609 = vmul.f32 %v2486, %v2578
        %v2610 = vmul.f32 %v2491, %v2581
        %v2611 = vmul.f32 %v2496, %v2584
        %v2612 = vmul.f32 %v2501, %v2587
        %v2613 = vmul.f32 %v2506, %v2590
        %v2614 = vmul.f32 %v2511, %v2593
        %v2615 = vmul.f32 %v2516, %v2596
        %v2616 = vmul.f32 %v2521, %v2599
        %v2617 = vmul.f32 %v2526, %v2602
        %v2618 = vld [vmem:[#allocation7] sm:$0xff]
        %v2619 = vld [vmem:[#allocation7 + $0x8] sm:$0xff]
        %v2620 = vld [vmem:[#allocation7 + $0x10] sm:$0xf]
        %v2621 = vperm.slane %v476, 4
        %vm2622 = vcmask 162816
        %v2624 = vsel %vm2622, %v2604, 0
        %v2627 = vsel %vm2622, %v2605, 0
        %v2630 = vsel %vm2622, %v2606, 0
        %v2633 = vsel %vm2622, %v2607, 0
        %v2636 = vsel %vm2622, %v2608, 0
        %v2639 = vsel %vm2622, %v2609, 0
        %v2642 = vsel %vm2622, %v2610, 0
        %v2645 = vsel %vm2622, %v2611, 0
        %v2648 = vsel %vm2622, %v2612, 0
        %v2651 = vsel %vm2622, %v2613, 0
        %v2654 = vsel %vm2622, %v2614, 0
        %v2657 = vsel %vm2622, %v2615, 0
        %v2660 = vsel %vm2622, %v2616, 0
        %v2663 = vsel %vm2622, %v2617, 0
        %vm2665 = vcmask 1043456
        %v2667 = vsel %vm2665, %v2620, 0
        %2669 = vmatpush.msra.mxu0 0.0
        %2670 = vmatpush.msra.mxu0 0.0
        %2671 = vmatpush.msra.mxu0 0.0
        %2672 = vmatpush.msra.mxu0 0.0
        %2673 = vmatpush.msra.mxu0 0.0
        %2674 = vmatpush.msra.mxu0 0.0
        %2675 = vmatpush.msra.mxu0 0.0
        %2676 = vmatpush.msra.mxu0 0.0
        %2677 = vmatpush.msra.mxu0 0.0
        %2678 = vmatpush.msra.mxu0 0.0
        %2679 = vmatpush.msra.mxu0 0.0
        %2680 = vmatpush.msra.mxu0 0.0
        %2681 = vmatpush.msra.mxu0 0.0
        %2682 = vmatpush.msra.mxu0 %v2667
        %2683 = vmatpush.msra.mxu0 %v2619
        %2684 = vmatpush.msra.mxu0 %v2618
        %2685 = vmatmul.f32.gmra.mxu0 %v2624
        %v2686 = vpop.f32.mrf.mxu0
        %v2687 = vadd.f32 %v2621, %v2686
        %2688 = vmatmul.f32.gmra.mxu0 %v2627
        %v2689 = vpop.f32.mrf.mxu0
        %v2690 = vadd.f32 %v2621, %v2689
        %2691 = vmatmul.f32.gmra.mxu0 %v2630
        %v2692 = vpop.f32.mrf.mxu0
        %v2693 = vadd.f32 %v2621, %v2692
        %2694 = vmatmul.f32.gmra.mxu0 %v2633
        %v2695 = vpop.f32.mrf.mxu0
        %v2696 = vadd.f32 %v2621, %v2695
        %2697 = vmatmul.f32.gmra.mxu0 %v2636
        %v2698 = vpop.f32.mrf.mxu0
        %v2699 = vadd.f32 %v2621, %v2698
        %2700 = vmatmul.f32.gmra.mxu0 %v2639
        %v2701 = vpop.f32.mrf.mxu0
        %v2702 = vadd.f32 %v2621, %v2701
        %2703 = vmatmul.f32.gmra.mxu0 %v2642
        %v2704 = vpop.f32.mrf.mxu0
        %v2705 = vadd.f32 %v2621, %v2704
        %2706 = vmatmul.f32.gmra.mxu0 %v2645
        %v2707 = vpop.f32.mrf.mxu0
        %v2708 = vadd.f32 %v2621, %v2707
        %2709 = vmatmul.f32.gmra.mxu0 %v2648
        %v2710 = vpop.f32.mrf.mxu0
        %v2711 = vadd.f32 %v2621, %v2710
        %2712 = vmatmul.f32.gmra.mxu0 %v2651
        %v2713 = vpop.f32.mrf.mxu0
        %v2714 = vadd.f32 %v2621, %v2713
        %2715 = vmatmul.f32.gmra.mxu0 %v2654
        %v2716 = vpop.f32.mrf.mxu0
        %v2717 = vadd.f32 %v2621, %v2716
        %2718 = vmatmul.f32.gmra.mxu0 %v2657
        %v2719 = vpop.f32.mrf.mxu0
        %v2720 = vadd.f32 %v2621, %v2719
        %2721 = vmatmul.f32.gmra.mxu0 %v2660
        %v2722 = vpop.f32.mrf.mxu0
        %v2723 = vadd.f32 %v2621, %v2722
        %2724 = vmatmul.f32.gmra.mxu0 %v2663
        %v2725 = vpop.f32.mrf.mxu0
        %v2726 = vadd.f32 %v2621, %v2725
        %2727 = vdwg.mxu0
        %vm2728 = vcmp.gt.f32.partialorder %v2687, 0.0
        %vm2729 = vcmp.gt.f32.partialorder %v2690, 0.0
        %vm2730 = vcmp.gt.f32.partialorder %v2693, 0.0
        %vm2731 = vcmp.gt.f32.partialorder %v2696, 0.0
        %vm2732 = vcmp.gt.f32.partialorder %v2699, 0.0
        %vm2733 = vcmp.gt.f32.partialorder %v2702, 0.0
        %vm2734 = vcmp.gt.f32.partialorder %v2705, 0.0
        %vm2735 = vcmp.gt.f32.partialorder %v2708, 0.0
        %vm2736 = vcmp.gt.f32.partialorder %v2711, 0.0
        %vm2737 = vcmp.gt.f32.partialorder %v2714, 0.0
        %vm2738 = vcmp.gt.f32.partialorder %v2717, 0.0
        %vm2739 = vcmp.gt.f32.partialorder %v2720, 0.0
        %vm2740 = vcmp.gt.f32.partialorder %v2723, 0.0
        %vm2741 = vcmp.gt.f32.partialorder %v2726, 0.0
        %v2742 = vmul.f32 %v2687, 0.01
        %v2743 = vmul.f32 %v2690, 0.01
        %v2744 = vmul.f32 %v2693, 0.01
        %v2745 = vmul.f32 %v2696, 0.01
        %v2746 = vmul.f32 %v2699, 0.01
        %v2747 = vmul.f32 %v2702, 0.01
        %v2748 = vmul.f32 %v2705, 0.01
        %v2749 = vmul.f32 %v2708, 0.01
        %v2750 = vmul.f32 %v2711, 0.01
        %v2751 = vmul.f32 %v2714, 0.01
        %v2752 = vmul.f32 %v2717, 0.01
        %v2753 = vmul.f32 %v2720, 0.01
        %v2754 = vmul.f32 %v2723, 0.01
        %v2755 = vmul.f32 %v2726, 0.01
        %v2756 = vsel %vm2728, %v2687, %v2742
        %v2757 = vsel %vm2729, %v2690, %v2743
        %v2758 = vsel %vm2730, %v2693, %v2744
        %v2759 = vsel %vm2731, %v2696, %v2745
        %v2760 = vsel %vm2732, %v2699, %v2746
        %v2761 = vsel %vm2733, %v2702, %v2747
        %v2762 = vsel %vm2734, %v2705, %v2748
        %v2763 = vsel %vm2735, %v2708, %v2749
        %v2764 = vsel %vm2736, %v2711, %v2750
        %v2765 = vsel %vm2737, %v2714, %v2751
        %v2766 = vsel %vm2738, %v2717, %v2752
        %v2767 = vsel %vm2739, %v2720, %v2753
        %v2768 = vsel %vm2740, %v2723, %v2754
        %v2769 = vsel %vm2741, %v2726, %v2755
        %v2770 = vld [vmem:[%s7] sm:$0xff]
        %v2771 = vld [vmem:[%s7 + $0x8] sm:$0xff]
        %v2772 = vld [vmem:[%s7 + $0x10] sm:$0xf]
        %v2774 = vsel %vm520, %v2769, 0
        %2776 = vmatpush.msra.mxu0 0.0
        %2777 = vmatpush.msra.mxu0 0.0
        %2778 = vmatpush.msra.mxu0 %v2774
        %2779 = vmatpush.msra.mxu0 %v2768
        %2780 = vmatpush.msra.mxu0 %v2767
        %2781 = vmatpush.msra.mxu0 %v2766
        %2782 = vmatpush.msra.mxu0 %v2765
        %2783 = vmatpush.msra.mxu0 %v2764
        %2784 = vmatpush.msra.mxu0 %v2763
        %2785 = vmatpush.msra.mxu0 %v2762
        %2786 = vmatpush.msra.mxu0 %v2761
        %2787 = vmatpush.msra.mxu0 %v2760
        %2788 = vmatpush.msra.mxu0 %v2759
        %2789 = vmatpush.msra.mxu0 %v2758
        %2790 = vmatpush.msra.mxu0 %v2757
        %2791 = vmatpush.msra.mxu0 %v2756
        %2792 = vmatmul.f32.gmra.mxu0 %v479
        %v2793 = vpop.f32.mrf.mxu0
        %v2794 = vadd.f32 0.0, %v2793
        %2795 = vmatmul.f32.gmra.mxu0 %v482
        %v2796 = vpop.f32.mrf.mxu0
        %v2797 = vadd.f32 0.0, %v2796
        %2798 = vmatmul.f32.gmra.mxu0 %v485
        %v2799 = vpop.f32.mrf.mxu0
        %v2800 = vadd.f32 0.0, %v2799
        %2801 = vmatmul.f32.gmra.mxu0 %v488
        %v2802 = vpop.f32.mrf.mxu0
        %v2803 = vadd.f32 0.0, %v2802
        %2804 = vmatmul.f32.gmra.mxu0 %v491
        %v2805 = vpop.f32.mrf.mxu0
        %v2806 = vadd.f32 0.0, %v2805
        %2807 = vmatmul.f32.gmra.mxu0 %v494
        %v2808 = vpop.f32.mrf.mxu0
        %v2809 = vadd.f32 0.0, %v2808
        %2810 = vmatmul.f32.gmra.mxu0 %v497
        %v2811 = vpop.f32.mrf.mxu0
        %v2812 = vadd.f32 0.0, %v2811
        %2813 = vmatmul.f32.gmra.mxu0 %v500
        %v2814 = vpop.f32.mrf.mxu0
        %v2815 = vadd.f32 0.0, %v2814
        %2816 = vmatmul.f32.gmra.mxu0 %v503
        %v2817 = vpop.f32.mrf.mxu0
        %v2818 = vadd.f32 0.0, %v2817
        %2819 = vmatmul.f32.gmra.mxu0 %v506
        %v2820 = vpop.f32.mrf.mxu0
        %v2821 = vadd.f32 0.0, %v2820
        %2822 = vmatmul.f32.gmra.mxu0 %v509
        %v2823 = vpop.f32.mrf.mxu0
        %v2824 = vadd.f32 0.0, %v2823
        %2825 = vmatmul.f32.gmra.mxu0 %v512
        %v2826 = vpop.f32.mrf.mxu0
        %v2827 = vadd.f32 0.0, %v2826
        %2828 = vmatmul.f32.gmra.mxu0 %v515
        %v2829 = vpop.f32.mrf.mxu0
        %v2830 = vadd.f32 0.0, %v2829
        %2831 = vmatmul.f32.gmra.mxu0 %v518
        %v2832 = vpop.f32.mrf.mxu0
        %v2833 = vadd.f32 0.0, %v2832
        %2834 = vdwg.mxu0
        %2838 = vrot.lane.b32.xlu0 %v2770, 127
        %v2839 = vpop.permute.xlu0 %2838
        %2840 = vrot.lane.b32.xlu0 %v2771, 127
        %v2841 = vpop.permute.xlu0 %2840
        %2842 = vrot.lane.b32.xlu0 %v2772, 127
        %v2843 = vpop.permute.xlu0 %2842
        %v2847 = vsel %vm2622, %v2756, 0
        %v2850 = vsel %vm2622, %v2757, 0
        %v2853 = vsel %vm2622, %v2758, 0
        %v2856 = vsel %vm2622, %v2759, 0
        %v2859 = vsel %vm2622, %v2760, 0
        %v2862 = vsel %vm2622, %v2761, 0
        %v2865 = vsel %vm2622, %v2762, 0
        %v2868 = vsel %vm2622, %v2763, 0
        %v2871 = vsel %vm2622, %v2764, 0
        %v2874 = vsel %vm2622, %v2765, 0
        %v2877 = vsel %vm2622, %v2766, 0
        %v2880 = vsel %vm2622, %v2767, 0
        %v2883 = vsel %vm2622, %v2768, 0
        %v2885 = vsel %vm2622, %v2769, 0
        %v2887 = vsel %vm2665, %v2843, 0
        %2889 = vmatpush.msra.mxu0 0.0
        %2890 = vmatpush.msra.mxu0 0.0
        %2891 = vmatpush.msra.mxu0 0.0
        %2892 = vmatpush.msra.mxu0 0.0
        %2893 = vmatpush.msra.mxu0 0.0
        %2894 = vmatpush.msra.mxu0 0.0
        %2895 = vmatpush.msra.mxu0 0.0
        %2896 = vmatpush.msra.mxu0 0.0
        %2897 = vmatpush.msra.mxu0 0.0
        %2898 = vmatpush.msra.mxu0 0.0
        %2899 = vmatpush.msra.mxu0 0.0
        %2900 = vmatpush.msra.mxu0 0.0
        %2901 = vmatpush.msra.mxu0 0.0
        %2902 = vmatpush.msra.mxu0 %v2887
        %2903 = vmatpush.msra.mxu0 %v2841
        %2904 = vmatpush.msra.mxu0 %v2839
        %2905 = vmatmul.f32.gmra.mxu0 %v2847
        %v2906 = vpop.f32.mrf.mxu0
        %v2907 = vadd.f32 0.0, %v2906
        %2908 = vmatmul.f32.gmra.mxu0 %v2850
        %v2909 = vpop.f32.mrf.mxu0
        %v2910 = vadd.f32 0.0, %v2909
        %2911 = vmatmul.f32.gmra.mxu0 %v2853
        %v2912 = vpop.f32.mrf.mxu0
        %v2913 = vadd.f32 0.0, %v2912
        %2914 = vmatmul.f32.gmra.mxu0 %v2856
        %v2915 = vpop.f32.mrf.mxu0
        %v2916 = vadd.f32 0.0, %v2915
        %2917 = vmatmul.f32.gmra.mxu0 %v2859
        %v2918 = vpop.f32.mrf.mxu0
        %v2919 = vadd.f32 0.0, %v2918
        %2920 = vmatmul.f32.gmra.mxu0 %v2862
        %v2921 = vpop.f32.mrf.mxu0
        %v2922 = vadd.f32 0.0, %v2921
        %2923 = vmatmul.f32.gmra.mxu0 %v2865
        %v2924 = vpop.f32.mrf.mxu0
        %v2925 = vadd.f32 0.0, %v2924
        %2926 = vmatmul.f32.gmra.mxu0 %v2868
        %v2927 = vpop.f32.mrf.mxu0
        %v2928 = vadd.f32 0.0, %v2927
        %2929 = vmatmul.f32.gmra.mxu0 %v2871
        %v2930 = vpop.f32.mrf.mxu0
        %v2931 = vadd.f32 0.0, %v2930
        %2932 = vmatmul.f32.gmra.mxu0 %v2874
        %v2933 = vpop.f32.mrf.mxu0
        %v2934 = vadd.f32 0.0, %v2933
        %2935 = vmatmul.f32.gmra.mxu0 %v2877
        %v2936 = vpop.f32.mrf.mxu0
        %v2937 = vadd.f32 0.0, %v2936
        %2938 = vmatmul.f32.gmra.mxu0 %v2880
        %v2939 = vpop.f32.mrf.mxu0
        %v2940 = vadd.f32 0.0, %v2939
        %2941 = vmatmul.f32.gmra.mxu0 %v2883
        %v2942 = vpop.f32.mrf.mxu0
        %v2943 = vadd.f32 0.0, %v2942
        %2944 = vmatmul.f32.gmra.mxu0 %v2885
        %v2945 = vpop.f32.mrf.mxu0
        %v2946 = vadd.f32 0.0, %v2945
        %2947 = vdwg.mxu0
        %v2949 = vsel %vm2622, %v2794, 0
        %v2952 = vsel %vm2622, %v2797, 0
        %v2955 = vsel %vm2622, %v2800, 0
        %v2958 = vsel %vm2622, %v2803, 0
        %v2961 = vsel %vm2622, %v2806, 0
        %v2964 = vsel %vm2622, %v2809, 0
        %v2967 = vsel %vm2622, %v2812, 0
        %v2970 = vsel %vm2622, %v2815, 0
        %v2973 = vsel %vm2622, %v2818, 0
        %v2976 = vsel %vm2622, %v2821, 0
        %v2979 = vsel %vm2622, %v2824, 0
        %v2982 = vsel %vm2622, %v2827, 0
        %v2985 = vsel %vm2622, %v2830, 0
        %v2988 = vsel %vm2622, %v2833, 0
        %v2990 = vsel %vm2665, %v2772, 0
        %2992 = vmatpush.msra.mxu0 0.0
        %2993 = vmatpush.msra.mxu0 0.0
        %2994 = vmatpush.msra.mxu0 0.0
        %2995 = vmatpush.msra.mxu0 0.0
        %2996 = vmatpush.msra.mxu0 0.0
        %2997 = vmatpush.msra.mxu0 0.0
        %2998 = vmatpush.msra.mxu0 0.0
        %2999 = vmatpush.msra.mxu0 0.0
        %3000 = vmatpush.msra.mxu0 0.0
        %3001 = vmatpush.msra.mxu0 0.0
        %3002 = vmatpush.msra.mxu0 0.0
        %3003 = vmatpush.msra.mxu0 0.0
        %3004 = vmatpush.msra.mxu0 0.0
        %3005 = vmatpush.msra.mxu0 %v2990
        %3006 = vmatpush.msra.mxu0 %v2771
        %3007 = vmatpush.msra.mxu0 %v2770
        %3008 = vmatmul.f32.gmra.mxu0 %v2949
        %v3009 = vpop.f32.mrf.mxu0
        %v3010 = vadd.f32 %v2907, %v3009
        %3011 = vmatmul.f32.gmra.mxu0 %v2952
        %v3012 = vpop.f32.mrf.mxu0
        %v3013 = vadd.f32 %v2910, %v3012
        %3014 = vmatmul.f32.gmra.mxu0 %v2955
        %v3015 = vpop.f32.mrf.mxu0
        %v3016 = vadd.f32 %v2913, %v3015
        %3017 = vmatmul.f32.gmra.mxu0 %v2958
        %v3018 = vpop.f32.mrf.mxu0
        %v3019 = vadd.f32 %v2916, %v3018
        %3020 = vmatmul.f32.gmra.mxu0 %v2961
        %v3021 = vpop.f32.mrf.mxu0
        %v3022 = vadd.f32 %v2919, %v3021
        %3023 = vmatmul.f32.gmra.mxu0 %v2964
        %v3024 = vpop.f32.mrf.mxu0
        %v3025 = vadd.f32 %v2922, %v3024
        %3026 = vmatmul.f32.gmra.mxu0 %v2967
        %v3027 = vpop.f32.mrf.mxu0
        %v3028 = vadd.f32 %v2925, %v3027
        %3029 = vmatmul.f32.gmra.mxu0 %v2970
        %v3030 = vpop.f32.mrf.mxu0
        %v3031 = vadd.f32 %v2928, %v3030
        %3032 = vmatmul.f32.gmra.mxu0 %v2973
        %v3033 = vpop.f32.mrf.mxu0
        %v3034 = vadd.f32 %v2931, %v3033
        %3035 = vmatmul.f32.gmra.mxu0 %v2976
        %v3036 = vpop.f32.mrf.mxu0
        %v3037 = vadd.f32 %v2934, %v3036
        %3038 = vmatmul.f32.gmra.mxu0 %v2979
        %v3039 = vpop.f32.mrf.mxu0
        %v3040 = vadd.f32 %v2937, %v3039
        %3041 = vmatmul.f32.gmra.mxu0 %v2982
        %v3042 = vpop.f32.mrf.mxu0
        %v3043 = vadd.f32 %v2940, %v3042
        %3044 = vmatmul.f32.gmra.mxu0 %v2985
        %v3045 = vpop.f32.mrf.mxu0
        %v3046 = vadd.f32 %v2943, %v3045
        %3047 = vmatmul.f32.gmra.mxu0 %v2988
        %v3048 = vpop.f32.mrf.mxu0
        %v3049 = vadd.f32 %v2946, %v3048
        %3050 = vdwg.mxu0
        %v3051 = vperm.slane %v476, 5
        %v3052 = vadd.f32 %v3010, %v3051
        %v3053 = vadd.f32 %v3013, %v3051
        %v3054 = vadd.f32 %v3016, %v3051
        %v3055 = vadd.f32 %v3019, %v3051
        %v3056 = vadd.f32 %v3022, %v3051
        %v3057 = vadd.f32 %v3025, %v3051
        %v3058 = vadd.f32 %v3028, %v3051
        %v3059 = vadd.f32 %v3031, %v3051
        %v3060 = vadd.f32 %v3034, %v3051
        %v3061 = vadd.f32 %v3037, %v3051
        %v3062 = vadd.f32 %v3040, %v3051
        %v3063 = vadd.f32 %v3043, %v3051
        %v3064 = vadd.f32 %v3046, %v3051
        %v3065 = vadd.f32 %v3049, %v3051
        %v3066 = vlaneseq
        %v3067 = vshrl.u32 %v3066, 7
        %v3068 = vadd.s32 %v3067, 8
        %v3069 = vadd.s32 %v3067, 16
        %v3070 = vadd.s32 %v3067, 24
        %v3071 = vadd.s32 %v3067, 32
        %v3072 = vadd.s32 %v3067, 40
        %v3073 = vadd.s32 %v3067, 48
        %v3074 = vadd.s32 %v3067, 56
        %v3075 = vadd.s32 %v3067, 64
        %v3076 = vadd.s32 %v3067, 72
        %v3077 = vadd.s32 %v3067, 80
        %v3078 = vadd.s32 %v3067, 88
        %v3079 = vadd.s32 %v3067, 96
        %v3080 = vadd.s32 %v3067, 104
        %v3081 = vlaneseq
        %v3082 = vand.u32 %v3081, 127
        %3084 = vset.pattern.permute.xlu0 0
        %3085 = vperm.xlu0 %3084, %v3052
        %v3086 = vpop.permute.xlu0 %3085
        %3089 = vset.pattern.permute.xlu0 0
        %3090 = vperm.xlu0 %3089, %v3053
        %v3091 = vpop.permute.xlu0 %3090
        %3094 = vset.pattern.permute.xlu0 0
        %3095 = vperm.xlu0 %3094, %v3054
        %v3096 = vpop.permute.xlu0 %3095
        %3099 = vset.pattern.permute.xlu0 0
        %3100 = vperm.xlu0 %3099, %v3055
        %v3101 = vpop.permute.xlu0 %3100
        %3104 = vset.pattern.permute.xlu0 0
        %3105 = vperm.xlu0 %3104, %v3056
        %v3106 = vpop.permute.xlu0 %3105
        %3109 = vset.pattern.permute.xlu0 0
        %3110 = vperm.xlu0 %3109, %v3057
        %v3111 = vpop.permute.xlu0 %3110
        %3114 = vset.pattern.permute.xlu0 0
        %3115 = vperm.xlu0 %3114, %v3058
        %v3116 = vpop.permute.xlu0 %3115
        %3119 = vset.pattern.permute.xlu0 0
        %3120 = vperm.xlu0 %3119, %v3059
        %v3121 = vpop.permute.xlu0 %3120
        %3124 = vset.pattern.permute.xlu0 0
        %3125 = vperm.xlu0 %3124, %v3060
        %v3126 = vpop.permute.xlu0 %3125
        %3129 = vset.pattern.permute.xlu0 0
        %3130 = vperm.xlu0 %3129, %v3061
        %v3131 = vpop.permute.xlu0 %3130
        %3134 = vset.pattern.permute.xlu0 0
        %3135 = vperm.xlu0 %3134, %v3062
        %v3136 = vpop.permute.xlu0 %3135
        %3139 = vset.pattern.permute.xlu0 0
        %3140 = vperm.xlu0 %3139, %v3063
        %v3141 = vpop.permute.xlu0 %3140
        %3144 = vset.pattern.permute.xlu0 0
        %3145 = vperm.xlu0 %3144, %v3064
        %v3146 = vpop.permute.xlu0 %3145
        %3149 = vset.pattern.permute.xlu0 0
        %3150 = vperm.xlu0 %3149, %v3065
        %v3151 = vpop.permute.xlu0 %3150
        %vm3153 = vcmask 7168
        %v3155 = vsel %vm3153, 1.0, 0
        %v3157 = vsel %vm3153, %v3052, 0
        %v3159 = vsel %vm3153, %v3053, 0
        %v3161 = vsel %vm3153, %v3054, 0
        %v3163 = vsel %vm3153, %v3055, 0
        %v3165 = vsel %vm3153, %v3056, 0
        %v3167 = vsel %vm3153, %v3057, 0
        %v3169 = vsel %vm3153, %v3058, 0
        %v3171 = vsel %vm3153, %v3059, 0
        %v3173 = vsel %vm3153, %v3060, 0
        %v3175 = vsel %vm3153, %v3061, 0
        %v3177 = vsel %vm3153, %v3062, 0
        %v3179 = vsel %vm3153, %v3063, 0
        %v3181 = vsel %vm3153, %v3064, 0
        %v3183 = vsel %vm3153, %v3065, 0
        %3185 = vmatpush.xpose.msra.mxu0 0.0
        %3186 = vmatpush.xpose.msra.mxu0 0.0
        %3187 = vmatpush.xpose.msra.mxu0 %v3183
        %3188 = vmatpush.xpose.msra.mxu0 %v3181
        %3189 = vmatpush.xpose.msra.mxu0 %v3179
        %3190 = vmatpush.xpose.msra.mxu0 %v3177
        %3191 = vmatpush.xpose.msra.mxu0 %v3175
        %3192 = vmatpush.xpose.msra.mxu0 %v3173
        %3193 = vmatpush.xpose.msra.mxu0 %v3171
        %3194 = vmatpush.xpose.msra.mxu0 %v3169
        %3195 = vmatpush.xpose.msra.mxu0 %v3167
        %3196 = vmatpush.xpose.msra.mxu0 %v3165
        %3197 = vmatpush.xpose.msra.mxu0 %v3163
        %3198 = vmatpush.xpose.msra.mxu0 %v3161
        %3199 = vmatpush.xpose.msra.mxu0 %v3159
        %3200 = vmatpush.xpose.msra.mxu0 %v3157
        %3201 = vmatmul.f32.gmra.mxu0 %v3155
        %v3202 = vpop.f32.mrf.mxu0
        %v3203 = vadd.f32 0.0, %v3202
        %3204 = vmatmul.f32.gmra.mxu0 %v3155
        %v3205 = vpop.f32.mrf.mxu0
        %v3206 = vadd.f32 0.0, %v3205
        %3207 = vmatmul.f32.gmra.mxu0 %v3155
        %v3208 = vpop.f32.mrf.mxu0
        %v3209 = vadd.f32 0.0, %v3208
        %3210 = vmatmul.f32.gmra.mxu0 %v3155
        %v3211 = vpop.f32.mrf.mxu0
        %v3212 = vadd.f32 0.0, %v3211
        %3213 = vmatmul.f32.gmra.mxu0 %v3155
        %v3214 = vpop.f32.mrf.mxu0
        %v3215 = vadd.f32 0.0, %v3214
        %3216 = vmatmul.f32.gmra.mxu0 %v3155
        %v3217 = vpop.f32.mrf.mxu0
        %v3218 = vadd.f32 0.0, %v3217
        %3219 = vmatmul.f32.gmra.mxu0 %v3155
        %v3220 = vpop.f32.mrf.mxu0
        %v3221 = vadd.f32 0.0, %v3220
        %3222 = vmatmul.f32.gmra.mxu0 %v3155
        %v3223 = vpop.f32.mrf.mxu0
        %v3224 = vadd.f32 0.0, %v3223
        %3225 = vmatmul.f32.gmra.mxu0 %v3155
        %v3226 = vpop.f32.mrf.mxu0
        %v3227 = vadd.f32 0.0, %v3226
        %3228 = vmatmul.f32.gmra.mxu0 %v3155
        %v3229 = vpop.f32.mrf.mxu0
        %v3230 = vadd.f32 0.0, %v3229
        %3231 = vmatmul.f32.gmra.mxu0 %v3155
        %v3232 = vpop.f32.mrf.mxu0
        %v3233 = vadd.f32 0.0, %v3232
        %3234 = vmatmul.f32.gmra.mxu0 %v3155
        %v3235 = vpop.f32.mrf.mxu0
        %v3236 = vadd.f32 0.0, %v3235
        %3237 = vmatmul.f32.gmra.mxu0 %v3155
        %v3238 = vpop.f32.mrf.mxu0
        %v3239 = vadd.f32 0.0, %v3238
        %3240 = vmatmul.f32.gmra.mxu0 %v3155
        %v3241 = vpop.f32.mrf.mxu0
        %v3242 = vadd.f32 0.0, %v3241
        %3243 = vdwg.mxu0
        %vm3244 = vcmp.gt.f32.partialorder %v3203, %v3086
        %vm3245 = vcmp.gt.f32.partialorder %v3206, %v3091
        %vm3246 = vcmp.gt.f32.partialorder %v3209, %v3096
        %vm3247 = vcmp.gt.f32.partialorder %v3212, %v3101
        %vm3248 = vcmp.gt.f32.partialorder %v3215, %v3106
        %vm3249 = vcmp.gt.f32.partialorder %v3218, %v3111
        %vm3250 = vcmp.gt.f32.partialorder %v3221, %v3116
        %vm3251 = vcmp.gt.f32.partialorder %v3224, %v3121
        %vm3252 = vcmp.gt.f32.partialorder %v3227, %v3126
        %vm3253 = vcmp.gt.f32.partialorder %v3230, %v3131
        %vm3254 = vcmp.gt.f32.partialorder %v3233, %v3136
        %vm3255 = vcmp.gt.f32.partialorder %v3236, %v3141
        %vm3256 = vcmp.gt.f32.partialorder %v3239, %v3146
        %vm3257 = vcmp.gt.f32.partialorder %v3242, %v3151
        %vm3258 = vcmp.eq.f32.partialorder %v3203, %v3086
        %vm3259 = vcmp.eq.f32.partialorder %v3206, %v3091
        %vm3260 = vcmp.eq.f32.partialorder %v3209, %v3096
        %vm3261 = vcmp.eq.f32.partialorder %v3212, %v3101
        %vm3262 = vcmp.eq.f32.partialorder %v3215, %v3106
        %vm3263 = vcmp.eq.f32.partialorder %v3218, %v3111
        %vm3264 = vcmp.eq.f32.partialorder %v3221, %v3116
        %vm3265 = vcmp.eq.f32.partialorder %v3224, %v3121
        %vm3266 = vcmp.eq.f32.partialorder %v3227, %v3126
        %vm3267 = vcmp.eq.f32.partialorder %v3230, %v3131
        %vm3268 = vcmp.eq.f32.partialorder %v3233, %v3136
        %vm3269 = vcmp.eq.f32.partialorder %v3236, %v3141
        %vm3270 = vcmp.eq.f32.partialorder %v3239, %v3146
        %vm3271 = vcmp.eq.f32.partialorder %v3242, %v3151
        %vm3272 = vcmp.lt.s32.totalorder %v3082, %v3067
        %vm3273 = vcmp.lt.s32.totalorder %v3082, %v3068
        %vm3274 = vcmp.lt.s32.totalorder %v3082, %v3069
        %vm3275 = vcmp.lt.s32.totalorder %v3082, %v3070
        %vm3276 = vcmp.lt.s32.totalorder %v3082, %v3071
        %vm3277 = vcmp.lt.s32.totalorder %v3082, %v3072
        %vm3278 = vcmp.lt.s32.totalorder %v3082, %v3073
        %vm3279 = vcmp.lt.s32.totalorder %v3082, %v3074
        %vm3280 = vcmp.lt.s32.totalorder %v3082, %v3075
        %vm3281 = vcmp.lt.s32.totalorder %v3082, %v3076
        %vm3282 = vcmp.lt.s32.totalorder %v3082, %v3077
        %vm3283 = vcmp.lt.s32.totalorder %v3082, %v3078
        %vm3284 = vcmp.lt.s32.totalorder %v3082, %v3079
        %vm3285 = vcmp.lt.s32.totalorder %v3082, %v3080
        %vm3286 = vmand %vm3258, %vm3272
        %vm3287 = vmand %vm3259, %vm3273
        %vm3288 = vmand %vm3260, %vm3274
        %vm3289 = vmand %vm3261, %vm3275
        %vm3290 = vmand %vm3262, %vm3276
        %vm3291 = vmand %vm3263, %vm3277
        %vm3292 = vmand %vm3264, %vm3278
        %vm3293 = vmand %vm3265, %vm3279
        %vm3294 = vmand %vm3266, %vm3280
        %vm3295 = vmand %vm3267, %vm3281
        %vm3296 = vmand %vm3268, %vm3282
        %vm3297 = vmand %vm3269, %vm3283
        %vm3298 = vmand %vm3270, %vm3284
        %vm3299 = vmand %vm3271, %vm3285
        %vm3300 = vmor %vm3244, %vm3286
        %vm3301 = vmor %vm3245, %vm3287
        %vm3302 = vmor %vm3246, %vm3288
        %vm3303 = vmor %vm3247, %vm3289
        %vm3304 = vmor %vm3248, %vm3290
        %vm3305 = vmor %vm3249, %vm3291
        %vm3306 = vmor %vm3250, %vm3292
        %vm3307 = vmor %vm3251, %vm3293
        %vm3308 = vmor %vm3252, %vm3294
        %vm3309 = vmor %vm3253, %vm3295
        %vm3310 = vmor %vm3254, %vm3296
        %vm3311 = vmor %vm3255, %vm3297
        %vm3312 = vmor %vm3256, %vm3298
        %vm3313 = vmor %vm3257, %vm3299
        %v3314 = vsel %vm3300, 1, 0
        %v3315 = vsel %vm3301, 1, 0
        %v3316 = vsel %vm3302, 1, 0
        %v3317 = vsel %vm3303, 1, 0
        %v3318 = vsel %vm3304, 1, 0
        %v3319 = vsel %vm3305, 1, 0
        %v3320 = vsel %vm3306, 1, 0
        %v3321 = vsel %vm3307, 1, 0
        %v3322 = vsel %vm3308, 1, 0
        %v3323 = vsel %vm3309, 1, 0
        %v3324 = vsel %vm3310, 1, 0
        %v3325 = vsel %vm3311, 1, 0
        %v3326 = vsel %vm3312, 1, 0
        %v3327 = vsel %vm3313, 1, 0
        %v3328 = vcvt.s32.f32 %v3314
        %v3329 = vcvt.s32.f32 %v3315
        %v3330 = vcvt.s32.f32 %v3316
        %v3331 = vcvt.s32.f32 %v3317
        %v3332 = vcvt.s32.f32 %v3318
        %v3333 = vcvt.s32.f32 %v3319
        %v3334 = vcvt.s32.f32 %v3320
        %v3335 = vcvt.s32.f32 %v3321
        %v3336 = vcvt.s32.f32 %v3322
        %v3337 = vcvt.s32.f32 %v3323
        %v3338 = vcvt.s32.f32 %v3324
        %v3339 = vcvt.s32.f32 %v3325
        %v3340 = vcvt.s32.f32 %v3326
        %v3341 = vcvt.s32.f32 %v3327
        %v3342 = vsel %vm477, %v3328, 0.0
        %3343 = vadd.xlane.f32.xlu0 %v3342
        %v3344 = vpop.xlane.xlu0 %3343
        %v3345 = vsel %vm477, %v3329, 0.0
        %3346 = vadd.xlane.f32.xlu0 %v3345
        %v3347 = vpop.xlane.xlu0 %3346
        %v3348 = vsel %vm477, %v3330, 0.0
        %3349 = vadd.xlane.f32.xlu0 %v3348
        %v3350 = vpop.xlane.xlu0 %3349
        %v3351 = vsel %vm477, %v3331, 0.0
        %3352 = vadd.xlane.f32.xlu0 %v3351
        %v3353 = vpop.xlane.xlu0 %3352
        %v3354 = vsel %vm477, %v3332, 0.0
        %3355 = vadd.xlane.f32.xlu0 %v3354
        %v3356 = vpop.xlane.xlu0 %3355
        %v3357 = vsel %vm477, %v3333, 0.0
        %3358 = vadd.xlane.f32.xlu0 %v3357
        %v3359 = vpop.xlane.xlu0 %3358
        %v3360 = vsel %vm477, %v3334, 0.0
        %3361 = vadd.xlane.f32.xlu0 %v3360
        %v3362 = vpop.xlane.xlu0 %3361
        %v3363 = vsel %vm477, %v3335, 0.0
        %3364 = vadd.xlane.f32.xlu0 %v3363
        %v3365 = vpop.xlane.xlu0 %3364
        %v3366 = vsel %vm477, %v3336, 0.0
        %3367 = vadd.xlane.f32.xlu0 %v3366
        %v3368 = vpop.xlane.xlu0 %3367
        %v3369 = vsel %vm477, %v3337, 0.0
        %3370 = vadd.xlane.f32.xlu0 %v3369
        %v3371 = vpop.xlane.xlu0 %3370
        %v3372 = vsel %vm477, %v3338, 0.0
        %3373 = vadd.xlane.f32.xlu0 %v3372
        %v3374 = vpop.xlane.xlu0 %3373
        %v3375 = vsel %vm477, %v3339, 0.0
        %3376 = vadd.xlane.f32.xlu0 %v3375
        %v3377 = vpop.xlane.xlu0 %3376
        %v3378 = vsel %vm477, %v3340, 0.0
        %3379 = vadd.xlane.f32.xlu0 %v3378
        %v3380 = vpop.xlane.xlu0 %3379
        %vm3381 = vcmask 907264
        %v3382 = vsel %vm3381, %v3341, 0.0
        %3383 = vadd.xlane.f32.xlu0 %v3382
        %v3384 = vpop.xlane.xlu0 %3383
        %v3386 = vsel %vm3153, %v3344, 0
        %v3389 = vsel %vm3153, %v3347, 0
        %v3392 = vsel %vm3153, %v3350, 0
        %v3395 = vsel %vm3153, %v3353, 0
        %v3398 = vsel %vm3153, %v3356, 0
        %v3401 = vsel %vm3153, %v3359, 0
        %v3404 = vsel %vm3153, %v3362, 0
        %v3407 = vsel %vm3153, %v3365, 0
        %v3410 = vsel %vm3153, %v3368, 0
        %v3413 = vsel %vm3153, %v3371, 0
        %v3416 = vsel %vm3153, %v3374, 0
        %v3419 = vsel %vm3153, %v3377, 0
        %v3422 = vsel %vm3153, %v3380, 0
        %v3425 = vsel %vm3153, %v3384, 0
        %3427 = vmatpush.xpose.msra.mxu0 0.0
        %3428 = vmatpush.xpose.msra.mxu0 0.0
        %3429 = vmatpush.xpose.msra.mxu0 %v3425
        %3430 = vmatpush.xpose.msra.mxu0 %v3422
        %3431 = vmatpush.xpose.msra.mxu0 %v3419
        %3432 = vmatpush.xpose.msra.mxu0 %v3416
        %3433 = vmatpush.xpose.msra.mxu0 %v3413
        %3434 = vmatpush.xpose.msra.mxu0 %v3410
        %3435 = vmatpush.xpose.msra.mxu0 %v3407
        %3436 = vmatpush.xpose.msra.mxu0 %v3404
        %3437 = vmatpush.xpose.msra.mxu0 %v3401
        %3438 = vmatpush.xpose.msra.mxu0 %v3398
        %3439 = vmatpush.xpose.msra.mxu0 %v3395
        %3440 = vmatpush.xpose.msra.mxu0 %v3392
        %3441 = vmatpush.xpose.msra.mxu0 %v3389
        %3442 = vmatpush.xpose.msra.mxu0 %v3386
        %3443 = vmatmul.f32.gmra.mxu0 %v3155
        %v3444 = vpop.f32.mrf.mxu0
        %v3445 = vadd.f32 0.0, %v3444
        %3446 = vmatmul.f32.gmra.mxu0 %v3155
        %v3447 = vpop.f32.mrf.mxu0
        %v3448 = vadd.f32 0.0, %v3447
        %3449 = vmatmul.f32.gmra.mxu0 %v3155
        %v3450 = vpop.f32.mrf.mxu0
        %v3451 = vadd.f32 0.0, %v3450
        %3452 = vmatmul.f32.gmra.mxu0 %v3155
        %v3453 = vpop.f32.mrf.mxu0
        %v3454 = vadd.f32 0.0, %v3453
        %3455 = vmatmul.f32.gmra.mxu0 %v3155
        %v3456 = vpop.f32.mrf.mxu0
        %v3457 = vadd.f32 0.0, %v3456
        %3458 = vmatmul.f32.gmra.mxu0 %v3155
        %v3459 = vpop.f32.mrf.mxu0
        %v3460 = vadd.f32 0.0, %v3459
        %3461 = vmatmul.f32.gmra.mxu0 %v3155
        %v3462 = vpop.f32.mrf.mxu0
        %v3463 = vadd.f32 0.0, %v3462
        %3464 = vmatmul.f32.gmra.mxu0 %v3155
        %v3465 = vpop.f32.mrf.mxu0
        %v3466 = vadd.f32 0.0, %v3465
        %3467 = vmatmul.f32.gmra.mxu0 %v3155
        %v3468 = vpop.f32.mrf.mxu0
        %v3469 = vadd.f32 0.0, %v3468
        %3470 = vmatmul.f32.gmra.mxu0 %v3155
        %v3471 = vpop.f32.mrf.mxu0
        %v3472 = vadd.f32 0.0, %v3471
        %3473 = vmatmul.f32.gmra.mxu0 %v3155
        %v3474 = vpop.f32.mrf.mxu0
        %v3475 = vadd.f32 0.0, %v3474
        %3476 = vmatmul.f32.gmra.mxu0 %v3155
        %v3477 = vpop.f32.mrf.mxu0
        %v3478 = vadd.f32 0.0, %v3477
        %3479 = vmatmul.f32.gmra.mxu0 %v3155
        %v3480 = vpop.f32.mrf.mxu0
        %v3481 = vadd.f32 0.0, %v3480
        %3482 = vmatmul.f32.gmra.mxu0 %v3155
        %v3483 = vpop.f32.mrf.mxu0
        %v3484 = vadd.f32 0.0, %v3483
        %3485 = vdwg.mxu0
        %v3486 = vcvt.s32.f32 %v3067
        %v3487 = vcvt.s32.f32 %v3068
        %v3488 = vcvt.s32.f32 %v3069
        %v3489 = vcvt.s32.f32 %v3070
        %v3490 = vcvt.s32.f32 %v3071
        %v3491 = vcvt.s32.f32 %v3072
        %v3492 = vcvt.s32.f32 %v3073
        %v3493 = vcvt.s32.f32 %v3074
        %v3494 = vcvt.s32.f32 %v3075
        %v3495 = vcvt.s32.f32 %v3076
        %v3496 = vcvt.s32.f32 %v3077
        %v3497 = vcvt.s32.f32 %v3078
        %v3498 = vcvt.s32.f32 %v3079
        %v3499 = vcvt.s32.f32 %v3080
        %vm3500 = vcmp.eq.f32.partialorder %v3445, %v3486
        %vm3501 = vcmp.eq.f32.partialorder %v3448, %v3487
        %vm3502 = vcmp.eq.f32.partialorder %v3451, %v3488
        %vm3503 = vcmp.eq.f32.partialorder %v3454, %v3489
        %vm3504 = vcmp.eq.f32.partialorder %v3457, %v3490
        %vm3505 = vcmp.eq.f32.partialorder %v3460, %v3491
        %vm3506 = vcmp.eq.f32.partialorder %v3463, %v3492
        %vm3507 = vcmp.eq.f32.partialorder %v3466, %v3493
        %vm3508 = vcmp.eq.f32.partialorder %v3469, %v3494
        %vm3509 = vcmp.eq.f32.partialorder %v3472, %v3495
        %vm3510 = vcmp.eq.f32.partialorder %v3475, %v3496
        %vm3511 = vcmp.eq.f32.partialorder %v3478, %v3497
        %vm3512 = vcmp.eq.f32.partialorder %v3481, %v3498
        %vm3513 = vcmp.eq.f32.partialorder %v3484, %v3499
        %vm3514 = vcmp.lt.s32.totalorder %v3067, 100
        %vm3515 = vcmp.lt.s32.totalorder %v3068, 100
        %vm3516 = vcmp.lt.s32.totalorder %v3069, 100
        %vm3517 = vcmp.lt.s32.totalorder %v3070, 100
        %vm3518 = vcmp.lt.s32.totalorder %v3071, 100
        %vm3519 = vcmp.lt.s32.totalorder %v3072, 100
        %vm3520 = vcmp.lt.s32.totalorder %v3073, 100
        %vm3521 = vcmp.lt.s32.totalorder %v3074, 100
        %vm3522 = vcmp.lt.s32.totalorder %v3075, 100
        %vm3523 = vcmp.lt.s32.totalorder %v3076, 100
        %vm3524 = vcmp.lt.s32.totalorder %v3077, 100
        %vm3525 = vcmp.lt.s32.totalorder %v3078, 100
        %vm3526 = vcmp.lt.s32.totalorder %v3079, 100
        %vm3527 = vcmp.lt.s32.totalorder %v3080, 100
        %vm3528 = vmand %vm3500, %vm3514
        %vm3529 = vmand %vm3501, %vm3515
        %vm3530 = vmand %vm3502, %vm3516
        %vm3531 = vmand %vm3503, %vm3517
        %vm3532 = vmand %vm3504, %vm3518
        %vm3533 = vmand %vm3505, %vm3519
        %vm3534 = vmand %vm3506, %vm3520
        %vm3535 = vmand %vm3507, %vm3521
        %vm3536 = vmand %vm3508, %vm3522
        %vm3537 = vmand %vm3509, %vm3523
        %vm3538 = vmand %vm3510, %vm3524
        %vm3539 = vmand %vm3511, %vm3525
        %vm3540 = vmand %vm3512, %vm3526
        %vm3541 = vmand %vm3513, %vm3527
        %v3542 = vsel %vm3528, 1, 0
        %v3543 = vsel %vm3529, 1, 0
        %v3544 = vsel %vm3530, 1, 0
        %v3545 = vsel %vm3531, 1, 0
        %v3546 = vsel %vm3532, 1, 0
        %v3547 = vsel %vm3533, 1, 0
        %v3548 = vsel %vm3534, 1, 0
        %v3549 = vsel %vm3535, 1, 0
        %v3550 = vsel %vm3536, 1, 0
        %v3551 = vsel %vm3537, 1, 0
        %v3552 = vsel %vm3538, 1, 0
        %v3553 = vsel %vm3539, 1, 0
        %v3554 = vsel %vm3540, 1, 0
        %v3555 = vsel %vm3541, 1, 0
        %v3556 = vcvt.s32.f32 %v3542
        %v3557 = vcvt.s32.f32 %v3543
        %v3558 = vcvt.s32.f32 %v3544
        %v3559 = vcvt.s32.f32 %v3545
        %v3560 = vcvt.s32.f32 %v3546
        %v3561 = vcvt.s32.f32 %v3547
        %v3562 = vcvt.s32.f32 %v3548
        %v3563 = vcvt.s32.f32 %v3549
        %v3564 = vcvt.s32.f32 %v3550
        %v3565 = vcvt.s32.f32 %v3551
        %v3566 = vcvt.s32.f32 %v3552
        %v3567 = vcvt.s32.f32 %v3553
        %v3568 = vcvt.s32.f32 %v3554
        %v3569 = vcvt.s32.f32 %v3555
        %v3571 = vsel %vm477, %v3556, 0
        %v3574 = vsel %vm477, %v3557, 0
        %v3577 = vsel %vm477, %v3558, 0
        %v3580 = vsel %vm477, %v3559, 0
        %v3583 = vsel %vm477, %v3560, 0
        %v3586 = vsel %vm477, %v3561, 0
        %v3589 = vsel %vm477, %v3562, 0
        %v3592 = vsel %vm477, %v3563, 0
        %v3595 = vsel %vm477, %v3564, 0
        %v3598 = vsel %vm477, %v3565, 0
        %v3601 = vsel %vm477, %v3566, 0
        %v3604 = vsel %vm477, %v3567, 0
        %v3607 = vsel %vm477, %v3568, 0
        %3609 = vmatpush.msra.mxu0 0.0
        %3610 = vmatpush.msra.mxu0 0.0
        %3611 = vmatpush.msra.mxu0 %v2774
        %3612 = vmatpush.msra.mxu0 %v2768
        %3613 = vmatpush.msra.mxu0 %v2767
        %3614 = vmatpush.msra.mxu0 %v2766
        %3615 = vmatpush.msra.mxu0 %v2765
        %3616 = vmatpush.msra.mxu0 %v2764
        %3617 = vmatpush.msra.mxu0 %v2763
        %3618 = vmatpush.msra.mxu0 %v2762
        %3619 = vmatpush.msra.mxu0 %v2761
        %3620 = vmatpush.msra.mxu0 %v2760
        %3621 = vmatpush.msra.mxu0 %v2759
        %3622 = vmatpush.msra.mxu0 %v2758
        %3623 = vmatpush.msra.mxu0 %v2757
        %3624 = vmatpush.msra.mxu0 %v2756
        %3625 = vmatmul.f32.gmra.mxu0 %v3571
        %v3626 = vpop.f32.mrf.mxu0
        %v3627 = vadd.f32 0.0, %v3626
        %3628 = vmatmul.f32.gmra.mxu0 %v3574
        %v3629 = vpop.f32.mrf.mxu0
        %v3630 = vadd.f32 0.0, %v3629
        %3631 = vmatmul.f32.gmra.mxu0 %v3577
        %v3632 = vpop.f32.mrf.mxu0
        %v3633 = vadd.f32 0.0, %v3632
        %3634 = vmatmul.f32.gmra.mxu0 %v3580
        %v3635 = vpop.f32.mrf.mxu0
        %v3636 = vadd.f32 0.0, %v3635
        %3637 = vmatmul.f32.gmra.mxu0 %v3583
        %v3638 = vpop.f32.mrf.mxu0
        %v3639 = vadd.f32 0.0, %v3638
        %3640 = vmatmul.f32.gmra.mxu0 %v3586
        %v3641 = vpop.f32.mrf.mxu0
        %v3642 = vadd.f32 0.0, %v3641
        %3643 = vmatmul.f32.gmra.mxu0 %v3589
        %v3644 = vpop.f32.mrf.mxu0
        %v3645 = vadd.f32 0.0, %v3644
        %3646 = vmatmul.f32.gmra.mxu0 %v3592
        %v3647 = vpop.f32.mrf.mxu0
        %v3648 = vadd.f32 0.0, %v3647
        %3649 = vmatmul.f32.gmra.mxu0 %v3595
        %v3650 = vpop.f32.mrf.mxu0
        %v3651 = vadd.f32 0.0, %v3650
        %3652 = vmatmul.f32.gmra.mxu0 %v3598
        %v3653 = vpop.f32.mrf.mxu0
        %v3654 = vadd.f32 0.0, %v3653
        %3655 = vmatmul.f32.gmra.mxu0 %v3601
        %v3656 = vpop.f32.mrf.mxu0
        %v3657 = vadd.f32 0.0, %v3656
        %3658 = vmatmul.f32.gmra.mxu0 %v3604
        %v3659 = vpop.f32.mrf.mxu0
        %v3660 = vadd.f32 0.0, %v3659
        %3661 = vmatmul.f32.gmra.mxu0 %v3607
        %v3662 = vpop.f32.mrf.mxu0
        %v3663 = vadd.f32 0.0, %v3662
        %3664 = vdwg.mxu0
        %v3665 = vsel %vm520, %v3065, 0
        %3667 = vmatpush.msra.mxu0 0.0
        %3668 = vmatpush.msra.mxu0 0.0
        %3669 = vmatpush.msra.mxu0 %v3665
        %3670 = vmatpush.msra.mxu0 %v3064
        %3671 = vmatpush.msra.mxu0 %v3063
        %3672 = vmatpush.msra.mxu0 %v3062
        %3673 = vmatpush.msra.mxu0 %v3061
        %3674 = vmatpush.msra.mxu0 %v3060
        %3675 = vmatpush.msra.mxu0 %v3059
        %3676 = vmatpush.msra.mxu0 %v3058
        %3677 = vmatpush.msra.mxu0 %v3057
        %3678 = vmatpush.msra.mxu0 %v3056
        %3679 = vmatpush.msra.mxu0 %v3055
        %3680 = vmatpush.msra.mxu0 %v3054
        %3681 = vmatpush.msra.mxu0 %v3053
        %3682 = vmatpush.msra.mxu0 %v3052
        %3683 = vmatmul.f32.gmra.mxu0 %v3571
        %v3684 = vpop.f32.mrf.mxu0
        %v3685 = vadd.f32 0.0, %v3684
        %3686 = vmatmul.f32.gmra.mxu0 %v3574
        %v3687 = vpop.f32.mrf.mxu0
        %v3688 = vadd.f32 0.0, %v3687
        %3689 = vmatmul.f32.gmra.mxu0 %v3577
        %v3690 = vpop.f32.mrf.mxu0
        %v3691 = vadd.f32 0.0, %v3690
        %3692 = vmatmul.f32.gmra.mxu0 %v3580
        %v3693 = vpop.f32.mrf.mxu0
        %v3694 = vadd.f32 0.0, %v3693
        %3695 = vmatmul.f32.gmra.mxu0 %v3583
        %v3696 = vpop.f32.mrf.mxu0
        %v3697 = vadd.f32 0.0, %v3696
        %3698 = vmatmul.f32.gmra.mxu0 %v3586
        %v3699 = vpop.f32.mrf.mxu0
        %v3700 = vadd.f32 0.0, %v3699
        %3701 = vmatmul.f32.gmra.mxu0 %v3589
        %v3702 = vpop.f32.mrf.mxu0
        %v3703 = vadd.f32 0.0, %v3702
        %3704 = vmatmul.f32.gmra.mxu0 %v3592
        %v3705 = vpop.f32.mrf.mxu0
        %v3706 = vadd.f32 0.0, %v3705
        %3707 = vmatmul.f32.gmra.mxu0 %v3595
        %v3708 = vpop.f32.mrf.mxu0
        %v3709 = vadd.f32 0.0, %v3708
        %3710 = vmatmul.f32.gmra.mxu0 %v3598
        %v3711 = vpop.f32.mrf.mxu0
        %v3712 = vadd.f32 0.0, %v3711
        %3713 = vmatmul.f32.gmra.mxu0 %v3601
        %v3714 = vpop.f32.mrf.mxu0
        %v3715 = vadd.f32 0.0, %v3714
        %3716 = vmatmul.f32.gmra.mxu0 %v3604
        %v3717 = vpop.f32.mrf.mxu0
        %v3718 = vadd.f32 0.0, %v3717
        %3719 = vmatmul.f32.gmra.mxu0 %v3607
        %v3720 = vpop.f32.mrf.mxu0
        %v3721 = vadd.f32 0.0, %v3720
        %3722 = vdwg.mxu0
        %v3723 = vtanh.pop %v3685
        %v3724 = vtanh.pop %v3688
        %v3725 = vtanh.pop %v3691
        %v3726 = vtanh.pop %v3694
        %v3727 = vtanh.pop %v3697
        %v3728 = vtanh.pop %v3700
        %v3729 = vtanh.pop %v3703
        %v3730 = vtanh.pop %v3706
        %v3731 = vtanh.pop %v3709
        %v3732 = vtanh.pop %v3712
        %v3733 = vtanh.pop %v3715
        %v3734 = vtanh.pop %v3718
        %v3735 = vtanh.pop %v3721
        %3737 = vset.pattern.permute.xlu0 0
        %3738 = vperm.xlu0 %3737, %v3723
        %v3739 = vpop.permute.xlu0 %3738
        %3742 = vset.pattern.permute.xlu0 0
        %3743 = vperm.xlu0 %3742, %v3724
        %v3744 = vpop.permute.xlu0 %3743
        %3747 = vset.pattern.permute.xlu0 0
        %3748 = vperm.xlu0 %3747, %v3725
        %v3749 = vpop.permute.xlu0 %3748
        %3752 = vset.pattern.permute.xlu0 0
        %3753 = vperm.xlu0 %3752, %v3726
        %v3754 = vpop.permute.xlu0 %3753
        %3757 = vset.pattern.permute.xlu0 0
        %3758 = vperm.xlu0 %3757, %v3727
        %v3759 = vpop.permute.xlu0 %3758
        %3762 = vset.pattern.permute.xlu0 0
        %3763 = vperm.xlu0 %3762, %v3728
        %v3764 = vpop.permute.xlu0 %3763
        %3767 = vset.pattern.permute.xlu0 0
        %3768 = vperm.xlu0 %3767, %v3729
        %v3769 = vpop.permute.xlu0 %3768
        %3772 = vset.pattern.permute.xlu0 0
        %3773 = vperm.xlu0 %3772, %v3730
        %v3774 = vpop.permute.xlu0 %3773
        %3777 = vset.pattern.permute.xlu0 0
        %3778 = vperm.xlu0 %3777, %v3731
        %v3779 = vpop.permute.xlu0 %3778
        %3782 = vset.pattern.permute.xlu0 0
        %3783 = vperm.xlu0 %3782, %v3732
        %v3784 = vpop.permute.xlu0 %3783
        %3787 = vset.pattern.permute.xlu0 0
        %3788 = vperm.xlu0 %3787, %v3733
        %v3789 = vpop.permute.xlu0 %3788
        %3792 = vset.pattern.permute.xlu0 0
        %3793 = vperm.xlu0 %3792, %v3734
        %v3794 = vpop.permute.xlu0 %3793
        %3797 = vset.pattern.permute.xlu0 0
        %3798 = vperm.xlu0 %3797, %v3735
        %v3799 = vpop.permute.xlu0 %3798
        %v3801 = vmul.f32 %v3627, %v3739
        %v3802 = vmul.f32 %v3630, %v3744
        %v3803 = vmul.f32 %v3633, %v3749
        %v3804 = vmul.f32 %v3636, %v3754
        %v3805 = vmul.f32 %v3639, %v3759
        %v3806 = vmul.f32 %v3642, %v3764
        %v3807 = vmul.f32 %v3645, %v3769
        %v3808 = vmul.f32 %v3648, %v3774
        %v3809 = vmul.f32 %v3651, %v3779
        %v3810 = vmul.f32 %v3654, %v3784
        %v3811 = vmul.f32 %v3657, %v3789
        %v3812 = vmul.f32 %v3660, %v3794
        %v3813 = vmul.f32 %v3663, %v3799
        %vm3814 = vcmp.gt.f32.partialorder %v434, 0.0
        %vm3815 = vcmp.gt.f32.partialorder %v435, 0.0
        %vm3816 = vcmp.gt.f32.partialorder %v436, 0.0
        %vm3817 = vcmp.gt.f32.partialorder %v437, 0.0
        %vm3818 = vcmp.gt.f32.partialorder %v438, 0.0
        %vm3819 = vcmp.gt.f32.partialorder %v439, 0.0
        %vm3820 = vcmp.gt.f32.partialorder %v440, 0.0
        %vm3821 = vcmp.gt.f32.partialorder %v441, 0.0
        %vm3822 = vcmp.gt.f32.partialorder %v442, 0.0
        %vm3823 = vcmp.gt.f32.partialorder %v443, 0.0
        %vm3824 = vcmp.gt.f32.partialorder %v444, 0.0
        %vm3825 = vcmp.gt.f32.partialorder %v445, 0.0
        %vm3826 = vcmp.gt.f32.partialorder %v446, 0.0
        %vm3827 = vcmp.gt.f32.partialorder %v447, 0.0
        %v3828 = vsel %vm3814, 1, 0
        %v3829 = vsel %vm3815, 1, 0
        %v3830 = vsel %vm3816, 1, 0
        %v3831 = vsel %vm3817, 1, 0
        %v3832 = vsel %vm3818, 1, 0
        %v3833 = vsel %vm3819, 1, 0
        %v3834 = vsel %vm3820, 1, 0
        %v3835 = vsel %vm3821, 1, 0
        %v3836 = vsel %vm3822, 1, 0
        %v3837 = vsel %vm3823, 1, 0
        %v3838 = vsel %vm3824, 1, 0
        %v3839 = vsel %vm3825, 1, 0
        %v3840 = vsel %vm3826, 1, 0
        %v3841 = vsel %vm3827, 1, 0
        %v3842 = vcvt.s32.f32 %v3828
        %v3843 = vcvt.s32.f32 %v3829
        %v3844 = vcvt.s32.f32 %v3830
        %v3845 = vcvt.s32.f32 %v3831
        %v3846 = vcvt.s32.f32 %v3832
        %v3847 = vcvt.s32.f32 %v3833
        %v3848 = vcvt.s32.f32 %v3834
        %v3849 = vcvt.s32.f32 %v3835
        %v3850 = vcvt.s32.f32 %v3836
        %v3851 = vcvt.s32.f32 %v3837
        %v3852 = vcvt.s32.f32 %v3838
        %v3853 = vcvt.s32.f32 %v3839
        %v3854 = vcvt.s32.f32 %v3840
        %v3855 = vcvt.s32.f32 %v3841
        %v3857 = vsel %vm477, %v3569, 0
        %v3860 = vsel %vm520, %v3855, 0
        %3862 = vmatpush.msra.mxu0 0.0
        %3863 = vmatpush.msra.mxu0 0.0
        %3864 = vmatpush.msra.mxu0 %v3860
        %3865 = vmatpush.msra.mxu0 %v3854
        %3866 = vmatpush.msra.mxu0 %v3853
        %3867 = vmatpush.msra.mxu0 %v3852
        %3868 = vmatpush.msra.mxu0 %v3851
        %3869 = vmatpush.msra.mxu0 %v3850
        %3870 = vmatpush.msra.mxu0 %v3849
        %3871 = vmatpush.msra.mxu0 %v3848
        %3872 = vmatpush.msra.mxu0 %v3847
        %3873 = vmatpush.msra.mxu0 %v3846
        %3874 = vmatpush.msra.mxu0 %v3845
        %3875 = vmatpush.msra.mxu0 %v3844
        %3876 = vmatpush.msra.mxu0 %v3843
        %3877 = vmatpush.msra.mxu0 %v3842
        %3878 = vmatmul.f32.gmra.mxu0 %v3571
        %v3879 = vpop.f32.mrf.mxu0
        %v3880 = vadd.f32 0.0, %v3879
        %3881 = vmatmul.f32.gmra.mxu0 %v3574
        %v3882 = vpop.f32.mrf.mxu0
        %v3883 = vadd.f32 0.0, %v3882
        %3884 = vmatmul.f32.gmra.mxu0 %v3577
        %v3885 = vpop.f32.mrf.mxu0
        %v3886 = vadd.f32 0.0, %v3885
        %3887 = vmatmul.f32.gmra.mxu0 %v3580
        %v3888 = vpop.f32.mrf.mxu0
        %v3889 = vadd.f32 0.0, %v3888
        %3890 = vmatmul.f32.gmra.mxu0 %v3583
        %v3891 = vpop.f32.mrf.mxu0
        %v3892 = vadd.f32 0.0, %v3891
        %3893 = vmatmul.f32.gmra.mxu0 %v3586
        %v3894 = vpop.f32.mrf.mxu0
        %v3895 = vadd.f32 0.0, %v3894
        %3896 = vmatmul.f32.gmra.mxu0 %v3589
        %v3897 = vpop.f32.mrf.mxu0
        %v3898 = vadd.f32 0.0, %v3897
        %3899 = vmatmul.f32.gmra.mxu0 %v3592
        %v3900 = vpop.f32.mrf.mxu0
        %v3901 = vadd.f32 0.0, %v3900
        %3902 = vmatmul.f32.gmra.mxu0 %v3595
        %v3903 = vpop.f32.mrf.mxu0
        %v3904 = vadd.f32 0.0, %v3903
        %3905 = vmatmul.f32.gmra.mxu0 %v3598
        %v3906 = vpop.f32.mrf.mxu0
        %v3907 = vadd.f32 0.0, %v3906
        %3908 = vmatmul.f32.gmra.mxu0 %v3601
        %v3909 = vpop.f32.mrf.mxu0
        %v3910 = vadd.f32 0.0, %v3909
        %3911 = vmatmul.f32.gmra.mxu0 %v3604
        %v3912 = vpop.f32.mrf.mxu0
        %v3913 = vadd.f32 0.0, %v3912
        %3914 = vmatmul.f32.gmra.mxu0 %v3607
        %v3915 = vpop.f32.mrf.mxu0
        %v3916 = vadd.f32 0.0, %v3915
        %3917 = vmatmul.f32.gmra.mxu0 %v3857
        %v3918 = vpop.f32.mrf.mxu0
        %v3919 = vadd.f32 0.0, %v3918
        %3920 = vdwg.mxu0
        %v3922 = vsel %vm477, %v3880, 0
        %v3925 = vsel %vm477, %v3883, 0
        %v3928 = vsel %vm477, %v3886, 0
        %v3931 = vsel %vm477, %v3889, 0
        %v3934 = vsel %vm477, %v3892, 0
        %v3937 = vsel %vm477, %v3895, 0
        %v3940 = vsel %vm477, %v3898, 0
        %v3943 = vsel %vm477, %v3901, 0
        %v3946 = vsel %vm477, %v3904, 0
        %v3949 = vsel %vm477, %v3907, 0
        %v3952 = vsel %vm477, %v3910, 0
        %v3955 = vsel %vm477, %v3913, 0
        %v3958 = vsel %vm477, %v3916, 0
        %v3961 = vsel %vm477, %v3919, 0
        %3963 = vmatpush.xpose.msra.mxu0 0.0
        %3964 = vmatpush.xpose.msra.mxu0 0.0
        %3965 = vmatpush.xpose.msra.mxu0 %v3857
        %3966 = vmatpush.xpose.msra.mxu0 %v3607
        %3967 = vmatpush.xpose.msra.mxu0 %v3604
        %3968 = vmatpush.xpose.msra.mxu0 %v3601
        %3969 = vmatpush.xpose.msra.mxu0 %v3598
        %3970 = vmatpush.xpose.msra.mxu0 %v3595
        %3971 = vmatpush.xpose.msra.mxu0 %v3592
        %3972 = vmatpush.xpose.msra.mxu0 %v3589
        %3973 = vmatpush.xpose.msra.mxu0 %v3586
        %3974 = vmatpush.xpose.msra.mxu0 %v3583
        %3975 = vmatpush.xpose.msra.mxu0 %v3580
        %3976 = vmatpush.xpose.msra.mxu0 %v3577
        %3977 = vmatpush.xpose.msra.mxu0 %v3574
        %3978 = vmatpush.xpose.msra.mxu0 %v3571
        %3979 = vmatmul.f32.gmra.mxu0 %v3922
        %v3980 = vpop.f32.mrf.mxu0
        %v3981 = vadd.f32 0.0, %v3980
        %3982 = vmatmul.f32.gmra.mxu0 %v3925
        %v3983 = vpop.f32.mrf.mxu0
        %v3984 = vadd.f32 0.0, %v3983
        %3985 = vmatmul.f32.gmra.mxu0 %v3928
        %v3986 = vpop.f32.mrf.mxu0
        %v3987 = vadd.f32 0.0, %v3986
        %3988 = vmatmul.f32.gmra.mxu0 %v3931
        %v3989 = vpop.f32.mrf.mxu0
        %v3990 = vadd.f32 0.0, %v3989
        %3991 = vmatmul.f32.gmra.mxu0 %v3934
        %v3992 = vpop.f32.mrf.mxu0
        %v3993 = vadd.f32 0.0, %v3992
        %3994 = vmatmul.f32.gmra.mxu0 %v3937
        %v3995 = vpop.f32.mrf.mxu0
        %v3996 = vadd.f32 0.0, %v3995
        %3997 = vmatmul.f32.gmra.mxu0 %v3940
        %v3998 = vpop.f32.mrf.mxu0
        %v3999 = vadd.f32 0.0, %v3998
        %4000 = vmatmul.f32.gmra.mxu0 %v3943
        %v4001 = vpop.f32.mrf.mxu0
        %v4002 = vadd.f32 0.0, %v4001
        %4003 = vmatmul.f32.gmra.mxu0 %v3946
        %v4004 = vpop.f32.mrf.mxu0
        %v4005 = vadd.f32 0.0, %v4004
        %4006 = vmatmul.f32.gmra.mxu0 %v3949
        %v4007 = vpop.f32.mrf.mxu0
        %v4008 = vadd.f32 0.0, %v4007
        %4009 = vmatmul.f32.gmra.mxu0 %v3952
        %v4010 = vpop.f32.mrf.mxu0
        %v4011 = vadd.f32 0.0, %v4010
        %4012 = vmatmul.f32.gmra.mxu0 %v3955
        %v4013 = vpop.f32.mrf.mxu0
        %v4014 = vadd.f32 0.0, %v4013
        %4015 = vmatmul.f32.gmra.mxu0 %v3958
        %v4016 = vpop.f32.mrf.mxu0
        %v4017 = vadd.f32 0.0, %v4016
        %4018 = vmatmul.f32.gmra.mxu0 %v3961
        %v4019 = vpop.f32.mrf.mxu0
        %v4020 = vadd.f32 0.0, %v4019
        %4021 = vdwg.mxu0
        %v4022 = vsel %vm477, %v3981, 0.0
        %4023 = vadd.xlane.f32.xlu0 %v4022
        %v4024 = vpop.xlane.xlu0 %4023
        %v4025 = vsel %vm477, %v3984, 0.0
        %4026 = vadd.xlane.f32.xlu0 %v4025
        %v4027 = vpop.xlane.xlu0 %4026
        %v4028 = vsel %vm477, %v3987, 0.0
        %4029 = vadd.xlane.f32.xlu0 %v4028
        %v4030 = vpop.xlane.xlu0 %4029
        %v4031 = vsel %vm477, %v3990, 0.0
        %4032 = vadd.xlane.f32.xlu0 %v4031
        %v4033 = vpop.xlane.xlu0 %4032
        %v4034 = vsel %vm477, %v3993, 0.0
        %4035 = vadd.xlane.f32.xlu0 %v4034
        %v4036 = vpop.xlane.xlu0 %4035
        %v4037 = vsel %vm477, %v3996, 0.0
        %4038 = vadd.xlane.f32.xlu0 %v4037
        %v4039 = vpop.xlane.xlu0 %4038
        %v4040 = vsel %vm477, %v3999, 0.0
        %4041 = vadd.xlane.f32.xlu0 %v4040
        %v4042 = vpop.xlane.xlu0 %4041
        %v4043 = vsel %vm477, %v4002, 0.0
        %4044 = vadd.xlane.f32.xlu0 %v4043
        %v4045 = vpop.xlane.xlu0 %4044
        %v4046 = vsel %vm477, %v4005, 0.0
        %4047 = vadd.xlane.f32.xlu0 %v4046
        %v4048 = vpop.xlane.xlu0 %4047
        %v4049 = vsel %vm477, %v4008, 0.0
        %4050 = vadd.xlane.f32.xlu0 %v4049
        %v4051 = vpop.xlane.xlu0 %4050
        %v4052 = vsel %vm477, %v4011, 0.0
        %4053 = vadd.xlane.f32.xlu0 %v4052
        %v4054 = vpop.xlane.xlu0 %4053
        %v4055 = vsel %vm477, %v4014, 0.0
        %4056 = vadd.xlane.f32.xlu0 %v4055
        %v4057 = vpop.xlane.xlu0 %4056
        %v4058 = vsel %vm477, %v4017, 0.0
        %4059 = vadd.xlane.f32.xlu0 %v4058
        %v4060 = vpop.xlane.xlu0 %4059
        %v4061 = vsel %vm3381, %v4020, 0.0
        %4062 = vadd.xlane.f32.xlu0 %v4061
        %v4063 = vpop.xlane.xlu0 %4062
        %vm4064 = vcmp.gt.f32.partialorder %v4024, 0.0
        %vm4065 = vcmp.gt.f32.partialorder %v4027, 0.0
        %vm4066 = vcmp.gt.f32.partialorder %v4030, 0.0
        %vm4067 = vcmp.gt.f32.partialorder %v4033, 0.0
        %vm4068 = vcmp.gt.f32.partialorder %v4036, 0.0
        %vm4069 = vcmp.gt.f32.partialorder %v4039, 0.0
        %vm4070 = vcmp.gt.f32.partialorder %v4042, 0.0
        %vm4071 = vcmp.gt.f32.partialorder %v4045, 0.0
        %vm4072 = vcmp.gt.f32.partialorder %v4048, 0.0
        %vm4073 = vcmp.gt.f32.partialorder %v4051, 0.0
        %vm4074 = vcmp.gt.f32.partialorder %v4054, 0.0
        %vm4075 = vcmp.gt.f32.partialorder %v4057, 0.0
        %vm4076 = vcmp.gt.f32.partialorder %v4060, 0.0
        %vm4077 = vcmp.gt.f32.partialorder %v4063, 0.0
        %v4078 = vmax.f32 %v4024, 1e-12
        %v4079 = vmax.f32 %v4027, 1e-12
        %v4080 = vmax.f32 %v4030, 1e-12
        %v4081 = vmax.f32 %v4033, 1e-12
        %v4082 = vmax.f32 %v4036, 1e-12
        %v4083 = vmax.f32 %v4039, 1e-12
        %v4084 = vmax.f32 %v4042, 1e-12
        %v4085 = vmax.f32 %v4045, 1e-12
        %v4086 = vmax.f32 %v4048, 1e-12
        %v4087 = vmax.f32 %v4051, 1e-12
        %v4088 = vmax.f32 %v4054, 1e-12
        %v4089 = vmax.f32 %v4057, 1e-12
        %v4090 = vmax.f32 %v4060, 1e-12
        %v4091 = vmax.f32 %v4063, 1e-12
        %v4092 = vrsqrt.pop %v4078
        %v4093 = vmul.f32 %v4092, %v4078
        %v4094 = vmul.f32 %v4093, %v4092
        %v4095 = vmul.f32 0.5, %v4094
        %v4096 = vsub.f32 1.5, %v4095
        %v4097 = vmul.f32 %v4092, %v4096
        %vm4098 = vweird.f32 %v4078
        %vm4099 = vweird.f32 %v4092
        %vm4100 = vmor %vm4098, %vm4099
        %v4101 = vsel %vm4100, %v4092, %v4097
        %v4102 = vrsqrt.pop %v4079
        %v4103 = vmul.f32 %v4102, %v4079
        %v4104 = vmul.f32 %v4103, %v4102
        %v4105 = vmul.f32 0.5, %v4104
        %v4106 = vsub.f32 1.5, %v4105
        %v4107 = vmul.f32 %v4102, %v4106
        %vm4108 = vweird.f32 %v4079
        %vm4109 = vweird.f32 %v4102
        %vm4110 = vmor %vm4108, %vm4109
        %v4111 = vsel %vm4110, %v4102, %v4107
        %v4112 = vrsqrt.pop %v4080
        %v4113 = vmul.f32 %v4112, %v4080
        %v4114 = vmul.f32 %v4113, %v4112
        %v4115 = vmul.f32 0.5, %v4114
        %v4116 = vsub.f32 1.5, %v4115
        %v4117 = vmul.f32 %v4112, %v4116
        %vm4118 = vweird.f32 %v4080
        %vm4119 = vweird.f32 %v4112
        %vm4120 = vmor %vm4118, %vm4119
        %v4121 = vsel %vm4120, %v4112, %v4117
        %v4122 = vrsqrt.pop %v4081
        %v4123 = vmul.f32 %v4122, %v4081
        %v4124 = vmul.f32 %v4123, %v4122
        %v4125 = vmul.f32 0.5, %v4124
        %v4126 = vsub.f32 1.5, %v4125
        %v4127 = vmul.f32 %v4122, %v4126
        %vm4128 = vweird.f32 %v4081
        %vm4129 = vweird.f32 %v4122
        %vm4130 = vmor %vm4128, %vm4129
        %v4131 = vsel %vm4130, %v4122, %v4127
        %v4132 = vrsqrt.pop %v4082
        %v4133 = vmul.f32 %v4132, %v4082
        %v4134 = vmul.f32 %v4133, %v4132
        %v4135 = vmul.f32 0.5, %v4134
        %v4136 = vsub.f32 1.5, %v4135
        %v4137 = vmul.f32 %v4132, %v4136
        %vm4138 = vweird.f32 %v4082
        %vm4139 = vweird.f32 %v4132
        %vm4140 = vmor %vm4138, %vm4139
        %v4141 = vsel %vm4140, %v4132, %v4137
        %v4142 = vrsqrt.pop %v4083
        %v4143 = vmul.f32 %v4142, %v4083
        %v4144 = vmul.f32 %v4143, %v4142
        %v4145 = vmul.f32 0.5, %v4144
        %v4146 = vsub.f32 1.5, %v4145
        %v4147 = vmul.f32 %v4142, %v4146
        %vm4148 = vweird.f32 %v4083
        %vm4149 = vweird.f32 %v4142
        %vm4150 = vmor %vm4148, %vm4149
        %v4151 = vsel %vm4150, %v4142, %v4147
        %v4152 = vrsqrt.pop %v4084
        %v4153 = vmul.f32 %v4152, %v4084
        %v4154 = vmul.f32 %v4153, %v4152
        %v4155 = vmul.f32 0.5, %v4154
        %v4156 = vsub.f32 1.5, %v4155
        %v4157 = vmul.f32 %v4152, %v4156
        %vm4158 = vweird.f32 %v4084
        %vm4159 = vweird.f32 %v4152
        %vm4160 = vmor %vm4158, %vm4159
        %v4161 = vsel %vm4160, %v4152, %v4157
        %v4162 = vrsqrt.pop %v4085
        %v4163 = vmul.f32 %v4162, %v4085
        %v4164 = vmul.f32 %v4163, %v4162
        %v4165 = vmul.f32 0.5, %v4164
        %v4166 = vsub.f32 1.5, %v4165
        %v4167 = vmul.f32 %v4162, %v4166
        %vm4168 = vweird.f32 %v4085
        %vm4169 = vweird.f32 %v4162
        %vm4170 = vmor %vm4168, %vm4169
        %v4171 = vsel %vm4170, %v4162, %v4167
        %v4172 = vrsqrt.pop %v4086
        %v4173 = vmul.f32 %v4172, %v4086
        %v4174 = vmul.f32 %v4173, %v4172
        %v4175 = vmul.f32 0.5, %v4174
        %v4176 = vsub.f32 1.5, %v4175
        %v4177 = vmul.f32 %v4172, %v4176
        %vm4178 = vweird.f32 %v4086
        %vm4179 = vweird.f32 %v4172
        %vm4180 = vmor %vm4178, %vm4179
        %v4181 = vsel %vm4180, %v4172, %v4177
        %v4182 = vrsqrt.pop %v4087
        %v4183 = vmul.f32 %v4182, %v4087
        %v4184 = vmul.f32 %v4183, %v4182
        %v4185 = vmul.f32 0.5, %v4184
        %v4186 = vsub.f32 1.5, %v4185
        %v4187 = vmul.f32 %v4182, %v4186
        %vm4188 = vweird.f32 %v4087
        %vm4189 = vweird.f32 %v4182
        %vm4190 = vmor %vm4188, %vm4189
        %v4191 = vsel %vm4190, %v4182, %v4187
        %v4192 = vrsqrt.pop %v4088
        %v4193 = vmul.f32 %v4192, %v4088
        %v4194 = vmul.f32 %v4193, %v4192
        %v4195 = vmul.f32 0.5, %v4194
        %v4196 = vsub.f32 1.5, %v4195
        %v4197 = vmul.f32 %v4192, %v4196
        %vm4198 = vweird.f32 %v4088
        %vm4199 = vweird.f32 %v4192
        %vm4200 = vmor %vm4198, %vm4199
        %v4201 = vsel %vm4200, %v4192, %v4197
        %v4202 = vrsqrt.pop %v4089
        %v4203 = vmul.f32 %v4202, %v4089
        %v4204 = vmul.f32 %v4203, %v4202
        %v4205 = vmul.f32 0.5, %v4204
        %v4206 = vsub.f32 1.5, %v4205
        %v4207 = vmul.f32 %v4202, %v4206
        %vm4208 = vweird.f32 %v4089
        %vm4209 = vweird.f32 %v4202
        %vm4210 = vmor %vm4208, %vm4209
        %v4211 = vsel %vm4210, %v4202, %v4207
        %v4212 = vrsqrt.pop %v4090
        %v4213 = vmul.f32 %v4212, %v4090
        %v4214 = vmul.f32 %v4213, %v4212
        %v4215 = vmul.f32 0.5, %v4214
        %v4216 = vsub.f32 1.5, %v4215
        %v4217 = vmul.f32 %v4212, %v4216
        %vm4218 = vweird.f32 %v4090
        %vm4219 = vweird.f32 %v4212
        %vm4220 = vmor %vm4218, %vm4219
        %v4221 = vsel %vm4220, %v4212, %v4217
        %v4222 = vrsqrt.pop %v4091
        %v4223 = vmul.f32 %v4222, %v4091
        %v4224 = vmul.f32 %v4223, %v4222
        %v4225 = vmul.f32 0.5, %v4224
        %v4226 = vsub.f32 1.5, %v4225
        %v4227 = vmul.f32 %v4222, %v4226
        %vm4228 = vweird.f32 %v4091
        %vm4229 = vweird.f32 %v4222
        %vm4230 = vmor %vm4228, %vm4229
        %v4231 = vsel %vm4230, %v4222, %v4227
        %v4232 = vsel %vm4064, %v4101, 0.0
        %v4233 = vsel %vm4065, %v4111, 0.0
        %v4234 = vsel %vm4066, %v4121, 0.0
        %v4235 = vsel %vm4067, %v4131, 0.0
        %v4236 = vsel %vm4068, %v4141, 0.0
        %v4237 = vsel %vm4069, %v4151, 0.0
        %v4238 = vsel %vm4070, %v4161, 0.0
        %v4239 = vsel %vm4071, %v4171, 0.0
        %v4240 = vsel %vm4072, %v4181, 0.0
        %v4241 = vsel %vm4073, %v4191, 0.0
        %v4242 = vsel %vm4074, %v4201, 0.0
        %v4243 = vsel %vm4075, %v4211, 0.0
        %v4244 = vsel %vm4076, %v4221, 0.0
        %v4245 = vsel %vm4077, %v4231, 0.0
        %v4246 = vmul.f32 %v4232, %v2756
        %v4247 = vmul.f32 %v4233, %v2757
        %v4248 = vmul.f32 %v4234, %v2758
        %v4249 = vmul.f32 %v4235, %v2759
        %v4250 = vmul.f32 %v4236, %v2760
        %v4251 = vmul.f32 %v4237, %v2761
        %v4252 = vmul.f32 %v4238, %v2762
        %v4253 = vmul.f32 %v4239, %v2763
        %v4254 = vmul.f32 %v4240, %v2764
        %v4255 = vmul.f32 %v4241, %v2765
        %v4256 = vmul.f32 %v4242, %v2766
        %v4257 = vmul.f32 %v4243, %v2767
        %v4258 = vmul.f32 %v4244, %v2768
        %v4259 = vmul.f32 %v4245, %v2769
        %v4261 = vsel %vm477, %v3981, 0
        %v4264 = vsel %vm477, %v3984, 0
        %v4267 = vsel %vm477, %v3987, 0
        %v4270 = vsel %vm477, %v3990, 0
        %v4273 = vsel %vm477, %v3993, 0
        %v4276 = vsel %vm477, %v3996, 0
        %v4279 = vsel %vm477, %v3999, 0
        %v4282 = vsel %vm477, %v4002, 0
        %v4285 = vsel %vm477, %v4005, 0
        %v4288 = vsel %vm477, %v4008, 0
        %v4291 = vsel %vm477, %v4011, 0
        %v4294 = vsel %vm477, %v4014, 0
        %v4297 = vsel %vm477, %v4017, 0
        %v4300 = vsel %vm477, %v4020, 0
        %v4303 = vsel %vm520, %v4259, 0
        %4305 = vmatpush.msra.mxu0 0.0
        %4306 = vmatpush.msra.mxu0 0.0
        %4307 = vmatpush.msra.mxu0 %v4303
        %4308 = vmatpush.msra.mxu0 %v4258
        %4309 = vmatpush.msra.mxu0 %v4257
        %4310 = vmatpush.msra.mxu0 %v4256
        %4311 = vmatpush.msra.mxu0 %v4255
        %4312 = vmatpush.msra.mxu0 %v4254
        %4313 = vmatpush.msra.mxu0 %v4253
        %4314 = vmatpush.msra.mxu0 %v4252
        %4315 = vmatpush.msra.mxu0 %v4251
        %4316 = vmatpush.msra.mxu0 %v4250
        %4317 = vmatpush.msra.mxu0 %v4249
        %4318 = vmatpush.msra.mxu0 %v4248
        %4319 = vmatpush.msra.mxu0 %v4247
        %4320 = vmatpush.msra.mxu0 %v4246
        %4321 = vmatmul.f32.gmra.mxu0 %v4261
        %v4322 = vpop.f32.mrf.mxu0
        %v4323 = vadd.f32 0.0, %v4322
        %4324 = vmatmul.f32.gmra.mxu0 %v4264
        %v4325 = vpop.f32.mrf.mxu0
        %v4326 = vadd.f32 0.0, %v4325
        %4327 = vmatmul.f32.gmra.mxu0 %v4267
        %v4328 = vpop.f32.mrf.mxu0
        %v4329 = vadd.f32 0.0, %v4328
        %4330 = vmatmul.f32.gmra.mxu0 %v4270
        %v4331 = vpop.f32.mrf.mxu0
        %v4332 = vadd.f32 0.0, %v4331
        %4333 = vmatmul.f32.gmra.mxu0 %v4273
        %v4334 = vpop.f32.mrf.mxu0
        %v4335 = vadd.f32 0.0, %v4334
        %4336 = vmatmul.f32.gmra.mxu0 %v4276
        %v4337 = vpop.f32.mrf.mxu0
        %v4338 = vadd.f32 0.0, %v4337
        %4339 = vmatmul.f32.gmra.mxu0 %v4279
        %v4340 = vpop.f32.mrf.mxu0
        %v4341 = vadd.f32 0.0, %v4340
        %4342 = vmatmul.f32.gmra.mxu0 %v4282
        %v4343 = vpop.f32.mrf.mxu0
        %v4344 = vadd.f32 0.0, %v4343
        %4345 = vmatmul.f32.gmra.mxu0 %v4285
        %v4346 = vpop.f32.mrf.mxu0
        %v4347 = vadd.f32 0.0, %v4346
        %4348 = vmatmul.f32.gmra.mxu0 %v4288
        %v4349 = vpop.f32.mrf.mxu0
        %v4350 = vadd.f32 0.0, %v4349
        %4351 = vmatmul.f32.gmra.mxu0 %v4291
        %v4352 = vpop.f32.mrf.mxu0
        %v4353 = vadd.f32 0.0, %v4352
        %4354 = vmatmul.f32.gmra.mxu0 %v4294
        %v4355 = vpop.f32.mrf.mxu0
        %v4356 = vadd.f32 0.0, %v4355
        %4357 = vmatmul.f32.gmra.mxu0 %v4297
        %v4358 = vpop.f32.mrf.mxu0
        %v4359 = vadd.f32 0.0, %v4358
        %4360 = vmatmul.f32.gmra.mxu0 %v4300
        %v4361 = vpop.f32.mrf.mxu0
        %v4362 = vadd.f32 0.0, %v4361
        %4363 = vdwg.mxu0
        %v4364 = vmul.f32 %v4232, %v4323
        %v4365 = vmul.f32 %v4233, %v4326
        %v4366 = vmul.f32 %v4234, %v4329
        %v4367 = vmul.f32 %v4235, %v4332
        %v4368 = vmul.f32 %v4236, %v4335
        %v4369 = vmul.f32 %v4237, %v4338
        %v4370 = vmul.f32 %v4238, %v4341
        %v4371 = vmul.f32 %v4239, %v4344
        %v4372 = vmul.f32 %v4240, %v4347
        %v4373 = vmul.f32 %v4241, %v4350
        %v4374 = vmul.f32 %v4242, %v4353
        %v4375 = vmul.f32 %v4243, %v4356
        %v4376 = vmul.f32 %v4244, %v4359
        %v4377 = vmul.f32 %v4245, %v4362
        %v4378 = vsub.f32 0.0, %v4364
        %v4379 = vsub.f32 0.0, %v4365
        %v4380 = vsub.f32 0.0, %v4366
        %v4381 = vsub.f32 0.0, %v4367
        %v4382 = vsub.f32 0.0, %v4368
        %v4383 = vsub.f32 0.0, %v4369
        %v4384 = vsub.f32 0.0, %v4370
        %v4385 = vsub.f32 0.0, %v4371
        %v4386 = vsub.f32 0.0, %v4372
        %v4387 = vsub.f32 0.0, %v4373
        %v4388 = vsub.f32 0.0, %v4374
        %v4389 = vsub.f32 0.0, %v4375
        %v4390 = vsub.f32 0.0, %v4376
        %v4391 = vsub.f32 0.0, %v4377
        %v4392 = vmul.f32 %v4232, %v4378
        %v4393 = vmul.f32 %v4233, %v4379
        %v4394 = vmul.f32 %v4234, %v4380
        %v4395 = vmul.f32 %v4235, %v4381
        %v4396 = vmul.f32 %v4236, %v4382
        %v4397 = vmul.f32 %v4237, %v4383
        %v4398 = vmul.f32 %v4238, %v4384
        %v4399 = vmul.f32 %v4239, %v4385
        %v4400 = vmul.f32 %v4240, %v4386
        %v4401 = vmul.f32 %v4241, %v4387
        %v4402 = vmul.f32 %v4242, %v4388
        %v4403 = vmul.f32 %v4243, %v4389
        %v4404 = vmul.f32 %v4244, %v4390
        %v4405 = vmul.f32 %v4245, %v4391
        %v4407 = vsel %vm520, %v4405, 0
        %4409 = vmatpush.msra.mxu0 0.0
        %4410 = vmatpush.msra.mxu0 0.0
        %4411 = vmatpush.msra.mxu0 %v4407
        %4412 = vmatpush.msra.mxu0 %v4404
        %4413 = vmatpush.msra.mxu0 %v4403
        %4414 = vmatpush.msra.mxu0 %v4402
        %4415 = vmatpush.msra.mxu0 %v4401
        %4416 = vmatpush.msra.mxu0 %v4400
        %4417 = vmatpush.msra.mxu0 %v4399
        %4418 = vmatpush.msra.mxu0 %v4398
        %4419 = vmatpush.msra.mxu0 %v4397
        %4420 = vmatpush.msra.mxu0 %v4396
        %4421 = vmatpush.msra.mxu0 %v4395
        %4422 = vmatpush.msra.mxu0 %v4394
        %4423 = vmatpush.msra.mxu0 %v4393
        %4424 = vmatpush.msra.mxu0 %v4392
        %4425 = vmatmul.f32.gmra.mxu0 %v4261
        %v4426 = vpop.f32.mrf.mxu0
        %v4427 = vadd.f32 0.0, %v4426
        %4428 = vmatmul.f32.gmra.mxu0 %v4264
        %v4429 = vpop.f32.mrf.mxu0
        %v4430 = vadd.f32 0.0, %v4429
        %4431 = vmatmul.f32.gmra.mxu0 %v4267
        %v4432 = vpop.f32.mrf.mxu0
        %v4433 = vadd.f32 0.0, %v4432
        %4434 = vmatmul.f32.gmra.mxu0 %v4270
        %v4435 = vpop.f32.mrf.mxu0
        %v4436 = vadd.f32 0.0, %v4435
        %4437 = vmatmul.f32.gmra.mxu0 %v4273
        %v4438 = vpop.f32.mrf.mxu0
        %v4439 = vadd.f32 0.0, %v4438
        %4440 = vmatmul.f32.gmra.mxu0 %v4276
        %v4441 = vpop.f32.mrf.mxu0
        %v4442 = vadd.f32 0.0, %v4441
        %4443 = vmatmul.f32.gmra.mxu0 %v4279
        %v4444 = vpop.f32.mrf.mxu0
        %v4445 = vadd.f32 0.0, %v4444
        %4446 = vmatmul.f32.gmra.mxu0 %v4282
        %v4447 = vpop.f32.mrf.mxu0
        %v4448 = vadd.f32 0.0, %v4447
        %4449 = vmatmul.f32.gmra.mxu0 %v4285
        %v4450 = vpop.f32.mrf.mxu0
        %v4451 = vadd.f32 0.0, %v4450
        %4452 = vmatmul.f32.gmra.mxu0 %v4288
        %v4453 = vpop.f32.mrf.mxu0
        %v4454 = vadd.f32 0.0, %v4453
        %4455 = vmatmul.f32.gmra.mxu0 %v4291
        %v4456 = vpop.f32.mrf.mxu0
        %v4457 = vadd.f32 0.0, %v4456
        %4458 = vmatmul.f32.gmra.mxu0 %v4294
        %v4459 = vpop.f32.mrf.mxu0
        %v4460 = vadd.f32 0.0, %v4459
        %4461 = vmatmul.f32.gmra.mxu0 %v4297
        %v4462 = vpop.f32.mrf.mxu0
        %v4463 = vadd.f32 0.0, %v4462
        %4464 = vmatmul.f32.gmra.mxu0 %v4300
        %v4465 = vpop.f32.mrf.mxu0
        %v4466 = vadd.f32 0.0, %v4465
        %4467 = vdwg.mxu0
        %v4468 = vmul.f32 %v4232, %v4427
        %v4469 = vmul.f32 %v4233, %v4430
        %v4470 = vmul.f32 %v4234, %v4433
        %v4471 = vmul.f32 %v4235, %v4436
        %v4472 = vmul.f32 %v4236, %v4439
        %v4473 = vmul.f32 %v4237, %v4442
        %v4474 = vmul.f32 %v4238, %v4445
        %v4475 = vmul.f32 %v4239, %v4448
        %v4476 = vmul.f32 %v4240, %v4451
        %v4477 = vmul.f32 %v4241, %v4454
        %v4478 = vmul.f32 %v4242, %v4457
        %v4479 = vmul.f32 %v4243, %v4460
        %v4480 = vmul.f32 %v4244, %v4463
        %v4481 = vmul.f32 %v4245, %v4466
        %v4482 = vsub.f32 0.0, %v4468
        %v4483 = vsub.f32 0.0, %v4469
        %v4484 = vsub.f32 0.0, %v4470
        %v4485 = vsub.f32 0.0, %v4471
        %v4486 = vsub.f32 0.0, %v4472
        %v4487 = vsub.f32 0.0, %v4473
        %v4488 = vsub.f32 0.0, %v4474
        %v4489 = vsub.f32 0.0, %v4475
        %v4490 = vsub.f32 0.0, %v4476
        %v4491 = vsub.f32 0.0, %v4477
        %v4492 = vsub.f32 0.0, %v4478
        %v4493 = vsub.f32 0.0, %v4479
        %v4494 = vsub.f32 0.0, %v4480
        %v4495 = vsub.f32 0.0, %v4481
        %v4496 = vmul.f32 %v4482, 2.0
        %v4497 = vmul.f32 %v4483, 2.0
        %v4498 = vmul.f32 %v4484, 2.0
        %v4499 = vmul.f32 %v4485, 2.0
        %v4500 = vmul.f32 %v4486, 2.0
        %v4501 = vmul.f32 %v4487, 2.0
        %v4502 = vmul.f32 %v4488, 2.0
        %v4503 = vmul.f32 %v4489, 2.0
        %v4504 = vmul.f32 %v4490, 2.0
        %v4505 = vmul.f32 %v4491, 2.0
        %v4506 = vmul.f32 %v4492, 2.0
        %v4507 = vmul.f32 %v4493, 2.0
        %v4508 = vmul.f32 %v4494, 2.0
        %v4509 = vmul.f32 %v4495, 2.0
        %v4510 = vsub.f32 %v4496, %v2756
        %v4511 = vsub.f32 %v4497, %v2757
        %v4512 = vsub.f32 %v4498, %v2758
        %v4513 = vsub.f32 %v4499, %v2759
        %v4514 = vsub.f32 %v4500, %v2760
        %v4515 = vsub.f32 %v4501, %v2761
        %v4516 = vsub.f32 %v4502, %v2762
        %v4517 = vsub.f32 %v4503, %v2763
        %v4518 = vsub.f32 %v4504, %v2764
        %v4519 = vsub.f32 %v4505, %v2765
        %v4520 = vsub.f32 %v4506, %v2766
        %v4521 = vsub.f32 %v4507, %v2767
        %v4522 = vsub.f32 %v4508, %v2768
        %v4523 = vsub.f32 %v4509, %v2769
        %v4524 = vld [vmem:[#allocation9] sm:$0xff]
        %v4525 = vld [vmem:[#allocation9 + $0x8] sm:$0xff]
        %v4526 = vld [vmem:[#allocation9 + $0x10] sm:$0xf]
        %s4527 = scalar_lea.vmem [#allocation9], 24
        %v4528 = vld [vmem:[%s4527] sm:$0xff]
        %v4529 = vld [vmem:[%s4527 + $0x8] sm:$0xff]
        %v4530 = vld [vmem:[%s4527 + $0x10] sm:$0xf]
        %v4532 = vsel %vm2622, %v4378, 0
        %v4535 = vsel %vm2622, %v4379, 0
        %v4538 = vsel %vm2622, %v4380, 0
        %v4541 = vsel %vm2622, %v4381, 0
        %v4544 = vsel %vm2622, %v4382, 0
        %v4547 = vsel %vm2622, %v4383, 0
        %v4550 = vsel %vm2622, %v4384, 0
        %v4553 = vsel %vm2622, %v4385, 0
        %v4556 = vsel %vm2622, %v4386, 0
        %v4559 = vsel %vm2622, %v4387, 0
        %v4562 = vsel %vm2622, %v4388, 0
        %v4565 = vsel %vm2622, %v4389, 0
        %v4568 = vsel %vm2622, %v4390, 0
        %v4571 = vsel %vm2622, %v4391, 0
        %v4574 = vsel %vm2665, %v4530, 0
        %4576 = vmatpush.msra.mxu0 0.0
        %4577 = vmatpush.msra.mxu0 0.0
        %4578 = vmatpush.msra.mxu0 0.0
        %4579 = vmatpush.msra.mxu0 0.0
        %4580 = vmatpush.msra.mxu0 0.0
        %4581 = vmatpush.msra.mxu0 0.0
        %4582 = vmatpush.msra.mxu0 0.0
        %4583 = vmatpush.msra.mxu0 0.0
        %4584 = vmatpush.msra.mxu0 0.0
        %4585 = vmatpush.msra.mxu0 0.0
        %4586 = vmatpush.msra.mxu0 0.0
        %4587 = vmatpush.msra.mxu0 0.0
        %4588 = vmatpush.msra.mxu0 0.0
        %4589 = vmatpush.msra.mxu0 %v4574
        %4590 = vmatpush.msra.mxu0 %v4529
        %4591 = vmatpush.msra.mxu0 %v4528
        %4592 = vmatmul.f32.gmra.mxu0 %v4532
        %v4593 = vpop.f32.mrf.mxu0
        %v4594 = vadd.f32 0.0, %v4593
        %4595 = vmatmul.f32.gmra.mxu0 %v4535
        %v4596 = vpop.f32.mrf.mxu0
        %v4597 = vadd.f32 0.0, %v4596
        %4598 = vmatmul.f32.gmra.mxu0 %v4538
        %v4599 = vpop.f32.mrf.mxu0
        %v4600 = vadd.f32 0.0, %v4599
        %4601 = vmatmul.f32.gmra.mxu0 %v4541
        %v4602 = vpop.f32.mrf.mxu0
        %v4603 = vadd.f32 0.0, %v4602
        %4604 = vmatmul.f32.gmra.mxu0 %v4544
        %v4605 = vpop.f32.mrf.mxu0
        %v4606 = vadd.f32 0.0, %v4605
        %4607 = vmatmul.f32.gmra.mxu0 %v4547
        %v4608 = vpop.f32.mrf.mxu0
        %v4609 = vadd.f32 0.0, %v4608
        %4610 = vmatmul.f32.gmra.mxu0 %v4550
        %v4611 = vpop.f32.mrf.mxu0
        %v4612 = vadd.f32 0.0, %v4611
        %4613 = vmatmul.f32.gmra.mxu0 %v4553
        %v4614 = vpop.f32.mrf.mxu0
        %v4615 = vadd.f32 0.0, %v4614
        %4616 = vmatmul.f32.gmra.mxu0 %v4556
        %v4617 = vpop.f32.mrf.mxu0
        %v4618 = vadd.f32 0.0, %v4617
        %4619 = vmatmul.f32.gmra.mxu0 %v4559
        %v4620 = vpop.f32.mrf.mxu0
        %v4621 = vadd.f32 0.0, %v4620
        %4622 = vmatmul.f32.gmra.mxu0 %v4562
        %v4623 = vpop.f32.mrf.mxu0
        %v4624 = vadd.f32 0.0, %v4623
        %4625 = vmatmul.f32.gmra.mxu0 %v4565
        %v4626 = vpop.f32.mrf.mxu0
        %v4627 = vadd.f32 0.0, %v4626
        %4628 = vmatmul.f32.gmra.mxu0 %v4568
        %v4629 = vpop.f32.mrf.mxu0
        %v4630 = vadd.f32 0.0, %v4629
        %4631 = vmatmul.f32.gmra.mxu0 %v4571
        %v4632 = vpop.f32.mrf.mxu0
        %v4633 = vadd.f32 0.0, %v4632
        %4634 = vdwg.mxu0
        %v4636 = vsel %vm2665, %v4526, 0
        %4638 = vmatpush.msra.mxu0 0.0
        %4639 = vmatpush.msra.mxu0 0.0
        %4640 = vmatpush.msra.mxu0 0.0
        %4641 = vmatpush.msra.mxu0 0.0
        %4642 = vmatpush.msra.mxu0 0.0
        %4643 = vmatpush.msra.mxu0 0.0
        %4644 = vmatpush.msra.mxu0 0.0
        %4645 = vmatpush.msra.mxu0 0.0
        %4646 = vmatpush.msra.mxu0 0.0
        %4647 = vmatpush.msra.mxu0 0.0
        %4648 = vmatpush.msra.mxu0 0.0
        %4649 = vmatpush.msra.mxu0 0.0
        %4650 = vmatpush.msra.mxu0 0.0
        %4651 = vmatpush.msra.mxu0 %v4636
        %4652 = vmatpush.msra.mxu0 %v4525
        %4653 = vmatpush.msra.mxu0 %v4524
        %4654 = vmatmul.f32.gmra.mxu0 %v2847
        %v4655 = vpop.f32.mrf.mxu0
        %v4656 = vadd.f32 %v4594, %v4655
        %4657 = vmatmul.f32.gmra.mxu0 %v2850
        %v4658 = vpop.f32.mrf.mxu0
        %v4659 = vadd.f32 %v4597, %v4658
        %4660 = vmatmul.f32.gmra.mxu0 %v2853
        %v4661 = vpop.f32.mrf.mxu0
        %v4662 = vadd.f32 %v4600, %v4661
        %4663 = vmatmul.f32.gmra.mxu0 %v2856
        %v4664 = vpop.f32.mrf.mxu0
        %v4665 = vadd.f32 %v4603, %v4664
        %4666 = vmatmul.f32.gmra.mxu0 %v2859
        %v4667 = vpop.f32.mrf.mxu0
        %v4668 = vadd.f32 %v4606, %v4667
        %4669 = vmatmul.f32.gmra.mxu0 %v2862
        %v4670 = vpop.f32.mrf.mxu0
        %v4671 = vadd.f32 %v4609, %v4670
        %4672 = vmatmul.f32.gmra.mxu0 %v2865
        %v4673 = vpop.f32.mrf.mxu0
        %v4674 = vadd.f32 %v4612, %v4673
        %4675 = vmatmul.f32.gmra.mxu0 %v2868
        %v4676 = vpop.f32.mrf.mxu0
        %v4677 = vadd.f32 %v4615, %v4676
        %4678 = vmatmul.f32.gmra.mxu0 %v2871
        %v4679 = vpop.f32.mrf.mxu0
        %v4680 = vadd.f32 %v4618, %v4679
        %4681 = vmatmul.f32.gmra.mxu0 %v2874
        %v4682 = vpop.f32.mrf.mxu0
        %v4683 = vadd.f32 %v4621, %v4682
        %4684 = vmatmul.f32.gmra.mxu0 %v2877
        %v4685 = vpop.f32.mrf.mxu0
        %v4686 = vadd.f32 %v4624, %v4685
        %4687 = vmatmul.f32.gmra.mxu0 %v2880
        %v4688 = vpop.f32.mrf.mxu0
        %v4689 = vadd.f32 %v4627, %v4688
        %4690 = vmatmul.f32.gmra.mxu0 %v2883
        %v4691 = vpop.f32.mrf.mxu0
        %v4692 = vadd.f32 %v4630, %v4691
        %4693 = vmatmul.f32.gmra.mxu0 %v2885
        %v4694 = vpop.f32.mrf.mxu0
        %v4695 = vadd.f32 %v4633, %v4694
        %4696 = vdwg.mxu0
        %s4697 = scalar_lea.vmem [#allocation9], 48
        %v4698 = vld [vmem:[%s4697] sm:$0xff]
        %v4699 = vld [vmem:[%s4697 + $0x8] sm:$0xff]
        %v4700 = vld [vmem:[%s4697 + $0x10] sm:$0xf]
        %v4702 = vsel %vm2622, %v4510, 0
        %v4705 = vsel %vm2622, %v4511, 0
        %v4708 = vsel %vm2622, %v4512, 0
        %v4711 = vsel %vm2622, %v4513, 0
        %v4714 = vsel %vm2622, %v4514, 0
        %v4717 = vsel %vm2622, %v4515, 0
        %v4720 = vsel %vm2622, %v4516, 0
        %v4723 = vsel %vm2622, %v4517, 0
        %v4726 = vsel %vm2622, %v4518, 0
        %v4729 = vsel %vm2622, %v4519, 0
        %v4732 = vsel %vm2622, %v4520, 0
        %v4735 = vsel %vm2622, %v4521, 0
        %v4738 = vsel %vm2622, %v4522, 0
        %v4741 = vsel %vm2622, %v4523, 0
        %v4744 = vsel %vm2665, %v4700, 0
        %4746 = vmatpush.msra.mxu0 0.0
        %4747 = vmatpush.msra.mxu0 0.0
        %4748 = vmatpush.msra.mxu0 0.0
        %4749 = vmatpush.msra.mxu0 0.0
        %4750 = vmatpush.msra.mxu0 0.0
        %4751 = vmatpush.msra.mxu0 0.0
        %4752 = vmatpush.msra.mxu0 0.0
        %4753 = vmatpush.msra.mxu0 0.0
        %4754 = vmatpush.msra.mxu0 0.0
        %4755 = vmatpush.msra.mxu0 0.0
        %4756 = vmatpush.msra.mxu0 0.0
        %4757 = vmatpush.msra.mxu0 0.0
        %4758 = vmatpush.msra.mxu0 0.0
        %4759 = vmatpush.msra.mxu0 %v4744
        %4760 = vmatpush.msra.mxu0 %v4699
        %4761 = vmatpush.msra.mxu0 %v4698
        %4762 = vmatmul.f32.gmra.mxu0 %v4702
        %v4763 = vpop.f32.mrf.mxu0
        %v4764 = vadd.f32 0.0, %v4763
        %4765 = vmatmul.f32.gmra.mxu0 %v4705
        %v4766 = vpop.f32.mrf.mxu0
        %v4767 = vadd.f32 0.0, %v4766
        %4768 = vmatmul.f32.gmra.mxu0 %v4708
        %v4769 = vpop.f32.mrf.mxu0
        %v4770 = vadd.f32 0.0, %v4769
        %4771 = vmatmul.f32.gmra.mxu0 %v4711
        %v4772 = vpop.f32.mrf.mxu0
        %v4773 = vadd.f32 0.0, %v4772
        %4774 = vmatmul.f32.gmra.mxu0 %v4714
        %v4775 = vpop.f32.mrf.mxu0
        %v4776 = vadd.f32 0.0, %v4775
        %4777 = vmatmul.f32.gmra.mxu0 %v4717
        %v4778 = vpop.f32.mrf.mxu0
        %v4779 = vadd.f32 0.0, %v4778
        %4780 = vmatmul.f32.gmra.mxu0 %v4720
        %v4781 = vpop.f32.mrf.mxu0
        %v4782 = vadd.f32 0.0, %v4781
        %4783 = vmatmul.f32.gmra.mxu0 %v4723
        %v4784 = vpop.f32.mrf.mxu0
        %v4785 = vadd.f32 0.0, %v4784
        %4786 = vmatmul.f32.gmra.mxu0 %v4726
        %v4787 = vpop.f32.mrf.mxu0
        %v4788 = vadd.f32 0.0, %v4787
        %4789 = vmatmul.f32.gmra.mxu0 %v4729
        %v4790 = vpop.f32.mrf.mxu0
        %v4791 = vadd.f32 0.0, %v4790
        %4792 = vmatmul.f32.gmra.mxu0 %v4732
        %v4793 = vpop.f32.mrf.mxu0
        %v4794 = vadd.f32 0.0, %v4793
        %4795 = vmatmul.f32.gmra.mxu0 %v4735
        %v4796 = vpop.f32.mrf.mxu0
        %v4797 = vadd.f32 0.0, %v4796
        %4798 = vmatmul.f32.gmra.mxu0 %v4738
        %v4799 = vpop.f32.mrf.mxu0
        %v4800 = vadd.f32 0.0, %v4799
        %4801 = vmatmul.f32.gmra.mxu0 %v4741
        %v4802 = vpop.f32.mrf.mxu0
        %v4803 = vadd.f32 0.0, %v4802
        %4804 = vdwg.mxu0
        %v4805 = vadd.f32 %v4656, %v4764
        %v4806 = vadd.f32 %v4659, %v4767
        %v4807 = vadd.f32 %v4662, %v4770
        %v4808 = vadd.f32 %v4665, %v4773
        %v4809 = vadd.f32 %v4668, %v4776
        %v4810 = vadd.f32 %v4671, %v4779
        %v4811 = vadd.f32 %v4674, %v4782
        %v4812 = vadd.f32 %v4677, %v4785
        %v4813 = vadd.f32 %v4680, %v4788
        %v4814 = vadd.f32 %v4683, %v4791
        %v4815 = vadd.f32 %v4686, %v4794
        %v4816 = vadd.f32 %v4689, %v4797
        %v4817 = vadd.f32 %v4692, %v4800
        %v4818 = vadd.f32 %v4695, %v4803
        %v4819 = vperm.slane %v476, 6
        %v4820 = vadd.f32 %v4805, %v4819
        %v4821 = vadd.f32 %v4806, %v4819
        %v4822 = vadd.f32 %v4807, %v4819
        %v4823 = vadd.f32 %v4808, %v4819
        %v4824 = vadd.f32 %v4809, %v4819
        %v4825 = vadd.f32 %v4810, %v4819
        %v4826 = vadd.f32 %v4811, %v4819
        %v4827 = vadd.f32 %v4812, %v4819
        %v4828 = vadd.f32 %v4813, %v4819
        %v4829 = vadd.f32 %v4814, %v4819
        %v4830 = vadd.f32 %v4815, %v4819
        %v4831 = vadd.f32 %v4816, %v4819
        %v4832 = vadd.f32 %v4817, %v4819
        %v4833 = vadd.f32 %v4818, %v4819
        %vm4834 = vcmask 457728
        %v4835 = vsel %vm4834, %v4820, -inf
        %4836 = vmax.xlane.f32.xlu0 %v4835
        %v4837 = vpop.xlane.xlu0 %4836
        %v4838 = vsel %vm4834, %v4821, -inf
        %4839 = vmax.xlane.f32.xlu0 %v4838
        %v4840 = vpop.xlane.xlu0 %4839
        %v4841 = vsel %vm4834, %v4822, -inf
        %4842 = vmax.xlane.f32.xlu0 %v4841
        %v4843 = vpop.xlane.xlu0 %4842
        %v4844 = vsel %vm4834, %v4823, -inf
        %4845 = vmax.xlane.f32.xlu0 %v4844
        %v4846 = vpop.xlane.xlu0 %4845
        %v4847 = vsel %vm4834, %v4824, -inf
        %4848 = vmax.xlane.f32.xlu0 %v4847
        %v4849 = vpop.xlane.xlu0 %4848
        %v4850 = vsel %vm4834, %v4825, -inf
        %4851 = vmax.xlane.f32.xlu0 %v4850
        %v4852 = vpop.xlane.xlu0 %4851
        %v4853 = vsel %vm4834, %v4826, -inf
        %4854 = vmax.xlane.f32.xlu0 %v4853
        %v4855 = vpop.xlane.xlu0 %4854
        %v4856 = vsel %vm4834, %v4827, -inf
        %4857 = vmax.xlane.f32.xlu0 %v4856
        %v4858 = vpop.xlane.xlu0 %4857
        %v4859 = vsel %vm4834, %v4828, -inf
        %4860 = vmax.xlane.f32.xlu0 %v4859
        %v4861 = vpop.xlane.xlu0 %4860
        %v4862 = vsel %vm4834, %v4829, -inf
        %4863 = vmax.xlane.f32.xlu0 %v4862
        %v4864 = vpop.xlane.xlu0 %4863
        %v4865 = vsel %vm4834, %v4830, -inf
        %4866 = vmax.xlane.f32.xlu0 %v4865
        %v4867 = vpop.xlane.xlu0 %4866
        %v4868 = vsel %vm4834, %v4831, -inf
        %4869 = vmax.xlane.f32.xlu0 %v4868
        %v4870 = vpop.xlane.xlu0 %4869
        %v4871 = vsel %vm4834, %v4832, -inf
        %4872 = vmax.xlane.f32.xlu0 %v4871
        %v4873 = vpop.xlane.xlu0 %4872
        %vm4874 = vcmask 456704
        %v4875 = vsel %vm4874, %v4833, -inf
        %4876 = vmax.xlane.f32.xlu0 %v4875
        %v4877 = vpop.xlane.xlu0 %4876
        %v4878 = vsub.f32 %v4820, %v4837
        %v4879 = vsub.f32 %v4821, %v4840
        %v4880 = vsub.f32 %v4822, %v4843
        %v4881 = vsub.f32 %v4823, %v4846
        %v4882 = vsub.f32 %v4824, %v4849
        %v4883 = vsub.f32 %v4825, %v4852
        %v4884 = vsub.f32 %v4826, %v4855
        %v4885 = vsub.f32 %v4827, %v4858
        %v4886 = vsub.f32 %v4828, %v4861
        %v4887 = vsub.f32 %v4829, %v4864
        %v4888 = vsub.f32 %v4830, %v4867
        %v4889 = vsub.f32 %v4831, %v4870
        %v4890 = vsub.f32 %v4832, %v4873
        %v4891 = vsub.f32 %v4833, %v4877
        %v4892 = vmul.f32 %v4878, 1.442695
        %v4893 = vpow.pop %v4892
        %v4894 = vmul.f32 %v4879, 1.442695
        %v4895 = vpow.pop %v4894
        %v4896 = vmul.f32 %v4880, 1.442695
        %v4897 = vpow.pop %v4896
        %v4898 = vmul.f32 %v4881, 1.442695
        %v4899 = vpow.pop %v4898
        %v4900 = vmul.f32 %v4882, 1.442695
        %v4901 = vpow.pop %v4900
        %v4902 = vmul.f32 %v4883, 1.442695
        %v4903 = vpow.pop %v4902
        %v4904 = vmul.f32 %v4884, 1.442695
        %v4905 = vpow.pop %v4904
        %v4906 = vmul.f32 %v4885, 1.442695
        %v4907 = vpow.pop %v4906
        %v4908 = vmul.f32 %v4886, 1.442695
        %v4909 = vpow.pop %v4908
        %v4910 = vmul.f32 %v4887, 1.442695
        %v4911 = vpow.pop %v4910
        %v4912 = vmul.f32 %v4888, 1.442695
        %v4913 = vpow.pop %v4912
        %v4914 = vmul.f32 %v4889, 1.442695
        %v4915 = vpow.pop %v4914
        %v4916 = vmul.f32 %v4890, 1.442695
        %v4917 = vpow.pop %v4916
        %v4918 = vmul.f32 %v4891, 1.442695
        %v4919 = vpow.pop %v4918
        %v4920 = vsel %vm4834, %v4893, 0.0
        %4921 = vadd.xlane.f32.xlu0 %v4920
        %v4922 = vpop.xlane.xlu0 %4921
        %v4923 = vsel %vm4834, %v4895, 0.0
        %4924 = vadd.xlane.f32.xlu0 %v4923
        %v4925 = vpop.xlane.xlu0 %4924
        %v4926 = vsel %vm4834, %v4897, 0.0
        %4927 = vadd.xlane.f32.xlu0 %v4926
        %v4928 = vpop.xlane.xlu0 %4927
        %v4929 = vsel %vm4834, %v4899, 0.0
        %4930 = vadd.xlane.f32.xlu0 %v4929
        %v4931 = vpop.xlane.xlu0 %4930
        %v4932 = vsel %vm4834, %v4901, 0.0
        %4933 = vadd.xlane.f32.xlu0 %v4932
        %v4934 = vpop.xlane.xlu0 %4933
        %v4935 = vsel %vm4834, %v4903, 0.0
        %4936 = vadd.xlane.f32.xlu0 %v4935
        %v4937 = vpop.xlane.xlu0 %4936
        %v4938 = vsel %vm4834, %v4905, 0.0
        %4939 = vadd.xlane.f32.xlu0 %v4938
        %v4940 = vpop.xlane.xlu0 %4939
        %v4941 = vsel %vm4834, %v4907, 0.0
        %4942 = vadd.xlane.f32.xlu0 %v4941
        %v4943 = vpop.xlane.xlu0 %4942
        %v4944 = vsel %vm4834, %v4909, 0.0
        %4945 = vadd.xlane.f32.xlu0 %v4944
        %v4946 = vpop.xlane.xlu0 %4945
        %v4947 = vsel %vm4834, %v4911, 0.0
        %4948 = vadd.xlane.f32.xlu0 %v4947
        %v4949 = vpop.xlane.xlu0 %4948
        %v4950 = vsel %vm4834, %v4913, 0.0
        %4951 = vadd.xlane.f32.xlu0 %v4950
        %v4952 = vpop.xlane.xlu0 %4951
        %v4953 = vsel %vm4834, %v4915, 0.0
        %4954 = vadd.xlane.f32.xlu0 %v4953
        %v4955 = vpop.xlane.xlu0 %4954
        %v4956 = vsel %vm4834, %v4917, 0.0
        %4957 = vadd.xlane.f32.xlu0 %v4956
        %v4958 = vpop.xlane.xlu0 %4957
        %v4959 = vsel %vm4874, %v4919, 0.0
        %4960 = vadd.xlane.f32.xlu0 %v4959
        %v4961 = vpop.xlane.xlu0 %4960
        %v4962 = vrcp.pop %v4922
        %v4963 = vrcp.pop %v4925
        %v4964 = vrcp.pop %v4928
        %v4965 = vrcp.pop %v4931
        %v4966 = vrcp.pop %v4934
        %v4967 = vrcp.pop %v4937
        %v4968 = vrcp.pop %v4940
        %v4969 = vrcp.pop %v4943
        %v4970 = vrcp.pop %v4946
        %v4971 = vrcp.pop %v4949
        %v4972 = vrcp.pop %v4952
        %v4973 = vrcp.pop %v4955
        %v4974 = vrcp.pop %v4958
        %v4975 = vrcp.pop %v4961
        %v4976 = vmul.f32 %v4893, %v4962
        %v4977 = vmul.f32 %v4895, %v4963
        %v4978 = vmul.f32 %v4897, %v4964
        %v4979 = vmul.f32 %v4899, %v4965
        %v4980 = vmul.f32 %v4901, %v4966
        %v4981 = vmul.f32 %v4903, %v4967
        %v4982 = vmul.f32 %v4905, %v4968
        %v4983 = vmul.f32 %v4907, %v4969
        %v4984 = vmul.f32 %v4909, %v4970
        %v4985 = vmul.f32 %v4911, %v4971
        %v4986 = vmul.f32 %v4913, %v4972
        %v4987 = vmul.f32 %v4915, %v4973
        %v4988 = vmul.f32 %v4917, %v4974
        %v4989 = vmul.f32 %v4919, %v4975
        %v4990 = vsel %vm4834, %v4976, -inf
        %4991 = vmax.xlane.f32.xlu0 %v4990
        %v4992 = vpop.xlane.xlu0 %4991
        %v4993 = vsel %vm4834, %v4977, -inf
        %4994 = vmax.xlane.f32.xlu0 %v4993
        %v4995 = vpop.xlane.xlu0 %4994
        %v4996 = vsel %vm4834, %v4978, -inf
        %4997 = vmax.xlane.f32.xlu0 %v4996
        %v4998 = vpop.xlane.xlu0 %4997
        %v4999 = vsel %vm4834, %v4979, -inf
        %5000 = vmax.xlane.f32.xlu0 %v4999
        %v5001 = vpop.xlane.xlu0 %5000
        %v5002 = vsel %vm4834, %v4980, -inf
        %5003 = vmax.xlane.f32.xlu0 %v5002
        %v5004 = vpop.xlane.xlu0 %5003
        %v5005 = vsel %vm4834, %v4981, -inf
        %5006 = vmax.xlane.f32.xlu0 %v5005
        %v5007 = vpop.xlane.xlu0 %5006
        %v5008 = vsel %vm4834, %v4982, -inf
        %5009 = vmax.xlane.f32.xlu0 %v5008
        %v5010 = vpop.xlane.xlu0 %5009
        %v5011 = vsel %vm4834, %v4983, -inf
        %5012 = vmax.xlane.f32.xlu0 %v5011
        %v5013 = vpop.xlane.xlu0 %5012
        %v5014 = vsel %vm4834, %v4984, -inf
        %5015 = vmax.xlane.f32.xlu0 %v5014
        %v5016 = vpop.xlane.xlu0 %5015
        %v5017 = vsel %vm4834, %v4985, -inf
        %5018 = vmax.xlane.f32.xlu0 %v5017
        %v5019 = vpop.xlane.xlu0 %5018
        %v5020 = vsel %vm4834, %v4986, -inf
        %5021 = vmax.xlane.f32.xlu0 %v5020
        %v5022 = vpop.xlane.xlu0 %5021
        %v5023 = vsel %vm4834, %v4987, -inf
        %5024 = vmax.xlane.f32.xlu0 %v5023
        %v5025 = vpop.xlane.xlu0 %5024
        %v5026 = vsel %vm4834, %v4988, -inf
        %5027 = vmax.xlane.f32.xlu0 %v5026
        %v5028 = vpop.xlane.xlu0 %5027
        %v5029 = vsel %vm4874, %v4989, -inf
        %5030 = vmax.xlane.f32.xlu0 %v5029
        %v5031 = vpop.xlane.xlu0 %5030
        %v5032 = vsub.f32 %v4976, %v4992
        %v5033 = vsub.f32 %v4977, %v4995
        %v5034 = vsub.f32 %v4978, %v4998
        %v5035 = vsub.f32 %v4979, %v5001
        %v5036 = vsub.f32 %v4980, %v5004
        %v5037 = vsub.f32 %v4981, %v5007
        %v5038 = vsub.f32 %v4982, %v5010
        %v5039 = vsub.f32 %v4983, %v5013
        %v5040 = vsub.f32 %v4984, %v5016
        %v5041 = vsub.f32 %v4985, %v5019
        %v5042 = vsub.f32 %v4986, %v5022
        %v5043 = vsub.f32 %v4987, %v5025
        %v5044 = vsub.f32 %v4988, %v5028
        %v5045 = vsub.f32 %v4989, %v5031
        %v5046 = vmul.f32 %v5032, 1.442695
        %v5047 = vpow.pop %v5046
        %v5048 = vmul.f32 %v5033, 1.442695
        %v5049 = vpow.pop %v5048
        %v5050 = vmul.f32 %v5034, 1.442695
        %v5051 = vpow.pop %v5050
        %v5052 = vmul.f32 %v5035, 1.442695
        %v5053 = vpow.pop %v5052
        %v5054 = vmul.f32 %v5036, 1.442695
        %v5055 = vpow.pop %v5054
        %v5056 = vmul.f32 %v5037, 1.442695
        %v5057 = vpow.pop %v5056
        %v5058 = vmul.f32 %v5038, 1.442695
        %v5059 = vpow.pop %v5058
        %v5060 = vmul.f32 %v5039, 1.442695
        %v5061 = vpow.pop %v5060
        %v5062 = vmul.f32 %v5040, 1.442695
        %v5063 = vpow.pop %v5062
        %v5064 = vmul.f32 %v5041, 1.442695
        %v5065 = vpow.pop %v5064
        %v5066 = vmul.f32 %v5042, 1.442695
        %v5067 = vpow.pop %v5066
        %v5068 = vmul.f32 %v5043, 1.442695
        %v5069 = vpow.pop %v5068
        %v5070 = vmul.f32 %v5044, 1.442695
        %v5071 = vpow.pop %v5070
        %v5072 = vmul.f32 %v5045, 1.442695
        %v5073 = vpow.pop %v5072
        %v5074 = vsel %vm4834, %v5047, 0.0
        %5075 = vadd.xlane.f32.xlu0 %v5074
        %v5076 = vpop.xlane.xlu0 %5075
        %v5077 = vsel %vm4834, %v5049, 0.0
        %5078 = vadd.xlane.f32.xlu0 %v5077
        %v5079 = vpop.xlane.xlu0 %5078
        %v5080 = vsel %vm4834, %v5051, 0.0
        %5081 = vadd.xlane.f32.xlu0 %v5080
        %v5082 = vpop.xlane.xlu0 %5081
        %v5083 = vsel %vm4834, %v5053, 0.0
        %5084 = vadd.xlane.f32.xlu0 %v5083
        %v5085 = vpop.xlane.xlu0 %5084
        %v5086 = vsel %vm4834, %v5055, 0.0
        %5087 = vadd.xlane.f32.xlu0 %v5086
        %v5088 = vpop.xlane.xlu0 %5087
        %v5089 = vsel %vm4834, %v5057, 0.0
        %5090 = vadd.xlane.f32.xlu0 %v5089
        %v5091 = vpop.xlane.xlu0 %5090
        %v5092 = vsel %vm4834, %v5059, 0.0
        %5093 = vadd.xlane.f32.xlu0 %v5092
        %v5094 = vpop.xlane.xlu0 %5093
        %v5095 = vsel %vm4834, %v5061, 0.0
        %5096 = vadd.xlane.f32.xlu0 %v5095
        %v5097 = vpop.xlane.xlu0 %5096
        %v5098 = vsel %vm4834, %v5063, 0.0
        %5099 = vadd.xlane.f32.xlu0 %v5098
        %v5100 = vpop.xlane.xlu0 %5099
        %v5101 = vsel %vm4834, %v5065, 0.0
        %5102 = vadd.xlane.f32.xlu0 %v5101
        %v5103 = vpop.xlane.xlu0 %5102
        %v5104 = vsel %vm4834, %v5067, 0.0
        %5105 = vadd.xlane.f32.xlu0 %v5104
        %v5106 = vpop.xlane.xlu0 %5105
        %v5107 = vsel %vm4834, %v5069, 0.0
        %5108 = vadd.xlane.f32.xlu0 %v5107
        %v5109 = vpop.xlane.xlu0 %5108
        %v5110 = vsel %vm4834, %v5071, 0.0
        %5111 = vadd.xlane.f32.xlu0 %v5110
        %v5112 = vpop.xlane.xlu0 %5111
        %v5113 = vsel %vm4874, %v5073, 0.0
        %5114 = vadd.xlane.f32.xlu0 %v5113
        %v5115 = vpop.xlane.xlu0 %5114
        %v5116 = vrcp.pop %v5076
        %v5117 = vrcp.pop %v5079
        %v5118 = vrcp.pop %v5082
        %v5119 = vrcp.pop %v5085
        %v5120 = vrcp.pop %v5088
        %v5121 = vrcp.pop %v5091
        %v5122 = vrcp.pop %v5094
        %v5123 = vrcp.pop %v5097
        %v5124 = vrcp.pop %v5100
        %v5125 = vrcp.pop %v5103
        %v5126 = vrcp.pop %v5106
        %v5127 = vrcp.pop %v5109
        %v5128 = vrcp.pop %v5112
        %v5129 = vrcp.pop %v5115
        %v5130 = vmul.f32 %v5047, %v5116
        %v5131 = vmul.f32 %v5049, %v5117
        %v5132 = vmul.f32 %v5051, %v5118
        %v5133 = vmul.f32 %v5053, %v5119
        %v5134 = vmul.f32 %v5055, %v5120
        %v5135 = vmul.f32 %v5057, %v5121
        %v5136 = vmul.f32 %v5059, %v5122
        %v5137 = vmul.f32 %v5061, %v5123
        %v5138 = vmul.f32 %v5063, %v5124
        %v5139 = vmul.f32 %v5065, %v5125
        %v5140 = vmul.f32 %v5067, %v5126
        %v5141 = vmul.f32 %v5069, %v5127
        %v5142 = vmul.f32 %v5071, %v5128
        %v5143 = vmul.f32 %v5073, %v5129
        %vm5144 = vcmp.lt.f32.partialorder %v3344, 100.0
        %vm5145 = vcmp.lt.f32.partialorder %v3347, 100.0
        %vm5146 = vcmp.lt.f32.partialorder %v3350, 100.0
        %vm5147 = vcmp.lt.f32.partialorder %v3353, 100.0
        %vm5148 = vcmp.lt.f32.partialorder %v3356, 100.0
        %vm5149 = vcmp.lt.f32.partialorder %v3359, 100.0
        %vm5150 = vcmp.lt.f32.partialorder %v3362, 100.0
        %vm5151 = vcmp.lt.f32.partialorder %v3365, 100.0
        %vm5152 = vcmp.lt.f32.partialorder %v3368, 100.0
        %vm5153 = vcmp.lt.f32.partialorder %v3371, 100.0
        %vm5154 = vcmp.lt.f32.partialorder %v3374, 100.0
        %vm5155 = vcmp.lt.f32.partialorder %v3377, 100.0
        %vm5156 = vcmp.lt.f32.partialorder %v3380, 100.0
        %vm5157 = vcmp.lt.f32.partialorder %v3384, 100.0
        %vm5158 = vcmp.lt.s32.totalorder %v3067, 110
        %vm5159 = vcmp.lt.s32.totalorder %v3068, 110
        %vm5160 = vcmp.lt.s32.totalorder %v3069, 110
        %vm5161 = vcmp.lt.s32.totalorder %v3070, 110
        %vm5162 = vcmp.lt.s32.totalorder %v3071, 110
        %vm5163 = vcmp.lt.s32.totalorder %v3072, 110
        %vm5164 = vcmp.lt.s32.totalorder %v3073, 110
        %vm5165 = vcmp.lt.s32.totalorder %v3074, 110
        %vm5166 = vcmp.lt.s32.totalorder %v3075, 110
        %vm5167 = vcmp.lt.s32.totalorder %v3076, 110
        %vm5168 = vcmp.lt.s32.totalorder %v3077, 110
        %vm5169 = vcmp.lt.s32.totalorder %v3078, 110
        %vm5170 = vcmp.lt.s32.totalorder %v3079, 110
        %vm5171 = vcmp.lt.s32.totalorder %v3080, 110
        %vm5172 = vmand %vm5144, %vm5158
        %vm5173 = vmand %vm5145, %vm5159
        %vm5174 = vmand %vm5146, %vm5160
        %vm5175 = vmand %vm5147, %vm5161
        %vm5176 = vmand %vm5148, %vm5162
        %vm5177 = vmand %vm5149, %vm5163
        %vm5178 = vmand %vm5150, %vm5164
        %vm5179 = vmand %vm5151, %vm5165
        %vm5180 = vmand %vm5152, %vm5166
        %vm5181 = vmand %vm5153, %vm5167
        %vm5182 = vmand %vm5154, %vm5168
        %vm5183 = vmand %vm5155, %vm5169
        %vm5184 = vmand %vm5156, %vm5170
        %vm5185 = vmand %vm5157, %vm5171
        %v5186 = vsel %vm5172, 1, 0
        %v5187 = vsel %vm5173, 1, 0
        %v5188 = vsel %vm5174, 1, 0
        %v5189 = vsel %vm5175, 1, 0
        %v5190 = vsel %vm5176, 1, 0
        %v5191 = vsel %vm5177, 1, 0
        %v5192 = vsel %vm5178, 1, 0
        %v5193 = vsel %vm5179, 1, 0
        %v5194 = vsel %vm5180, 1, 0
        %v5195 = vsel %vm5181, 1, 0
        %v5196 = vsel %vm5182, 1, 0
        %v5197 = vsel %vm5183, 1, 0
        %v5198 = vsel %vm5184, 1, 0
        %v5199 = vsel %vm5185, 1, 0
        %v5200 = vcvt.s32.f32 %v5186
        %v5201 = vcvt.s32.f32 %v5187
        %v5202 = vcvt.s32.f32 %v5188
        %v5203 = vcvt.s32.f32 %v5189
        %v5204 = vcvt.s32.f32 %v5190
        %v5205 = vcvt.s32.f32 %v5191
        %v5206 = vcvt.s32.f32 %v5192
        %v5207 = vcvt.s32.f32 %v5193
        %v5208 = vcvt.s32.f32 %v5194
        %v5209 = vcvt.s32.f32 %v5195
        %v5210 = vcvt.s32.f32 %v5196
        %v5211 = vcvt.s32.f32 %v5197
        %v5212 = vcvt.s32.f32 %v5198
        %v5213 = vcvt.s32.f32 %v5199
        %vm5214 = vcmp.le.s32.totalorder %v3082, %v3067
        %vm5215 = vcmp.le.s32.totalorder %v3082, %v3068
        %vm5216 = vcmp.le.s32.totalorder %v3082, %v3069
        %vm5217 = vcmp.le.s32.totalorder %v3082, %v3070
        %vm5218 = vcmp.le.s32.totalorder %v3082, %v3071
        %vm5219 = vcmp.le.s32.totalorder %v3082, %v3072
        %vm5220 = vcmp.le.s32.totalorder %v3082, %v3073
        %vm5221 = vcmp.le.s32.totalorder %v3082, %v3074
        %vm5222 = vcmp.le.s32.totalorder %v3082, %v3075
        %vm5223 = vcmp.le.s32.totalorder %v3082, %v3076
        %vm5224 = vcmp.le.s32.totalorder %v3082, %v3077
        %vm5225 = vcmp.le.s32.totalorder %v3082, %v3078
        %vm5226 = vcmp.le.s32.totalorder %v3082, %v3079
        %vm5227 = vcmp.le.s32.totalorder %v3082, %v3080
        %v5228 = vsel %vm5214, 1, 0
        %v5229 = vsel %vm5215, 1, 0
        %v5230 = vsel %vm5216, 1, 0
        %v5231 = vsel %vm5217, 1, 0
        %v5232 = vsel %vm5218, 1, 0
        %v5233 = vsel %vm5219, 1, 0
        %v5234 = vsel %vm5220, 1, 0
        %v5235 = vsel %vm5221, 1, 0
        %v5236 = vsel %vm5222, 1, 0
        %v5237 = vsel %vm5223, 1, 0
        %v5238 = vsel %vm5224, 1, 0
        %v5239 = vsel %vm5225, 1, 0
        %v5240 = vsel %vm5226, 1, 0
        %v5241 = vsel %vm5227, 1, 0
        %v5242 = vcvt.s32.f32 %v5228
        %v5243 = vcvt.s32.f32 %v5229
        %v5244 = vcvt.s32.f32 %v5230
        %v5245 = vcvt.s32.f32 %v5231
        %v5246 = vcvt.s32.f32 %v5232
        %v5247 = vcvt.s32.f32 %v5233
        %v5248 = vcvt.s32.f32 %v5234
        %v5249 = vcvt.s32.f32 %v5235
        %v5250 = vcvt.s32.f32 %v5236
        %v5251 = vcvt.s32.f32 %v5237
        %v5252 = vcvt.s32.f32 %v5238
        %v5253 = vcvt.s32.f32 %v5239
        %v5254 = vcvt.s32.f32 %v5240
        %v5255 = vcvt.s32.f32 %v5241
        %v5257 = vsel %vm477, %v5242, 0
        %v5260 = vsel %vm477, %v5243, 0
        %v5263 = vsel %vm477, %v5244, 0
        %v5266 = vsel %vm477, %v5245, 0
        %v5269 = vsel %vm477, %v5246, 0
        %v5272 = vsel %vm477, %v5247, 0
        %v5275 = vsel %vm477, %v5248, 0
        %v5278 = vsel %vm477, %v5249, 0
        %v5281 = vsel %vm477, %v5250, 0
        %v5284 = vsel %vm477, %v5251, 0
        %v5287 = vsel %vm477, %v5252, 0
        %v5290 = vsel %vm477, %v5253, 0
        %v5293 = vsel %vm477, %v5254, 0
        %v5296 = vsel %vm477, %v5255, 0
        %v5299 = vsel %vm520, %v5213, 0
        %5301 = vmatpush.msra.mxu0 0.0
        %5302 = vmatpush.msra.mxu0 0.0
        %5303 = vmatpush.msra.mxu0 %v5299
        %5304 = vmatpush.msra.mxu0 %v5212
        %5305 = vmatpush.msra.mxu0 %v5211
        %5306 = vmatpush.msra.mxu0 %v5210
        %5307 = vmatpush.msra.mxu0 %v5209
        %5308 = vmatpush.msra.mxu0 %v5208
        %5309 = vmatpush.msra.mxu0 %v5207
        %5310 = vmatpush.msra.mxu0 %v5206
        %5311 = vmatpush.msra.mxu0 %v5205
        %5312 = vmatpush.msra.mxu0 %v5204
        %5313 = vmatpush.msra.mxu0 %v5203
        %5314 = vmatpush.msra.mxu0 %v5202
        %5315 = vmatpush.msra.mxu0 %v5201
        %5316 = vmatpush.msra.mxu0 %v5200
        %5317 = vmatmul.f32.gmra.mxu0 %v5257
        %v5318 = vpop.f32.mrf.mxu0
        %v5319 = vadd.f32 0.0, %v5318
        %5320 = vmatmul.f32.gmra.mxu0 %v5260
        %v5321 = vpop.f32.mrf.mxu0
        %v5322 = vadd.f32 0.0, %v5321
        %5323 = vmatmul.f32.gmra.mxu0 %v5263
        %v5324 = vpop.f32.mrf.mxu0
        %v5325 = vadd.f32 0.0, %v5324
        %5326 = vmatmul.f32.gmra.mxu0 %v5266
        %v5327 = vpop.f32.mrf.mxu0
        %v5328 = vadd.f32 0.0, %v5327
        %5329 = vmatmul.f32.gmra.mxu0 %v5269
        %v5330 = vpop.f32.mrf.mxu0
        %v5331 = vadd.f32 0.0, %v5330
        %5332 = vmatmul.f32.gmra.mxu0 %v5272
        %v5333 = vpop.f32.mrf.mxu0
        %v5334 = vadd.f32 0.0, %v5333
        %5335 = vmatmul.f32.gmra.mxu0 %v5275
        %v5336 = vpop.f32.mrf.mxu0
        %v5337 = vadd.f32 0.0, %v5336
        %5338 = vmatmul.f32.gmra.mxu0 %v5278
        %v5339 = vpop.f32.mrf.mxu0
        %v5340 = vadd.f32 0.0, %v5339
        %5341 = vmatmul.f32.gmra.mxu0 %v5281
        %v5342 = vpop.f32.mrf.mxu0
        %v5343 = vadd.f32 0.0, %v5342
        %5344 = vmatmul.f32.gmra.mxu0 %v5284
        %v5345 = vpop.f32.mrf.mxu0
        %v5346 = vadd.f32 0.0, %v5345
        %5347 = vmatmul.f32.gmra.mxu0 %v5287
        %v5348 = vpop.f32.mrf.mxu0
        %v5349 = vadd.f32 0.0, %v5348
        %5350 = vmatmul.f32.gmra.mxu0 %v5290
        %v5351 = vpop.f32.mrf.mxu0
        %v5352 = vadd.f32 0.0, %v5351
        %5353 = vmatmul.f32.gmra.mxu0 %v5293
        %v5354 = vpop.f32.mrf.mxu0
        %v5355 = vadd.f32 0.0, %v5354
        %5356 = vmatmul.f32.gmra.mxu0 %v5296
        %v5357 = vpop.f32.mrf.mxu0
        %v5358 = vadd.f32 0.0, %v5357
        %5359 = vdwg.mxu0
        %v5360 = vsub.f32 %v5319, 1.0
        %v5361 = vsub.f32 %v5322, 1.0
        %v5362 = vsub.f32 %v5325, 1.0
        %v5363 = vsub.f32 %v5328, 1.0
        %v5364 = vsub.f32 %v5331, 1.0
        %v5365 = vsub.f32 %v5334, 1.0
        %v5366 = vsub.f32 %v5337, 1.0
        %v5367 = vsub.f32 %v5340, 1.0
        %v5368 = vsub.f32 %v5343, 1.0
        %v5369 = vsub.f32 %v5346, 1.0
        %v5370 = vsub.f32 %v5349, 1.0
        %v5371 = vsub.f32 %v5352, 1.0
        %v5372 = vsub.f32 %v5355, 1.0
        %v5373 = vsub.f32 %v5358, 1.0
        %vm5374 = vcmp.gt.f32.partialorder %v5200, 0.0
        %vm5375 = vcmp.gt.f32.partialorder %v5201, 0.0
        %vm5376 = vcmp.gt.f32.partialorder %v5202, 0.0
        %vm5377 = vcmp.gt.f32.partialorder %v5203, 0.0
        %vm5378 = vcmp.gt.f32.partialorder %v5204, 0.0
        %vm5379 = vcmp.gt.f32.partialorder %v5205, 0.0
        %vm5380 = vcmp.gt.f32.partialorder %v5206, 0.0
        %vm5381 = vcmp.gt.f32.partialorder %v5207, 0.0
        %vm5382 = vcmp.gt.f32.partialorder %v5208, 0.0
        %vm5383 = vcmp.gt.f32.partialorder %v5209, 0.0
        %vm5384 = vcmp.gt.f32.partialorder %v5210, 0.0
        %vm5385 = vcmp.gt.f32.partialorder %v5211, 0.0
        %vm5386 = vcmp.gt.f32.partialorder %v5212, 0.0
        %vm5387 = vcmp.gt.f32.partialorder %v5213, 0.0
        %v5388 = vsel %vm5374, %v5360, -1.0
        %v5389 = vsel %vm5375, %v5361, -1.0
        %v5390 = vsel %vm5376, %v5362, -1.0
        %v5391 = vsel %vm5377, %v5363, -1.0
        %v5392 = vsel %vm5378, %v5364, -1.0
        %v5393 = vsel %vm5379, %v5365, -1.0
        %v5394 = vsel %vm5380, %v5366, -1.0
        %v5395 = vsel %vm5381, %v5367, -1.0
        %v5396 = vsel %vm5382, %v5368, -1.0
        %v5397 = vsel %vm5383, %v5369, -1.0
        %v5398 = vsel %vm5384, %v5370, -1.0
        %v5399 = vsel %vm5385, %v5371, -1.0
        %v5400 = vsel %vm5386, %v5372, -1.0
        %v5401 = vsel %vm5387, %v5373, -1.0
        %v5403 = vsel %vm3153, %v5388, 0
        %v5406 = vsel %vm3153, %v5389, 0
        %v5409 = vsel %vm3153, %v5390, 0
        %v5412 = vsel %vm3153, %v5391, 0
        %v5415 = vsel %vm3153, %v5392, 0
        %v5418 = vsel %vm3153, %v5393, 0
        %v5421 = vsel %vm3153, %v5394, 0
        %v5424 = vsel %vm3153, %v5395, 0
        %v5427 = vsel %vm3153, %v5396, 0
        %v5430 = vsel %vm3153, %v5397, 0
        %v5433 = vsel %vm3153, %v5398, 0
        %v5436 = vsel %vm3153, %v5399, 0
        %v5439 = vsel %vm3153, %v5400, 0
        %v5442 = vsel %vm3153, %v5401, 0
        %5444 = vmatpush.xpose.msra.mxu0 0.0
        %5445 = vmatpush.xpose.msra.mxu0 0.0
        %5446 = vmatpush.xpose.msra.mxu0 %v5442
        %5447 = vmatpush.xpose.msra.mxu0 %v5439
        %5448 = vmatpush.xpose.msra.mxu0 %v5436
        %5449 = vmatpush.xpose.msra.mxu0 %v5433
        %5450 = vmatpush.xpose.msra.mxu0 %v5430
        %5451 = vmatpush.xpose.msra.mxu0 %v5427
        %5452 = vmatpush.xpose.msra.mxu0 %v5424
        %5453 = vmatpush.xpose.msra.mxu0 %v5421
        %5454 = vmatpush.xpose.msra.mxu0 %v5418
        %5455 = vmatpush.xpose.msra.mxu0 %v5415
        %5456 = vmatpush.xpose.msra.mxu0 %v5412
        %5457 = vmatpush.xpose.msra.mxu0 %v5409
        %5458 = vmatpush.xpose.msra.mxu0 %v5406
        %5459 = vmatpush.xpose.msra.mxu0 %v5403
        %5460 = vmatmul.f32.gmra.mxu0 %v3155
        %v5461 = vpop.f32.mrf.mxu0
        %v5462 = vadd.f32 0.0, %v5461
        %5463 = vmatmul.f32.gmra.mxu0 %v3155
        %v5464 = vpop.f32.mrf.mxu0
        %v5465 = vadd.f32 0.0, %v5464
        %5466 = vmatmul.f32.gmra.mxu0 %v3155
        %v5467 = vpop.f32.mrf.mxu0
        %v5468 = vadd.f32 0.0, %v5467
        %5469 = vmatmul.f32.gmra.mxu0 %v3155
        %v5470 = vpop.f32.mrf.mxu0
        %v5471 = vadd.f32 0.0, %v5470
        %5472 = vmatmul.f32.gmra.mxu0 %v3155
        %v5473 = vpop.f32.mrf.mxu0
        %v5474 = vadd.f32 0.0, %v5473
        %5475 = vmatmul.f32.gmra.mxu0 %v3155
        %v5476 = vpop.f32.mrf.mxu0
        %v5477 = vadd.f32 0.0, %v5476
        %5478 = vmatmul.f32.gmra.mxu0 %v3155
        %v5479 = vpop.f32.mrf.mxu0
        %v5480 = vadd.f32 0.0, %v5479
        %5481 = vmatmul.f32.gmra.mxu0 %v3155
        %v5482 = vpop.f32.mrf.mxu0
        %v5483 = vadd.f32 0.0, %v5482
        %5484 = vmatmul.f32.gmra.mxu0 %v3155
        %v5485 = vpop.f32.mrf.mxu0
        %v5486 = vadd.f32 0.0, %v5485
        %5487 = vmatmul.f32.gmra.mxu0 %v3155
        %v5488 = vpop.f32.mrf.mxu0
        %v5489 = vadd.f32 0.0, %v5488
        %5490 = vmatmul.f32.gmra.mxu0 %v3155
        %v5491 = vpop.f32.mrf.mxu0
        %v5492 = vadd.f32 0.0, %v5491
        %5493 = vmatmul.f32.gmra.mxu0 %v3155
        %v5494 = vpop.f32.mrf.mxu0
        %v5495 = vadd.f32 0.0, %v5494
        %5496 = vmatmul.f32.gmra.mxu0 %v3155
        %v5497 = vpop.f32.mrf.mxu0
        %v5498 = vadd.f32 0.0, %v5497
        %5499 = vdwg.mxu0
        %vm5500 = vcmp.eq.f32.partialorder %v3486, %v5462
        %vm5501 = vcmp.eq.f32.partialorder %v3487, %v5465
        %vm5502 = vcmp.eq.f32.partialorder %v3488, %v5468
        %vm5503 = vcmp.eq.f32.partialorder %v3489, %v5471
        %vm5504 = vcmp.eq.f32.partialorder %v3490, %v5474
        %vm5505 = vcmp.eq.f32.partialorder %v3491, %v5477
        %vm5506 = vcmp.eq.f32.partialorder %v3492, %v5480
        %vm5507 = vcmp.eq.f32.partialorder %v3493, %v5483
        %vm5508 = vcmp.eq.f32.partialorder %v3494, %v5486
        %vm5509 = vcmp.eq.f32.partialorder %v3495, %v5489
        %vm5510 = vcmp.eq.f32.partialorder %v3496, %v5492
        %vm5511 = vcmp.eq.f32.partialorder %v3497, %v5495
        %vm5512 = vcmp.eq.f32.partialorder %v3498, %v5498
        %v5513 = vsel %vm5500, 1, 0
        %v5514 = vsel %vm5501, 1, 0
        %v5515 = vsel %vm5502, 1, 0
        %v5516 = vsel %vm5503, 1, 0
        %v5517 = vsel %vm5504, 1, 0
        %v5518 = vsel %vm5505, 1, 0
        %v5519 = vsel %vm5506, 1, 0
        %v5520 = vsel %vm5507, 1, 0
        %v5521 = vsel %vm5508, 1, 0
        %v5522 = vsel %vm5509, 1, 0
        %v5523 = vsel %vm5510, 1, 0
        %v5524 = vsel %vm5511, 1, 0
        %v5525 = vsel %vm5512, 1, 0
        %v5526 = vcvt.s32.f32 %v5513
        %v5527 = vcvt.s32.f32 %v5514
        %v5528 = vcvt.s32.f32 %v5515
        %v5529 = vcvt.s32.f32 %v5516
        %v5530 = vcvt.s32.f32 %v5517
        %v5531 = vcvt.s32.f32 %v5518
        %v5532 = vcvt.s32.f32 %v5519
        %v5533 = vcvt.s32.f32 %v5520
        %v5534 = vcvt.s32.f32 %v5521
        %v5535 = vcvt.s32.f32 %v5522
        %v5536 = vcvt.s32.f32 %v5523
        %v5537 = vcvt.s32.f32 %v5524
        %v5538 = vcvt.s32.f32 %v5525
        %v5540 = vsel %vm477, %v5526, 0
        %v5543 = vsel %vm477, %v5527, 0
        %v5546 = vsel %vm477, %v5528, 0
        %v5549 = vsel %vm477, %v5529, 0
        %v5552 = vsel %vm477, %v5530, 0
        %v5555 = vsel %vm477, %v5531, 0
        %v5558 = vsel %vm477, %v5532, 0
        %v5561 = vsel %vm477, %v5533, 0
        %v5564 = vsel %vm477, %v5534, 0
        %v5567 = vsel %vm477, %v5535, 0
        %v5570 = vsel %vm477, %v5536, 0
        %v5573 = vsel %vm477, %v5537, 0
        %v5576 = vsel %vm477, %v5538, 0
        %v5579 = vsel %vm520, %v4989, 0
        %5581 = vmatpush.msra.mxu0 0.0
        %5582 = vmatpush.msra.mxu0 0.0
        %5583 = vmatpush.msra.mxu0 %v5579
        %5584 = vmatpush.msra.mxu0 %v4988
        %5585 = vmatpush.msra.mxu0 %v4987
        %5586 = vmatpush.msra.mxu0 %v4986
        %5587 = vmatpush.msra.mxu0 %v4985
        %5588 = vmatpush.msra.mxu0 %v4984
        %5589 = vmatpush.msra.mxu0 %v4983
        %5590 = vmatpush.msra.mxu0 %v4982
        %5591 = vmatpush.msra.mxu0 %v4981
        %5592 = vmatpush.msra.mxu0 %v4980
        %5593 = vmatpush.msra.mxu0 %v4979
        %5594 = vmatpush.msra.mxu0 %v4978
        %5595 = vmatpush.msra.mxu0 %v4977
        %5596 = vmatpush.msra.mxu0 %v4976
        %5597 = vmatmul.f32.gmra.mxu0 %v5540
        %v5598 = vpop.f32.mrf.mxu0
        %v5599 = vadd.f32 0.0, %v5598
        %5600 = vmatmul.f32.gmra.mxu0 %v5543
        %v5601 = vpop.f32.mrf.mxu0
        %v5602 = vadd.f32 0.0, %v5601
        %5603 = vmatmul.f32.gmra.mxu0 %v5546
        %v5604 = vpop.f32.mrf.mxu0
        %v5605 = vadd.f32 0.0, %v5604
        %5606 = vmatmul.f32.gmra.mxu0 %v5549
        %v5607 = vpop.f32.mrf.mxu0
        %v5608 = vadd.f32 0.0, %v5607
        %5609 = vmatmul.f32.gmra.mxu0 %v5552
        %v5610 = vpop.f32.mrf.mxu0
        %v5611 = vadd.f32 0.0, %v5610
        %5612 = vmatmul.f32.gmra.mxu0 %v5555
        %v5613 = vpop.f32.mrf.mxu0
        %v5614 = vadd.f32 0.0, %v5613
        %5615 = vmatmul.f32.gmra.mxu0 %v5558
        %v5616 = vpop.f32.mrf.mxu0
        %v5617 = vadd.f32 0.0, %v5616
        %5618 = vmatmul.f32.gmra.mxu0 %v5561
        %v5619 = vpop.f32.mrf.mxu0
        %v5620 = vadd.f32 0.0, %v5619
        %5621 = vmatmul.f32.gmra.mxu0 %v5564
        %v5622 = vpop.f32.mrf.mxu0
        %v5623 = vadd.f32 0.0, %v5622
        %5624 = vmatmul.f32.gmra.mxu0 %v5567
        %v5625 = vpop.f32.mrf.mxu0
        %v5626 = vadd.f32 0.0, %v5625
        %5627 = vmatmul.f32.gmra.mxu0 %v5570
        %v5628 = vpop.f32.mrf.mxu0
        %v5629 = vadd.f32 0.0, %v5628
        %5630 = vmatmul.f32.gmra.mxu0 %v5573
        %v5631 = vpop.f32.mrf.mxu0
        %v5632 = vadd.f32 0.0, %v5631
        %5633 = vmatmul.f32.gmra.mxu0 %v5576
        %v5634 = vpop.f32.mrf.mxu0
        %v5635 = vadd.f32 0.0, %v5634
        %5636 = vdwg.mxu0
        %v5638 = vsel %vm4834, %v5599, 0
        %v5641 = vsel %vm4834, %v5602, 0
        %v5644 = vsel %vm4834, %v5605, 0
        %v5647 = vsel %vm4834, %v5608, 0
        %v5650 = vsel %vm4834, %v5611, 0
        %v5653 = vsel %vm4834, %v5614, 0
        %v5656 = vsel %vm4834, %v5617, 0
        %v5659 = vsel %vm4834, %v5620, 0
        %v5662 = vsel %vm4834, %v5623, 0
        %v5665 = vsel %vm4834, %v5626, 0
        %v5668 = vsel %vm4834, %v5629, 0
        %v5671 = vsel %vm4834, %v5632, 0
        %v5674 = vsel %vm4834, %v5635, 0
        %v5677 = vsel %vm4834, %v5130, 0
        %v5680 = vsel %vm4834, %v5131, 0
        %v5683 = vsel %vm4834, %v5132, 0
        %v5686 = vsel %vm4834, %v5133, 0
        %v5689 = vsel %vm4834, %v5134, 0
        %v5692 = vsel %vm4834, %v5135, 0
        %v5695 = vsel %vm4834, %v5136, 0
        %v5698 = vsel %vm4834, %v5137, 0
        %v5701 = vsel %vm4834, %v5138, 0
        %v5704 = vsel %vm4834, %v5139, 0
        %v5707 = vsel %vm4834, %v5140, 0
        %v5710 = vsel %vm4834, %v5141, 0
        %v5713 = vsel %vm4834, %v5142, 0
        %v5716 = vsel %vm4834, %v5143, 0
        %5718 = vmatpush.xpose.msra.mxu0 0.0
        %5719 = vmatpush.xpose.msra.mxu0 0.0
        %5720 = vmatpush.xpose.msra.mxu0 %v5716
        %5721 = vmatpush.xpose.msra.mxu0 %v5713
        %5722 = vmatpush.xpose.msra.mxu0 %v5710
        %5723 = vmatpush.xpose.msra.mxu0 %v5707
        %5724 = vmatpush.xpose.msra.mxu0 %v5704
        %5725 = vmatpush.xpose.msra.mxu0 %v5701
        %5726 = vmatpush.xpose.msra.mxu0 %v5698
        %5727 = vmatpush.xpose.msra.mxu0 %v5695
        %5728 = vmatpush.xpose.msra.mxu0 %v5692
        %5729 = vmatpush.xpose.msra.mxu0 %v5689
        %5730 = vmatpush.xpose.msra.mxu0 %v5686
        %5731 = vmatpush.xpose.msra.mxu0 %v5683
        %5732 = vmatpush.xpose.msra.mxu0 %v5680
        %5733 = vmatpush.xpose.msra.mxu0 %v5677
        %5734 = vmatmul.f32.gmra.mxu0 %v5638
        %v5735 = vpop.f32.mrf.mxu0
        %v5736 = vadd.f32 0.0, %v5735
        %5737 = vmatmul.f32.gmra.mxu0 %v5641
        %v5738 = vpop.f32.mrf.mxu0
        %v5739 = vadd.f32 0.0, %v5738
        %5740 = vmatmul.f32.gmra.mxu0 %v5644
        %v5741 = vpop.f32.mrf.mxu0
        %v5742 = vadd.f32 0.0, %v5741
        %5743 = vmatmul.f32.gmra.mxu0 %v5647
        %v5744 = vpop.f32.mrf.mxu0
        %v5745 = vadd.f32 0.0, %v5744
        %5746 = vmatmul.f32.gmra.mxu0 %v5650
        %v5747 = vpop.f32.mrf.mxu0
        %v5748 = vadd.f32 0.0, %v5747
        %5749 = vmatmul.f32.gmra.mxu0 %v5653
        %v5750 = vpop.f32.mrf.mxu0
        %v5751 = vadd.f32 0.0, %v5750
        %5752 = vmatmul.f32.gmra.mxu0 %v5656
        %v5753 = vpop.f32.mrf.mxu0
        %v5754 = vadd.f32 0.0, %v5753
        %5755 = vmatmul.f32.gmra.mxu0 %v5659
        %v5756 = vpop.f32.mrf.mxu0
        %v5757 = vadd.f32 0.0, %v5756
        %5758 = vmatmul.f32.gmra.mxu0 %v5662
        %v5759 = vpop.f32.mrf.mxu0
        %v5760 = vadd.f32 0.0, %v5759
        %5761 = vmatmul.f32.gmra.mxu0 %v5665
        %v5762 = vpop.f32.mrf.mxu0
        %v5763 = vadd.f32 0.0, %v5762
        %5764 = vmatmul.f32.gmra.mxu0 %v5668
        %v5765 = vpop.f32.mrf.mxu0
        %v5766 = vadd.f32 0.0, %v5765
        %5767 = vmatmul.f32.gmra.mxu0 %v5671
        %v5768 = vpop.f32.mrf.mxu0
        %v5769 = vadd.f32 0.0, %v5768
        %5770 = vmatmul.f32.gmra.mxu0 %v5674
        %v5771 = vpop.f32.mrf.mxu0
        %v5772 = vadd.f32 0.0, %v5771
        %5773 = vdwg.mxu0
        %v5775 = vsel %vm477, %v5736, 0
        %v5778 = vsel %vm477, %v5739, 0
        %v5781 = vsel %vm477, %v5742, 0
        %v5784 = vsel %vm477, %v5745, 0
        %v5787 = vsel %vm477, %v5748, 0
        %v5790 = vsel %vm477, %v5751, 0
        %v5793 = vsel %vm477, %v5754, 0
        %v5796 = vsel %vm477, %v5757, 0
        %v5799 = vsel %vm477, %v5760, 0
        %v5802 = vsel %vm477, %v5763, 0
        %v5805 = vsel %vm477, %v5766, 0
        %v5808 = vsel %vm477, %v5769, 0
        %v5811 = vsel %vm477, %v5772, 0
        %5813 = vmatpush.msra.mxu0 0.0
        %5814 = vmatpush.msra.mxu0 0.0
        %5815 = vmatpush.msra.mxu0 %v2774
        %5816 = vmatpush.msra.mxu0 %v2768
        %5817 = vmatpush.msra.mxu0 %v2767
        %5818 = vmatpush.msra.mxu0 %v2766
        %5819 = vmatpush.msra.mxu0 %v2765
        %5820 = vmatpush.msra.mxu0 %v2764
        %5821 = vmatpush.msra.mxu0 %v2763
        %5822 = vmatpush.msra.mxu0 %v2762
        %5823 = vmatpush.msra.mxu0 %v2761
        %5824 = vmatpush.msra.mxu0 %v2760
        %5825 = vmatpush.msra.mxu0 %v2759
        %5826 = vmatpush.msra.mxu0 %v2758
        %5827 = vmatpush.msra.mxu0 %v2757
        %5828 = vmatpush.msra.mxu0 %v2756
        %5829 = vmatmul.f32.gmra.mxu0 %v5775
        %v5830 = vpop.f32.mrf.mxu0
        %v5831 = vadd.f32 0.0, %v5830
        %5832 = vmatmul.f32.gmra.mxu0 %v5778
        %v5833 = vpop.f32.mrf.mxu0
        %v5834 = vadd.f32 0.0, %v5833
        %5835 = vmatmul.f32.gmra.mxu0 %v5781
        %v5836 = vpop.f32.mrf.mxu0
        %v5837 = vadd.f32 0.0, %v5836
        %5838 = vmatmul.f32.gmra.mxu0 %v5784
        %v5839 = vpop.f32.mrf.mxu0
        %v5840 = vadd.f32 0.0, %v5839
        %5841 = vmatmul.f32.gmra.mxu0 %v5787
        %v5842 = vpop.f32.mrf.mxu0
        %v5843 = vadd.f32 0.0, %v5842
        %5844 = vmatmul.f32.gmra.mxu0 %v5790
        %v5845 = vpop.f32.mrf.mxu0
        %v5846 = vadd.f32 0.0, %v5845
        %5847 = vmatmul.f32.gmra.mxu0 %v5793
        %v5848 = vpop.f32.mrf.mxu0
        %v5849 = vadd.f32 0.0, %v5848
        %5850 = vmatmul.f32.gmra.mxu0 %v5796
        %v5851 = vpop.f32.mrf.mxu0
        %v5852 = vadd.f32 0.0, %v5851
        %5853 = vmatmul.f32.gmra.mxu0 %v5799
        %v5854 = vpop.f32.mrf.mxu0
        %v5855 = vadd.f32 0.0, %v5854
        %5856 = vmatmul.f32.gmra.mxu0 %v5802
        %v5857 = vpop.f32.mrf.mxu0
        %v5858 = vadd.f32 0.0, %v5857
        %5859 = vmatmul.f32.gmra.mxu0 %v5805
        %v5860 = vpop.f32.mrf.mxu0
        %v5861 = vadd.f32 0.0, %v5860
        %5862 = vmatmul.f32.gmra.mxu0 %v5808
        %v5863 = vpop.f32.mrf.mxu0
        %v5864 = vadd.f32 0.0, %v5863
        %5865 = vmatmul.f32.gmra.mxu0 %v5811
        %v5866 = vpop.f32.mrf.mxu0
        %v5867 = vadd.f32 0.0, %v5866
        %5868 = vdwg.mxu0
        %v5869 = vadd.f32 %v3801, %v5831
        %v5870 = vadd.f32 %v3802, %v5834
        %v5871 = vadd.f32 %v3803, %v5837
        %v5872 = vadd.f32 %v3804, %v5840
        %v5873 = vadd.f32 %v3805, %v5843
        %v5874 = vadd.f32 %v3806, %v5846
        %v5875 = vadd.f32 %v3807, %v5849
        %v5876 = vadd.f32 %v3808, %v5852
        %v5877 = vadd.f32 %v3809, %v5855
        %v5878 = vadd.f32 %v3810, %v5858
        %v5879 = vadd.f32 %v3811, %v5861
        %v5880 = vadd.f32 %v3812, %v5864
        %v5881 = vadd.f32 %v3813, %v5867
        %5882 = vst.msk [vmem:[%s433] sm:$0xff] %vm2622, %v5869
        %5883 = vst.msk [vmem:[%s433 + $0x8] sm:$0xff] %vm2622, %v5870
        %5884 = vst.msk [vmem:[%s433 + $0x10] sm:$0xff] %vm2622, %v5871
        %5885 = vst.msk [vmem:[%s433 + $0x18] sm:$0xff] %vm2622, %v5872
        %5886 = vst.msk [vmem:[%s433 + $0x20] sm:$0xff] %vm2622, %v5873
        %5887 = vst.msk [vmem:[%s433 + $0x28] sm:$0xff] %vm2622, %v5874
        %5888 = vst.msk [vmem:[%s433 + $0x30] sm:$0xff] %vm2622, %v5875
        %5889 = vst.msk [vmem:[%s433 + $0x38] sm:$0xff] %vm2622, %v5876
        %5890 = vst.msk [vmem:[%s433 + $0x40] sm:$0xff] %vm2622, %v5877
        %5891 = vst.msk [vmem:[%s433 + $0x48] sm:$0xff] %vm2622, %v5878
        %5892 = vst.msk [vmem:[%s433 + $0x50] sm:$0xff] %vm2622, %v5879
        %5893 = vst.msk [vmem:[%s433 + $0x58] sm:$0xff] %vm2622, %v5880
        %vm5894 = vcmask 158720
        %5895 = vst.msk [vmem:[%s433 + $0x60] sm:$0xf] %vm5894, %v5881
        %p5896 = scmp.lt.s32.totalorder %s23, 3
        %s5897 = scalar_select %p5896, %s23, 3
        %s5898 = smul.addr %s5897, 13
        %s5899 = smul.addr %s5898, 8
        %s5900 = scalar_lea.vmem %s9, %s5899
        // Predicated region
        $region77: #{fc_hgnn_forward.2} parent=55 // pred_check
          %p5901 = pneg %p240
        $region78: #{fc_hgnn_forward.2} parent=55 // pred_check_branch
          %5903 = sbr.rel (%p5901) target = $region80
        $region79: #{fc_hgnn_forward.2} parent=55 // pred_region
          _
        $region80: #{fc_hgnn_forward.2} parent=55 // pred_fallthru
          _
      $region56: #{fc_hgnn_forward.2} parent=5 // pred_fallthru
        _
      %p5904 = scmp.le.s32.totalorder 2, %s18
      // Predicated region
      $region81: #{fc_hgnn_forward.2} parent=5 // pred_check
        %p5905 = pneg %p5904
      $region82: #{fc_hgnn_forward.2} parent=5 // pred_check_branch
        %5907 = sbr.rel (%p5905) target = $region84
      $region83: #{fc_hgnn_forward.2} parent=5 // pred_region
        %s5908 = ssub.s32 %s18, 2
        // Predicated region
        $region85: #{fc_hgnn_forward.2} parent=83 // pred_check
          %p5909 = pneg %p246
        $region86: #{fc_hgnn_forward.2} parent=83 // pred_check_branch
          %5911 = sbr.rel (%p5909) target = $region88
        $region87: #{fc_hgnn_forward.2} parent=83 // pred_region
          %p5912 = scmp.lt.s32.totalorder %s24, 3
          %s5913 = scalar_select %p5912, %s24, 3
          %s5914 = smul.addr %s5913, 13
          %s5915 = smul.addr %s5914, 8
          %s5916 = scalar_lea.vmem %s9, %s5915
        $region88: #{fc_hgnn_forward.2} parent=83 // pred_fallthru
          _
      $region84: #{fc_hgnn_forward.2} parent=5 // pred_fallthru
        _
    $region6: #{fc_hgnn_forward.2} parent=1 // loop_footer
      %s22 = sadd.s32 1, %s18
    $region7: #{fc_hgnn_forward.2} parent=1 // loop_footer_branch
      %17 = sbr.rel target = $region3
    $region8: #{fc_hgnn_forward.2} parent=1 // loop_exit
      _
    %5917 = vsyncpa [#allocation3], 1
    %s5918 = scalar_lea.sflag [#allocation3], 1
    %5919 = vsyncpa %s5918, 1
    %5920 = vsyncpa [#allocation5], 1
    %5921 = vsyncpa [#allocation8], 1

</llo_original>
